<compile_context>
chip_gen: v7x
topology: tpu7x:2x2x1
jax: 0.10.0
libtpu: 0.0.40
codegen_flags: <defaults>
</compile_context>

<pallas_src>
import functools

import jax
import jax.numpy as jnp
from jax import lax
from jax.experimental import pallas as pl
from jax.experimental.pallas import tpu as pltpu


# ----------------------------------------------------------------------------
# Pallas kernels
# ----------------------------------------------------------------------------

def _conv_block_kernel(p_ref, w_ref, o_ref, *, use_instance_norm, negative_slope):
    """One batch element per grid step.

    p_ref: (1, P, K)  im2col patches for this sample (P = OH*OW, K = KH*KW*Ci)
    w_ref: (K, Co)    reshaped conv weights (shared across the grid)
    o_ref: (1, P, Co) conv output after (optional) InstanceNorm + LeakyReLU
    """
    x = p_ref[0].astype(jnp.float32)                        # (P, K)
    w = w_ref[...].astype(jnp.float32)                      # (K, Co)
    y = jnp.dot(x, w, preferred_element_type=jnp.float32)   # (P, Co) on the MXU

    if use_instance_norm:
        # InstanceNorm2d(affine=False): per-sample, per-channel stats over the
        # P spatial positions; biased variance, eps = 1e-5 (PyTorch defaults).
        mean = jnp.mean(y, axis=0, keepdims=True)                      # (1, Co)
        var = jnp.mean(jnp.square(y - mean), axis=0, keepdims=True)    # (1, Co)
        y = (y - mean) * lax.rsqrt(var + 1e-5)

    # LeakyReLU(negative_slope)
    y = jnp.where(y >= 0.0, y, negative_slope * y)
    o_ref[0] = y.astype(o_ref.dtype)


def _dense_sigmoid_kernel(x_ref, w_ref, b_ref, o_ref):
    """Fused y = sigmoid(x @ W + b). Used for conv5 (b = 0) and the mixers."""
    x = x_ref[...].astype(jnp.float32)                       # (M, K)
    w = w_ref[...].astype(jnp.float32)                       # (K, Dout)
    y = jnp.dot(x, w, preferred_element_type=jnp.float32)    # (M, Dout)
    y = y + b_ref[...].astype(jnp.float32)                   # (1, Dout) broadcast
    o_ref[...] = (1.0 / (1.0 + jnp.exp(-y))).astype(o_ref.dtype)


# ----------------------------------------------------------------------------
# Wrappers (layout plumbing + pallas_call)
# ----------------------------------------------------------------------------

def _im2col(x, ksize, stride, pad):
    """x: (N, H, W, C) -> patches (N, OH*OW, ksize*ksize*C). Pure data layout."""
    N, H, W, C = x.shape
    if pad > 0:
        x = jnp.pad(x, ((0, 0), (pad, pad), (pad, pad), (0, 0)))
    Hp, Wp = H + 2 * pad, W + 2 * pad
    OH = (Hp - ksize) // stride + 1
    OW = (Wp - ksize) // stride + 1
    cols = []
    for kh in range(ksize):
        for kw in range(ksize):
            cols.append(x[:, kh:kh + stride * OH:stride,
                          kw:kw + stride * OW:stride, :])    # (N, OH, OW, C)
    patches = jnp.stack(cols, axis=3)                        # (N, OH, OW, k*k, C)
    return patches.reshape(N, OH * OW, ksize * ksize * C), OH, OW


def conv_in_lrelu(x_nhwc, w_hwio, *, stride, pad, use_instance_norm,
                  negative_slope=0.2):
    """Conv2d(bias=False) [+ InstanceNorm2d] + LeakyReLU.  NHWC in / NHWC out."""
    KH, KW, Ci, Co = w_hwio.shape
    patches, OH, OW = _im2col(x_nhwc, KH, stride, pad)
    N, P, K = patches.shape
    w2d = w_hwio.reshape(KH * KW * Ci, Co)                   # (kh, kw, ci) -> rows

    kernel = functools.partial(_conv_block_kernel,
                               use_instance_norm=use_instance_norm,
                               negative_slope=negative_slope)
    out = pl.pallas_call(
        kernel,
        out_shape=jax.ShapeDtypeStruct((N, P, Co), jnp.float32),
        grid_spec=pl.GridSpec(
            grid=(N,),
            in_specs=[
                pl.BlockSpec((1, P, K), lambda n: (n, 0, 0)),   # one sample / step
                pl.BlockSpec((K, Co), lambda n: (0, 0)),        # shared weights
            ],
            out_specs=pl.BlockSpec((1, P, Co), lambda n: (n, 0, 0)),
        ),
        compiler_params=pltpu.CompilerParams(
            dimension_semantics=("parallel",),
        ),
    )(patches, w2d)
    return out.reshape(N, OH, OW, Co)


def dense_sigmoid(x, w, b):
    """sigmoid(x @ w + b) with x:(M,K), w:(K,Dout), b:(Dout,)."""
    M, K = x.shape
    Dout = w.shape[1]
    b2 = b.reshape(1, Dout).astype(jnp.float32)
    return pl.pallas_call(
        _dense_sigmoid_kernel,
        out_shape=jax.ShapeDtypeStruct((M, Dout), jnp.float32),
        grid_spec=pl.GridSpec(
            grid=(1,),
            in_specs=[
                pl.BlockSpec((M, K), lambda i: (0, 0)),
                pl.BlockSpec((K, Dout), lambda i: (0, 0)),
                pl.BlockSpec((1, Dout), lambda i: (0, 0)),
            ],
            out_specs=pl.BlockSpec((M, Dout), lambda i: (0, 0)),
        ),
        compiler_params=pltpu.CompilerParams(
            dimension_semantics=("arbitrary",),
        ),
    )(x, w, b2)


def encoders_intrinsic_forward(x_nchw, params):
    """Forward of Encoders_Intrinsic. Returns (z, zShade, zTexture, zWarp)."""
    x = jnp.transpose(x_nchw, (0, 2, 3, 1)).astype(jnp.float32)   # NCHW -> NHWC

    h = conv_in_lrelu(x, params["conv1"], stride=2, pad=1, use_instance_norm=False)
    h = conv_in_lrelu(h, params["conv2"], stride=2, pad=1, use_instance_norm=True)
    h = conv_in_lrelu(h, params["conv3"], stride=2, pad=1, use_instance_norm=True)
    h = conv_in_lrelu(h, params["conv4"], stride=2, pad=1, use_instance_norm=True)

    # Final Conv2d(8nf, latent, 4, 4, 0) consumes the whole 4x4 map -> dense layer.
    N, H4, W4, C4 = h.shape
    feats = h.reshape(N, H4 * W4 * C4)                       # (kh, kw, ci) order
    w5 = params["conv5"].reshape(H4 * W4 * C4, -1)
    latent = w5.shape[1]
    z = dense_sigmoid(feats, w5, jnp.zeros((latent,), jnp.float32))  # + .view(-1, D)

    z_shade = dense_sigmoid(z, params["ws"], params["bs"])    # zSmixer
    z_texture = dense_sigmoid(z, params["wt"], params["bt"])  # zTmixer
    z_warp = dense_sigmoid(z, params["ww"], params["bw"])     # zWmixer
    return z, z_shade, z_texture, z_warp


# ----------------------------------------------------------------------------
# Pure-JAX reference (for correctness check only)
# ----------------------------------------------------------------------------

def _reference_forward(x_nchw, params):
    x = jnp.transpose(x_nchw, (0, 2, 3, 1)).astype(jnp.float32)

    def conv(h, w, stride, pad):
        return lax.conv_general_dilated(
            h, w, window_strides=(stride, stride),
            padding=((pad, pad), (pad, pad)),
            dimension_numbers=("NHWC", "HWIO", "NHWC"),
            precision=lax.Precision.HIGHEST)

    def inorm(h):
        mean = jnp.mean(h, axis=(1, 2), keepdims=True)
        var = jnp.mean(jnp.square(h - mean), axis=(1, 2), keepdims=True)
        return (h - mean) / jnp.sqrt(var + 1e-5)

    def lrelu(h):
        return jnp.where(h >= 0, h, 0.2 * h)

    def sig(h):
        return 1.0 / (1.0 + jnp.exp(-h))

    h = lrelu(conv(x, params["conv1"], 2, 1))
    h = lrelu(inorm(conv(h, params["conv2"], 2, 1)))
    h = lrelu(inorm(conv(h, params["conv3"], 2, 1)))
    h = lrelu(inorm(conv(h, params["conv4"], 2, 1)))
    h = conv(h, params["conv5"], 4, 0)                        # (N, 1, 1, latent)
    z = sig(h.reshape(h.shape[0], -1))
    zs = sig(jnp.dot(z, params["ws"], precision=lax.Precision.HIGHEST) + params["bs"])
    zt = sig(jnp.dot(z, params["wt"], precision=lax.Precision.HIGHEST) + params["bt"])
    zw = sig(jnp.dot(z, params["ww"], precision=lax.Precision.HIGHEST) + params["bw"])
    return z, zs, zt, zw


# ----------------------------------------------------------------------------
# Demo / self-check
# ----------------------------------------------------------------------------

if __name__ == "__main__":
    key = jax.random.PRNGKey(0)
    # Small config consistent with the module: the 5-layer stride pattern
    # (2,2,2,2 then 4/4/0) implies a 64x64 input; defaults Cin=1, nf=32, latent=128.
    N, Cin, Hin, Win = 2, 1, 64, 64
    nf, latent = 32, 128
    sdim, tdim, wdim = 16, 16, 64

    keys = jax.random.split(key, 12)
    s = 0.05
    params = {
        "conv1": jax.random.normal(keys[0], (4, 4, Cin, nf), jnp.float32) * s,
        "conv2": jax.random.normal(keys[1], (4, 4, nf, nf * 2), jnp.float32) * s,
        "conv3": jax.random.normal(keys[2], (4, 4, nf * 2, nf * 4), jnp.float32) * s,
        "conv4": jax.random.normal(keys[3], (4, 4, nf * 4, nf * 8), jnp.float32) * s,
        "conv5": jax.random.normal(keys[4], (4, 4, nf * 8, latent), jnp.float32) * s,
        "ws": jax.random.normal(keys[5], (latent, sdim), jnp.float32) * s,
        "bs": jax.random.normal(keys[6], (sdim,), jnp.float32) * s,
        "wt": jax.random.normal(keys[7], (latent, tdim), jnp.float32) * s,
        "bt": jax.random.normal(keys[8], (tdim,), jnp.float32) * s,
        "ww": jax.random.normal(keys[9], (latent, wdim), jnp.float32) * s,
        "bw": jax.random.normal(keys[10], (wdim,), jnp.float32) * s,
    }
    x = jax.random.normal(keys[11], (N, Cin, Hin, Win), jnp.float32)

    fwd = jax.jit(encoders_intrinsic_forward)
    z, zs, zt, zw = jax.block_until_ready(fwd(x, params))

    rz, rzs, rzt, rzw = _reference_forward(x, params)
    for got, ref in ((z, rz), (zs, rzs), (zt, rzt), (zw, rzw)):
        assert got.shape == ref.shape, (got.shape, ref.shape)
        assert jnp.allclose(got, ref, rtol=2e-2, atol=2e-2), (
            float(jnp.max(jnp.abs(got - ref))))

    print("KERNEL_OK")
</pallas_src>

<mosaic_0001>
module attributes {stable_mosaic.version = 11 : i64} {
  func.func @_conv_block_kernel(%arg0: i32, %arg1: memref<1x1024x16xf32, #tpu.memory_space<vmem>>, %arg2: memref<16x32xf32, #tpu.memory_space<vmem>>, %arg3: memref<1x1024x32xf32, #tpu.memory_space<vmem>>) attributes {dimension_semantics = [#tpu.dimension_semantics<parallel>], iteration_bounds = array<i64: 2>, scalar_prefetch = 0 : i64, scratch_operands = 0 : i64, tpu.core_type = #tpu.core_type<tc>, window_params = [{transform_indices = @transform_0, window_bounds = array<i64: 1, 1024, 16>}, {pipeline_mode = #tpu.pipeline_mode<synchronous>, transform_indices = @transform_1, window_bounds = array<i64: 16, 32>}, {transform_indices = @transform_2, window_bounds = array<i64: 1, 1024, 32>}]} {
    %c0 = arith.constant 0 : index
    %c0_0 = arith.constant 0 : index
    %c0_1 = arith.constant 0 : index
    %0 = vector.load %arg1[%c0, %c0_0, %c0_1] : memref<1x1024x16xf32, #tpu.memory_space<vmem>>, vector<1x1024x16xf32>
    %1 = vector.shape_cast %0 : vector<1x1024x16xf32> to vector<1024x16xf32>
    %c0_2 = arith.constant 0 : index
    %c0_3 = arith.constant 0 : index
    %2 = vector.load %arg2[%c0_2, %c0_3] : memref<16x32xf32, #tpu.memory_space<vmem>>, vector<16x32xf32>
    %cst = arith.constant dense<0.000000e+00> : vector<1024x32xf32>
    %3 = tpu.matmul %1, %2, %cst {dimension_numbers = #tpu.dot_dimension_numbers<[1], [0], [0], [1], [0, 0, 1, 1], [], []>} : vector<1024x16xf32>, vector<16x32xf32>, vector<1024x32xf32> -> vector<1024x32xf32>
    %cst_4 = arith.constant 0.000000e+00 : f32
    %4 = vector.broadcast %cst_4 : f32 to vector<1024x32xf32>
    %5 = arith.cmpf oge, %3, %4 : vector<1024x32xf32>
    %cst_5 = arith.constant 2.000000e-01 : f32
    %6 = vector.broadcast %cst_5 : f32 to vector<1024x32xf32>
    %7 = arith.mulf %6, %3 : vector<1024x32xf32>
    %8 = arith.select %5, %3, %7 : vector<1024x32xi1>, vector<1024x32xf32>
    %c0_6 = arith.constant 0 : index
    %c0_7 = arith.constant 0 : index
    %c0_8 = arith.constant 0 : index
    %9 = vector.load %arg3[%c0_6, %c0_7, %c0_8] : memref<1x1024x32xf32, #tpu.memory_space<vmem>>, vector<1x1024x32xf32>
    %10 = vector.shape_cast %9 : vector<1x1024x32xf32> to vector<1024x32xf32>
    %11 = vector.shape_cast %8 : vector<1024x32xf32> to vector<1x1024x32xf32>
    tpu.vector_store %arg3[%c0_6, %c0_7, %c0_8], %11 {strides = array<i32>} : memref<1x1024x32xf32, #tpu.memory_space<vmem>>, vector<1x1024x32xf32>,
    return
  }
  func.func @transform_0(%arg0: i32) -> (i32, i32, i32) {
    %c0_i32 = arith.constant 0 : i32
    %c0_i32_0 = arith.constant 0 : i32
    %c0_i32_1 = arith.constant 0 : i32
    return %arg0, %c0_i32, %c0_i32_0 : i32, i32, i32
  }
  func.func @transform_1(%arg0: i32) -> (i32, i32) {
    %c0_i32 = arith.constant 0 : i32
    %c0_i32_0 = arith.constant 0 : i32
    %c0_i32_1 = arith.constant 0 : i32
    return %c0_i32, %c0_i32_0 : i32, i32
  }
  func.func @transform_2(%arg0: i32) -> (i32, i32, i32) {
    %c0_i32 = arith.constant 0 : i32
    %c0_i32_0 = arith.constant 0 : i32
    %c0_i32_1 = arith.constant 0 : i32
    return %arg0, %c0_i32, %c0_i32_0 : i32, i32, i32
  }
}

module attributes {stable_mosaic.version = 11 : i64} {
  func.func @_conv_block_kernel(%arg0: i32, %arg1: memref<1x256x512xf32, #tpu.memory_space<vmem>>, %arg2: memref<512x64xf32, #tpu.memory_space<vmem>>, %arg3: memref<1x256x64xf32, #tpu.memory_space<vmem>>) attributes {dimension_semantics = [#tpu.dimension_semantics<parallel>], iteration_bounds = array<i64: 2>, scalar_prefetch = 0 : i64, scratch_operands = 0 : i64, tpu.core_type = #tpu.core_type<tc>, window_params = [{transform_indices = @transform_0, window_bounds = array<i64: 1, 256, 512>}, {pipeline_mode = #tpu.pipeline_mode<synchronous>, transform_indices = @transform_1, window_bounds = array<i64: 512, 64>}, {transform_indices = @transform_2, window_bounds = array<i64: 1, 256, 64>}]} {
    %c0 = arith.constant 0 : index
    %c0_0 = arith.constant 0 : index
    %c0_1 = arith.constant 0 : index
    %0 = vector.load %arg1[%c0, %c0_0, %c0_1] : memref<1x256x512xf32, #tpu.memory_space<vmem>>, vector<1x256x512xf32>
    %1 = vector.shape_cast %0 : vector<1x256x512xf32> to vector<256x512xf32>
    %c0_2 = arith.constant 0 : index
    %c0_3 = arith.constant 0 : index
    %2 = vector.load %arg2[%c0_2, %c0_3] : memref<512x64xf32, #tpu.memory_space<vmem>>, vector<512x64xf32>
    %cst = arith.constant dense<0.000000e+00> : vector<256x64xf32>
    %3 = tpu.matmul %1, %2, %cst {dimension_numbers = #tpu.dot_dimension_numbers<[1], [0], [0], [1], [0, 0, 1, 1], [], []>} : vector<256x512xf32>, vector<512x64xf32>, vector<256x64xf32> -> vector<256x64xf32>
    %cst_4 = arith.constant dense<0.000000e+00> : vector<64xf32>
    %4 = vector.multi_reduction <add>, %3, %cst_4 [0] : vector<256x64xf32> to vector<64xf32>
    %5 = vector.shape_cast %4 : vector<64xf32> to vector<1x64xf32>
    %cst_5 = arith.constant 2.560000e+02 : f32
    %6 = vector.broadcast %cst_5 : f32 to vector<1x64xf32>
    %7 = arith.divf %5, %6 : vector<1x64xf32>
    %8 = vector.broadcast %7 : vector<1x64xf32> to vector<256x64xf32>
    %9 = arith.subf %3, %8 : vector<256x64xf32>
    %10 = arith.mulf %9, %9 : vector<256x64xf32>
    %cst_6 = arith.constant dense<0.000000e+00> : vector<64xf32>
    %11 = vector.multi_reduction <add>, %10, %cst_6 [0] : vector<256x64xf32> to vector<64xf32>
    %12 = vector.shape_cast %11 : vector<64xf32> to vector<1x64xf32>
    %cst_7 = arith.constant 2.560000e+02 : f32
    %13 = vector.broadcast %cst_7 : f32 to vector<1x64xf32>
    %14 = arith.divf %12, %13 : vector<1x64xf32>
    %15 = vector.broadcast %7 : vector<1x64xf32> to vector<256x64xf32>
    %16 = arith.subf %3, %15 : vector<256x64xf32>
    %cst_8 = arith.constant 9.99999974E-6 : f32
    %17 = vector.broadcast %cst_8 : f32 to vector<1x64xf32>
    %18 = arith.addf %14, %17 : vector<1x64xf32>
    %19 = math.rsqrt %18 : vector<1x64xf32>
    %20 = vector.broadcast %19 : vector<1x64xf32> to vector<256x64xf32>
    %21 = arith.mulf %16, %20 : vector<256x64xf32>
    %cst_9 = arith.constant 0.000000e+00 : f32
    %22 = vector.broadcast %cst_9 : f32 to vector<256x64xf32>
    %23 = arith.cmpf oge, %21, %22 : vector<256x64xf32>
    %cst_10 = arith.constant 2.000000e-01 : f32
    %24 = vector.broadcast %cst_10 : f32 to vector<256x64xf32>
    %25 = arith.mulf %24, %21 : vector<256x64xf32>
    %26 = arith.select %23, %21, %25 : vector<256x64xi1>, vector<256x64xf32>
    %c0_11 = arith.constant 0 : index
    %c0_12 = arith.constant 0 : index
    %c0_13 = arith.constant 0 : index
    %27 = vector.load %arg3[%c0_11, %c0_12, %c0_13] : memref<1x256x64xf32, #tpu.memory_space<vmem>>, vector<1x256x64xf32>
    %28 = vector.shape_cast %27 : vector<1x256x64xf32> to vector<256x64xf32>
    %29 = vector.shape_cast %26 : vector<256x64xf32> to vector<1x256x64xf32>
    tpu.vector_store %arg3[%c0_11, %c0_12, %c0_13], %29 {strides = array<i32>} : memref<1x256x64xf32, #tpu.memory_space<vmem>>, vector<1x256x64xf32>,
    return
  }
  func.func @transform_0(%arg0: i32) -> (i32, i32, i32) {
    %c0_i32 = arith.constant 0 : i32
    %c0_i32_0 = arith.constant 0 : i32
    %c0_i32_1 = arith.constant 0 : i32
    return %arg0, %c0_i32, %c0_i32_0 : i32, i32, i32
  }
  func.func @transform_1(%arg0: i32) -> (i32, i32) {
    %c0_i32 = arith.constant 0 : i32
    %c0_i32_0 = arith.constant 0 : i32
    %c0_i32_1 = arith.constant 0 : i32
    return %c0_i32, %c0_i32_0 : i32, i32
  }
  func.func @transform_2(%arg0: i32) -> (i32, i32, i32) {
    %c0_i32 = arith.constant 0 : i32
    %c0_i32_0 = arith.constant 0 : i32
    %c0_i32_1 = arith.constant 0 : i32
    return %arg0, %c0_i32, %c0_i32_0 : i32, i32, i32
  }
}

module attributes {stable_mosaic.version = 11 : i64} {
  func.func @_conv_block_kernel(%arg0: i32, %arg1: memref<1x64x1024xf32, #tpu.memory_space<vmem>>, %arg2: memref<1024x128xf32, #tpu.memory_space<vmem>>, %arg3: memref<1x64x128xf32, #tpu.memory_space<vmem>>) attributes {dimension_semantics = [#tpu.dimension_semantics<parallel>], iteration_bounds = array<i64: 2>, scalar_prefetch = 0 : i64, scratch_operands = 0 : i64, tpu.core_type = #tpu.core_type<tc>, window_params = [{transform_indices = @transform_0, window_bounds = array<i64: 1, 64, 1024>}, {pipeline_mode = #tpu.pipeline_mode<synchronous>, transform_indices = @transform_1, window_bounds = array<i64: 1024, 128>}, {transform_indices = @transform_2, window_bounds = array<i64: 1, 64, 128>}]} {
    %c0 = arith.constant 0 : index
    %c0_0 = arith.constant 0 : index
    %c0_1 = arith.constant 0 : index
    %0 = vector.load %arg1[%c0, %c0_0, %c0_1] : memref<1x64x1024xf32, #tpu.memory_space<vmem>>, vector<1x64x1024xf32>
    %1 = vector.shape_cast %0 : vector<1x64x1024xf32> to vector<64x1024xf32>
    %c0_2 = arith.constant 0 : index
    %c0_3 = arith.constant 0 : index
    %2 = vector.load %arg2[%c0_2, %c0_3] : memref<1024x128xf32, #tpu.memory_space<vmem>>, vector<1024x128xf32>
    %cst = arith.constant dense<0.000000e+00> : vector<64x128xf32>
    %3 = tpu.matmul %1, %2, %cst {dimension_numbers = #tpu.dot_dimension_numbers<[1], [0], [0], [1], [0, 0, 1, 1], [], []>} : vector<64x1024xf32>, vector<1024x128xf32>, vector<64x128xf32> -> vector<64x128xf32>
    %cst_4 = arith.constant dense<0.000000e+00> : vector<128xf32>
    %4 = vector.multi_reduction <add>, %3, %cst_4 [0] : vector<64x128xf32> to vector<128xf32>
    %5 = vector.shape_cast %4 : vector<128xf32> to vector<1x128xf32>
    %cst_5 = arith.constant 6.400000e+01 : f32
    %6 = vector.broadcast %cst_5 : f32 to vector<1x128xf32>
    %7 = arith.divf %5, %6 : vector<1x128xf32>
    %8 = vector.broadcast %7 : vector<1x128xf32> to vector<64x128xf32>
    %9 = arith.subf %3, %8 : vector<64x128xf32>
    %10 = arith.mulf %9, %9 : vector<64x128xf32>
    %cst_6 = arith.constant dense<0.000000e+00> : vector<128xf32>
    %11 = vector.multi_reduction <add>, %10, %cst_6 [0] : vector<64x128xf32> to vector<128xf32>
    %12 = vector.shape_cast %11 : vector<128xf32> to vector<1x128xf32>
    %cst_7 = arith.constant 6.400000e+01 : f32
    %13 = vector.broadcast %cst_7 : f32 to vector<1x128xf32>
    %14 = arith.divf %12, %13 : vector<1x128xf32>
    %15 = vector.broadcast %7 : vector<1x128xf32> to vector<64x128xf32>
    %16 = arith.subf %3, %15 : vector<64x128xf32>
    %cst_8 = arith.constant 9.99999974E-6 : f32
    %17 = vector.broadcast %cst_8 : f32 to vector<1x128xf32>
    %18 = arith.addf %14, %17 : vector<1x128xf32>
    %19 = math.rsqrt %18 : vector<1x128xf32>
    %20 = vector.broadcast %19 : vector<1x128xf32> to vector<64x128xf32>
    %21 = arith.mulf %16, %20 : vector<64x128xf32>
    %cst_9 = arith.constant 0.000000e+00 : f32
    %22 = vector.broadcast %cst_9 : f32 to vector<64x128xf32>
    %23 = arith.cmpf oge, %21, %22 : vector<64x128xf32>
    %cst_10 = arith.constant 2.000000e-01 : f32
    %24 = vector.broadcast %cst_10 : f32 to vector<64x128xf32>
    %25 = arith.mulf %24, %21 : vector<64x128xf32>
    %26 = arith.select %23, %21, %25 : vector<64x128xi1>, vector<64x128xf32>
    %c0_11 = arith.constant 0 : index
    %c0_12 = arith.constant 0 : index
    %c0_13 = arith.constant 0 : index
    %27 = vector.load %arg3[%c0_11, %c0_12, %c0_13] : memref<1x64x128xf32, #tpu.memory_space<vmem>>, vector<1x64x128xf32>
    %28 = vector.shape_cast %27 : vector<1x64x128xf32> to vector<64x128xf32>
    %29 = vector.shape_cast %26 : vector<64x128xf32> to vector<1x64x128xf32>
    tpu.vector_store %arg3[%c0_11, %c0_12, %c0_13], %29 {strides = array<i32>} : memref<1x64x128xf32, #tpu.memory_space<vmem>>, vector<1x64x128xf32>,
    return
  }
  func.func @transform_0(%arg0: i32) -> (i32, i32, i32) {
    %c0_i32 = arith.constant 0 : i32
    %c0_i32_0 = arith.constant 0 : i32
    %c0_i32_1 = arith.constant 0 : i32
    return %arg0, %c0_i32, %c0_i32_0 : i32, i32, i32
  }
  func.func @transform_1(%arg0: i32) -> (i32, i32) {
    %c0_i32 = arith.constant 0 : i32
    %c0_i32_0 = arith.constant 0 : i32
    %c0_i32_1 = arith.constant 0 : i32
    return %c0_i32, %c0_i32_0 : i32, i32
  }
  func.func @transform_2(%arg0: i32) -> (i32, i32, i32) {
    %c0_i32 = arith.constant 0 : i32
    %c0_i32_0 = arith.constant 0 : i32
    %c0_i32_1 = arith.constant 0 : i32
    return %arg0, %c0_i32, %c0_i32_0 : i32, i32, i32
  }
}

module attributes {stable_mosaic.version = 11 : i64} {
  func.func @_conv_block_kernel(%arg0: i32, %arg1: memref<1x16x2048xf32, #tpu.memory_space<vmem>>, %arg2: memref<2048x256xf32, #tpu.memory_space<vmem>>, %arg3: memref<1x16x256xf32, #tpu.memory_space<vmem>>) attributes {dimension_semantics = [#tpu.dimension_semantics<parallel>], iteration_bounds = array<i64: 2>, scalar_prefetch = 0 : i64, scratch_operands = 0 : i64, tpu.core_type = #tpu.core_type<tc>, window_params = [{transform_indices = @transform_0, window_bounds = array<i64: 1, 16, 2048>}, {pipeline_mode = #tpu.pipeline_mode<synchronous>, transform_indices = @transform_1, window_bounds = array<i64: 2048, 256>}, {transform_indices = @transform_2, window_bounds = array<i64: 1, 16, 256>}]} {
    %c0 = arith.constant 0 : index
    %c0_0 = arith.constant 0 : index
    %c0_1 = arith.constant 0 : index
    %0 = vector.load %arg1[%c0, %c0_0, %c0_1] : memref<1x16x2048xf32, #tpu.memory_space<vmem>>, vector<1x16x2048xf32>
    %1 = vector.shape_cast %0 : vector<1x16x2048xf32> to vector<16x2048xf32>
    %c0_2 = arith.constant 0 : index
    %c0_3 = arith.constant 0 : index
    %2 = vector.load %arg2[%c0_2, %c0_3] : memref<2048x256xf32, #tpu.memory_space<vmem>>, vector<2048x256xf32>
    %cst = arith.constant dense<0.000000e+00> : vector<16x256xf32>
    %3 = tpu.matmul %1, %2, %cst {dimension_numbers = #tpu.dot_dimension_numbers<[1], [0], [0], [1], [0, 0, 1, 1], [], []>} : vector<16x2048xf32>, vector<2048x256xf32>, vector<16x256xf32> -> vector<16x256xf32>
    %cst_4 = arith.constant dense<0.000000e+00> : vector<256xf32>
    %4 = vector.multi_reduction <add>, %3, %cst_4 [0] : vector<16x256xf32> to vector<256xf32>
    %5 = vector.shape_cast %4 : vector<256xf32> to vector<1x256xf32>
    %cst_5 = arith.constant 1.600000e+01 : f32
    %6 = vector.broadcast %cst_5 : f32 to vector<1x256xf32>
    %7 = arith.divf %5, %6 : vector<1x256xf32>
    %8 = vector.broadcast %7 : vector<1x256xf32> to vector<16x256xf32>
    %9 = arith.subf %3, %8 : vector<16x256xf32>
    %10 = arith.mulf %9, %9 : vector<16x256xf32>
    %cst_6 = arith.constant dense<0.000000e+00> : vector<256xf32>
    %11 = vector.multi_reduction <add>, %10, %cst_6 [0] : vector<16x256xf32> to vector<256xf32>
    %12 = vector.shape_cast %11 : vector<256xf32> to vector<1x256xf32>
    %cst_7 = arith.constant 1.600000e+01 : f32
    %13 = vector.broadcast %cst_7 : f32 to vector<1x256xf32>
    %14 = arith.divf %12, %13 : vector<1x256xf32>
    %15 = vector.broadcast %7 : vector<1x256xf32> to vector<16x256xf32>
    %16 = arith.subf %3, %15 : vector<16x256xf32>
    %cst_8 = arith.constant 9.99999974E-6 : f32
    %17 = vector.broadcast %cst_8 : f32 to vector<1x256xf32>
    %18 = arith.addf %14, %17 : vector<1x256xf32>
    %19 = math.rsqrt %18 : vector<1x256xf32>
    %20 = vector.broadcast %19 : vector<1x256xf32> to vector<16x256xf32>
    %21 = arith.mulf %16, %20 : vector<16x256xf32>
    %cst_9 = arith.constant 0.000000e+00 : f32
    %22 = vector.broadcast %cst_9 : f32 to vector<16x256xf32>
    %23 = arith.cmpf oge, %21, %22 : vector<16x256xf32>
    %cst_10 = arith.constant 2.000000e-01 : f32
    %24 = vector.broadcast %cst_10 : f32 to vector<16x256xf32>
    %25 = arith.mulf %24, %21 : vector<16x256xf32>
    %26 = arith.select %23, %21, %25 : vector<16x256xi1>, vector<16x256xf32>
    %c0_11 = arith.constant 0 : index
    %c0_12 = arith.constant 0 : index
    %c0_13 = arith.constant 0 : index
    %27 = vector.load %arg3[%c0_11, %c0_12, %c0_13] : memref<1x16x256xf32, #tpu.memory_space<vmem>>, vector<1x16x256xf32>
    %28 = vector.shape_cast %27 : vector<1x16x256xf32> to vector<16x256xf32>
    %29 = vector.shape_cast %26 : vector<16x256xf32> to vector<1x16x256xf32>
    tpu.vector_store %arg3[%c0_11, %c0_12, %c0_13], %29 {strides = array<i32>} : memref<1x16x256xf32, #tpu.memory_space<vmem>>, vector<1x16x256xf32>,
    return
  }
  func.func @transform_0(%arg0: i32) -> (i32, i32, i32) {
    %c0_i32 = arith.constant 0 : i32
    %c0_i32_0 = arith.constant 0 : i32
    %c0_i32_1 = arith.constant 0 : i32
    return %arg0, %c0_i32, %c0_i32_0 : i32, i32, i32
  }
  func.func @transform_1(%arg0: i32) -> (i32, i32) {
    %c0_i32 = arith.constant 0 : i32
    %c0_i32_0 = arith.constant 0 : i32
    %c0_i32_1 = arith.constant 0 : i32
    return %c0_i32, %c0_i32_0 : i32, i32
  }
  func.func @transform_2(%arg0: i32) -> (i32, i32, i32) {
    %c0_i32 = arith.constant 0 : i32
    %c0_i32_0 = arith.constant 0 : i32
    %c0_i32_1 = arith.constant 0 : i32
    return %arg0, %c0_i32, %c0_i32_0 : i32, i32, i32
  }
}

module attributes {stable_mosaic.version = 11 : i64} {
  func.func @_dense_sigmoid_kernel(%arg0: i32, %arg1: memref<2x4096xf32, #tpu.memory_space<vmem>>, %arg2: memref<4096x128xf32, #tpu.memory_space<vmem>>, %arg3: memref<1x128xf32, #tpu.memory_space<vmem>>, %arg4: memref<2x128xf32, #tpu.memory_space<vmem>>) attributes {dimension_semantics = [#tpu.dimension_semantics<arbitrary>], iteration_bounds = array<i64: 1>, scalar_prefetch = 0 : i64, scratch_operands = 0 : i64, tpu.core_type = #tpu.core_type<tc>, window_params = [{pipeline_mode = #tpu.pipeline_mode<synchronous>, transform_indices = @transform_0, window_bounds = array<i64: 2, 4096>}, {pipeline_mode = #tpu.pipeline_mode<synchronous>, transform_indices = @transform_1, window_bounds = array<i64: 4096, 128>}, {pipeline_mode = #tpu.pipeline_mode<synchronous>, transform_indices = @transform_2, window_bounds = array<i64: 1, 128>}, {pipeline_mode = #tpu.pipeline_mode<synchronous>, transform_indices = @transform_3, window_bounds = array<i64: 2, 128>}]} {
    %c0 = arith.constant 0 : index
    %c0_0 = arith.constant 0 : index
    %0 = vector.load %arg1[%c0, %c0_0] : memref<2x4096xf32, #tpu.memory_space<vmem>>, vector<2x4096xf32>
    %c0_1 = arith.constant 0 : index
    %c0_2 = arith.constant 0 : index
    %1 = vector.load %arg2[%c0_1, %c0_2] : memref<4096x128xf32, #tpu.memory_space<vmem>>, vector<4096x128xf32>
    %cst = arith.constant dense<0.000000e+00> : vector<2x128xf32>
    %2 = tpu.matmul %0, %1, %cst {dimension_numbers = #tpu.dot_dimension_numbers<[1], [0], [0], [1], [0, 0, 1, 1], [], []>} : vector<2x4096xf32>, vector<4096x128xf32>, vector<2x128xf32> -> vector<2x128xf32>
    %c0_3 = arith.constant 0 : index
    %c0_4 = arith.constant 0 : index
    %3 = vector.load %arg3[%c0_3, %c0_4] : memref<1x128xf32, #tpu.memory_space<vmem>>, vector<1x128xf32>
    %4 = vector.broadcast %3 : vector<1x128xf32> to vector<2x128xf32>
    %5 = arith.addf %2, %4 : vector<2x128xf32>
    %cst_5 = arith.constant 0.000000e+00 : f32
    %6 = vector.broadcast %cst_5 : f32 to vector<2x128xf32>
    %7 = arith.subf %6, %5 : vector<2x128xf32>
    %8 = math.exp %7 : vector<2x128xf32>
    %cst_6 = arith.constant 1.000000e+00 : f32
    %9 = vector.broadcast %cst_6 : f32 to vector<2x128xf32>
    %10 = arith.addf %9, %8 : vector<2x128xf32>
    %cst_7 = arith.constant 1.000000e+00 : f32
    %11 = vector.broadcast %cst_7 : f32 to vector<2x128xf32>
    %12 = arith.divf %11, %10 : vector<2x128xf32>
    %c0_8 = arith.constant 0 : index
    %c0_9 = arith.constant 0 : index
    %13 = vector.load %arg4[%c0_8, %c0_9] : memref<2x128xf32, #tpu.memory_space<vmem>>, vector<2x128xf32>
    tpu.vector_store %arg4[%c0_8, %c0_9], %12 {strides = array<i32>} : memref<2x128xf32, #tpu.memory_space<vmem>>, vector<2x128xf32>,
    return
  }
  func.func @transform_0(%arg0: i32) -> (i32, i32) {
    %c0_i32 = arith.constant 0 : i32
    %c0_i32_0 = arith.constant 0 : i32
    %c0_i32_1 = arith.constant 0 : i32
    return %c0_i32, %c0_i32_0 : i32, i32
  }
  func.func @transform_1(%arg0: i32) -> (i32, i32) {
    %c0_i32 = arith.constant 0 : i32
    %c0_i32_0 = arith.constant 0 : i32
    %c0_i32_1 = arith.constant 0 : i32
    return %c0_i32, %c0_i32_0 : i32, i32
  }
  func.func @transform_2(%arg0: i32) -> (i32, i32) {
    %c0_i32 = arith.constant 0 : i32
    %c0_i32_0 = arith.constant 0 : i32
    %c0_i32_1 = arith.constant 0 : i32
    return %c0_i32, %c0_i32_0 : i32, i32
  }
  func.func @transform_3(%arg0: i32) -> (i32, i32) {
    %c0_i32 = arith.constant 0 : i32
    %c0_i32_0 = arith.constant 0 : i32
    %c0_i32_1 = arith.constant 0 : i32
    return %c0_i32, %c0_i32_0 : i32, i32
  }
}

module attributes {stable_mosaic.version = 11 : i64} {
  func.func @_dense_sigmoid_kernel(%arg0: i32, %arg1: memref<2x128xf32, #tpu.memory_space<vmem>>, %arg2: memref<128x16xf32, #tpu.memory_space<vmem>>, %arg3: memref<1x16xf32, #tpu.memory_space<vmem>>, %arg4: memref<2x16xf32, #tpu.memory_space<vmem>>) attributes {dimension_semantics = [#tpu.dimension_semantics<arbitrary>], iteration_bounds = array<i64: 1>, scalar_prefetch = 0 : i64, scratch_operands = 0 : i64, tpu.core_type = #tpu.core_type<tc>, window_params = [{pipeline_mode = #tpu.pipeline_mode<synchronous>, transform_indices = @transform_0, window_bounds = array<i64: 2, 128>}, {pipeline_mode = #tpu.pipeline_mode<synchronous>, transform_indices = @transform_1, window_bounds = array<i64: 128, 16>}, {pipeline_mode = #tpu.pipeline_mode<synchronous>, transform_indices = @transform_2, window_bounds = array<i64: 1, 16>}, {pipeline_mode = #tpu.pipeline_mode<synchronous>, transform_indices = @transform_3, window_bounds = array<i64: 2, 16>}]} {
    %c0 = arith.constant 0 : index
    %c0_0 = arith.constant 0 : index
    %0 = vector.load %arg1[%c0, %c0_0] : memref<2x128xf32, #tpu.memory_space<vmem>>, vector<2x128xf32>
    %c0_1 = arith.constant 0 : index
    %c0_2 = arith.constant 0 : index
    %1 = vector.load %arg2[%c0_1, %c0_2] : memref<128x16xf32, #tpu.memory_space<vmem>>, vector<128x16xf32>
    %cst = arith.constant dense<0.000000e+00> : vector<2x16xf32>
    %2 = tpu.matmul %0, %1, %cst {dimension_numbers = #tpu.dot_dimension_numbers<[1], [0], [0], [1], [0, 0, 1, 1], [], []>} : vector<2x128xf32>, vector<128x16xf32>, vector<2x16xf32> -> vector<2x16xf32>
    %c0_3 = arith.constant 0 : index
    %c0_4 = arith.constant 0 : index
    %3 = vector.load %arg3[%c0_3, %c0_4] : memref<1x16xf32, #tpu.memory_space<vmem>>, vector<1x16xf32>
    %4 = vector.broadcast %3 : vector<1x16xf32> to vector<2x16xf32>
    %5 = arith.addf %2, %4 : vector<2x16xf32>
    %cst_5 = arith.constant 0.000000e+00 : f32
    %6 = vector.broadcast %cst_5 : f32 to vector<2x16xf32>
    %7 = arith.subf %6, %5 : vector<2x16xf32>
    %8 = math.exp %7 : vector<2x16xf32>
    %cst_6 = arith.constant 1.000000e+00 : f32
    %9 = vector.broadcast %cst_6 : f32 to vector<2x16xf32>
    %10 = arith.addf %9, %8 : vector<2x16xf32>
    %cst_7 = arith.constant 1.000000e+00 : f32
    %11 = vector.broadcast %cst_7 : f32 to vector<2x16xf32>
    %12 = arith.divf %11, %10 : vector<2x16xf32>
    %c0_8 = arith.constant 0 : index
    %c0_9 = arith.constant 0 : index
    %13 = vector.load %arg4[%c0_8, %c0_9] : memref<2x16xf32, #tpu.memory_space<vmem>>, vector<2x16xf32>
    tpu.vector_store %arg4[%c0_8, %c0_9], %12 {strides = array<i32>} : memref<2x16xf32, #tpu.memory_space<vmem>>, vector<2x16xf32>,
    return
  }
  func.func @transform_0(%arg0: i32) -> (i32, i32) {
    %c0_i32 = arith.constant 0 : i32
    %c0_i32_0 = arith.constant 0 : i32
    %c0_i32_1 = arith.constant 0 : i32
    return %c0_i32, %c0_i32_0 : i32, i32
  }
  func.func @transform_1(%arg0: i32) -> (i32, i32) {
    %c0_i32 = arith.constant 0 : i32
    %c0_i32_0 = arith.constant 0 : i32
    %c0_i32_1 = arith.constant 0 : i32
    return %c0_i32, %c0_i32_0 : i32, i32
  }
  func.func @transform_2(%arg0: i32) -> (i32, i32) {
    %c0_i32 = arith.constant 0 : i32
    %c0_i32_0 = arith.constant 0 : i32
    %c0_i32_1 = arith.constant 0 : i32
    return %c0_i32, %c0_i32_0 : i32, i32
  }
  func.func @transform_3(%arg0: i32) -> (i32, i32) {
    %c0_i32 = arith.constant 0 : i32
    %c0_i32_0 = arith.constant 0 : i32
    %c0_i32_1 = arith.constant 0 : i32
    return %c0_i32, %c0_i32_0 : i32, i32
  }
}

module attributes {stable_mosaic.version = 11 : i64} {
  func.func @_dense_sigmoid_kernel(%arg0: i32, %arg1: memref<2x128xf32, #tpu.memory_space<vmem>>, %arg2: memref<128x64xf32, #tpu.memory_space<vmem>>, %arg3: memref<1x64xf32, #tpu.memory_space<vmem>>, %arg4: memref<2x64xf32, #tpu.memory_space<vmem>>) attributes {dimension_semantics = [#tpu.dimension_semantics<arbitrary>], iteration_bounds = array<i64: 1>, scalar_prefetch = 0 : i64, scratch_operands = 0 : i64, tpu.core_type = #tpu.core_type<tc>, window_params = [{pipeline_mode = #tpu.pipeline_mode<synchronous>, transform_indices = @transform_0, window_bounds = array<i64: 2, 128>}, {pipeline_mode = #tpu.pipeline_mode<synchronous>, transform_indices = @transform_1, window_bounds = array<i64: 128, 64>}, {pipeline_mode = #tpu.pipeline_mode<synchronous>, transform_indices = @transform_2, window_bounds = array<i64: 1, 64>}, {pipeline_mode = #tpu.pipeline_mode<synchronous>, transform_indices = @transform_3, window_bounds = array<i64: 2, 64>}]} {
    %c0 = arith.constant 0 : index
    %c0_0 = arith.constant 0 : index
    %0 = vector.load %arg1[%c0, %c0_0] : memref<2x128xf32, #tpu.memory_space<vmem>>, vector<2x128xf32>
    %c0_1 = arith.constant 0 : index
    %c0_2 = arith.constant 0 : index
    %1 = vector.load %arg2[%c0_1, %c0_2] : memref<128x64xf32, #tpu.memory_space<vmem>>, vector<128x64xf32>
    %cst = arith.constant dense<0.000000e+00> : vector<2x64xf32>
    %2 = tpu.matmul %0, %1, %cst {dimension_numbers = #tpu.dot_dimension_numbers<[1], [0], [0], [1], [0, 0, 1, 1], [], []>} : vector<2x128xf32>, vector<128x64xf32>, vector<2x64xf32> -> vector<2x64xf32>
    %c0_3 = arith.constant 0 : index
    %c0_4 = arith.constant 0 : index
    %3 = vector.load %arg3[%c0_3, %c0_4] : memref<1x64xf32, #tpu.memory_space<vmem>>, vector<1x64xf32>
    %4 = vector.broadcast %3 : vector<1x64xf32> to vector<2x64xf32>
    %5 = arith.addf %2, %4 : vector<2x64xf32>
    %cst_5 = arith.constant 0.000000e+00 : f32
    %6 = vector.broadcast %cst_5 : f32 to vector<2x64xf32>
    %7 = arith.subf %6, %5 : vector<2x64xf32>
    %8 = math.exp %7 : vector<2x64xf32>
    %cst_6 = arith.constant 1.000000e+00 : f32
    %9 = vector.broadcast %cst_6 : f32 to vector<2x64xf32>
    %10 = arith.addf %9, %8 : vector<2x64xf32>
    %cst_7 = arith.constant 1.000000e+00 : f32
    %11 = vector.broadcast %cst_7 : f32 to vector<2x64xf32>
    %12 = arith.divf %11, %10 : vector<2x64xf32>
    %c0_8 = arith.constant 0 : index
    %c0_9 = arith.constant 0 : index
    %13 = vector.load %arg4[%c0_8, %c0_9] : memref<2x64xf32, #tpu.memory_space<vmem>>, vector<2x64xf32>
    tpu.vector_store %arg4[%c0_8, %c0_9], %12 {strides = array<i32>} : memref<2x64xf32, #tpu.memory_space<vmem>>, vector<2x64xf32>,
    return
  }
  func.func @transform_0(%arg0: i32) -> (i32, i32) {
    %c0_i32 = arith.constant 0 : i32
    %c0_i32_0 = arith.constant 0 : i32
    %c0_i32_1 = arith.constant 0 : i32
    return %c0_i32, %c0_i32_0 : i32, i32
  }
  func.func @transform_1(%arg0: i32) -> (i32, i32) {
    %c0_i32 = arith.constant 0 : i32
    %c0_i32_0 = arith.constant 0 : i32
    %c0_i32_1 = arith.constant 0 : i32
    return %c0_i32, %c0_i32_0 : i32, i32
  }
  func.func @transform_2(%arg0: i32) -> (i32, i32) {
    %c0_i32 = arith.constant 0 : i32
    %c0_i32_0 = arith.constant 0 : i32
    %c0_i32_1 = arith.constant 0 : i32
    return %c0_i32, %c0_i32_0 : i32, i32
  }
  func.func @transform_3(%arg0: i32) -> (i32, i32) {
    %c0_i32 = arith.constant 0 : i32
    %c0_i32_0 = arith.constant 0 : i32
    %c0_i32_1 = arith.constant 0 : i32
    return %c0_i32, %c0_i32_0 : i32, i32
  }
}

</mosaic_0001>

<llo_original>
// kernel: encoders_intrinsic_forward.8
$region0: #{encoders_intrinsic_forward.8}
  #allocation0 [shape = 'u32[]', space=smem, size = 0x4, offset = 0x4, fixed_abs, tag = 'smem constant byte address 0x4 - core index']
  #allocation1 [shape = 'u32[144,128]{1,0:T(1,128)}', space=vmem, size = 0x12000, scoped, tag = 'internal scratch']
  %s0 = inlined_call_operand.vmem [shape: f32[2,1024,16], index: 0, kind: input, shape index: {}]
  %s1 = inlined_call_operand.vmem [shape: f32[16,32], index: 1, kind: input, shape index: {}]
  %s2 = inlined_call_operand.vmem [shape: f32[2,1024,32], index: 2, kind: output, shape index: {}]
  %s3 = sld [smem:[#allocation0]]
  $region41: #{encoders_intrinsic_forward.8} parent=0
    _
  %s5 = ssub.s32 1, %s3
  %s6 = scalar_select 0, %s5, %s3
  loop: start=0, step=1, limit=4
  $region2: #{encoders_intrinsic_forward.8} parent=0 // loop_pre_header
    _
  $region3: #{encoders_intrinsic_forward.8} parent=0 // loop_header
    %s8 = sphi 0, %s12
    %p9 = scmp.ge.s32.totalorder %s8, 4
    %s18 = sphi 0, %s20
    %s21 = sphi 0, %s18
    %s22 = sphi 0, %s21
    %s38 = sphi 0, %s22
    %s42 = sphi 0, %s42
    %s44 = sphi 0, %s42
    %s45 = sphi 0, %s44
    %s59 = sphi 0, %s45
    %s65 = sphi 0, %s67
    %s68 = sphi 0, %s65
    %s69 = sphi 0, %s68
    %s85 = sphi 0, %s69
  $region4: #{encoders_intrinsic_forward.8} parent=0 // loop_header_branch
    %11 = sbr.rel (%p9) target = $region8
  $region5: #{encoders_intrinsic_forward.8} parent=0 // loop_body
    %s13 = ssub.s32 %s8, 1
    %s14 = ssub.s32 %s8, 2
    %s15 = sadd.s32 %s8, 1
    %s16 = ssub.s32 %s8, %s15
    %p17 = scmp.eq.s32.totalorder %s16, 0
    %s19 = sadd.s32 %s18, 1
    %s20 = scalar_select %p17, %s18, %s19
    %p23 = pneg %p17
    %p24 = scmp.eq.s32.totalorder %s8, 1
    %p25 = por %p23, %p24
    %p26 = scmp.ne.s32.totalorder %s18, %s21
    %p27 = scmp.eq.s32.totalorder %s8, 0
    %p28 = por %p26, %p27
    %p29 = scmp.ne.s32.totalorder %s18, %s21
    %p30 = scmp.eq.s32.totalorder %s13, 1
    %p31 = por %p29, %p30
    %p32 = scmp.ne.s32.totalorder %s21, %s22
    %p33 = scmp.eq.s32.totalorder %s13, 0
    %p34 = por %p32, %p33
    %p35 = scmp.ne.s32.totalorder %s21, %s22
    %p36 = scmp.eq.s32.totalorder %s14, 1
    %p37 = por %p35, %p36
    %p39 = scmp.ne.s32.totalorder %s22, %s38
    %p40 = scmp.eq.s32.totalorder %s14, 0
    %p41 = por %p39, %p40
    %s43 = sadd.s32 %s42, 1
    %p46 = scmp.eq.s32.totalorder %s8, 1
    %p47 = scmp.ne.s32.totalorder %s42, %s44
    %p48 = scmp.eq.s32.totalorder %s8, 0
    %p49 = por %p47, %p48
    %p50 = scmp.ne.s32.totalorder %s42, %s44
    %p51 = scmp.eq.s32.totalorder %s13, 1
    %p52 = por %p50, %p51
    %p53 = scmp.ne.s32.totalorder %s44, %s45
    %p54 = scmp.eq.s32.totalorder %s13, 0
    %p55 = por %p53, %p54
    %p56 = scmp.ne.s32.totalorder %s44, %s45
    %p57 = scmp.eq.s32.totalorder %s14, 1
    %p58 = por %p56, %p57
    %p60 = scmp.ne.s32.totalorder %s45, %s59
    %p61 = scmp.eq.s32.totalorder %s14, 0
    %p62 = por %p60, %p61
    %s63 = ssub.s32 %s8, %s15
    %p64 = scmp.eq.s32.totalorder %s63, 0
    %s66 = sadd.s32 %s65, 1
    %s67 = scalar_select %p64, %s65, %s66
    %p70 = pneg %p64
    %p71 = scmp.eq.s32.totalorder %s8, 1
    %p72 = por %p70, %p71
    %p73 = scmp.ne.s32.totalorder %s65, %s68
    %p74 = scmp.eq.s32.totalorder %s8, 0
    %p75 = por %p73, %p74
    %p76 = scmp.ne.s32.totalorder %s65, %s68
    %p77 = scmp.eq.s32.totalorder %s13, 1
    %p78 = por %p76, %p77
    %p79 = scmp.ne.s32.totalorder %s68, %s69
    %p80 = scmp.eq.s32.totalorder %s13, 0
    %p81 = por %p79, %p80
    %p82 = scmp.ne.s32.totalorder %s68, %s69
    %p83 = scmp.eq.s32.totalorder %s14, 1
    %p84 = por %p82, %p83
    %p86 = scmp.ne.s32.totalorder %s69, %s85
    %p87 = scmp.eq.s32.totalorder %s14, 0
    %p88 = por %p86, %p87
    %p89 = scmp.le.s32.totalorder 1, %s8
    %p90 = scmp.lt.s32.totalorder %s8, 3
    %p91 = pnand %p89, %p90
    %p92 = pneg %p91
    // Predicated region
    $region9: #{encoders_intrinsic_forward.8} parent=5 // pred_check
      _
    $region10: #{encoders_intrinsic_forward.8} parent=5 // pred_check_branch
      %94 = sbr.rel (%p91) target = $region12
    $region11: #{encoders_intrinsic_forward.8} parent=5 // pred_region
      %s95 = ssub.s32 %s8, 1
      // Predicated region
      $region13: #{encoders_intrinsic_forward.8} parent=11 // pred_check
        %p96 = pneg %p55
      $region14: #{encoders_intrinsic_forward.8} parent=11 // pred_check_branch
        %98 = sbr.rel (%p96) target = $region16
      $region15: #{encoders_intrinsic_forward.8} parent=11 // pred_region
        _
      $region16: #{encoders_intrinsic_forward.8} parent=11 // pred_fallthru
        _
    $region12: #{encoders_intrinsic_forward.8} parent=5 // pred_fallthru
      _
    %p99 = scmp.lt.s32.totalorder %s8, 2
    // Predicated region
    $region17: #{encoders_intrinsic_forward.8} parent=5 // pred_check
      %p100 = pneg %p99
    $region18: #{encoders_intrinsic_forward.8} parent=5 // pred_check_branch
      %102 = sbr.rel (%p100) target = $region20
    $region19: #{encoders_intrinsic_forward.8} parent=5 // pred_region
      // Predicated region
      $region21: #{encoders_intrinsic_forward.8} parent=19 // pred_check
        %p103 = pneg %p28
      $region22: #{encoders_intrinsic_forward.8} parent=19 // pred_check_branch
        %105 = sbr.rel (%p103) target = $region24
      $region23: #{encoders_intrinsic_forward.8} parent=19 // pred_region
        %p106 = scmp.lt.s32.totalorder %s8, 1
        %s107 = scalar_select %p106, %s8, 1
        %s108 = smul.addr %s107, 128
        %s109 = smul.addr %s108, 8
        %s110 = scalar_lea.vmem %s0, %s109
      $region24: #{encoders_intrinsic_forward.8} parent=19 // pred_fallthru
        _
    $region20: #{encoders_intrinsic_forward.8} parent=5 // pred_fallthru
      _
    %p111 = scmp.le.s32.totalorder 1, %s8
    %p112 = scmp.lt.s32.totalorder %s8, 3
    %p113 = pnand %p111, %p112
    %p114 = pneg %p113
    // Predicated region
    $region25: #{encoders_intrinsic_forward.8} parent=5 // pred_check
      _
    $region26: #{encoders_intrinsic_forward.8} parent=5 // pred_check_branch
      %116 = sbr.rel (%p113) target = $region28
    $region27: #{encoders_intrinsic_forward.8} parent=5 // pred_region
      %s117 = ssub.s32 %s8, 1
      %p118 = scmp.lt.s32.totalorder %s13, 1
      %s119 = scalar_select %p118, %s13, 1
      %s120 = smul.addr %s119, 128
      %s121 = smul.addr %s120, 8
      %s122 = scalar_lea.vmem %s0, %s121
      %p123 = pneg %p34
      %p124 = pneg %p31
      %p125 = pneg %p55
      %p126 = pneg %p52
      %p127 = pneg %p81
      %p128 = pneg %p78
      %p129 = scmp.lt.s32.totalorder %s13, 1
      %s130 = scalar_select %p129, %s13, 1
      %s131 = smul.addr %s130, 128
      %s132 = smul.addr %s131, 8
      %s133 = scalar_lea.vmem %s2, %s132
      %p134 = scmp.lt.s32.totalorder %s13, 1
      %s135 = scalar_select %p134, %s13, 1
      %s136 = smul.addr %s135, 128
      %s137 = smul.addr %s136, 8
      %s138 = scalar_lea.vmem %s0, %s137
      %p139 = scmp.lt.s32.totalorder %s13, 1
      %s140 = scalar_select %p139, %s13, 1
      %s141 = smul.addr %s140, 128
      %s142 = smul.addr %s141, 8
      %s143 = scalar_lea.vmem %s2, %s142
      %v144 = vld [vmem:[%s138] sm:$0xff]
      %v145 = vld [vmem:[%s138 + $0x8] sm:$0xff]
      %v146 = vld [vmem:[%s138 + $0x10] sm:$0xff]
      %v147 = vld [vmem:[%s138 + $0x18] sm:$0xff]
      %v148 = vld [vmem:[%s138 + $0x20] sm:$0xff]
      %v149 = vld [vmem:[%s138 + $0x28] sm:$0xff]
      %v150 = vld [vmem:[%s138 + $0x30] sm:$0xff]
      %v151 = vld [vmem:[%s138 + $0x38] sm:$0xff]
      %v152 = vld [vmem:[%s138 + $0x40] sm:$0xff]
      %v153 = vld [vmem:[%s138 + $0x48] sm:$0xff]
      %v154 = vld [vmem:[%s138 + $0x50] sm:$0xff]
      %v155 = vld [vmem:[%s138 + $0x58] sm:$0xff]
      %v156 = vld [vmem:[%s138 + $0x60] sm:$0xff]
      %v157 = vld [vmem:[%s138 + $0x68] sm:$0xff]
      %v158 = vld [vmem:[%s138 + $0x70] sm:$0xff]
      %v159 = vld [vmem:[%s138 + $0x78] sm:$0xff]
      %v160 = vld [vmem:[%s138 + $0x80] sm:$0xff]
      %v161 = vld [vmem:[%s138 + $0x88] sm:$0xff]
      %v162 = vld [vmem:[%s138 + $0x90] sm:$0xff]
      %v163 = vld [vmem:[%s138 + $0x98] sm:$0xff]
      %v164 = vld [vmem:[%s138 + $0xa0] sm:$0xff]
      %v165 = vld [vmem:[%s138 + $0xa8] sm:$0xff]
      %v166 = vld [vmem:[%s138 + $0xb0] sm:$0xff]
      %v167 = vld [vmem:[%s138 + $0xb8] sm:$0xff]
      %v168 = vld [vmem:[%s138 + $0xc0] sm:$0xff]
      %v169 = vld [vmem:[%s138 + $0xc8] sm:$0xff]
      %v170 = vld [vmem:[%s138 + $0xd0] sm:$0xff]
      %v171 = vld [vmem:[%s138 + $0xd8] sm:$0xff]
      %v172 = vld [vmem:[%s138 + $0xe0] sm:$0xff]
      %v173 = vld [vmem:[%s138 + $0xe8] sm:$0xff]
      %v174 = vld [vmem:[%s138 + $0xf0] sm:$0xff]
      %v175 = vld [vmem:[%s138 + $0xf8] sm:$0xff]
      %v176 = vld [vmem:[%s138 + $0x100] sm:$0xff]
      %v177 = vld [vmem:[%s138 + $0x108] sm:$0xff]
      %v178 = vld [vmem:[%s138 + $0x110] sm:$0xff]
      %v179 = vld [vmem:[%s138 + $0x118] sm:$0xff]
      %v180 = vld [vmem:[%s138 + $0x120] sm:$0xff]
      %v181 = vld [vmem:[%s138 + $0x128] sm:$0xff]
      %v182 = vld [vmem:[%s138 + $0x130] sm:$0xff]
      %v183 = vld [vmem:[%s138 + $0x138] sm:$0xff]
      %v184 = vld [vmem:[%s138 + $0x140] sm:$0xff]
      %v185 = vld [vmem:[%s138 + $0x148] sm:$0xff]
      %v186 = vld [vmem:[%s138 + $0x150] sm:$0xff]
      %v187 = vld [vmem:[%s138 + $0x158] sm:$0xff]
      %v188 = vld [vmem:[%s138 + $0x160] sm:$0xff]
      %v189 = vld [vmem:[%s138 + $0x168] sm:$0xff]
      %v190 = vld [vmem:[%s138 + $0x170] sm:$0xff]
      %v191 = vld [vmem:[%s138 + $0x178] sm:$0xff]
      %v192 = vld [vmem:[%s138 + $0x180] sm:$0xff]
      %v193 = vld [vmem:[%s138 + $0x188] sm:$0xff]
      %v194 = vld [vmem:[%s138 + $0x190] sm:$0xff]
      %v195 = vld [vmem:[%s138 + $0x198] sm:$0xff]
      %v196 = vld [vmem:[%s138 + $0x1a0] sm:$0xff]
      %v197 = vld [vmem:[%s138 + $0x1a8] sm:$0xff]
      %v198 = vld [vmem:[%s138 + $0x1b0] sm:$0xff]
      %v199 = vld [vmem:[%s138 + $0x1b8] sm:$0xff]
      %v200 = vld [vmem:[%s138 + $0x1c0] sm:$0xff]
      %v201 = vld [vmem:[%s138 + $0x1c8] sm:$0xff]
      %v202 = vld [vmem:[%s138 + $0x1d0] sm:$0xff]
      %v203 = vld [vmem:[%s138 + $0x1d8] sm:$0xff]
      %v204 = vld [vmem:[%s138 + $0x1e0] sm:$0xff]
      %v205 = vld [vmem:[%s138 + $0x1e8] sm:$0xff]
      %v206 = vld [vmem:[%s138 + $0x1f0] sm:$0xff]
      %v207 = vld [vmem:[%s138 + $0x1f8] sm:$0xff]
      %v208 = vld [vmem:[%s138 + $0x200] sm:$0xff]
      %v209 = vld [vmem:[%s138 + $0x208] sm:$0xff]
      %v210 = vld [vmem:[%s138 + $0x210] sm:$0xff]
      %v211 = vld [vmem:[%s138 + $0x218] sm:$0xff]
      %v212 = vld [vmem:[%s138 + $0x220] sm:$0xff]
      %v213 = vld [vmem:[%s138 + $0x228] sm:$0xff]
      %v214 = vld [vmem:[%s138 + $0x230] sm:$0xff]
      %v215 = vld [vmem:[%s138 + $0x238] sm:$0xff]
      %v216 = vld [vmem:[%s138 + $0x240] sm:$0xff]
      %v217 = vld [vmem:[%s138 + $0x248] sm:$0xff]
      %v218 = vld [vmem:[%s138 + $0x250] sm:$0xff]
      %v219 = vld [vmem:[%s138 + $0x258] sm:$0xff]
      %v220 = vld [vmem:[%s138 + $0x260] sm:$0xff]
      %v221 = vld [vmem:[%s138 + $0x268] sm:$0xff]
      %v222 = vld [vmem:[%s138 + $0x270] sm:$0xff]
      %v223 = vld [vmem:[%s138 + $0x278] sm:$0xff]
      %v224 = vld [vmem:[%s138 + $0x280] sm:$0xff]
      %v225 = vld [vmem:[%s138 + $0x288] sm:$0xff]
      %v226 = vld [vmem:[%s138 + $0x290] sm:$0xff]
      %v227 = vld [vmem:[%s138 + $0x298] sm:$0xff]
      %v228 = vld [vmem:[%s138 + $0x2a0] sm:$0xff]
      %v229 = vld [vmem:[%s138 + $0x2a8] sm:$0xff]
      %v230 = vld [vmem:[%s138 + $0x2b0] sm:$0xff]
      %v231 = vld [vmem:[%s138 + $0x2b8] sm:$0xff]
      %v232 = vld [vmem:[%s138 + $0x2c0] sm:$0xff]
      %v233 = vld [vmem:[%s138 + $0x2c8] sm:$0xff]
      %v234 = vld [vmem:[%s138 + $0x2d0] sm:$0xff]
      %v235 = vld [vmem:[%s138 + $0x2d8] sm:$0xff]
      %v236 = vld [vmem:[%s138 + $0x2e0] sm:$0xff]
      %v237 = vld [vmem:[%s138 + $0x2e8] sm:$0xff]
      %v238 = vld [vmem:[%s138 + $0x2f0] sm:$0xff]
      %v239 = vld [vmem:[%s138 + $0x2f8] sm:$0xff]
      %v240 = vld [vmem:[%s138 + $0x300] sm:$0xff]
      %v241 = vld [vmem:[%s138 + $0x308] sm:$0xff]
      %v242 = vld [vmem:[%s138 + $0x310] sm:$0xff]
      %v243 = vld [vmem:[%s138 + $0x318] sm:$0xff]
      %v244 = vld [vmem:[%s138 + $0x320] sm:$0xff]
      %v245 = vld [vmem:[%s138 + $0x328] sm:$0xff]
      %v246 = vld [vmem:[%s138 + $0x330] sm:$0xff]
      %v247 = vld [vmem:[%s138 + $0x338] sm:$0xff]
      %v248 = vld [vmem:[%s138 + $0x340] sm:$0xff]
      %v249 = vld [vmem:[%s138 + $0x348] sm:$0xff]
      %v250 = vld [vmem:[%s138 + $0x350] sm:$0xff]
      %v251 = vld [vmem:[%s138 + $0x358] sm:$0xff]
      %v252 = vld [vmem:[%s138 + $0x360] sm:$0xff]
      %v253 = vld [vmem:[%s138 + $0x368] sm:$0xff]
      %v254 = vld [vmem:[%s138 + $0x370] sm:$0xff]
      %v255 = vld [vmem:[%s138 + $0x378] sm:$0xff]
      %v256 = vld [vmem:[%s138 + $0x380] sm:$0xff]
      %v257 = vld [vmem:[%s138 + $0x388] sm:$0xff]
      %v258 = vld [vmem:[%s138 + $0x390] sm:$0xff]
      %v259 = vld [vmem:[%s138 + $0x398] sm:$0xff]
      %v260 = vld [vmem:[%s138 + $0x3a0] sm:$0xff]
      %v261 = vld [vmem:[%s138 + $0x3a8] sm:$0xff]
      %v262 = vld [vmem:[%s138 + $0x3b0] sm:$0xff]
      %v263 = vld [vmem:[%s138 + $0x3b8] sm:$0xff]
      %v264 = vld [vmem:[%s138 + $0x3c0] sm:$0xff]
      %v265 = vld [vmem:[%s138 + $0x3c8] sm:$0xff]
      %v266 = vld [vmem:[%s138 + $0x3d0] sm:$0xff]
      %v267 = vld [vmem:[%s138 + $0x3d8] sm:$0xff]
      %v268 = vld [vmem:[%s138 + $0x3e0] sm:$0xff]
      %v269 = vld [vmem:[%s138 + $0x3e8] sm:$0xff]
      %v270 = vld [vmem:[%s138 + $0x3f0] sm:$0xff]
      %v271 = vld [vmem:[%s138 + $0x3f8] sm:$0xff]
      %v272 = vld [vmem:[%s1] sm:$0xff]
      %v273 = vld [vmem:[%s1 + $0x8] sm:$0xff]
      %vm274 = vcmask 130048
      %v276 = vsel %vm274, %v144, 0
      %v279 = vsel %vm274, %v145, 0
      %v282 = vsel %vm274, %v146, 0
      %v285 = vsel %vm274, %v147, 0
      %v288 = vsel %vm274, %v148, 0
      %v291 = vsel %vm274, %v149, 0
      %v294 = vsel %vm274, %v150, 0
      %v297 = vsel %vm274, %v151, 0
      %v300 = vsel %vm274, %v152, 0
      %v303 = vsel %vm274, %v153, 0
      %v306 = vsel %vm274, %v154, 0
      %v309 = vsel %vm274, %v155, 0
      %v312 = vsel %vm274, %v156, 0
      %v315 = vsel %vm274, %v157, 0
      %v318 = vsel %vm274, %v158, 0
      %v321 = vsel %vm274, %v159, 0
      %v324 = vsel %vm274, %v160, 0
      %v327 = vsel %vm274, %v161, 0
      %v330 = vsel %vm274, %v162, 0
      %v333 = vsel %vm274, %v163, 0
      %v336 = vsel %vm274, %v164, 0
      %v339 = vsel %vm274, %v165, 0
      %v342 = vsel %vm274, %v166, 0
      %v345 = vsel %vm274, %v167, 0
      %v348 = vsel %vm274, %v168, 0
      %v351 = vsel %vm274, %v169, 0
      %v354 = vsel %vm274, %v170, 0
      %v357 = vsel %vm274, %v171, 0
      %v360 = vsel %vm274, %v172, 0
      %v363 = vsel %vm274, %v173, 0
      %v366 = vsel %vm274, %v174, 0
      %v369 = vsel %vm274, %v175, 0
      %v372 = vsel %vm274, %v176, 0
      %v375 = vsel %vm274, %v177, 0
      %v378 = vsel %vm274, %v178, 0
      %v381 = vsel %vm274, %v179, 0
      %v384 = vsel %vm274, %v180, 0
      %v387 = vsel %vm274, %v181, 0
      %v390 = vsel %vm274, %v182, 0
      %v393 = vsel %vm274, %v183, 0
      %v396 = vsel %vm274, %v184, 0
      %v399 = vsel %vm274, %v185, 0
      %v402 = vsel %vm274, %v186, 0
      %v405 = vsel %vm274, %v187, 0
      %v408 = vsel %vm274, %v188, 0
      %v411 = vsel %vm274, %v189, 0
      %v414 = vsel %vm274, %v190, 0
      %v417 = vsel %vm274, %v191, 0
      %v420 = vsel %vm274, %v192, 0
      %v423 = vsel %vm274, %v193, 0
      %v426 = vsel %vm274, %v194, 0
      %v429 = vsel %vm274, %v195, 0
      %v432 = vsel %vm274, %v196, 0
      %v435 = vsel %vm274, %v197, 0
      %v438 = vsel %vm274, %v198, 0
      %v441 = vsel %vm274, %v199, 0
      %v444 = vsel %vm274, %v200, 0
      %v447 = vsel %vm274, %v201, 0
      %v450 = vsel %vm274, %v202, 0
      %v453 = vsel %vm274, %v203, 0
      %v456 = vsel %vm274, %v204, 0
      %v459 = vsel %vm274, %v205, 0
      %v462 = vsel %vm274, %v206, 0
      %v465 = vsel %vm274, %v207, 0
      %v468 = vsel %vm274, %v208, 0
      %v471 = vsel %vm274, %v209, 0
      %v474 = vsel %vm274, %v210, 0
      %v477 = vsel %vm274, %v211, 0
      %v480 = vsel %vm274, %v212, 0
      %v483 = vsel %vm274, %v213, 0
      %v486 = vsel %vm274, %v214, 0
      %v489 = vsel %vm274, %v215, 0
      %v492 = vsel %vm274, %v216, 0
      %v495 = vsel %vm274, %v217, 0
      %v498 = vsel %vm274, %v218, 0
      %v501 = vsel %vm274, %v219, 0
      %v504 = vsel %vm274, %v220, 0
      %v507 = vsel %vm274, %v221, 0
      %v510 = vsel %vm274, %v222, 0
      %v513 = vsel %vm274, %v223, 0
      %v516 = vsel %vm274, %v224, 0
      %v519 = vsel %vm274, %v225, 0
      %v522 = vsel %vm274, %v226, 0
      %v525 = vsel %vm274, %v227, 0
      %v528 = vsel %vm274, %v228, 0
      %v531 = vsel %vm274, %v229, 0
      %v534 = vsel %vm274, %v230, 0
      %v537 = vsel %vm274, %v231, 0
      %v540 = vsel %vm274, %v232, 0
      %v543 = vsel %vm274, %v233, 0
      %v546 = vsel %vm274, %v234, 0
      %v549 = vsel %vm274, %v235, 0
      %v552 = vsel %vm274, %v236, 0
      %v555 = vsel %vm274, %v237, 0
      %v558 = vsel %vm274, %v238, 0
      %v561 = vsel %vm274, %v239, 0
      %v564 = vsel %vm274, %v240, 0
      %v567 = vsel %vm274, %v241, 0
      %v570 = vsel %vm274, %v242, 0
      %v573 = vsel %vm274, %v243, 0
      %v576 = vsel %vm274, %v244, 0
      %v579 = vsel %vm274, %v245, 0
      %v582 = vsel %vm274, %v246, 0
      %v585 = vsel %vm274, %v247, 0
      %v588 = vsel %vm274, %v248, 0
      %v591 = vsel %vm274, %v249, 0
      %v594 = vsel %vm274, %v250, 0
      %v597 = vsel %vm274, %v251, 0
      %v600 = vsel %vm274, %v252, 0
      %v603 = vsel %vm274, %v253, 0
      %v606 = vsel %vm274, %v254, 0
      %v609 = vsel %vm274, %v255, 0
      %v612 = vsel %vm274, %v256, 0
      %v615 = vsel %vm274, %v257, 0
      %v618 = vsel %vm274, %v258, 0
      %v621 = vsel %vm274, %v259, 0
      %v624 = vsel %vm274, %v260, 0
      %v627 = vsel %vm274, %v261, 0
      %v630 = vsel %vm274, %v262, 0
      %v633 = vsel %vm274, %v263, 0
      %v636 = vsel %vm274, %v264, 0
      %v639 = vsel %vm274, %v265, 0
      %v642 = vsel %vm274, %v266, 0
      %v645 = vsel %vm274, %v267, 0
      %v648 = vsel %vm274, %v268, 0
      %v651 = vsel %vm274, %v269, 0
      %v654 = vsel %vm274, %v270, 0
      %v657 = vsel %vm274, %v271, 0
      %659 = vmatprep.subr.mxu0 0.0
      %660 = vmatpush1.msra.mxu0 %v272
      %661 = vmatprep.subr.mxu0 0.0
      %662 = vmatpush1.msra.mxu0 %v273
      %663 = vmatprep.subr.mxu0 0.0
      %664 = vmatpush1.msra.mxu0 0.0
      %665 = vmatprep.subr.mxu0 0.0
      %666 = vmatpush1.msra.mxu0 0.0
      %667 = vmatprep.subr.mxu0 0.0
      %668 = vmatpush1.msra.mxu0 0.0
      %669 = vmatprep.subr.mxu0 0.0
      %670 = vmatpush1.msra.mxu0 0.0
      %671 = vmatprep.subr.mxu0 0.0
      %672 = vmatpush1.msra.mxu0 0.0
      %673 = vmatprep.subr.mxu0 0.0
      %674 = vmatpush1.msra.mxu0 0.0
      %675 = vmatprep.subr.mxu0 0.0
      %676 = vmatpush1.msra.mxu0 0.0
      %677 = vmatprep.subr.mxu0 0.0
      %678 = vmatpush1.msra.mxu0 0.0
      %679 = vmatprep.subr.mxu0 0.0
      %680 = vmatpush1.msra.mxu0 0.0
      %681 = vmatprep.subr.mxu0 0.0
      %682 = vmatpush1.msra.mxu0 0.0
      %683 = vmatprep.subr.mxu0 0.0
      %684 = vmatpush1.msra.mxu0 0.0
      %685 = vmatprep.subr.mxu0 0.0
      %686 = vmatpush1.msra.mxu0 0.0
      %687 = vmatprep.subr.mxu0 0.0
      %688 = vmatpush1.msra.mxu0 0.0
      %689 = vmatprep.subr.mxu0 0.0
      %690 = vmatpush1.msra.mxu0 0.0
      %691 = vmatprep.subr.mxu0 0.0
      %692 = vmatpush1.msra.mxu0 0.0
      %693 = vmatprep.subr.mxu0 0.0
      %694 = vmatpush1.msra.mxu0 0.0
      %695 = vmatprep.subr.mxu0 0.0
      %696 = vmatpush1.msra.mxu0 0.0
      %697 = vmatprep.subr.mxu0 0.0
      %698 = vmatpush1.msra.mxu0 0.0
      %699 = vmatprep.subr.mxu0 0.0
      %700 = vmatpush1.msra.mxu0 0.0
      %701 = vmatprep.subr.mxu0 0.0
      %702 = vmatpush1.msra.mxu0 0.0
      %703 = vmatprep.subr.mxu0 0.0
      %704 = vmatpush1.msra.mxu0 0.0
      %705 = vmatprep.subr.mxu0 0.0
      %706 = vmatpush1.msra.mxu0 0.0
      %707 = vmatprep.subr.mxu0 0.0
      %708 = vmatpush1.msra.mxu0 0.0
      %709 = vmatprep.subr.mxu0 0.0
      %710 = vmatpush1.msra.mxu0 0.0
      %711 = vmatprep.subr.mxu0 0.0
      %712 = vmatpush1.msra.mxu0 0.0
      %713 = vmatprep.subr.mxu0 0.0
      %714 = vmatpush1.msra.mxu0 0.0
      %715 = vmatprep.subr.mxu0 0.0
      %716 = vmatpush1.msra.mxu0 0.0
      %717 = vmatprep.subr.mxu0 0.0
      %718 = vmatpush1.msra.mxu0 0.0
      %719 = vmatprep.subr.mxu0 0.0
      %720 = vmatpush1.msra.mxu0 0.0
      %721 = vmatprep.subr.mxu0 0.0
      %722 = vmatpush1.msra.mxu0 0.0
      %723 = vmatprep.mubr.f32.mxu0 0.0
      %724 = vmatmul.mubr.f32.gmra.mrb[0].mxu0 %v276
      %v725 = vpop.f32.mrb[0].mxu0
      %v726 = vadd.f32 0.0, %v725
      %v727 = vpop.f32.mrb[0].mxu0
      %728 = vmatprep.mubr.f32.mxu0 0.0
      %729 = vmatmul.mubr.f32.gmra.mrb[0].mxu0 %v279
      %v730 = vpop.f32.mrb[0].mxu0
      %v731 = vadd.f32 0.0, %v730
      %v732 = vpop.f32.mrb[0].mxu0
      %733 = vmatprep.mubr.f32.mxu0 0.0
      %734 = vmatmul.mubr.f32.gmra.mrb[0].mxu0 %v282
      %v735 = vpop.f32.mrb[0].mxu0
      %v736 = vadd.f32 0.0, %v735
      %v737 = vpop.f32.mrb[0].mxu0
      %738 = vmatprep.mubr.f32.mxu0 0.0
      %739 = vmatmul.mubr.f32.gmra.mrb[0].mxu0 %v285
      %v740 = vpop.f32.mrb[0].mxu0
      %v741 = vadd.f32 0.0, %v740
      %v742 = vpop.f32.mrb[0].mxu0
      %743 = vmatprep.mubr.f32.mxu0 0.0
      %744 = vmatmul.mubr.f32.gmra.mrb[0].mxu0 %v288
      %v745 = vpop.f32.mrb[0].mxu0
      %v746 = vadd.f32 0.0, %v745
      %v747 = vpop.f32.mrb[0].mxu0
      %748 = vmatprep.mubr.f32.mxu0 0.0
      %749 = vmatmul.mubr.f32.gmra.mrb[0].mxu0 %v291
      %v750 = vpop.f32.mrb[0].mxu0
      %v751 = vadd.f32 0.0, %v750
      %v752 = vpop.f32.mrb[0].mxu0
      %753 = vmatprep.mubr.f32.mxu0 0.0
      %754 = vmatmul.mubr.f32.gmra.mrb[0].mxu0 %v294
      %v755 = vpop.f32.mrb[0].mxu0
      %v756 = vadd.f32 0.0, %v755
      %v757 = vpop.f32.mrb[0].mxu0
      %758 = vmatprep.mubr.f32.mxu0 0.0
      %759 = vmatmul.mubr.f32.gmra.mrb[0].mxu0 %v297
      %v760 = vpop.f32.mrb[0].mxu0
      %v761 = vadd.f32 0.0, %v760
      %v762 = vpop.f32.mrb[0].mxu0
      %763 = vmatprep.mubr.f32.mxu0 0.0
      %764 = vmatmul.mubr.f32.gmra.mrb[0].mxu0 %v300
      %v765 = vpop.f32.mrb[0].mxu0
      %v766 = vadd.f32 0.0, %v765
      %v767 = vpop.f32.mrb[0].mxu0
      %768 = vmatprep.mubr.f32.mxu0 0.0
      %769 = vmatmul.mubr.f32.gmra.mrb[0].mxu0 %v303
      %v770 = vpop.f32.mrb[0].mxu0
      %v771 = vadd.f32 0.0, %v770
      %v772 = vpop.f32.mrb[0].mxu0
      %773 = vmatprep.mubr.f32.mxu0 0.0
      %774 = vmatmul.mubr.f32.gmra.mrb[0].mxu0 %v306
      %v775 = vpop.f32.mrb[0].mxu0
      %v776 = vadd.f32 0.0, %v775
      %v777 = vpop.f32.mrb[0].mxu0
      %778 = vmatprep.mubr.f32.mxu0 0.0
      %779 = vmatmul.mubr.f32.gmra.mrb[0].mxu0 %v309
      %v780 = vpop.f32.mrb[0].mxu0
      %v781 = vadd.f32 0.0, %v780
      %v782 = vpop.f32.mrb[0].mxu0
      %783 = vmatprep.mubr.f32.mxu0 0.0
      %784 = vmatmul.mubr.f32.gmra.mrb[0].mxu0 %v312
      %v785 = vpop.f32.mrb[0].mxu0
      %v786 = vadd.f32 0.0, %v785
      %v787 = vpop.f32.mrb[0].mxu0
      %788 = vmatprep.mubr.f32.mxu0 0.0
      %789 = vmatmul.mubr.f32.gmra.mrb[0].mxu0 %v315
      %v790 = vpop.f32.mrb[0].mxu0
      %v791 = vadd.f32 0.0, %v790
      %v792 = vpop.f32.mrb[0].mxu0
      %793 = vmatprep.mubr.f32.mxu0 0.0
      %794 = vmatmul.mubr.f32.gmra.mrb[0].mxu0 %v318
      %v795 = vpop.f32.mrb[0].mxu0
      %v796 = vadd.f32 0.0, %v795
      %v797 = vpop.f32.mrb[0].mxu0
      %798 = vmatprep.mubr.f32.mxu0 0.0
      %799 = vmatmul.mubr.f32.gmra.mrb[0].mxu0 %v321
      %v800 = vpop.f32.mrb[0].mxu0
      %v801 = vadd.f32 0.0, %v800
      %v802 = vpop.f32.mrb[0].mxu0
      %803 = vmatprep.mubr.f32.mxu0 0.0
      %804 = vmatmul.mubr.f32.gmra.mrb[0].mxu0 %v324
      %v805 = vpop.f32.mrb[0].mxu0
      %v806 = vadd.f32 0.0, %v805
      %v807 = vpop.f32.mrb[0].mxu0
      %808 = vmatprep.mubr.f32.mxu0 0.0
      %809 = vmatmul.mubr.f32.gmra.mrb[0].mxu0 %v327
      %v810 = vpop.f32.mrb[0].mxu0
      %v811 = vadd.f32 0.0, %v810
      %v812 = vpop.f32.mrb[0].mxu0
      %813 = vmatprep.mubr.f32.mxu0 0.0
      %814 = vmatmul.mubr.f32.gmra.mrb[0].mxu0 %v330
      %v815 = vpop.f32.mrb[0].mxu0
      %v816 = vadd.f32 0.0, %v815
      %v817 = vpop.f32.mrb[0].mxu0
      %818 = vmatprep.mubr.f32.mxu0 0.0
      %819 = vmatmul.mubr.f32.gmra.mrb[0].mxu0 %v333
      %v820 = vpop.f32.mrb[0].mxu0
      %v821 = vadd.f32 0.0, %v820
      %v822 = vpop.f32.mrb[0].mxu0
      %823 = vmatprep.mubr.f32.mxu0 0.0
      %824 = vmatmul.mubr.f32.gmra.mrb[0].mxu0 %v336
      %v825 = vpop.f32.mrb[0].mxu0
      %v826 = vadd.f32 0.0, %v825
      %v827 = vpop.f32.mrb[0].mxu0
      %828 = vmatprep.mubr.f32.mxu0 0.0
      %829 = vmatmul.mubr.f32.gmra.mrb[0].mxu0 %v339
      %v830 = vpop.f32.mrb[0].mxu0
      %v831 = vadd.f32 0.0, %v830
      %v832 = vpop.f32.mrb[0].mxu0
      %833 = vmatprep.mubr.f32.mxu0 0.0
      %834 = vmatmul.mubr.f32.gmra.mrb[0].mxu0 %v342
      %v835 = vpop.f32.mrb[0].mxu0
      %v836 = vadd.f32 0.0, %v835
      %v837 = vpop.f32.mrb[0].mxu0
      %838 = vmatprep.mubr.f32.mxu0 0.0
      %839 = vmatmul.mubr.f32.gmra.mrb[0].mxu0 %v345
      %v840 = vpop.f32.mrb[0].mxu0
      %v841 = vadd.f32 0.0, %v840
      %v842 = vpop.f32.mrb[0].mxu0
      %843 = vmatprep.mubr.f32.mxu0 0.0
      %844 = vmatmul.mubr.f32.gmra.mrb[0].mxu0 %v348
      %v845 = vpop.f32.mrb[0].mxu0
      %v846 = vadd.f32 0.0, %v845
      %v847 = vpop.f32.mrb[0].mxu0
      %848 = vmatprep.mubr.f32.mxu0 0.0
      %849 = vmatmul.mubr.f32.gmra.mrb[0].mxu0 %v351
      %v850 = vpop.f32.mrb[0].mxu0
      %v851 = vadd.f32 0.0, %v850
      %v852 = vpop.f32.mrb[0].mxu0
      %853 = vmatprep.mubr.f32.mxu0 0.0
      %854 = vmatmul.mubr.f32.gmra.mrb[0].mxu0 %v354
      %v855 = vpop.f32.mrb[0].mxu0
      %v856 = vadd.f32 0.0, %v855
      %v857 = vpop.f32.mrb[0].mxu0
      %858 = vmatprep.mubr.f32.mxu0 0.0
      %859 = vmatmul.mubr.f32.gmra.mrb[0].mxu0 %v357
      %v860 = vpop.f32.mrb[0].mxu0
      %v861 = vadd.f32 0.0, %v860
      %v862 = vpop.f32.mrb[0].mxu0
      %863 = vmatprep.mubr.f32.mxu0 0.0
      %864 = vmatmul.mubr.f32.gmra.mrb[0].mxu0 %v360
      %v865 = vpop.f32.mrb[0].mxu0
      %v866 = vadd.f32 0.0, %v865
      %v867 = vpop.f32.mrb[0].mxu0
      %868 = vmatprep.mubr.f32.mxu0 0.0
      %869 = vmatmul.mubr.f32.gmra.mrb[0].mxu0 %v363
      %v870 = vpop.f32.mrb[0].mxu0
      %v871 = vadd.f32 0.0, %v870
      %v872 = vpop.f32.mrb[0].mxu0
      %873 = vmatprep.mubr.f32.mxu0 0.0
      %874 = vmatmul.mubr.f32.gmra.mrb[0].mxu0 %v366
      %v875 = vpop.f32.mrb[0].mxu0
      %v876 = vadd.f32 0.0, %v875
      %v877 = vpop.f32.mrb[0].mxu0
      %878 = vmatprep.mubr.f32.mxu0 0.0
      %879 = vmatmul.mubr.f32.gmra.mrb[0].mxu0 %v369
      %v880 = vpop.f32.mrb[0].mxu0
      %v881 = vadd.f32 0.0, %v880
      %v882 = vpop.f32.mrb[0].mxu0
      %883 = vmatprep.mubr.f32.mxu0 0.0
      %884 = vmatmul.mubr.f32.gmra.mrb[0].mxu0 %v372
      %v885 = vpop.f32.mrb[0].mxu0
      %v886 = vadd.f32 0.0, %v885
      %v887 = vpop.f32.mrb[0].mxu0
      %888 = vmatprep.mubr.f32.mxu0 0.0
      %889 = vmatmul.mubr.f32.gmra.mrb[0].mxu0 %v375
      %v890 = vpop.f32.mrb[0].mxu0
      %v891 = vadd.f32 0.0, %v890
      %v892 = vpop.f32.mrb[0].mxu0
      %893 = vmatprep.mubr.f32.mxu0 0.0
      %894 = vmatmul.mubr.f32.gmra.mrb[0].mxu0 %v378
      %v895 = vpop.f32.mrb[0].mxu0
      %v896 = vadd.f32 0.0, %v895
      %v897 = vpop.f32.mrb[0].mxu0
      %898 = vmatprep.mubr.f32.mxu0 0.0
      %899 = vmatmul.mubr.f32.gmra.mrb[0].mxu0 %v381
      %v900 = vpop.f32.mrb[0].mxu0
      %v901 = vadd.f32 0.0, %v900
      %v902 = vpop.f32.mrb[0].mxu0
      %903 = vmatprep.mubr.f32.mxu0 0.0
      %904 = vmatmul.mubr.f32.gmra.mrb[0].mxu0 %v384
      %v905 = vpop.f32.mrb[0].mxu0
      %v906 = vadd.f32 0.0, %v905
      %v907 = vpop.f32.mrb[0].mxu0
      %908 = vmatprep.mubr.f32.mxu0 0.0
      %909 = vmatmul.mubr.f32.gmra.mrb[0].mxu0 %v387
      %v910 = vpop.f32.mrb[0].mxu0
      %v911 = vadd.f32 0.0, %v910
      %v912 = vpop.f32.mrb[0].mxu0
      %913 = vmatprep.mubr.f32.mxu0 0.0
      %914 = vmatmul.mubr.f32.gmra.mrb[0].mxu0 %v390
      %v915 = vpop.f32.mrb[0].mxu0
      %v916 = vadd.f32 0.0, %v915
      %v917 = vpop.f32.mrb[0].mxu0
      %918 = vmatprep.mubr.f32.mxu0 0.0
      %919 = vmatmul.mubr.f32.gmra.mrb[0].mxu0 %v393
      %v920 = vpop.f32.mrb[0].mxu0
      %v921 = vadd.f32 0.0, %v920
      %v922 = vpop.f32.mrb[0].mxu0
      %923 = vmatprep.mubr.f32.mxu0 0.0
      %924 = vmatmul.mubr.f32.gmra.mrb[0].mxu0 %v396
      %v925 = vpop.f32.mrb[0].mxu0
      %v926 = vadd.f32 0.0, %v925
      %v927 = vpop.f32.mrb[0].mxu0
      %928 = vmatprep.mubr.f32.mxu0 0.0
      %929 = vmatmul.mubr.f32.gmra.mrb[0].mxu0 %v399
      %v930 = vpop.f32.mrb[0].mxu0
      %v931 = vadd.f32 0.0, %v930
      %v932 = vpop.f32.mrb[0].mxu0
      %933 = vmatprep.mubr.f32.mxu0 0.0
      %934 = vmatmul.mubr.f32.gmra.mrb[0].mxu0 %v402
      %v935 = vpop.f32.mrb[0].mxu0
      %v936 = vadd.f32 0.0, %v935
      %v937 = vpop.f32.mrb[0].mxu0
      %938 = vmatprep.mubr.f32.mxu0 0.0
      %939 = vmatmul.mubr.f32.gmra.mrb[0].mxu0 %v405
      %v940 = vpop.f32.mrb[0].mxu0
      %v941 = vadd.f32 0.0, %v940
      %v942 = vpop.f32.mrb[0].mxu0
      %943 = vmatprep.mubr.f32.mxu0 0.0
      %944 = vmatmul.mubr.f32.gmra.mrb[0].mxu0 %v408
      %v945 = vpop.f32.mrb[0].mxu0
      %v946 = vadd.f32 0.0, %v945
      %v947 = vpop.f32.mrb[0].mxu0
      %948 = vmatprep.mubr.f32.mxu0 0.0
      %949 = vmatmul.mubr.f32.gmra.mrb[0].mxu0 %v411
      %v950 = vpop.f32.mrb[0].mxu0
      %v951 = vadd.f32 0.0, %v950
      %v952 = vpop.f32.mrb[0].mxu0
      %953 = vmatprep.mubr.f32.mxu0 0.0
      %954 = vmatmul.mubr.f32.gmra.mrb[0].mxu0 %v414
      %v955 = vpop.f32.mrb[0].mxu0
      %v956 = vadd.f32 0.0, %v955
      %v957 = vpop.f32.mrb[0].mxu0
      %958 = vmatprep.mubr.f32.mxu0 0.0
      %959 = vmatmul.mubr.f32.gmra.mrb[0].mxu0 %v417
      %v960 = vpop.f32.mrb[0].mxu0
      %v961 = vadd.f32 0.0, %v960
      %v962 = vpop.f32.mrb[0].mxu0
      %963 = vmatprep.mubr.f32.mxu0 0.0
      %964 = vmatmul.mubr.f32.gmra.mrb[0].mxu0 %v420
      %v965 = vpop.f32.mrb[0].mxu0
      %v966 = vadd.f32 0.0, %v965
      %v967 = vpop.f32.mrb[0].mxu0
      %968 = vmatprep.mubr.f32.mxu0 0.0
      %969 = vmatmul.mubr.f32.gmra.mrb[0].mxu0 %v423
      %v970 = vpop.f32.mrb[0].mxu0
      %v971 = vadd.f32 0.0, %v970
      %v972 = vpop.f32.mrb[0].mxu0
      %973 = vmatprep.mubr.f32.mxu0 0.0
      %974 = vmatmul.mubr.f32.gmra.mrb[0].mxu0 %v426
      %v975 = vpop.f32.mrb[0].mxu0
      %v976 = vadd.f32 0.0, %v975
      %v977 = vpop.f32.mrb[0].mxu0
      %978 = vmatprep.mubr.f32.mxu0 0.0
      %979 = vmatmul.mubr.f32.gmra.mrb[0].mxu0 %v429
      %v980 = vpop.f32.mrb[0].mxu0
      %v981 = vadd.f32 0.0, %v980
      %v982 = vpop.f32.mrb[0].mxu0
      %983 = vmatprep.mubr.f32.mxu0 0.0
      %984 = vmatmul.mubr.f32.gmra.mrb[0].mxu0 %v432
      %v985 = vpop.f32.mrb[0].mxu0
      %v986 = vadd.f32 0.0, %v985
      %v987 = vpop.f32.mrb[0].mxu0
      %988 = vmatprep.mubr.f32.mxu0 0.0
      %989 = vmatmul.mubr.f32.gmra.mrb[0].mxu0 %v435
      %v990 = vpop.f32.mrb[0].mxu0
      %v991 = vadd.f32 0.0, %v990
      %v992 = vpop.f32.mrb[0].mxu0
      %993 = vmatprep.mubr.f32.mxu0 0.0
      %994 = vmatmul.mubr.f32.gmra.mrb[0].mxu0 %v438
      %v995 = vpop.f32.mrb[0].mxu0
      %v996 = vadd.f32 0.0, %v995
      %v997 = vpop.f32.mrb[0].mxu0
      %998 = vmatprep.mubr.f32.mxu0 0.0
      %999 = vmatmul.mubr.f32.gmra.mrb[0].mxu0 %v441
      %v1000 = vpop.f32.mrb[0].mxu0
      %v1001 = vadd.f32 0.0, %v1000
      %v1002 = vpop.f32.mrb[0].mxu0
      %1003 = vmatprep.mubr.f32.mxu0 0.0
      %1004 = vmatmul.mubr.f32.gmra.mrb[0].mxu0 %v444
      %v1005 = vpop.f32.mrb[0].mxu0
      %v1006 = vadd.f32 0.0, %v1005
      %v1007 = vpop.f32.mrb[0].mxu0
      %1008 = vmatprep.mubr.f32.mxu0 0.0
      %1009 = vmatmul.mubr.f32.gmra.mrb[0].mxu0 %v447
      %v1010 = vpop.f32.mrb[0].mxu0
      %v1011 = vadd.f32 0.0, %v1010
      %v1012 = vpop.f32.mrb[0].mxu0
      %1013 = vmatprep.mubr.f32.mxu0 0.0
      %1014 = vmatmul.mubr.f32.gmra.mrb[0].mxu0 %v450
      %v1015 = vpop.f32.mrb[0].mxu0
      %v1016 = vadd.f32 0.0, %v1015
      %v1017 = vpop.f32.mrb[0].mxu0
      %1018 = vmatprep.mubr.f32.mxu0 0.0
      %1019 = vmatmul.mubr.f32.gmra.mrb[0].mxu0 %v453
      %v1020 = vpop.f32.mrb[0].mxu0
      %v1021 = vadd.f32 0.0, %v1020
      %v1022 = vpop.f32.mrb[0].mxu0
      %1023 = vmatprep.mubr.f32.mxu0 0.0
      %1024 = vmatmul.mubr.f32.gmra.mrb[0].mxu0 %v456
      %v1025 = vpop.f32.mrb[0].mxu0
      %v1026 = vadd.f32 0.0, %v1025
      %v1027 = vpop.f32.mrb[0].mxu0
      %1028 = vmatprep.mubr.f32.mxu0 0.0
      %1029 = vmatmul.mubr.f32.gmra.mrb[0].mxu0 %v459
      %v1030 = vpop.f32.mrb[0].mxu0
      %v1031 = vadd.f32 0.0, %v1030
      %v1032 = vpop.f32.mrb[0].mxu0
      %1033 = vmatprep.mubr.f32.mxu0 0.0
      %1034 = vmatmul.mubr.f32.gmra.mrb[0].mxu0 %v462
      %v1035 = vpop.f32.mrb[0].mxu0
      %v1036 = vadd.f32 0.0, %v1035
      %v1037 = vpop.f32.mrb[0].mxu0
      %1038 = vmatprep.mubr.f32.mxu0 0.0
      %1039 = vmatmul.mubr.f32.gmra.mrb[0].mxu0 %v465
      %v1040 = vpop.f32.mrb[0].mxu0
      %v1041 = vadd.f32 0.0, %v1040
      %v1042 = vpop.f32.mrb[0].mxu0
      %1043 = vmatprep.mubr.f32.mxu0 0.0
      %1044 = vmatmul.mubr.f32.gmra.mrb[0].mxu0 %v468
      %v1045 = vpop.f32.mrb[0].mxu0
      %v1046 = vadd.f32 0.0, %v1045
      %v1047 = vpop.f32.mrb[0].mxu0
      %1048 = vmatprep.mubr.f32.mxu0 0.0
      %1049 = vmatmul.mubr.f32.gmra.mrb[0].mxu0 %v471
      %v1050 = vpop.f32.mrb[0].mxu0
      %v1051 = vadd.f32 0.0, %v1050
      %v1052 = vpop.f32.mrb[0].mxu0
      %1053 = vmatprep.mubr.f32.mxu0 0.0
      %1054 = vmatmul.mubr.f32.gmra.mrb[0].mxu0 %v474
      %v1055 = vpop.f32.mrb[0].mxu0
      %v1056 = vadd.f32 0.0, %v1055
      %v1057 = vpop.f32.mrb[0].mxu0
      %1058 = vmatprep.mubr.f32.mxu0 0.0
      %1059 = vmatmul.mubr.f32.gmra.mrb[0].mxu0 %v477
      %v1060 = vpop.f32.mrb[0].mxu0
      %v1061 = vadd.f32 0.0, %v1060
      %v1062 = vpop.f32.mrb[0].mxu0
      %1063 = vmatprep.mubr.f32.mxu0 0.0
      %1064 = vmatmul.mubr.f32.gmra.mrb[0].mxu0 %v480
      %v1065 = vpop.f32.mrb[0].mxu0
      %v1066 = vadd.f32 0.0, %v1065
      %v1067 = vpop.f32.mrb[0].mxu0
      %1068 = vmatprep.mubr.f32.mxu0 0.0
      %1069 = vmatmul.mubr.f32.gmra.mrb[0].mxu0 %v483
      %v1070 = vpop.f32.mrb[0].mxu0
      %v1071 = vadd.f32 0.0, %v1070
      %v1072 = vpop.f32.mrb[0].mxu0
      %1073 = vmatprep.mubr.f32.mxu0 0.0
      %1074 = vmatmul.mubr.f32.gmra.mrb[0].mxu0 %v486
      %v1075 = vpop.f32.mrb[0].mxu0
      %v1076 = vadd.f32 0.0, %v1075
      %v1077 = vpop.f32.mrb[0].mxu0
      %1078 = vmatprep.mubr.f32.mxu0 0.0
      %1079 = vmatmul.mubr.f32.gmra.mrb[0].mxu0 %v489
      %v1080 = vpop.f32.mrb[0].mxu0
      %v1081 = vadd.f32 0.0, %v1080
      %v1082 = vpop.f32.mrb[0].mxu0
      %1083 = vmatprep.mubr.f32.mxu0 0.0
      %1084 = vmatmul.mubr.f32.gmra.mrb[0].mxu0 %v492
      %v1085 = vpop.f32.mrb[0].mxu0
      %v1086 = vadd.f32 0.0, %v1085
      %v1087 = vpop.f32.mrb[0].mxu0
      %1088 = vmatprep.mubr.f32.mxu0 0.0
      %1089 = vmatmul.mubr.f32.gmra.mrb[0].mxu0 %v495
      %v1090 = vpop.f32.mrb[0].mxu0
      %v1091 = vadd.f32 0.0, %v1090
      %v1092 = vpop.f32.mrb[0].mxu0
      %1093 = vmatprep.mubr.f32.mxu0 0.0
      %1094 = vmatmul.mubr.f32.gmra.mrb[0].mxu0 %v498
      %v1095 = vpop.f32.mrb[0].mxu0
      %v1096 = vadd.f32 0.0, %v1095
      %v1097 = vpop.f32.mrb[0].mxu0
      %1098 = vmatprep.mubr.f32.mxu0 0.0
      %1099 = vmatmul.mubr.f32.gmra.mrb[0].mxu0 %v501
      %v1100 = vpop.f32.mrb[0].mxu0
      %v1101 = vadd.f32 0.0, %v1100
      %v1102 = vpop.f32.mrb[0].mxu0
      %1103 = vmatprep.mubr.f32.mxu0 0.0
      %1104 = vmatmul.mubr.f32.gmra.mrb[0].mxu0 %v504
      %v1105 = vpop.f32.mrb[0].mxu0
      %v1106 = vadd.f32 0.0, %v1105
      %v1107 = vpop.f32.mrb[0].mxu0
      %1108 = vmatprep.mubr.f32.mxu0 0.0
      %1109 = vmatmul.mubr.f32.gmra.mrb[0].mxu0 %v507
      %v1110 = vpop.f32.mrb[0].mxu0
      %v1111 = vadd.f32 0.0, %v1110
      %v1112 = vpop.f32.mrb[0].mxu0
      %1113 = vmatprep.mubr.f32.mxu0 0.0
      %1114 = vmatmul.mubr.f32.gmra.mrb[0].mxu0 %v510
      %v1115 = vpop.f32.mrb[0].mxu0
      %v1116 = vadd.f32 0.0, %v1115
      %v1117 = vpop.f32.mrb[0].mxu0
      %1118 = vmatprep.mubr.f32.mxu0 0.0
      %1119 = vmatmul.mubr.f32.gmra.mrb[0].mxu0 %v513
      %v1120 = vpop.f32.mrb[0].mxu0
      %v1121 = vadd.f32 0.0, %v1120
      %v1122 = vpop.f32.mrb[0].mxu0
      %1123 = vmatprep.mubr.f32.mxu0 0.0
      %1124 = vmatmul.mubr.f32.gmra.mrb[0].mxu0 %v516
      %v1125 = vpop.f32.mrb[0].mxu0
      %v1126 = vadd.f32 0.0, %v1125
      %v1127 = vpop.f32.mrb[0].mxu0
      %1128 = vmatprep.mubr.f32.mxu0 0.0
      %1129 = vmatmul.mubr.f32.gmra.mrb[0].mxu0 %v519
      %v1130 = vpop.f32.mrb[0].mxu0
      %v1131 = vadd.f32 0.0, %v1130
      %v1132 = vpop.f32.mrb[0].mxu0
      %1133 = vmatprep.mubr.f32.mxu0 0.0
      %1134 = vmatmul.mubr.f32.gmra.mrb[0].mxu0 %v522
      %v1135 = vpop.f32.mrb[0].mxu0
      %v1136 = vadd.f32 0.0, %v1135
      %v1137 = vpop.f32.mrb[0].mxu0
      %1138 = vmatprep.mubr.f32.mxu0 0.0
      %1139 = vmatmul.mubr.f32.gmra.mrb[0].mxu0 %v525
      %v1140 = vpop.f32.mrb[0].mxu0
      %v1141 = vadd.f32 0.0, %v1140
      %v1142 = vpop.f32.mrb[0].mxu0
      %1143 = vmatprep.mubr.f32.mxu0 0.0
      %1144 = vmatmul.mubr.f32.gmra.mrb[0].mxu0 %v528
      %v1145 = vpop.f32.mrb[0].mxu0
      %v1146 = vadd.f32 0.0, %v1145
      %v1147 = vpop.f32.mrb[0].mxu0
      %1148 = vmatprep.mubr.f32.mxu0 0.0
      %1149 = vmatmul.mubr.f32.gmra.mrb[0].mxu0 %v531
      %v1150 = vpop.f32.mrb[0].mxu0
      %v1151 = vadd.f32 0.0, %v1150
      %v1152 = vpop.f32.mrb[0].mxu0
      %1153 = vmatprep.mubr.f32.mxu0 0.0
      %1154 = vmatmul.mubr.f32.gmra.mrb[0].mxu0 %v534
      %v1155 = vpop.f32.mrb[0].mxu0
      %v1156 = vadd.f32 0.0, %v1155
      %v1157 = vpop.f32.mrb[0].mxu0
      %1158 = vmatprep.mubr.f32.mxu0 0.0
      %1159 = vmatmul.mubr.f32.gmra.mrb[0].mxu0 %v537
      %v1160 = vpop.f32.mrb[0].mxu0
      %v1161 = vadd.f32 0.0, %v1160
      %v1162 = vpop.f32.mrb[0].mxu0
      %1163 = vmatprep.mubr.f32.mxu0 0.0
      %1164 = vmatmul.mubr.f32.gmra.mrb[0].mxu0 %v540
      %v1165 = vpop.f32.mrb[0].mxu0
      %v1166 = vadd.f32 0.0, %v1165
      %v1167 = vpop.f32.mrb[0].mxu0
      %1168 = vmatprep.mubr.f32.mxu0 0.0
      %1169 = vmatmul.mubr.f32.gmra.mrb[0].mxu0 %v543
      %v1170 = vpop.f32.mrb[0].mxu0
      %v1171 = vadd.f32 0.0, %v1170
      %v1172 = vpop.f32.mrb[0].mxu0
      %1173 = vmatprep.mubr.f32.mxu0 0.0
      %1174 = vmatmul.mubr.f32.gmra.mrb[0].mxu0 %v546
      %v1175 = vpop.f32.mrb[0].mxu0
      %v1176 = vadd.f32 0.0, %v1175
      %v1177 = vpop.f32.mrb[0].mxu0
      %1178 = vmatprep.mubr.f32.mxu0 0.0
      %1179 = vmatmul.mubr.f32.gmra.mrb[0].mxu0 %v549
      %v1180 = vpop.f32.mrb[0].mxu0
      %v1181 = vadd.f32 0.0, %v1180
      %v1182 = vpop.f32.mrb[0].mxu0
      %1183 = vmatprep.mubr.f32.mxu0 0.0
      %1184 = vmatmul.mubr.f32.gmra.mrb[0].mxu0 %v552
      %v1185 = vpop.f32.mrb[0].mxu0
      %v1186 = vadd.f32 0.0, %v1185
      %v1187 = vpop.f32.mrb[0].mxu0
      %1188 = vmatprep.mubr.f32.mxu0 0.0
      %1189 = vmatmul.mubr.f32.gmra.mrb[0].mxu0 %v555
      %v1190 = vpop.f32.mrb[0].mxu0
      %v1191 = vadd.f32 0.0, %v1190
      %v1192 = vpop.f32.mrb[0].mxu0
      %1193 = vmatprep.mubr.f32.mxu0 0.0
      %1194 = vmatmul.mubr.f32.gmra.mrb[0].mxu0 %v558
      %v1195 = vpop.f32.mrb[0].mxu0
      %v1196 = vadd.f32 0.0, %v1195
      %v1197 = vpop.f32.mrb[0].mxu0
      %1198 = vmatprep.mubr.f32.mxu0 0.0
      %1199 = vmatmul.mubr.f32.gmra.mrb[0].mxu0 %v561
      %v1200 = vpop.f32.mrb[0].mxu0
      %v1201 = vadd.f32 0.0, %v1200
      %v1202 = vpop.f32.mrb[0].mxu0
      %1203 = vmatprep.mubr.f32.mxu0 0.0
      %1204 = vmatmul.mubr.f32.gmra.mrb[0].mxu0 %v564
      %v1205 = vpop.f32.mrb[0].mxu0
      %v1206 = vadd.f32 0.0, %v1205
      %v1207 = vpop.f32.mrb[0].mxu0
      %1208 = vmatprep.mubr.f32.mxu0 0.0
      %1209 = vmatmul.mubr.f32.gmra.mrb[0].mxu0 %v567
      %v1210 = vpop.f32.mrb[0].mxu0
      %v1211 = vadd.f32 0.0, %v1210
      %v1212 = vpop.f32.mrb[0].mxu0
      %1213 = vmatprep.mubr.f32.mxu0 0.0
      %1214 = vmatmul.mubr.f32.gmra.mrb[0].mxu0 %v570
      %v1215 = vpop.f32.mrb[0].mxu0
      %v1216 = vadd.f32 0.0, %v1215
      %v1217 = vpop.f32.mrb[0].mxu0
      %1218 = vmatprep.mubr.f32.mxu0 0.0
      %1219 = vmatmul.mubr.f32.gmra.mrb[0].mxu0 %v573
      %v1220 = vpop.f32.mrb[0].mxu0
      %v1221 = vadd.f32 0.0, %v1220
      %v1222 = vpop.f32.mrb[0].mxu0
      %1223 = vmatprep.mubr.f32.mxu0 0.0
      %1224 = vmatmul.mubr.f32.gmra.mrb[0].mxu0 %v576
      %v1225 = vpop.f32.mrb[0].mxu0
      %v1226 = vadd.f32 0.0, %v1225
      %v1227 = vpop.f32.mrb[0].mxu0
      %1228 = vmatprep.mubr.f32.mxu0 0.0
      %1229 = vmatmul.mubr.f32.gmra.mrb[0].mxu0 %v579
      %v1230 = vpop.f32.mrb[0].mxu0
      %v1231 = vadd.f32 0.0, %v1230
      %v1232 = vpop.f32.mrb[0].mxu0
      %1233 = vmatprep.mubr.f32.mxu0 0.0
      %1234 = vmatmul.mubr.f32.gmra.mrb[0].mxu0 %v582
      %v1235 = vpop.f32.mrb[0].mxu0
      %v1236 = vadd.f32 0.0, %v1235
      %v1237 = vpop.f32.mrb[0].mxu0
      %1238 = vmatprep.mubr.f32.mxu0 0.0
      %1239 = vmatmul.mubr.f32.gmra.mrb[0].mxu0 %v585
      %v1240 = vpop.f32.mrb[0].mxu0
      %v1241 = vadd.f32 0.0, %v1240
      %v1242 = vpop.f32.mrb[0].mxu0
      %1243 = vmatprep.mubr.f32.mxu0 0.0
      %1244 = vmatmul.mubr.f32.gmra.mrb[0].mxu0 %v588
      %v1245 = vpop.f32.mrb[0].mxu0
      %v1246 = vadd.f32 0.0, %v1245
      %v1247 = vpop.f32.mrb[0].mxu0
      %1248 = vmatprep.mubr.f32.mxu0 0.0
      %1249 = vmatmul.mubr.f32.gmra.mrb[0].mxu0 %v591
      %v1250 = vpop.f32.mrb[0].mxu0
      %v1251 = vadd.f32 0.0, %v1250
      %v1252 = vpop.f32.mrb[0].mxu0
      %1253 = vmatprep.mubr.f32.mxu0 0.0
      %1254 = vmatmul.mubr.f32.gmra.mrb[0].mxu0 %v594
      %v1255 = vpop.f32.mrb[0].mxu0
      %v1256 = vadd.f32 0.0, %v1255
      %v1257 = vpop.f32.mrb[0].mxu0
      %1258 = vmatprep.mubr.f32.mxu0 0.0
      %1259 = vmatmul.mubr.f32.gmra.mrb[0].mxu0 %v597
      %v1260 = vpop.f32.mrb[0].mxu0
      %v1261 = vadd.f32 0.0, %v1260
      %v1262 = vpop.f32.mrb[0].mxu0
      %1263 = vmatprep.mubr.f32.mxu0 0.0
      %1264 = vmatmul.mubr.f32.gmra.mrb[0].mxu0 %v600
      %v1265 = vpop.f32.mrb[0].mxu0
      %v1266 = vadd.f32 0.0, %v1265
      %v1267 = vpop.f32.mrb[0].mxu0
      %1268 = vmatprep.mubr.f32.mxu0 0.0
      %1269 = vmatmul.mubr.f32.gmra.mrb[0].mxu0 %v603
      %v1270 = vpop.f32.mrb[0].mxu0
      %v1271 = vadd.f32 0.0, %v1270
      %v1272 = vpop.f32.mrb[0].mxu0
      %1273 = vmatprep.mubr.f32.mxu0 0.0
      %1274 = vmatmul.mubr.f32.gmra.mrb[0].mxu0 %v606
      %v1275 = vpop.f32.mrb[0].mxu0
      %v1276 = vadd.f32 0.0, %v1275
      %v1277 = vpop.f32.mrb[0].mxu0
      %1278 = vmatprep.mubr.f32.mxu0 0.0
      %1279 = vmatmul.mubr.f32.gmra.mrb[0].mxu0 %v609
      %v1280 = vpop.f32.mrb[0].mxu0
      %v1281 = vadd.f32 0.0, %v1280
      %v1282 = vpop.f32.mrb[0].mxu0
      %1283 = vmatprep.mubr.f32.mxu0 0.0
      %1284 = vmatmul.mubr.f32.gmra.mrb[0].mxu0 %v612
      %v1285 = vpop.f32.mrb[0].mxu0
      %v1286 = vadd.f32 0.0, %v1285
      %v1287 = vpop.f32.mrb[0].mxu0
      %1288 = vmatprep.mubr.f32.mxu0 0.0
      %1289 = vmatmul.mubr.f32.gmra.mrb[0].mxu0 %v615
      %v1290 = vpop.f32.mrb[0].mxu0
      %v1291 = vadd.f32 0.0, %v1290
      %v1292 = vpop.f32.mrb[0].mxu0
      %1293 = vmatprep.mubr.f32.mxu0 0.0
      %1294 = vmatmul.mubr.f32.gmra.mrb[0].mxu0 %v618
      %v1295 = vpop.f32.mrb[0].mxu0
      %v1296 = vadd.f32 0.0, %v1295
      %v1297 = vpop.f32.mrb[0].mxu0
      %1298 = vmatprep.mubr.f32.mxu0 0.0
      %1299 = vmatmul.mubr.f32.gmra.mrb[0].mxu0 %v621
      %v1300 = vpop.f32.mrb[0].mxu0
      %v1301 = vadd.f32 0.0, %v1300
      %v1302 = vpop.f32.mrb[0].mxu0
      %1303 = vmatprep.mubr.f32.mxu0 0.0
      %1304 = vmatmul.mubr.f32.gmra.mrb[0].mxu0 %v624
      %v1305 = vpop.f32.mrb[0].mxu0
      %v1306 = vadd.f32 0.0, %v1305
      %v1307 = vpop.f32.mrb[0].mxu0
      %1308 = vmatprep.mubr.f32.mxu0 0.0
      %1309 = vmatmul.mubr.f32.gmra.mrb[0].mxu0 %v627
      %v1310 = vpop.f32.mrb[0].mxu0
      %v1311 = vadd.f32 0.0, %v1310
      %v1312 = vpop.f32.mrb[0].mxu0
      %1313 = vmatprep.mubr.f32.mxu0 0.0
      %1314 = vmatmul.mubr.f32.gmra.mrb[0].mxu0 %v630
      %v1315 = vpop.f32.mrb[0].mxu0
      %v1316 = vadd.f32 0.0, %v1315
      %v1317 = vpop.f32.mrb[0].mxu0
      %1318 = vmatprep.mubr.f32.mxu0 0.0
      %1319 = vmatmul.mubr.f32.gmra.mrb[0].mxu0 %v633
      %v1320 = vpop.f32.mrb[0].mxu0
      %v1321 = vadd.f32 0.0, %v1320
      %v1322 = vpop.f32.mrb[0].mxu0
      %1323 = vmatprep.mubr.f32.mxu0 0.0
      %1324 = vmatmul.mubr.f32.gmra.mrb[0].mxu0 %v636
      %v1325 = vpop.f32.mrb[0].mxu0
      %v1326 = vadd.f32 0.0, %v1325
      %v1327 = vpop.f32.mrb[0].mxu0
      %1328 = vmatprep.mubr.f32.mxu0 0.0
      %1329 = vmatmul.mubr.f32.gmra.mrb[0].mxu0 %v639
      %v1330 = vpop.f32.mrb[0].mxu0
      %v1331 = vadd.f32 0.0, %v1330
      %v1332 = vpop.f32.mrb[0].mxu0
      %1333 = vmatprep.mubr.f32.mxu0 0.0
      %1334 = vmatmul.mubr.f32.gmra.mrb[0].mxu0 %v642
      %v1335 = vpop.f32.mrb[0].mxu0
      %v1336 = vadd.f32 0.0, %v1335
      %v1337 = vpop.f32.mrb[0].mxu0
      %1338 = vmatprep.mubr.f32.mxu0 0.0
      %1339 = vmatmul.mubr.f32.gmra.mrb[0].mxu0 %v645
      %v1340 = vpop.f32.mrb[0].mxu0
      %v1341 = vadd.f32 0.0, %v1340
      %v1342 = vpop.f32.mrb[0].mxu0
      %1343 = vmatprep.mubr.f32.mxu0 0.0
      %1344 = vmatmul.mubr.f32.gmra.mrb[0].mxu0 %v648
      %v1345 = vpop.f32.mrb[0].mxu0
      %v1346 = vadd.f32 0.0, %v1345
      %v1347 = vpop.f32.mrb[0].mxu0
      %1348 = vmatprep.mubr.f32.mxu0 0.0
      %1349 = vmatmul.mubr.f32.gmra.mrb[0].mxu0 %v651
      %v1350 = vpop.f32.mrb[0].mxu0
      %v1351 = vadd.f32 0.0, %v1350
      %v1352 = vpop.f32.mrb[0].mxu0
      %1353 = vmatprep.mubr.f32.mxu0 0.0
      %1354 = vmatmul.mubr.f32.gmra.mrb[0].mxu0 %v654
      %v1355 = vpop.f32.mrb[0].mxu0
      %v1356 = vadd.f32 0.0, %v1355
      %v1357 = vpop.f32.mrb[0].mxu0
      %1358 = vmatprep.mubr.f32.mxu0 0.0
      %1359 = vmatmul.mubr.f32.gmra.mrb[0].mxu0 %v657
      %v1360 = vpop.f32.mrb[0].mxu0
      %v1361 = vadd.f32 0.0, %v1360
      %v1362 = vpop.f32.mrb[0].mxu0
      %1363 = vdwg.mxu0
      %vm1364 = vcmp.ge.f32.partialorder %v726, 0.0
      %vm1365 = vcmp.ge.f32.partialorder %v731, 0.0
      %vm1366 = vcmp.ge.f32.partialorder %v736, 0.0
      %vm1367 = vcmp.ge.f32.partialorder %v741, 0.0
      %vm1368 = vcmp.ge.f32.partialorder %v746, 0.0
      %vm1369 = vcmp.ge.f32.partialorder %v751, 0.0
      %vm1370 = vcmp.ge.f32.partialorder %v756, 0.0
      %vm1371 = vcmp.ge.f32.partialorder %v761, 0.0
      %vm1372 = vcmp.ge.f32.partialorder %v766, 0.0
      %vm1373 = vcmp.ge.f32.partialorder %v771, 0.0
      %vm1374 = vcmp.ge.f32.partialorder %v776, 0.0
      %vm1375 = vcmp.ge.f32.partialorder %v781, 0.0
      %vm1376 = vcmp.ge.f32.partialorder %v786, 0.0
      %vm1377 = vcmp.ge.f32.partialorder %v791, 0.0
      %vm1378 = vcmp.ge.f32.partialorder %v796, 0.0
      %vm1379 = vcmp.ge.f32.partialorder %v801, 0.0
      %vm1380 = vcmp.ge.f32.partialorder %v806, 0.0
      %vm1381 = vcmp.ge.f32.partialorder %v811, 0.0
      %vm1382 = vcmp.ge.f32.partialorder %v816, 0.0
      %vm1383 = vcmp.ge.f32.partialorder %v821, 0.0
      %vm1384 = vcmp.ge.f32.partialorder %v826, 0.0
      %vm1385 = vcmp.ge.f32.partialorder %v831, 0.0
      %vm1386 = vcmp.ge.f32.partialorder %v836, 0.0
      %vm1387 = vcmp.ge.f32.partialorder %v841, 0.0
      %vm1388 = vcmp.ge.f32.partialorder %v846, 0.0
      %vm1389 = vcmp.ge.f32.partialorder %v851, 0.0
      %vm1390 = vcmp.ge.f32.partialorder %v856, 0.0
      %vm1391 = vcmp.ge.f32.partialorder %v861, 0.0
      %vm1392 = vcmp.ge.f32.partialorder %v866, 0.0
      %vm1393 = vcmp.ge.f32.partialorder %v871, 0.0
      %vm1394 = vcmp.ge.f32.partialorder %v876, 0.0
      %vm1395 = vcmp.ge.f32.partialorder %v881, 0.0
      %vm1396 = vcmp.ge.f32.partialorder %v886, 0.0
      %vm1397 = vcmp.ge.f32.partialorder %v891, 0.0
      %vm1398 = vcmp.ge.f32.partialorder %v896, 0.0
      %vm1399 = vcmp.ge.f32.partialorder %v901, 0.0
      %vm1400 = vcmp.ge.f32.partialorder %v906, 0.0
      %vm1401 = vcmp.ge.f32.partialorder %v911, 0.0
      %vm1402 = vcmp.ge.f32.partialorder %v916, 0.0
      %vm1403 = vcmp.ge.f32.partialorder %v921, 0.0
      %vm1404 = vcmp.ge.f32.partialorder %v926, 0.0
      %vm1405 = vcmp.ge.f32.partialorder %v931, 0.0
      %vm1406 = vcmp.ge.f32.partialorder %v936, 0.0
      %vm1407 = vcmp.ge.f32.partialorder %v941, 0.0
      %vm1408 = vcmp.ge.f32.partialorder %v946, 0.0
      %vm1409 = vcmp.ge.f32.partialorder %v951, 0.0
      %vm1410 = vcmp.ge.f32.partialorder %v956, 0.0
      %vm1411 = vcmp.ge.f32.partialorder %v961, 0.0
      %vm1412 = vcmp.ge.f32.partialorder %v966, 0.0
      %vm1413 = vcmp.ge.f32.partialorder %v971, 0.0
      %vm1414 = vcmp.ge.f32.partialorder %v976, 0.0
      %vm1415 = vcmp.ge.f32.partialorder %v981, 0.0
      %vm1416 = vcmp.ge.f32.partialorder %v986, 0.0
      %vm1417 = vcmp.ge.f32.partialorder %v991, 0.0
      %vm1418 = vcmp.ge.f32.partialorder %v996, 0.0
      %vm1419 = vcmp.ge.f32.partialorder %v1001, 0.0
      %vm1420 = vcmp.ge.f32.partialorder %v1006, 0.0
      %vm1421 = vcmp.ge.f32.partialorder %v1011, 0.0
      %vm1422 = vcmp.ge.f32.partialorder %v1016, 0.0
      %vm1423 = vcmp.ge.f32.partialorder %v1021, 0.0
      %vm1424 = vcmp.ge.f32.partialorder %v1026, 0.0
      %vm1425 = vcmp.ge.f32.partialorder %v1031, 0.0
      %vm1426 = vcmp.ge.f32.partialorder %v1036, 0.0
      %vm1427 = vcmp.ge.f32.partialorder %v1041, 0.0
      %vm1428 = vcmp.ge.f32.partialorder %v1046, 0.0
      %vm1429 = vcmp.ge.f32.partialorder %v1051, 0.0
      %vm1430 = vcmp.ge.f32.partialorder %v1056, 0.0
      %vm1431 = vcmp.ge.f32.partialorder %v1061, 0.0
      %vm1432 = vcmp.ge.f32.partialorder %v1066, 0.0
      %vm1433 = vcmp.ge.f32.partialorder %v1071, 0.0
      %vm1434 = vcmp.ge.f32.partialorder %v1076, 0.0
      %vm1435 = vcmp.ge.f32.partialorder %v1081, 0.0
      %vm1436 = vcmp.ge.f32.partialorder %v1086, 0.0
      %vm1437 = vcmp.ge.f32.partialorder %v1091, 0.0
      %vm1438 = vcmp.ge.f32.partialorder %v1096, 0.0
      %vm1439 = vcmp.ge.f32.partialorder %v1101, 0.0
      %vm1440 = vcmp.ge.f32.partialorder %v1106, 0.0
      %vm1441 = vcmp.ge.f32.partialorder %v1111, 0.0
      %vm1442 = vcmp.ge.f32.partialorder %v1116, 0.0
      %vm1443 = vcmp.ge.f32.partialorder %v1121, 0.0
      %vm1444 = vcmp.ge.f32.partialorder %v1126, 0.0
      %vm1445 = vcmp.ge.f32.partialorder %v1131, 0.0
      %vm1446 = vcmp.ge.f32.partialorder %v1136, 0.0
      %vm1447 = vcmp.ge.f32.partialorder %v1141, 0.0
      %vm1448 = vcmp.ge.f32.partialorder %v1146, 0.0
      %vm1449 = vcmp.ge.f32.partialorder %v1151, 0.0
      %vm1450 = vcmp.ge.f32.partialorder %v1156, 0.0
      %vm1451 = vcmp.ge.f32.partialorder %v1161, 0.0
      %vm1452 = vcmp.ge.f32.partialorder %v1166, 0.0
      %vm1453 = vcmp.ge.f32.partialorder %v1171, 0.0
      %vm1454 = vcmp.ge.f32.partialorder %v1176, 0.0
      %vm1455 = vcmp.ge.f32.partialorder %v1181, 0.0
      %vm1456 = vcmp.ge.f32.partialorder %v1186, 0.0
      %vm1457 = vcmp.ge.f32.partialorder %v1191, 0.0
      %vm1458 = vcmp.ge.f32.partialorder %v1196, 0.0
      %vm1459 = vcmp.ge.f32.partialorder %v1201, 0.0
      %vm1460 = vcmp.ge.f32.partialorder %v1206, 0.0
      %vm1461 = vcmp.ge.f32.partialorder %v1211, 0.0
      %vm1462 = vcmp.ge.f32.partialorder %v1216, 0.0
      %vm1463 = vcmp.ge.f32.partialorder %v1221, 0.0
      %vm1464 = vcmp.ge.f32.partialorder %v1226, 0.0
      %vm1465 = vcmp.ge.f32.partialorder %v1231, 0.0
      %vm1466 = vcmp.ge.f32.partialorder %v1236, 0.0
      %vm1467 = vcmp.ge.f32.partialorder %v1241, 0.0
      %vm1468 = vcmp.ge.f32.partialorder %v1246, 0.0
      %vm1469 = vcmp.ge.f32.partialorder %v1251, 0.0
      %vm1470 = vcmp.ge.f32.partialorder %v1256, 0.0
      %vm1471 = vcmp.ge.f32.partialorder %v1261, 0.0
      %vm1472 = vcmp.ge.f32.partialorder %v1266, 0.0
      %vm1473 = vcmp.ge.f32.partialorder %v1271, 0.0
      %vm1474 = vcmp.ge.f32.partialorder %v1276, 0.0
      %vm1475 = vcmp.ge.f32.partialorder %v1281, 0.0
      %vm1476 = vcmp.ge.f32.partialorder %v1286, 0.0
      %vm1477 = vcmp.ge.f32.partialorder %v1291, 0.0
      %vm1478 = vcmp.ge.f32.partialorder %v1296, 0.0
      %vm1479 = vcmp.ge.f32.partialorder %v1301, 0.0
      %vm1480 = vcmp.ge.f32.partialorder %v1306, 0.0
      %vm1481 = vcmp.ge.f32.partialorder %v1311, 0.0
      %vm1482 = vcmp.ge.f32.partialorder %v1316, 0.0
      %vm1483 = vcmp.ge.f32.partialorder %v1321, 0.0
      %vm1484 = vcmp.ge.f32.partialorder %v1326, 0.0
      %vm1485 = vcmp.ge.f32.partialorder %v1331, 0.0
      %vm1486 = vcmp.ge.f32.partialorder %v1336, 0.0
      %vm1487 = vcmp.ge.f32.partialorder %v1341, 0.0
      %vm1488 = vcmp.ge.f32.partialorder %v1346, 0.0
      %vm1489 = vcmp.ge.f32.partialorder %v1351, 0.0
      %vm1490 = vcmp.ge.f32.partialorder %v1356, 0.0
      %vm1491 = vcmp.ge.f32.partialorder %v1361, 0.0
      %v1492 = vmul.f32 %v726, 0.2
      %v1493 = vmul.f32 %v731, 0.2
      %v1494 = vmul.f32 %v736, 0.2
      %v1495 = vmul.f32 %v741, 0.2
      %v1496 = vmul.f32 %v746, 0.2
      %v1497 = vmul.f32 %v751, 0.2
      %v1498 = vmul.f32 %v756, 0.2
      %v1499 = vmul.f32 %v761, 0.2
      %v1500 = vmul.f32 %v766, 0.2
      %v1501 = vmul.f32 %v771, 0.2
      %v1502 = vmul.f32 %v776, 0.2
      %v1503 = vmul.f32 %v781, 0.2
      %v1504 = vmul.f32 %v786, 0.2
      %v1505 = vmul.f32 %v791, 0.2
      %v1506 = vmul.f32 %v796, 0.2
      %v1507 = vmul.f32 %v801, 0.2
      %v1508 = vmul.f32 %v806, 0.2
      %v1509 = vmul.f32 %v811, 0.2
      %v1510 = vmul.f32 %v816, 0.2
      %v1511 = vmul.f32 %v821, 0.2
      %v1512 = vmul.f32 %v826, 0.2
      %v1513 = vmul.f32 %v831, 0.2
      %v1514 = vmul.f32 %v836, 0.2
      %v1515 = vmul.f32 %v841, 0.2
      %v1516 = vmul.f32 %v846, 0.2
      %v1517 = vmul.f32 %v851, 0.2
      %v1518 = vmul.f32 %v856, 0.2
      %v1519 = vmul.f32 %v861, 0.2
      %v1520 = vmul.f32 %v866, 0.2
      %v1521 = vmul.f32 %v871, 0.2
      %v1522 = vmul.f32 %v876, 0.2
      %v1523 = vmul.f32 %v881, 0.2
      %v1524 = vmul.f32 %v886, 0.2
      %v1525 = vmul.f32 %v891, 0.2
      %v1526 = vmul.f32 %v896, 0.2
      %v1527 = vmul.f32 %v901, 0.2
      %v1528 = vmul.f32 %v906, 0.2
      %v1529 = vmul.f32 %v911, 0.2
      %v1530 = vmul.f32 %v916, 0.2
      %v1531 = vmul.f32 %v921, 0.2
      %v1532 = vmul.f32 %v926, 0.2
      %v1533 = vmul.f32 %v931, 0.2
      %v1534 = vmul.f32 %v936, 0.2
      %v1535 = vmul.f32 %v941, 0.2
      %v1536 = vmul.f32 %v946, 0.2
      %v1537 = vmul.f32 %v951, 0.2
      %v1538 = vmul.f32 %v956, 0.2
      %v1539 = vmul.f32 %v961, 0.2
      %v1540 = vmul.f32 %v966, 0.2
      %v1541 = vmul.f32 %v971, 0.2
      %v1542 = vmul.f32 %v976, 0.2
      %v1543 = vmul.f32 %v981, 0.2
      %v1544 = vmul.f32 %v986, 0.2
      %v1545 = vmul.f32 %v991, 0.2
      %v1546 = vmul.f32 %v996, 0.2
      %v1547 = vmul.f32 %v1001, 0.2
      %v1548 = vmul.f32 %v1006, 0.2
      %v1549 = vmul.f32 %v1011, 0.2
      %v1550 = vmul.f32 %v1016, 0.2
      %v1551 = vmul.f32 %v1021, 0.2
      %v1552 = vmul.f32 %v1026, 0.2
      %v1553 = vmul.f32 %v1031, 0.2
      %v1554 = vmul.f32 %v1036, 0.2
      %v1555 = vmul.f32 %v1041, 0.2
      %v1556 = vmul.f32 %v1046, 0.2
      %v1557 = vmul.f32 %v1051, 0.2
      %v1558 = vmul.f32 %v1056, 0.2
      %v1559 = vmul.f32 %v1061, 0.2
      %v1560 = vmul.f32 %v1066, 0.2
      %v1561 = vmul.f32 %v1071, 0.2
      %v1562 = vmul.f32 %v1076, 0.2
      %v1563 = vmul.f32 %v1081, 0.2
      %v1564 = vmul.f32 %v1086, 0.2
      %v1565 = vmul.f32 %v1091, 0.2
      %v1566 = vmul.f32 %v1096, 0.2
      %v1567 = vmul.f32 %v1101, 0.2
      %v1568 = vmul.f32 %v1106, 0.2
      %v1569 = vmul.f32 %v1111, 0.2
      %v1570 = vmul.f32 %v1116, 0.2
      %v1571 = vmul.f32 %v1121, 0.2
      %v1572 = vmul.f32 %v1126, 0.2
      %v1573 = vmul.f32 %v1131, 0.2
      %v1574 = vmul.f32 %v1136, 0.2
      %v1575 = vmul.f32 %v1141, 0.2
      %v1576 = vmul.f32 %v1146, 0.2
      %v1577 = vmul.f32 %v1151, 0.2
      %v1578 = vmul.f32 %v1156, 0.2
      %v1579 = vmul.f32 %v1161, 0.2
      %v1580 = vmul.f32 %v1166, 0.2
      %v1581 = vmul.f32 %v1171, 0.2
      %v1582 = vmul.f32 %v1176, 0.2
      %v1583 = vmul.f32 %v1181, 0.2
      %v1584 = vmul.f32 %v1186, 0.2
      %v1585 = vmul.f32 %v1191, 0.2
      %v1586 = vmul.f32 %v1196, 0.2
      %v1587 = vmul.f32 %v1201, 0.2
      %v1588 = vmul.f32 %v1206, 0.2
      %v1589 = vmul.f32 %v1211, 0.2
      %v1590 = vmul.f32 %v1216, 0.2
      %v1591 = vmul.f32 %v1221, 0.2
      %v1592 = vmul.f32 %v1226, 0.2
      %v1593 = vmul.f32 %v1231, 0.2
      %v1594 = vmul.f32 %v1236, 0.2
      %v1595 = vmul.f32 %v1241, 0.2
      %v1596 = vmul.f32 %v1246, 0.2
      %v1597 = vmul.f32 %v1251, 0.2
      %v1598 = vmul.f32 %v1256, 0.2
      %v1599 = vmul.f32 %v1261, 0.2
      %v1600 = vmul.f32 %v1266, 0.2
      %v1601 = vmul.f32 %v1271, 0.2
      %v1602 = vmul.f32 %v1276, 0.2
      %v1603 = vmul.f32 %v1281, 0.2
      %v1604 = vmul.f32 %v1286, 0.2
      %v1605 = vmul.f32 %v1291, 0.2
      %v1606 = vmul.f32 %v1296, 0.2
      %v1607 = vmul.f32 %v1301, 0.2
      %v1608 = vmul.f32 %v1306, 0.2
      %v1609 = vmul.f32 %v1311, 0.2
      %v1610 = vmul.f32 %v1316, 0.2
      %v1611 = vmul.f32 %v1321, 0.2
      %v1612 = vmul.f32 %v1326, 0.2
      %v1613 = vmul.f32 %v1331, 0.2
      %v1614 = vmul.f32 %v1336, 0.2
      %v1615 = vmul.f32 %v1341, 0.2
      %v1616 = vmul.f32 %v1346, 0.2
      %v1617 = vmul.f32 %v1351, 0.2
      %v1618 = vmul.f32 %v1356, 0.2
      %v1619 = vmul.f32 %v1361, 0.2
      %v1620 = vsel %vm1364, %v726, %v1492
      %v1621 = vsel %vm1365, %v731, %v1493
      %v1622 = vsel %vm1366, %v736, %v1494
      %v1623 = vsel %vm1367, %v741, %v1495
      %v1624 = vsel %vm1368, %v746, %v1496
      %v1625 = vsel %vm1369, %v751, %v1497
      %v1626 = vsel %vm1370, %v756, %v1498
      %v1627 = vsel %vm1371, %v761, %v1499
      %v1628 = vsel %vm1372, %v766, %v1500
      %v1629 = vsel %vm1373, %v771, %v1501
      %v1630 = vsel %vm1374, %v776, %v1502
      %v1631 = vsel %vm1375, %v781, %v1503
      %v1632 = vsel %vm1376, %v786, %v1504
      %v1633 = vsel %vm1377, %v791, %v1505
      %v1634 = vsel %vm1378, %v796, %v1506
      %v1635 = vsel %vm1379, %v801, %v1507
      %v1636 = vsel %vm1380, %v806, %v1508
      %v1637 = vsel %vm1381, %v811, %v1509
      %v1638 = vsel %vm1382, %v816, %v1510
      %v1639 = vsel %vm1383, %v821, %v1511
      %v1640 = vsel %vm1384, %v826, %v1512
      %v1641 = vsel %vm1385, %v831, %v1513
      %v1642 = vsel %vm1386, %v836, %v1514
      %v1643 = vsel %vm1387, %v841, %v1515
      %v1644 = vsel %vm1388, %v846, %v1516
      %v1645 = vsel %vm1389, %v851, %v1517
      %v1646 = vsel %vm1390, %v856, %v1518
      %v1647 = vsel %vm1391, %v861, %v1519
      %v1648 = vsel %vm1392, %v866, %v1520
      %v1649 = vsel %vm1393, %v871, %v1521
      %v1650 = vsel %vm1394, %v876, %v1522
      %v1651 = vsel %vm1395, %v881, %v1523
      %v1652 = vsel %vm1396, %v886, %v1524
      %v1653 = vsel %vm1397, %v891, %v1525
      %v1654 = vsel %vm1398, %v896, %v1526
      %v1655 = vsel %vm1399, %v901, %v1527
      %v1656 = vsel %vm1400, %v906, %v1528
      %v1657 = vsel %vm1401, %v911, %v1529
      %v1658 = vsel %vm1402, %v916, %v1530
      %v1659 = vsel %vm1403, %v921, %v1531
      %v1660 = vsel %vm1404, %v926, %v1532
      %v1661 = vsel %vm1405, %v931, %v1533
      %v1662 = vsel %vm1406, %v936, %v1534
      %v1663 = vsel %vm1407, %v941, %v1535
      %v1664 = vsel %vm1408, %v946, %v1536
      %v1665 = vsel %vm1409, %v951, %v1537
      %v1666 = vsel %vm1410, %v956, %v1538
      %v1667 = vsel %vm1411, %v961, %v1539
      %v1668 = vsel %vm1412, %v966, %v1540
      %v1669 = vsel %vm1413, %v971, %v1541
      %v1670 = vsel %vm1414, %v976, %v1542
      %v1671 = vsel %vm1415, %v981, %v1543
      %v1672 = vsel %vm1416, %v986, %v1544
      %v1673 = vsel %vm1417, %v991, %v1545
      %v1674 = vsel %vm1418, %v996, %v1546
      %v1675 = vsel %vm1419, %v1001, %v1547
      %v1676 = vsel %vm1420, %v1006, %v1548
      %v1677 = vsel %vm1421, %v1011, %v1549
      %v1678 = vsel %vm1422, %v1016, %v1550
      %v1679 = vsel %vm1423, %v1021, %v1551
      %v1680 = vsel %vm1424, %v1026, %v1552
      %v1681 = vsel %vm1425, %v1031, %v1553
      %v1682 = vsel %vm1426, %v1036, %v1554
      %v1683 = vsel %vm1427, %v1041, %v1555
      %v1684 = vsel %vm1428, %v1046, %v1556
      %v1685 = vsel %vm1429, %v1051, %v1557
      %v1686 = vsel %vm1430, %v1056, %v1558
      %v1687 = vsel %vm1431, %v1061, %v1559
      %v1688 = vsel %vm1432, %v1066, %v1560
      %v1689 = vsel %vm1433, %v1071, %v1561
      %v1690 = vsel %vm1434, %v1076, %v1562
      %v1691 = vsel %vm1435, %v1081, %v1563
      %v1692 = vsel %vm1436, %v1086, %v1564
      %v1693 = vsel %vm1437, %v1091, %v1565
      %v1694 = vsel %vm1438, %v1096, %v1566
      %v1695 = vsel %vm1439, %v1101, %v1567
      %v1696 = vsel %vm1440, %v1106, %v1568
      %v1697 = vsel %vm1441, %v1111, %v1569
      %v1698 = vsel %vm1442, %v1116, %v1570
      %v1699 = vsel %vm1443, %v1121, %v1571
      %v1700 = vsel %vm1444, %v1126, %v1572
      %v1701 = vsel %vm1445, %v1131, %v1573
      %v1702 = vsel %vm1446, %v1136, %v1574
      %v1703 = vsel %vm1447, %v1141, %v1575
      %v1704 = vsel %vm1448, %v1146, %v1576
      %v1705 = vsel %vm1449, %v1151, %v1577
      %v1706 = vsel %vm1450, %v1156, %v1578
      %v1707 = vsel %vm1451, %v1161, %v1579
      %v1708 = vsel %vm1452, %v1166, %v1580
      %v1709 = vsel %vm1453, %v1171, %v1581
      %v1710 = vsel %vm1454, %v1176, %v1582
      %v1711 = vsel %vm1455, %v1181, %v1583
      %v1712 = vsel %vm1456, %v1186, %v1584
      %v1713 = vsel %vm1457, %v1191, %v1585
      %v1714 = vsel %vm1458, %v1196, %v1586
      %v1715 = vsel %vm1459, %v1201, %v1587
      %v1716 = vsel %vm1460, %v1206, %v1588
      %v1717 = vsel %vm1461, %v1211, %v1589
      %v1718 = vsel %vm1462, %v1216, %v1590
      %v1719 = vsel %vm1463, %v1221, %v1591
      %v1720 = vsel %vm1464, %v1226, %v1592
      %v1721 = vsel %vm1465, %v1231, %v1593
      %v1722 = vsel %vm1466, %v1236, %v1594
      %v1723 = vsel %vm1467, %v1241, %v1595
      %v1724 = vsel %vm1468, %v1246, %v1596
      %v1725 = vsel %vm1469, %v1251, %v1597
      %v1726 = vsel %vm1470, %v1256, %v1598
      %v1727 = vsel %vm1471, %v1261, %v1599
      %v1728 = vsel %vm1472, %v1266, %v1600
      %v1729 = vsel %vm1473, %v1271, %v1601
      %v1730 = vsel %vm1474, %v1276, %v1602
      %v1731 = vsel %vm1475, %v1281, %v1603
      %v1732 = vsel %vm1476, %v1286, %v1604
      %v1733 = vsel %vm1477, %v1291, %v1605
      %v1734 = vsel %vm1478, %v1296, %v1606
      %v1735 = vsel %vm1479, %v1301, %v1607
      %v1736 = vsel %vm1480, %v1306, %v1608
      %v1737 = vsel %vm1481, %v1311, %v1609
      %v1738 = vsel %vm1482, %v1316, %v1610
      %v1739 = vsel %vm1483, %v1321, %v1611
      %v1740 = vsel %vm1484, %v1326, %v1612
      %v1741 = vsel %vm1485, %v1331, %v1613
      %v1742 = vsel %vm1486, %v1336, %v1614
      %v1743 = vsel %vm1487, %v1341, %v1615
      %v1744 = vsel %vm1488, %v1346, %v1616
      %v1745 = vsel %vm1489, %v1351, %v1617
      %v1746 = vsel %vm1490, %v1356, %v1618
      %v1747 = vsel %vm1491, %v1361, %v1619
      %vm1748 = vcmask 261120
      %1749 = vst.msk [vmem:[%s143] sm:$0xff] %vm1748, %v1620
      %1750 = vst.msk [vmem:[%s143 + $0x8] sm:$0xff] %vm1748, %v1621
      %1751 = vst.msk [vmem:[%s143 + $0x10] sm:$0xff] %vm1748, %v1622
      %1752 = vst.msk [vmem:[%s143 + $0x18] sm:$0xff] %vm1748, %v1623
      %1753 = vst.msk [vmem:[%s143 + $0x20] sm:$0xff] %vm1748, %v1624
      %1754 = vst.msk [vmem:[%s143 + $0x28] sm:$0xff] %vm1748, %v1625
      %1755 = vst.msk [vmem:[%s143 + $0x30] sm:$0xff] %vm1748, %v1626
      %1756 = vst.msk [vmem:[%s143 + $0x38] sm:$0xff] %vm1748, %v1627
      %1757 = vst.msk [vmem:[%s143 + $0x40] sm:$0xff] %vm1748, %v1628
      %1758 = vst.msk [vmem:[%s143 + $0x48] sm:$0xff] %vm1748, %v1629
      %1759 = vst.msk [vmem:[%s143 + $0x50] sm:$0xff] %vm1748, %v1630
      %1760 = vst.msk [vmem:[%s143 + $0x58] sm:$0xff] %vm1748, %v1631
      %1761 = vst.msk [vmem:[%s143 + $0x60] sm:$0xff] %vm1748, %v1632
      %1762 = vst.msk [vmem:[%s143 + $0x68] sm:$0xff] %vm1748, %v1633
      %1763 = vst.msk [vmem:[%s143 + $0x70] sm:$0xff] %vm1748, %v1634
      %1764 = vst.msk [vmem:[%s143 + $0x78] sm:$0xff] %vm1748, %v1635
      %1765 = vst.msk [vmem:[%s143 + $0x80] sm:$0xff] %vm1748, %v1636
      %1766 = vst.msk [vmem:[%s143 + $0x88] sm:$0xff] %vm1748, %v1637
      %1767 = vst.msk [vmem:[%s143 + $0x90] sm:$0xff] %vm1748, %v1638
      %1768 = vst.msk [vmem:[%s143 + $0x98] sm:$0xff] %vm1748, %v1639
      %1769 = vst.msk [vmem:[%s143 + $0xa0] sm:$0xff] %vm1748, %v1640
      %1770 = vst.msk [vmem:[%s143 + $0xa8] sm:$0xff] %vm1748, %v1641
      %1771 = vst.msk [vmem:[%s143 + $0xb0] sm:$0xff] %vm1748, %v1642
      %1772 = vst.msk [vmem:[%s143 + $0xb8] sm:$0xff] %vm1748, %v1643
      %1773 = vst.msk [vmem:[%s143 + $0xc0] sm:$0xff] %vm1748, %v1644
      %1774 = vst.msk [vmem:[%s143 + $0xc8] sm:$0xff] %vm1748, %v1645
      %1775 = vst.msk [vmem:[%s143 + $0xd0] sm:$0xff] %vm1748, %v1646
      %1776 = vst.msk [vmem:[%s143 + $0xd8] sm:$0xff] %vm1748, %v1647
      %1777 = vst.msk [vmem:[%s143 + $0xe0] sm:$0xff] %vm1748, %v1648
      %1778 = vst.msk [vmem:[%s143 + $0xe8] sm:$0xff] %vm1748, %v1649
      %1779 = vst.msk [vmem:[%s143 + $0xf0] sm:$0xff] %vm1748, %v1650
      %1780 = vst.msk [vmem:[%s143 + $0xf8] sm:$0xff] %vm1748, %v1651
      %1781 = vst.msk [vmem:[%s143 + $0x100] sm:$0xff] %vm1748, %v1652
      %1782 = vst.msk [vmem:[%s143 + $0x108] sm:$0xff] %vm1748, %v1653
      %1783 = vst.msk [vmem:[%s143 + $0x110] sm:$0xff] %vm1748, %v1654
      %1784 = vst.msk [vmem:[%s143 + $0x118] sm:$0xff] %vm1748, %v1655
      %1785 = vst.msk [vmem:[%s143 + $0x120] sm:$0xff] %vm1748, %v1656
      %1786 = vst.msk [vmem:[%s143 + $0x128] sm:$0xff] %vm1748, %v1657
      %1787 = vst.msk [vmem:[%s143 + $0x130] sm:$0xff] %vm1748, %v1658
      %1788 = vst.msk [vmem:[%s143 + $0x138] sm:$0xff] %vm1748, %v1659
      %1789 = vst.msk [vmem:[%s143 + $0x140] sm:$0xff] %vm1748, %v1660
      %1790 = vst.msk [vmem:[%s143 + $0x148] sm:$0xff] %vm1748, %v1661
      %1791 = vst.msk [vmem:[%s143 + $0x150] sm:$0xff] %vm1748, %v1662
      %1792 = vst.msk [vmem:[%s143 + $0x158] sm:$0xff] %vm1748, %v1663
      %1793 = vst.msk [vmem:[%s143 + $0x160] sm:$0xff] %vm1748, %v1664
      %1794 = vst.msk [vmem:[%s143 + $0x168] sm:$0xff] %vm1748, %v1665
      %1795 = vst.msk [vmem:[%s143 + $0x170] sm:$0xff] %vm1748, %v1666
      %1796 = vst.msk [vmem:[%s143 + $0x178] sm:$0xff] %vm1748, %v1667
      %1797 = vst.msk [vmem:[%s143 + $0x180] sm:$0xff] %vm1748, %v1668
      %1798 = vst.msk [vmem:[%s143 + $0x188] sm:$0xff] %vm1748, %v1669
      %1799 = vst.msk [vmem:[%s143 + $0x190] sm:$0xff] %vm1748, %v1670
      %1800 = vst.msk [vmem:[%s143 + $0x198] sm:$0xff] %vm1748, %v1671
      %1801 = vst.msk [vmem:[%s143 + $0x1a0] sm:$0xff] %vm1748, %v1672
      %1802 = vst.msk [vmem:[%s143 + $0x1a8] sm:$0xff] %vm1748, %v1673
      %1803 = vst.msk [vmem:[%s143 + $0x1b0] sm:$0xff] %vm1748, %v1674
      %1804 = vst.msk [vmem:[%s143 + $0x1b8] sm:$0xff] %vm1748, %v1675
      %1805 = vst.msk [vmem:[%s143 + $0x1c0] sm:$0xff] %vm1748, %v1676
      %1806 = vst.msk [vmem:[%s143 + $0x1c8] sm:$0xff] %vm1748, %v1677
      %1807 = vst.msk [vmem:[%s143 + $0x1d0] sm:$0xff] %vm1748, %v1678
      %1808 = vst.msk [vmem:[%s143 + $0x1d8] sm:$0xff] %vm1748, %v1679
      %1809 = vst.msk [vmem:[%s143 + $0x1e0] sm:$0xff] %vm1748, %v1680
      %1810 = vst.msk [vmem:[%s143 + $0x1e8] sm:$0xff] %vm1748, %v1681
      %1811 = vst.msk [vmem:[%s143 + $0x1f0] sm:$0xff] %vm1748, %v1682
      %1812 = vst.msk [vmem:[%s143 + $0x1f8] sm:$0xff] %vm1748, %v1683
      %1813 = vst.msk [vmem:[%s143 + $0x200] sm:$0xff] %vm1748, %v1684
      %1814 = vst.msk [vmem:[%s143 + $0x208] sm:$0xff] %vm1748, %v1685
      %1815 = vst.msk [vmem:[%s143 + $0x210] sm:$0xff] %vm1748, %v1686
      %1816 = vst.msk [vmem:[%s143 + $0x218] sm:$0xff] %vm1748, %v1687
      %1817 = vst.msk [vmem:[%s143 + $0x220] sm:$0xff] %vm1748, %v1688
      %1818 = vst.msk [vmem:[%s143 + $0x228] sm:$0xff] %vm1748, %v1689
      %1819 = vst.msk [vmem:[%s143 + $0x230] sm:$0xff] %vm1748, %v1690
      %1820 = vst.msk [vmem:[%s143 + $0x238] sm:$0xff] %vm1748, %v1691
      %1821 = vst.msk [vmem:[%s143 + $0x240] sm:$0xff] %vm1748, %v1692
      %1822 = vst.msk [vmem:[%s143 + $0x248] sm:$0xff] %vm1748, %v1693
      %1823 = vst.msk [vmem:[%s143 + $0x250] sm:$0xff] %vm1748, %v1694
      %1824 = vst.msk [vmem:[%s143 + $0x258] sm:$0xff] %vm1748, %v1695
      %1825 = vst.msk [vmem:[%s143 + $0x260] sm:$0xff] %vm1748, %v1696
      %1826 = vst.msk [vmem:[%s143 + $0x268] sm:$0xff] %vm1748, %v1697
      %1827 = vst.msk [vmem:[%s143 + $0x270] sm:$0xff] %vm1748, %v1698
      %1828 = vst.msk [vmem:[%s143 + $0x278] sm:$0xff] %vm1748, %v1699
      %1829 = vst.msk [vmem:[%s143 + $0x280] sm:$0xff] %vm1748, %v1700
      %1830 = vst.msk [vmem:[%s143 + $0x288] sm:$0xff] %vm1748, %v1701
      %1831 = vst.msk [vmem:[%s143 + $0x290] sm:$0xff] %vm1748, %v1702
      %1832 = vst.msk [vmem:[%s143 + $0x298] sm:$0xff] %vm1748, %v1703
      %1833 = vst.msk [vmem:[%s143 + $0x2a0] sm:$0xff] %vm1748, %v1704
      %1834 = vst.msk [vmem:[%s143 + $0x2a8] sm:$0xff] %vm1748, %v1705
      %1835 = vst.msk [vmem:[%s143 + $0x2b0] sm:$0xff] %vm1748, %v1706
      %1836 = vst.msk [vmem:[%s143 + $0x2b8] sm:$0xff] %vm1748, %v1707
      %1837 = vst.msk [vmem:[%s143 + $0x2c0] sm:$0xff] %vm1748, %v1708
      %1838 = vst.msk [vmem:[%s143 + $0x2c8] sm:$0xff] %vm1748, %v1709
      %1839 = vst.msk [vmem:[%s143 + $0x2d0] sm:$0xff] %vm1748, %v1710
      %1840 = vst.msk [vmem:[%s143 + $0x2d8] sm:$0xff] %vm1748, %v1711
      %1841 = vst.msk [vmem:[%s143 + $0x2e0] sm:$0xff] %vm1748, %v1712
      %1842 = vst.msk [vmem:[%s143 + $0x2e8] sm:$0xff] %vm1748, %v1713
      %1843 = vst.msk [vmem:[%s143 + $0x2f0] sm:$0xff] %vm1748, %v1714
      %1844 = vst.msk [vmem:[%s143 + $0x2f8] sm:$0xff] %vm1748, %v1715
      %1845 = vst.msk [vmem:[%s143 + $0x300] sm:$0xff] %vm1748, %v1716
      %1846 = vst.msk [vmem:[%s143 + $0x308] sm:$0xff] %vm1748, %v1717
      %1847 = vst.msk [vmem:[%s143 + $0x310] sm:$0xff] %vm1748, %v1718
      %1848 = vst.msk [vmem:[%s143 + $0x318] sm:$0xff] %vm1748, %v1719
      %1849 = vst.msk [vmem:[%s143 + $0x320] sm:$0xff] %vm1748, %v1720
      %1850 = vst.msk [vmem:[%s143 + $0x328] sm:$0xff] %vm1748, %v1721
      %1851 = vst.msk [vmem:[%s143 + $0x330] sm:$0xff] %vm1748, %v1722
      %1852 = vst.msk [vmem:[%s143 + $0x338] sm:$0xff] %vm1748, %v1723
      %1853 = vst.msk [vmem:[%s143 + $0x340] sm:$0xff] %vm1748, %v1724
      %1854 = vst.msk [vmem:[%s143 + $0x348] sm:$0xff] %vm1748, %v1725
      %1855 = vst.msk [vmem:[%s143 + $0x350] sm:$0xff] %vm1748, %v1726
      %1856 = vst.msk [vmem:[%s143 + $0x358] sm:$0xff] %vm1748, %v1727
      %1857 = vst.msk [vmem:[%s143 + $0x360] sm:$0xff] %vm1748, %v1728
      %1858 = vst.msk [vmem:[%s143 + $0x368] sm:$0xff] %vm1748, %v1729
      %1859 = vst.msk [vmem:[%s143 + $0x370] sm:$0xff] %vm1748, %v1730
      %1860 = vst.msk [vmem:[%s143 + $0x378] sm:$0xff] %vm1748, %v1731
      %1861 = vst.msk [vmem:[%s143 + $0x380] sm:$0xff] %vm1748, %v1732
      %1862 = vst.msk [vmem:[%s143 + $0x388] sm:$0xff] %vm1748, %v1733
      %1863 = vst.msk [vmem:[%s143 + $0x390] sm:$0xff] %vm1748, %v1734
      %1864 = vst.msk [vmem:[%s143 + $0x398] sm:$0xff] %vm1748, %v1735
      %1865 = vst.msk [vmem:[%s143 + $0x3a0] sm:$0xff] %vm1748, %v1736
      %1866 = vst.msk [vmem:[%s143 + $0x3a8] sm:$0xff] %vm1748, %v1737
      %1867 = vst.msk [vmem:[%s143 + $0x3b0] sm:$0xff] %vm1748, %v1738
      %1868 = vst.msk [vmem:[%s143 + $0x3b8] sm:$0xff] %vm1748, %v1739
      %1869 = vst.msk [vmem:[%s143 + $0x3c0] sm:$0xff] %vm1748, %v1740
      %1870 = vst.msk [vmem:[%s143 + $0x3c8] sm:$0xff] %vm1748, %v1741
      %1871 = vst.msk [vmem:[%s143 + $0x3d0] sm:$0xff] %vm1748, %v1742
      %1872 = vst.msk [vmem:[%s143 + $0x3d8] sm:$0xff] %vm1748, %v1743
      %1873 = vst.msk [vmem:[%s143 + $0x3e0] sm:$0xff] %vm1748, %v1744
      %1874 = vst.msk [vmem:[%s143 + $0x3e8] sm:$0xff] %vm1748, %v1745
      %1875 = vst.msk [vmem:[%s143 + $0x3f0] sm:$0xff] %vm1748, %v1746
      %1876 = vst.msk [vmem:[%s143 + $0x3f8] sm:$0xff] %vm1748, %v1747
      %p1877 = scmp.lt.s32.totalorder %s13, 1
      %s1878 = scalar_select %p1877, %s13, 1
      %s1879 = smul.addr %s1878, 128
      %s1880 = smul.addr %s1879, 8
      %s1881 = scalar_lea.vmem %s2, %s1880
      // Predicated region
      $region29: #{encoders_intrinsic_forward.8} parent=27 // pred_check
        %p1882 = pneg %p78
      $region30: #{encoders_intrinsic_forward.8} parent=27 // pred_check_branch
        %1884 = sbr.rel (%p1882) target = $region32
      $region31: #{encoders_intrinsic_forward.8} parent=27 // pred_region
        _
      $region32: #{encoders_intrinsic_forward.8} parent=27 // pred_fallthru
        _
    $region28: #{encoders_intrinsic_forward.8} parent=5 // pred_fallthru
      _
    %p1885 = scmp.le.s32.totalorder 2, %s8
    // Predicated region
    $region33: #{encoders_intrinsic_forward.8} parent=5 // pred_check
      %p1886 = pneg %p1885
    $region34: #{encoders_intrinsic_forward.8} parent=5 // pred_check_branch
      %1888 = sbr.rel (%p1886) target = $region36
    $region35: #{encoders_intrinsic_forward.8} parent=5 // pred_region
      %s1889 = ssub.s32 %s8, 2
      // Predicated region
      $region37: #{encoders_intrinsic_forward.8} parent=35 // pred_check
        %p1890 = pneg %p84
      $region38: #{encoders_intrinsic_forward.8} parent=35 // pred_check_branch
        %1892 = sbr.rel (%p1890) target = $region40
      $region39: #{encoders_intrinsic_forward.8} parent=35 // pred_region
        %p1893 = scmp.lt.s32.totalorder %s14, 1
        %s1894 = scalar_select %p1893, %s14, 1
        %s1895 = smul.addr %s1894, 128
        %s1896 = smul.addr %s1895, 8
        %s1897 = scalar_lea.vmem %s2, %s1896
      $region40: #{encoders_intrinsic_forward.8} parent=35 // pred_fallthru
        _
    $region36: #{encoders_intrinsic_forward.8} parent=5 // pred_fallthru
      _
  $region6: #{encoders_intrinsic_forward.8} parent=0 // loop_footer
    %s12 = sadd.s32 1, %s8
  $region7: #{encoders_intrinsic_forward.8} parent=0 // loop_footer_branch
    %7 = sbr.rel target = $region3
  $region8: #{encoders_intrinsic_forward.8} parent=0 // loop_exit
    _

// kernel: encoders_intrinsic_forward.9
$region0: #{encoders_intrinsic_forward.9}
  #allocation0 [shape = 'u32[]', space=smem, size = 0x4, offset = 0x4, fixed_abs, tag = 'smem constant byte address 0x4 - core index']
  #allocation1 [shape = 'u32[144,128]{1,0:T(1,128)}', space=vmem, size = 0x12000, scoped, tag = 'internal scratch']
  %s0 = inlined_call_operand.vmem [shape: f32[2,256,512], index: 0, kind: input, shape index: {}]
  %s1 = inlined_call_operand.vmem [shape: f32[512,64], index: 1, kind: input, shape index: {}]
  %s2 = inlined_call_operand.vmem [shape: f32[2,256,64], index: 2, kind: output, shape index: {}]
  %s3 = sld [smem:[#allocation0]]
  $region41: #{encoders_intrinsic_forward.9} parent=0
    _
  %s5 = ssub.s32 1, %s3
  %s6 = scalar_select 0, %s5, %s3
  loop: start=0, step=1, limit=4
  $region2: #{encoders_intrinsic_forward.9} parent=0 // loop_pre_header
    _
  $region3: #{encoders_intrinsic_forward.9} parent=0 // loop_header
    %s8 = sphi 0, %s12
    %p9 = scmp.ge.s32.totalorder %s8, 4
    %s18 = sphi 0, %s20
    %s21 = sphi 0, %s18
    %s22 = sphi 0, %s21
    %s38 = sphi 0, %s22
    %s42 = sphi 0, %s42
    %s44 = sphi 0, %s42
    %s45 = sphi 0, %s44
    %s59 = sphi 0, %s45
    %s65 = sphi 0, %s67
    %s68 = sphi 0, %s65
    %s69 = sphi 0, %s68
    %s85 = sphi 0, %s69
  $region4: #{encoders_intrinsic_forward.9} parent=0 // loop_header_branch
    %11 = sbr.rel (%p9) target = $region8
  $region5: #{encoders_intrinsic_forward.9} parent=0 // loop_body
    %s13 = ssub.s32 %s8, 1
    %s14 = ssub.s32 %s8, 2
    %s15 = sadd.s32 %s8, 1
    %s16 = ssub.s32 %s8, %s15
    %p17 = scmp.eq.s32.totalorder %s16, 0
    %s19 = sadd.s32 %s18, 1
    %s20 = scalar_select %p17, %s18, %s19
    %p23 = pneg %p17
    %p24 = scmp.eq.s32.totalorder %s8, 1
    %p25 = por %p23, %p24
    %p26 = scmp.ne.s32.totalorder %s18, %s21
    %p27 = scmp.eq.s32.totalorder %s8, 0
    %p28 = por %p26, %p27
    %p29 = scmp.ne.s32.totalorder %s18, %s21
    %p30 = scmp.eq.s32.totalorder %s13, 1
    %p31 = por %p29, %p30
    %p32 = scmp.ne.s32.totalorder %s21, %s22
    %p33 = scmp.eq.s32.totalorder %s13, 0
    %p34 = por %p32, %p33
    %p35 = scmp.ne.s32.totalorder %s21, %s22
    %p36 = scmp.eq.s32.totalorder %s14, 1
    %p37 = por %p35, %p36
    %p39 = scmp.ne.s32.totalorder %s22, %s38
    %p40 = scmp.eq.s32.totalorder %s14, 0
    %p41 = por %p39, %p40
    %s43 = sadd.s32 %s42, 1
    %p46 = scmp.eq.s32.totalorder %s8, 1
    %p47 = scmp.ne.s32.totalorder %s42, %s44
    %p48 = scmp.eq.s32.totalorder %s8, 0
    %p49 = por %p47, %p48
    %p50 = scmp.ne.s32.totalorder %s42, %s44
    %p51 = scmp.eq.s32.totalorder %s13, 1
    %p52 = por %p50, %p51
    %p53 = scmp.ne.s32.totalorder %s44, %s45
    %p54 = scmp.eq.s32.totalorder %s13, 0
    %p55 = por %p53, %p54
    %p56 = scmp.ne.s32.totalorder %s44, %s45
    %p57 = scmp.eq.s32.totalorder %s14, 1
    %p58 = por %p56, %p57
    %p60 = scmp.ne.s32.totalorder %s45, %s59
    %p61 = scmp.eq.s32.totalorder %s14, 0
    %p62 = por %p60, %p61
    %s63 = ssub.s32 %s8, %s15
    %p64 = scmp.eq.s32.totalorder %s63, 0
    %s66 = sadd.s32 %s65, 1
    %s67 = scalar_select %p64, %s65, %s66
    %p70 = pneg %p64
    %p71 = scmp.eq.s32.totalorder %s8, 1
    %p72 = por %p70, %p71
    %p73 = scmp.ne.s32.totalorder %s65, %s68
    %p74 = scmp.eq.s32.totalorder %s8, 0
    %p75 = por %p73, %p74
    %p76 = scmp.ne.s32.totalorder %s65, %s68
    %p77 = scmp.eq.s32.totalorder %s13, 1
    %p78 = por %p76, %p77
    %p79 = scmp.ne.s32.totalorder %s68, %s69
    %p80 = scmp.eq.s32.totalorder %s13, 0
    %p81 = por %p79, %p80
    %p82 = scmp.ne.s32.totalorder %s68, %s69
    %p83 = scmp.eq.s32.totalorder %s14, 1
    %p84 = por %p82, %p83
    %p86 = scmp.ne.s32.totalorder %s69, %s85
    %p87 = scmp.eq.s32.totalorder %s14, 0
    %p88 = por %p86, %p87
    %p89 = scmp.le.s32.totalorder 1, %s8
    %p90 = scmp.lt.s32.totalorder %s8, 3
    %p91 = pnand %p89, %p90
    %p92 = pneg %p91
    // Predicated region
    $region9: #{encoders_intrinsic_forward.9} parent=5 // pred_check
      _
    $region10: #{encoders_intrinsic_forward.9} parent=5 // pred_check_branch
      %94 = sbr.rel (%p91) target = $region12
    $region11: #{encoders_intrinsic_forward.9} parent=5 // pred_region
      %s95 = ssub.s32 %s8, 1
      // Predicated region
      $region13: #{encoders_intrinsic_forward.9} parent=11 // pred_check
        %p96 = pneg %p55
      $region14: #{encoders_intrinsic_forward.9} parent=11 // pred_check_branch
        %98 = sbr.rel (%p96) target = $region16
      $region15: #{encoders_intrinsic_forward.9} parent=11 // pred_region
        _
      $region16: #{encoders_intrinsic_forward.9} parent=11 // pred_fallthru
        _
    $region12: #{encoders_intrinsic_forward.9} parent=5 // pred_fallthru
      _
    %p99 = scmp.lt.s32.totalorder %s8, 2
    // Predicated region
    $region17: #{encoders_intrinsic_forward.9} parent=5 // pred_check
      %p100 = pneg %p99
    $region18: #{encoders_intrinsic_forward.9} parent=5 // pred_check_branch
      %102 = sbr.rel (%p100) target = $region20
    $region19: #{encoders_intrinsic_forward.9} parent=5 // pred_region
      // Predicated region
      $region21: #{encoders_intrinsic_forward.9} parent=19 // pred_check
        %p103 = pneg %p28
      $region22: #{encoders_intrinsic_forward.9} parent=19 // pred_check_branch
        %105 = sbr.rel (%p103) target = $region24
      $region23: #{encoders_intrinsic_forward.9} parent=19 // pred_region
        %p106 = scmp.lt.s32.totalorder %s8, 1
        %s107 = scalar_select %p106, %s8, 1
        %s108 = smul.addr %s107, 128
        %s109 = smul.addr %s108, 8
        %s110 = scalar_lea.vmem %s0, %s109
      $region24: #{encoders_intrinsic_forward.9} parent=19 // pred_fallthru
        _
    $region20: #{encoders_intrinsic_forward.9} parent=5 // pred_fallthru
      _
    %p111 = scmp.le.s32.totalorder 1, %s8
    %p112 = scmp.lt.s32.totalorder %s8, 3
    %p113 = pnand %p111, %p112
    %p114 = pneg %p113
    // Predicated region
    $region25: #{encoders_intrinsic_forward.9} parent=5 // pred_check
      _
    $region26: #{encoders_intrinsic_forward.9} parent=5 // pred_check_branch
      %116 = sbr.rel (%p113) target = $region28
    $region27: #{encoders_intrinsic_forward.9} parent=5 // pred_region
      %s117 = ssub.s32 %s8, 1
      %p118 = scmp.lt.s32.totalorder %s13, 1
      %s119 = scalar_select %p118, %s13, 1
      %s120 = smul.addr %s119, 128
      %s121 = smul.addr %s120, 8
      %s122 = scalar_lea.vmem %s0, %s121
      %p123 = pneg %p34
      %p124 = pneg %p31
      %p125 = pneg %p55
      %p126 = pneg %p52
      %p127 = pneg %p81
      %p128 = pneg %p78
      %p129 = scmp.lt.s32.totalorder %s13, 1
      %s130 = scalar_select %p129, %s13, 1
      %s131 = smul.addr %s130, 32
      %s132 = smul.addr %s131, 8
      %s133 = scalar_lea.vmem %s2, %s132
      %p134 = scmp.lt.s32.totalorder %s13, 1
      %s135 = scalar_select %p134, %s13, 1
      %s136 = smul.addr %s135, 128
      %s137 = smul.addr %s136, 8
      %s138 = scalar_lea.vmem %s0, %s137
      %p139 = scmp.lt.s32.totalorder %s13, 1
      %s140 = scalar_select %p139, %s13, 1
      %s141 = smul.addr %s140, 32
      %s142 = smul.addr %s141, 8
      %s143 = scalar_lea.vmem %s2, %s142
      %v144 = vld [vmem:[%s138] sm:$0xff]
      %v145 = vld [vmem:[%s138 + $0x8] sm:$0xff]
      %v146 = vld [vmem:[%s138 + $0x10] sm:$0xff]
      %v147 = vld [vmem:[%s138 + $0x18] sm:$0xff]
      %v148 = vld [vmem:[%s138 + $0x20] sm:$0xff]
      %v149 = vld [vmem:[%s138 + $0x28] sm:$0xff]
      %v150 = vld [vmem:[%s138 + $0x30] sm:$0xff]
      %v151 = vld [vmem:[%s138 + $0x38] sm:$0xff]
      %v152 = vld [vmem:[%s138 + $0x40] sm:$0xff]
      %v153 = vld [vmem:[%s138 + $0x48] sm:$0xff]
      %v154 = vld [vmem:[%s138 + $0x50] sm:$0xff]
      %v155 = vld [vmem:[%s138 + $0x58] sm:$0xff]
      %v156 = vld [vmem:[%s138 + $0x60] sm:$0xff]
      %v157 = vld [vmem:[%s138 + $0x68] sm:$0xff]
      %v158 = vld [vmem:[%s138 + $0x70] sm:$0xff]
      %v159 = vld [vmem:[%s138 + $0x78] sm:$0xff]
      %v160 = vld [vmem:[%s138 + $0x80] sm:$0xff]
      %v161 = vld [vmem:[%s138 + $0x88] sm:$0xff]
      %v162 = vld [vmem:[%s138 + $0x90] sm:$0xff]
      %v163 = vld [vmem:[%s138 + $0x98] sm:$0xff]
      %v164 = vld [vmem:[%s138 + $0xa0] sm:$0xff]
      %v165 = vld [vmem:[%s138 + $0xa8] sm:$0xff]
      %v166 = vld [vmem:[%s138 + $0xb0] sm:$0xff]
      %v167 = vld [vmem:[%s138 + $0xb8] sm:$0xff]
      %v168 = vld [vmem:[%s138 + $0xc0] sm:$0xff]
      %v169 = vld [vmem:[%s138 + $0xc8] sm:$0xff]
      %v170 = vld [vmem:[%s138 + $0xd0] sm:$0xff]
      %v171 = vld [vmem:[%s138 + $0xd8] sm:$0xff]
      %v172 = vld [vmem:[%s138 + $0xe0] sm:$0xff]
      %v173 = vld [vmem:[%s138 + $0xe8] sm:$0xff]
      %v174 = vld [vmem:[%s138 + $0xf0] sm:$0xff]
      %v175 = vld [vmem:[%s138 + $0xf8] sm:$0xff]
      %v176 = vld [vmem:[%s138 + $0x100] sm:$0xff]
      %v177 = vld [vmem:[%s138 + $0x108] sm:$0xff]
      %v178 = vld [vmem:[%s138 + $0x110] sm:$0xff]
      %v179 = vld [vmem:[%s138 + $0x118] sm:$0xff]
      %v180 = vld [vmem:[%s138 + $0x120] sm:$0xff]
      %v181 = vld [vmem:[%s138 + $0x128] sm:$0xff]
      %v182 = vld [vmem:[%s138 + $0x130] sm:$0xff]
      %v183 = vld [vmem:[%s138 + $0x138] sm:$0xff]
      %v184 = vld [vmem:[%s138 + $0x140] sm:$0xff]
      %v185 = vld [vmem:[%s138 + $0x148] sm:$0xff]
      %v186 = vld [vmem:[%s138 + $0x150] sm:$0xff]
      %v187 = vld [vmem:[%s138 + $0x158] sm:$0xff]
      %v188 = vld [vmem:[%s138 + $0x160] sm:$0xff]
      %v189 = vld [vmem:[%s138 + $0x168] sm:$0xff]
      %v190 = vld [vmem:[%s138 + $0x170] sm:$0xff]
      %v191 = vld [vmem:[%s138 + $0x178] sm:$0xff]
      %v192 = vld [vmem:[%s138 + $0x180] sm:$0xff]
      %v193 = vld [vmem:[%s138 + $0x188] sm:$0xff]
      %v194 = vld [vmem:[%s138 + $0x190] sm:$0xff]
      %v195 = vld [vmem:[%s138 + $0x198] sm:$0xff]
      %v196 = vld [vmem:[%s138 + $0x1a0] sm:$0xff]
      %v197 = vld [vmem:[%s138 + $0x1a8] sm:$0xff]
      %v198 = vld [vmem:[%s138 + $0x1b0] sm:$0xff]
      %v199 = vld [vmem:[%s138 + $0x1b8] sm:$0xff]
      %v200 = vld [vmem:[%s138 + $0x1c0] sm:$0xff]
      %v201 = vld [vmem:[%s138 + $0x1c8] sm:$0xff]
      %v202 = vld [vmem:[%s138 + $0x1d0] sm:$0xff]
      %v203 = vld [vmem:[%s138 + $0x1d8] sm:$0xff]
      %v204 = vld [vmem:[%s138 + $0x1e0] sm:$0xff]
      %v205 = vld [vmem:[%s138 + $0x1e8] sm:$0xff]
      %v206 = vld [vmem:[%s138 + $0x1f0] sm:$0xff]
      %v207 = vld [vmem:[%s138 + $0x1f8] sm:$0xff]
      %v208 = vld [vmem:[%s138 + $0x200] sm:$0xff]
      %v209 = vld [vmem:[%s138 + $0x208] sm:$0xff]
      %v210 = vld [vmem:[%s138 + $0x210] sm:$0xff]
      %v211 = vld [vmem:[%s138 + $0x218] sm:$0xff]
      %v212 = vld [vmem:[%s138 + $0x220] sm:$0xff]
      %v213 = vld [vmem:[%s138 + $0x228] sm:$0xff]
      %v214 = vld [vmem:[%s138 + $0x230] sm:$0xff]
      %v215 = vld [vmem:[%s138 + $0x238] sm:$0xff]
      %v216 = vld [vmem:[%s138 + $0x240] sm:$0xff]
      %v217 = vld [vmem:[%s138 + $0x248] sm:$0xff]
      %v218 = vld [vmem:[%s138 + $0x250] sm:$0xff]
      %v219 = vld [vmem:[%s138 + $0x258] sm:$0xff]
      %v220 = vld [vmem:[%s138 + $0x260] sm:$0xff]
      %v221 = vld [vmem:[%s138 + $0x268] sm:$0xff]
      %v222 = vld [vmem:[%s138 + $0x270] sm:$0xff]
      %v223 = vld [vmem:[%s138 + $0x278] sm:$0xff]
      %v224 = vld [vmem:[%s138 + $0x280] sm:$0xff]
      %v225 = vld [vmem:[%s138 + $0x288] sm:$0xff]
      %v226 = vld [vmem:[%s138 + $0x290] sm:$0xff]
      %v227 = vld [vmem:[%s138 + $0x298] sm:$0xff]
      %v228 = vld [vmem:[%s138 + $0x2a0] sm:$0xff]
      %v229 = vld [vmem:[%s138 + $0x2a8] sm:$0xff]
      %v230 = vld [vmem:[%s138 + $0x2b0] sm:$0xff]
      %v231 = vld [vmem:[%s138 + $0x2b8] sm:$0xff]
      %v232 = vld [vmem:[%s138 + $0x2c0] sm:$0xff]
      %v233 = vld [vmem:[%s138 + $0x2c8] sm:$0xff]
      %v234 = vld [vmem:[%s138 + $0x2d0] sm:$0xff]
      %v235 = vld [vmem:[%s138 + $0x2d8] sm:$0xff]
      %v236 = vld [vmem:[%s138 + $0x2e0] sm:$0xff]
      %v237 = vld [vmem:[%s138 + $0x2e8] sm:$0xff]
      %v238 = vld [vmem:[%s138 + $0x2f0] sm:$0xff]
      %v239 = vld [vmem:[%s138 + $0x2f8] sm:$0xff]
      %v240 = vld [vmem:[%s138 + $0x300] sm:$0xff]
      %v241 = vld [vmem:[%s138 + $0x308] sm:$0xff]
      %v242 = vld [vmem:[%s138 + $0x310] sm:$0xff]
      %v243 = vld [vmem:[%s138 + $0x318] sm:$0xff]
      %v244 = vld [vmem:[%s138 + $0x320] sm:$0xff]
      %v245 = vld [vmem:[%s138 + $0x328] sm:$0xff]
      %v246 = vld [vmem:[%s138 + $0x330] sm:$0xff]
      %v247 = vld [vmem:[%s138 + $0x338] sm:$0xff]
      %v248 = vld [vmem:[%s138 + $0x340] sm:$0xff]
      %v249 = vld [vmem:[%s138 + $0x348] sm:$0xff]
      %v250 = vld [vmem:[%s138 + $0x350] sm:$0xff]
      %v251 = vld [vmem:[%s138 + $0x358] sm:$0xff]
      %v252 = vld [vmem:[%s138 + $0x360] sm:$0xff]
      %v253 = vld [vmem:[%s138 + $0x368] sm:$0xff]
      %v254 = vld [vmem:[%s138 + $0x370] sm:$0xff]
      %v255 = vld [vmem:[%s138 + $0x378] sm:$0xff]
      %v256 = vld [vmem:[%s138 + $0x380] sm:$0xff]
      %v257 = vld [vmem:[%s138 + $0x388] sm:$0xff]
      %v258 = vld [vmem:[%s138 + $0x390] sm:$0xff]
      %v259 = vld [vmem:[%s138 + $0x398] sm:$0xff]
      %v260 = vld [vmem:[%s138 + $0x3a0] sm:$0xff]
      %v261 = vld [vmem:[%s138 + $0x3a8] sm:$0xff]
      %v262 = vld [vmem:[%s138 + $0x3b0] sm:$0xff]
      %v263 = vld [vmem:[%s138 + $0x3b8] sm:$0xff]
      %v264 = vld [vmem:[%s138 + $0x3c0] sm:$0xff]
      %v265 = vld [vmem:[%s138 + $0x3c8] sm:$0xff]
      %v266 = vld [vmem:[%s138 + $0x3d0] sm:$0xff]
      %v267 = vld [vmem:[%s138 + $0x3d8] sm:$0xff]
      %v268 = vld [vmem:[%s138 + $0x3e0] sm:$0xff]
      %v269 = vld [vmem:[%s138 + $0x3e8] sm:$0xff]
      %v270 = vld [vmem:[%s138 + $0x3f0] sm:$0xff]
      %v271 = vld [vmem:[%s138 + $0x3f8] sm:$0xff]
      %v272 = vld [vmem:[%s1] sm:$0xff]
      %v273 = vld [vmem:[%s1 + $0x8] sm:$0xff]
      %v274 = vld [vmem:[%s1 + $0x10] sm:$0xff]
      %v275 = vld [vmem:[%s1 + $0x18] sm:$0xff]
      %v276 = vld [vmem:[%s1 + $0x20] sm:$0xff]
      %v277 = vld [vmem:[%s1 + $0x28] sm:$0xff]
      %v278 = vld [vmem:[%s1 + $0x30] sm:$0xff]
      %v279 = vld [vmem:[%s1 + $0x38] sm:$0xff]
      %v280 = vld [vmem:[%s1 + $0x40] sm:$0xff]
      %v281 = vld [vmem:[%s1 + $0x48] sm:$0xff]
      %v282 = vld [vmem:[%s1 + $0x50] sm:$0xff]
      %v283 = vld [vmem:[%s1 + $0x58] sm:$0xff]
      %v284 = vld [vmem:[%s1 + $0x60] sm:$0xff]
      %v285 = vld [vmem:[%s1 + $0x68] sm:$0xff]
      %v286 = vld [vmem:[%s1 + $0x70] sm:$0xff]
      %v287 = vld [vmem:[%s1 + $0x78] sm:$0xff]
      %v288 = vld [vmem:[%s1 + $0x80] sm:$0xff]
      %v289 = vld [vmem:[%s1 + $0x88] sm:$0xff]
      %v290 = vld [vmem:[%s1 + $0x90] sm:$0xff]
      %v291 = vld [vmem:[%s1 + $0x98] sm:$0xff]
      %v292 = vld [vmem:[%s1 + $0xa0] sm:$0xff]
      %v293 = vld [vmem:[%s1 + $0xa8] sm:$0xff]
      %v294 = vld [vmem:[%s1 + $0xb0] sm:$0xff]
      %v295 = vld [vmem:[%s1 + $0xb8] sm:$0xff]
      %v296 = vld [vmem:[%s1 + $0xc0] sm:$0xff]
      %v297 = vld [vmem:[%s1 + $0xc8] sm:$0xff]
      %v298 = vld [vmem:[%s1 + $0xd0] sm:$0xff]
      %v299 = vld [vmem:[%s1 + $0xd8] sm:$0xff]
      %v300 = vld [vmem:[%s1 + $0xe0] sm:$0xff]
      %v301 = vld [vmem:[%s1 + $0xe8] sm:$0xff]
      %v302 = vld [vmem:[%s1 + $0xf0] sm:$0xff]
      %v303 = vld [vmem:[%s1 + $0xf8] sm:$0xff]
      %v304 = vld [vmem:[%s1 + $0x100] sm:$0xff]
      %v305 = vld [vmem:[%s1 + $0x108] sm:$0xff]
      %v306 = vld [vmem:[%s1 + $0x110] sm:$0xff]
      %v307 = vld [vmem:[%s1 + $0x118] sm:$0xff]
      %v308 = vld [vmem:[%s1 + $0x120] sm:$0xff]
      %v309 = vld [vmem:[%s1 + $0x128] sm:$0xff]
      %v310 = vld [vmem:[%s1 + $0x130] sm:$0xff]
      %v311 = vld [vmem:[%s1 + $0x138] sm:$0xff]
      %v312 = vld [vmem:[%s1 + $0x140] sm:$0xff]
      %v313 = vld [vmem:[%s1 + $0x148] sm:$0xff]
      %v314 = vld [vmem:[%s1 + $0x150] sm:$0xff]
      %v315 = vld [vmem:[%s1 + $0x158] sm:$0xff]
      %v316 = vld [vmem:[%s1 + $0x160] sm:$0xff]
      %v317 = vld [vmem:[%s1 + $0x168] sm:$0xff]
      %v318 = vld [vmem:[%s1 + $0x170] sm:$0xff]
      %v319 = vld [vmem:[%s1 + $0x178] sm:$0xff]
      %v320 = vld [vmem:[%s1 + $0x180] sm:$0xff]
      %v321 = vld [vmem:[%s1 + $0x188] sm:$0xff]
      %v322 = vld [vmem:[%s1 + $0x190] sm:$0xff]
      %v323 = vld [vmem:[%s1 + $0x198] sm:$0xff]
      %v324 = vld [vmem:[%s1 + $0x1a0] sm:$0xff]
      %v325 = vld [vmem:[%s1 + $0x1a8] sm:$0xff]
      %v326 = vld [vmem:[%s1 + $0x1b0] sm:$0xff]
      %v327 = vld [vmem:[%s1 + $0x1b8] sm:$0xff]
      %v328 = vld [vmem:[%s1 + $0x1c0] sm:$0xff]
      %v329 = vld [vmem:[%s1 + $0x1c8] sm:$0xff]
      %v330 = vld [vmem:[%s1 + $0x1d0] sm:$0xff]
      %v331 = vld [vmem:[%s1 + $0x1d8] sm:$0xff]
      %v332 = vld [vmem:[%s1 + $0x1e0] sm:$0xff]
      %v333 = vld [vmem:[%s1 + $0x1e8] sm:$0xff]
      %v334 = vld [vmem:[%s1 + $0x1f0] sm:$0xff]
      %v335 = vld [vmem:[%s1 + $0x1f8] sm:$0xff]
      %336 = vmatprep.subr.mxu0 0.0
      %337 = vmatpush1.msra.mxu0 %v272
      %338 = vmatprep.subr.mxu0 0.0
      %339 = vmatpush1.msra.mxu0 %v273
      %340 = vmatprep.subr.mxu0 0.0
      %341 = vmatpush1.msra.mxu0 %v274
      %342 = vmatprep.subr.mxu0 0.0
      %343 = vmatpush1.msra.mxu0 %v275
      %344 = vmatprep.subr.mxu0 0.0
      %345 = vmatpush1.msra.mxu0 %v276
      %346 = vmatprep.subr.mxu0 0.0
      %347 = vmatpush1.msra.mxu0 %v277
      %348 = vmatprep.subr.mxu0 0.0
      %349 = vmatpush1.msra.mxu0 %v278
      %350 = vmatprep.subr.mxu0 0.0
      %351 = vmatpush1.msra.mxu0 %v279
      %352 = vmatprep.subr.mxu0 0.0
      %353 = vmatpush1.msra.mxu0 %v280
      %354 = vmatprep.subr.mxu0 0.0
      %355 = vmatpush1.msra.mxu0 %v281
      %356 = vmatprep.subr.mxu0 0.0
      %357 = vmatpush1.msra.mxu0 %v282
      %358 = vmatprep.subr.mxu0 0.0
      %359 = vmatpush1.msra.mxu0 %v283
      %360 = vmatprep.subr.mxu0 0.0
      %361 = vmatpush1.msra.mxu0 %v284
      %362 = vmatprep.subr.mxu0 0.0
      %363 = vmatpush1.msra.mxu0 %v285
      %364 = vmatprep.subr.mxu0 0.0
      %365 = vmatpush1.msra.mxu0 %v286
      %366 = vmatprep.subr.mxu0 0.0
      %367 = vmatpush1.msra.mxu0 %v287
      %368 = vmatprep.subr.mxu0 0.0
      %369 = vmatpush1.msra.mxu0 %v288
      %370 = vmatprep.subr.mxu0 0.0
      %371 = vmatpush1.msra.mxu0 %v289
      %372 = vmatprep.subr.mxu0 0.0
      %373 = vmatpush1.msra.mxu0 %v290
      %374 = vmatprep.subr.mxu0 0.0
      %375 = vmatpush1.msra.mxu0 %v291
      %376 = vmatprep.subr.mxu0 0.0
      %377 = vmatpush1.msra.mxu0 %v292
      %378 = vmatprep.subr.mxu0 0.0
      %379 = vmatpush1.msra.mxu0 %v293
      %380 = vmatprep.subr.mxu0 0.0
      %381 = vmatpush1.msra.mxu0 %v294
      %382 = vmatprep.subr.mxu0 0.0
      %383 = vmatpush1.msra.mxu0 %v295
      %384 = vmatprep.subr.mxu0 0.0
      %385 = vmatpush1.msra.mxu0 %v296
      %386 = vmatprep.subr.mxu0 0.0
      %387 = vmatpush1.msra.mxu0 %v297
      %388 = vmatprep.subr.mxu0 0.0
      %389 = vmatpush1.msra.mxu0 %v298
      %390 = vmatprep.subr.mxu0 0.0
      %391 = vmatpush1.msra.mxu0 %v299
      %392 = vmatprep.subr.mxu0 0.0
      %393 = vmatpush1.msra.mxu0 %v300
      %394 = vmatprep.subr.mxu0 0.0
      %395 = vmatpush1.msra.mxu0 %v301
      %396 = vmatprep.subr.mxu0 0.0
      %397 = vmatpush1.msra.mxu0 %v302
      %398 = vmatprep.subr.mxu0 0.0
      %399 = vmatpush1.msra.mxu0 %v303
      %400 = vmatprep.mubr.f32.mxu0 %v145
      %401 = vmatmul.mubr.f32.gmra.mrb[0].mxu0 %v144
      %v402 = vpop.f32.mrb[0].mxu0
      %v403 = vadd.f32 0.0, %v402
      %v404 = vpop.f32.mrb[0].mxu0
      %405 = vmatprep.mubr.f32.mxu0 %v149
      %406 = vmatmul.mubr.f32.gmra.mrb[0].mxu0 %v148
      %v407 = vpop.f32.mrb[0].mxu0
      %v408 = vadd.f32 0.0, %v407
      %v409 = vpop.f32.mrb[0].mxu0
      %410 = vmatprep.mubr.f32.mxu0 %v153
      %411 = vmatmul.mubr.f32.gmra.mrb[0].mxu0 %v152
      %v412 = vpop.f32.mrb[0].mxu0
      %v413 = vadd.f32 0.0, %v412
      %v414 = vpop.f32.mrb[0].mxu0
      %415 = vmatprep.mubr.f32.mxu0 %v157
      %416 = vmatmul.mubr.f32.gmra.mrb[0].mxu0 %v156
      %v417 = vpop.f32.mrb[0].mxu0
      %v418 = vadd.f32 0.0, %v417
      %v419 = vpop.f32.mrb[0].mxu0
      %420 = vmatprep.mubr.f32.mxu0 %v161
      %421 = vmatmul.mubr.f32.gmra.mrb[0].mxu0 %v160
      %v422 = vpop.f32.mrb[0].mxu0
      %v423 = vadd.f32 0.0, %v422
      %v424 = vpop.f32.mrb[0].mxu0
      %425 = vmatprep.mubr.f32.mxu0 %v165
      %426 = vmatmul.mubr.f32.gmra.mrb[0].mxu0 %v164
      %v427 = vpop.f32.mrb[0].mxu0
      %v428 = vadd.f32 0.0, %v427
      %v429 = vpop.f32.mrb[0].mxu0
      %430 = vmatprep.mubr.f32.mxu0 %v169
      %431 = vmatmul.mubr.f32.gmra.mrb[0].mxu0 %v168
      %v432 = vpop.f32.mrb[0].mxu0
      %v433 = vadd.f32 0.0, %v432
      %v434 = vpop.f32.mrb[0].mxu0
      %435 = vmatprep.mubr.f32.mxu0 %v173
      %436 = vmatmul.mubr.f32.gmra.mrb[0].mxu0 %v172
      %v437 = vpop.f32.mrb[0].mxu0
      %v438 = vadd.f32 0.0, %v437
      %v439 = vpop.f32.mrb[0].mxu0
      %440 = vmatprep.mubr.f32.mxu0 %v177
      %441 = vmatmul.mubr.f32.gmra.mrb[0].mxu0 %v176
      %v442 = vpop.f32.mrb[0].mxu0
      %v443 = vadd.f32 0.0, %v442
      %v444 = vpop.f32.mrb[0].mxu0
      %445 = vmatprep.mubr.f32.mxu0 %v181
      %446 = vmatmul.mubr.f32.gmra.mrb[0].mxu0 %v180
      %v447 = vpop.f32.mrb[0].mxu0
      %v448 = vadd.f32 0.0, %v447
      %v449 = vpop.f32.mrb[0].mxu0
      %450 = vmatprep.mubr.f32.mxu0 %v185
      %451 = vmatmul.mubr.f32.gmra.mrb[0].mxu0 %v184
      %v452 = vpop.f32.mrb[0].mxu0
      %v453 = vadd.f32 0.0, %v452
      %v454 = vpop.f32.mrb[0].mxu0
      %455 = vmatprep.mubr.f32.mxu0 %v189
      %456 = vmatmul.mubr.f32.gmra.mrb[0].mxu0 %v188
      %v457 = vpop.f32.mrb[0].mxu0
      %v458 = vadd.f32 0.0, %v457
      %v459 = vpop.f32.mrb[0].mxu0
      %460 = vmatprep.mubr.f32.mxu0 %v193
      %461 = vmatmul.mubr.f32.gmra.mrb[0].mxu0 %v192
      %v462 = vpop.f32.mrb[0].mxu0
      %v463 = vadd.f32 0.0, %v462
      %v464 = vpop.f32.mrb[0].mxu0
      %465 = vmatprep.mubr.f32.mxu0 %v197
      %466 = vmatmul.mubr.f32.gmra.mrb[0].mxu0 %v196
      %v467 = vpop.f32.mrb[0].mxu0
      %v468 = vadd.f32 0.0, %v467
      %v469 = vpop.f32.mrb[0].mxu0
      %470 = vmatprep.mubr.f32.mxu0 %v201
      %471 = vmatmul.mubr.f32.gmra.mrb[0].mxu0 %v200
      %v472 = vpop.f32.mrb[0].mxu0
      %v473 = vadd.f32 0.0, %v472
      %v474 = vpop.f32.mrb[0].mxu0
      %475 = vmatprep.mubr.f32.mxu0 %v205
      %476 = vmatmul.mubr.f32.gmra.mrb[0].mxu0 %v204
      %v477 = vpop.f32.mrb[0].mxu0
      %v478 = vadd.f32 0.0, %v477
      %v479 = vpop.f32.mrb[0].mxu0
      %480 = vmatprep.mubr.f32.mxu0 %v209
      %481 = vmatmul.mubr.f32.gmra.mrb[0].mxu0 %v208
      %v482 = vpop.f32.mrb[0].mxu0
      %v483 = vadd.f32 0.0, %v482
      %v484 = vpop.f32.mrb[0].mxu0
      %485 = vmatprep.mubr.f32.mxu0 %v213
      %486 = vmatmul.mubr.f32.gmra.mrb[0].mxu0 %v212
      %v487 = vpop.f32.mrb[0].mxu0
      %v488 = vadd.f32 0.0, %v487
      %v489 = vpop.f32.mrb[0].mxu0
      %490 = vmatprep.mubr.f32.mxu0 %v217
      %491 = vmatmul.mubr.f32.gmra.mrb[0].mxu0 %v216
      %v492 = vpop.f32.mrb[0].mxu0
      %v493 = vadd.f32 0.0, %v492
      %v494 = vpop.f32.mrb[0].mxu0
      %495 = vmatprep.mubr.f32.mxu0 %v221
      %496 = vmatmul.mubr.f32.gmra.mrb[0].mxu0 %v220
      %v497 = vpop.f32.mrb[0].mxu0
      %v498 = vadd.f32 0.0, %v497
      %v499 = vpop.f32.mrb[0].mxu0
      %500 = vmatprep.mubr.f32.mxu0 %v225
      %501 = vmatmul.mubr.f32.gmra.mrb[0].mxu0 %v224
      %v502 = vpop.f32.mrb[0].mxu0
      %v503 = vadd.f32 0.0, %v502
      %v504 = vpop.f32.mrb[0].mxu0
      %505 = vmatprep.mubr.f32.mxu0 %v229
      %506 = vmatmul.mubr.f32.gmra.mrb[0].mxu0 %v228
      %v507 = vpop.f32.mrb[0].mxu0
      %v508 = vadd.f32 0.0, %v507
      %v509 = vpop.f32.mrb[0].mxu0
      %510 = vmatprep.mubr.f32.mxu0 %v233
      %511 = vmatmul.mubr.f32.gmra.mrb[0].mxu0 %v232
      %v512 = vpop.f32.mrb[0].mxu0
      %v513 = vadd.f32 0.0, %v512
      %v514 = vpop.f32.mrb[0].mxu0
      %515 = vmatprep.mubr.f32.mxu0 %v237
      %516 = vmatmul.mubr.f32.gmra.mrb[0].mxu0 %v236
      %v517 = vpop.f32.mrb[0].mxu0
      %v518 = vadd.f32 0.0, %v517
      %v519 = vpop.f32.mrb[0].mxu0
      %520 = vmatprep.mubr.f32.mxu0 %v241
      %521 = vmatmul.mubr.f32.gmra.mrb[0].mxu0 %v240
      %v522 = vpop.f32.mrb[0].mxu0
      %v523 = vadd.f32 0.0, %v522
      %v524 = vpop.f32.mrb[0].mxu0
      %525 = vmatprep.mubr.f32.mxu0 %v245
      %526 = vmatmul.mubr.f32.gmra.mrb[0].mxu0 %v244
      %v527 = vpop.f32.mrb[0].mxu0
      %v528 = vadd.f32 0.0, %v527
      %v529 = vpop.f32.mrb[0].mxu0
      %530 = vmatprep.mubr.f32.mxu0 %v249
      %531 = vmatmul.mubr.f32.gmra.mrb[0].mxu0 %v248
      %v532 = vpop.f32.mrb[0].mxu0
      %v533 = vadd.f32 0.0, %v532
      %v534 = vpop.f32.mrb[0].mxu0
      %535 = vmatprep.mubr.f32.mxu0 %v253
      %536 = vmatmul.mubr.f32.gmra.mrb[0].mxu0 %v252
      %v537 = vpop.f32.mrb[0].mxu0
      %v538 = vadd.f32 0.0, %v537
      %v539 = vpop.f32.mrb[0].mxu0
      %540 = vmatprep.mubr.f32.mxu0 %v257
      %541 = vmatmul.mubr.f32.gmra.mrb[0].mxu0 %v256
      %v542 = vpop.f32.mrb[0].mxu0
      %v543 = vadd.f32 0.0, %v542
      %v544 = vpop.f32.mrb[0].mxu0
      %545 = vmatprep.mubr.f32.mxu0 %v261
      %546 = vmatmul.mubr.f32.gmra.mrb[0].mxu0 %v260
      %v547 = vpop.f32.mrb[0].mxu0
      %v548 = vadd.f32 0.0, %v547
      %v549 = vpop.f32.mrb[0].mxu0
      %550 = vmatprep.mubr.f32.mxu0 %v265
      %551 = vmatmul.mubr.f32.gmra.mrb[0].mxu0 %v264
      %v552 = vpop.f32.mrb[0].mxu0
      %v553 = vadd.f32 0.0, %v552
      %v554 = vpop.f32.mrb[0].mxu0
      %555 = vmatprep.mubr.f32.mxu0 %v269
      %556 = vmatmul.mubr.f32.gmra.mrb[0].mxu0 %v268
      %v557 = vpop.f32.mrb[0].mxu0
      %v558 = vadd.f32 0.0, %v557
      %v559 = vpop.f32.mrb[0].mxu0
      %560 = vdwg.mxu0
      %561 = vmatprep.subr.mxu0 0.0
      %562 = vmatpush1.msra.mxu0 %v304
      %563 = vmatprep.subr.mxu0 0.0
      %564 = vmatpush1.msra.mxu0 %v305
      %565 = vmatprep.subr.mxu0 0.0
      %566 = vmatpush1.msra.mxu0 %v306
      %567 = vmatprep.subr.mxu0 0.0
      %568 = vmatpush1.msra.mxu0 %v307
      %569 = vmatprep.subr.mxu0 0.0
      %570 = vmatpush1.msra.mxu0 %v308
      %571 = vmatprep.subr.mxu0 0.0
      %572 = vmatpush1.msra.mxu0 %v309
      %573 = vmatprep.subr.mxu0 0.0
      %574 = vmatpush1.msra.mxu0 %v310
      %575 = vmatprep.subr.mxu0 0.0
      %576 = vmatpush1.msra.mxu0 %v311
      %577 = vmatprep.subr.mxu0 0.0
      %578 = vmatpush1.msra.mxu0 %v312
      %579 = vmatprep.subr.mxu0 0.0
      %580 = vmatpush1.msra.mxu0 %v313
      %581 = vmatprep.subr.mxu0 0.0
      %582 = vmatpush1.msra.mxu0 %v314
      %583 = vmatprep.subr.mxu0 0.0
      %584 = vmatpush1.msra.mxu0 %v315
      %585 = vmatprep.subr.mxu0 0.0
      %586 = vmatpush1.msra.mxu0 %v316
      %587 = vmatprep.subr.mxu0 0.0
      %588 = vmatpush1.msra.mxu0 %v317
      %589 = vmatprep.subr.mxu0 0.0
      %590 = vmatpush1.msra.mxu0 %v318
      %591 = vmatprep.subr.mxu0 0.0
      %592 = vmatpush1.msra.mxu0 %v319
      %593 = vmatprep.subr.mxu0 0.0
      %594 = vmatpush1.msra.mxu0 %v320
      %595 = vmatprep.subr.mxu0 0.0
      %596 = vmatpush1.msra.mxu0 %v321
      %597 = vmatprep.subr.mxu0 0.0
      %598 = vmatpush1.msra.mxu0 %v322
      %599 = vmatprep.subr.mxu0 0.0
      %600 = vmatpush1.msra.mxu0 %v323
      %601 = vmatprep.subr.mxu0 0.0
      %602 = vmatpush1.msra.mxu0 %v324
      %603 = vmatprep.subr.mxu0 0.0
      %604 = vmatpush1.msra.mxu0 %v325
      %605 = vmatprep.subr.mxu0 0.0
      %606 = vmatpush1.msra.mxu0 %v326
      %607 = vmatprep.subr.mxu0 0.0
      %608 = vmatpush1.msra.mxu0 %v327
      %609 = vmatprep.subr.mxu0 0.0
      %610 = vmatpush1.msra.mxu0 %v328
      %611 = vmatprep.subr.mxu0 0.0
      %612 = vmatpush1.msra.mxu0 %v329
      %613 = vmatprep.subr.mxu0 0.0
      %614 = vmatpush1.msra.mxu0 %v330
      %615 = vmatprep.subr.mxu0 0.0
      %616 = vmatpush1.msra.mxu0 %v331
      %617 = vmatprep.subr.mxu0 0.0
      %618 = vmatpush1.msra.mxu0 %v332
      %619 = vmatprep.subr.mxu0 0.0
      %620 = vmatpush1.msra.mxu0 %v333
      %621 = vmatprep.subr.mxu0 0.0
      %622 = vmatpush1.msra.mxu0 %v334
      %623 = vmatprep.subr.mxu0 0.0
      %624 = vmatpush1.msra.mxu0 %v335
      %625 = vmatprep.mubr.f32.mxu0 %v147
      %626 = vmatmul.mubr.f32.gmra.mrb[0].mxu0 %v146
      %v627 = vpop.f32.mrb[0].mxu0
      %v628 = vadd.f32 %v403, %v627
      %v629 = vpop.f32.mrb[0].mxu0
      %630 = vmatprep.mubr.f32.mxu0 %v151
      %631 = vmatmul.mubr.f32.gmra.mrb[0].mxu0 %v150
      %v632 = vpop.f32.mrb[0].mxu0
      %v633 = vadd.f32 %v408, %v632
      %v634 = vpop.f32.mrb[0].mxu0
      %635 = vmatprep.mubr.f32.mxu0 %v155
      %636 = vmatmul.mubr.f32.gmra.mrb[0].mxu0 %v154
      %v637 = vpop.f32.mrb[0].mxu0
      %v638 = vadd.f32 %v413, %v637
      %v639 = vpop.f32.mrb[0].mxu0
      %640 = vmatprep.mubr.f32.mxu0 %v159
      %641 = vmatmul.mubr.f32.gmra.mrb[0].mxu0 %v158
      %v642 = vpop.f32.mrb[0].mxu0
      %v643 = vadd.f32 %v418, %v642
      %v644 = vpop.f32.mrb[0].mxu0
      %645 = vmatprep.mubr.f32.mxu0 %v163
      %646 = vmatmul.mubr.f32.gmra.mrb[0].mxu0 %v162
      %v647 = vpop.f32.mrb[0].mxu0
      %v648 = vadd.f32 %v423, %v647
      %v649 = vpop.f32.mrb[0].mxu0
      %650 = vmatprep.mubr.f32.mxu0 %v167
      %651 = vmatmul.mubr.f32.gmra.mrb[0].mxu0 %v166
      %v652 = vpop.f32.mrb[0].mxu0
      %v653 = vadd.f32 %v428, %v652
      %v654 = vpop.f32.mrb[0].mxu0
      %655 = vmatprep.mubr.f32.mxu0 %v171
      %656 = vmatmul.mubr.f32.gmra.mrb[0].mxu0 %v170
      %v657 = vpop.f32.mrb[0].mxu0
      %v658 = vadd.f32 %v433, %v657
      %v659 = vpop.f32.mrb[0].mxu0
      %660 = vmatprep.mubr.f32.mxu0 %v175
      %661 = vmatmul.mubr.f32.gmra.mrb[0].mxu0 %v174
      %v662 = vpop.f32.mrb[0].mxu0
      %v663 = vadd.f32 %v438, %v662
      %v664 = vpop.f32.mrb[0].mxu0
      %665 = vmatprep.mubr.f32.mxu0 %v179
      %666 = vmatmul.mubr.f32.gmra.mrb[0].mxu0 %v178
      %v667 = vpop.f32.mrb[0].mxu0
      %v668 = vadd.f32 %v443, %v667
      %v669 = vpop.f32.mrb[0].mxu0
      %670 = vmatprep.mubr.f32.mxu0 %v183
      %671 = vmatmul.mubr.f32.gmra.mrb[0].mxu0 %v182
      %v672 = vpop.f32.mrb[0].mxu0
      %v673 = vadd.f32 %v448, %v672
      %v674 = vpop.f32.mrb[0].mxu0
      %675 = vmatprep.mubr.f32.mxu0 %v187
      %676 = vmatmul.mubr.f32.gmra.mrb[0].mxu0 %v186
      %v677 = vpop.f32.mrb[0].mxu0
      %v678 = vadd.f32 %v453, %v677
      %v679 = vpop.f32.mrb[0].mxu0
      %680 = vmatprep.mubr.f32.mxu0 %v191
      %681 = vmatmul.mubr.f32.gmra.mrb[0].mxu0 %v190
      %v682 = vpop.f32.mrb[0].mxu0
      %v683 = vadd.f32 %v458, %v682
      %v684 = vpop.f32.mrb[0].mxu0
      %685 = vmatprep.mubr.f32.mxu0 %v195
      %686 = vmatmul.mubr.f32.gmra.mrb[0].mxu0 %v194
      %v687 = vpop.f32.mrb[0].mxu0
      %v688 = vadd.f32 %v463, %v687
      %v689 = vpop.f32.mrb[0].mxu0
      %690 = vmatprep.mubr.f32.mxu0 %v199
      %691 = vmatmul.mubr.f32.gmra.mrb[0].mxu0 %v198
      %v692 = vpop.f32.mrb[0].mxu0
      %v693 = vadd.f32 %v468, %v692
      %v694 = vpop.f32.mrb[0].mxu0
      %695 = vmatprep.mubr.f32.mxu0 %v203
      %696 = vmatmul.mubr.f32.gmra.mrb[0].mxu0 %v202
      %v697 = vpop.f32.mrb[0].mxu0
      %v698 = vadd.f32 %v473, %v697
      %v699 = vpop.f32.mrb[0].mxu0
      %700 = vmatprep.mubr.f32.mxu0 %v207
      %701 = vmatmul.mubr.f32.gmra.mrb[0].mxu0 %v206
      %v702 = vpop.f32.mrb[0].mxu0
      %v703 = vadd.f32 %v478, %v702
      %v704 = vpop.f32.mrb[0].mxu0
      %705 = vmatprep.mubr.f32.mxu0 %v211
      %706 = vmatmul.mubr.f32.gmra.mrb[0].mxu0 %v210
      %v707 = vpop.f32.mrb[0].mxu0
      %v708 = vadd.f32 %v483, %v707
      %v709 = vpop.f32.mrb[0].mxu0
      %710 = vmatprep.mubr.f32.mxu0 %v215
      %711 = vmatmul.mubr.f32.gmra.mrb[0].mxu0 %v214
      %v712 = vpop.f32.mrb[0].mxu0
      %v713 = vadd.f32 %v488, %v712
      %v714 = vpop.f32.mrb[0].mxu0
      %715 = vmatprep.mubr.f32.mxu0 %v219
      %716 = vmatmul.mubr.f32.gmra.mrb[0].mxu0 %v218
      %v717 = vpop.f32.mrb[0].mxu0
      %v718 = vadd.f32 %v493, %v717
      %v719 = vpop.f32.mrb[0].mxu0
      %720 = vmatprep.mubr.f32.mxu0 %v223
      %721 = vmatmul.mubr.f32.gmra.mrb[0].mxu0 %v222
      %v722 = vpop.f32.mrb[0].mxu0
      %v723 = vadd.f32 %v498, %v722
      %v724 = vpop.f32.mrb[0].mxu0
      %725 = vmatprep.mubr.f32.mxu0 %v227
      %726 = vmatmul.mubr.f32.gmra.mrb[0].mxu0 %v226
      %v727 = vpop.f32.mrb[0].mxu0
      %v728 = vadd.f32 %v503, %v727
      %v729 = vpop.f32.mrb[0].mxu0
      %730 = vmatprep.mubr.f32.mxu0 %v231
      %731 = vmatmul.mubr.f32.gmra.mrb[0].mxu0 %v230
      %v732 = vpop.f32.mrb[0].mxu0
      %v733 = vadd.f32 %v508, %v732
      %v734 = vpop.f32.mrb[0].mxu0
      %735 = vmatprep.mubr.f32.mxu0 %v235
      %736 = vmatmul.mubr.f32.gmra.mrb[0].mxu0 %v234
      %v737 = vpop.f32.mrb[0].mxu0
      %v738 = vadd.f32 %v513, %v737
      %v739 = vpop.f32.mrb[0].mxu0
      %740 = vmatprep.mubr.f32.mxu0 %v239
      %741 = vmatmul.mubr.f32.gmra.mrb[0].mxu0 %v238
      %v742 = vpop.f32.mrb[0].mxu0
      %v743 = vadd.f32 %v518, %v742
      %v744 = vpop.f32.mrb[0].mxu0
      %745 = vmatprep.mubr.f32.mxu0 %v243
      %746 = vmatmul.mubr.f32.gmra.mrb[0].mxu0 %v242
      %v747 = vpop.f32.mrb[0].mxu0
      %v748 = vadd.f32 %v523, %v747
      %v749 = vpop.f32.mrb[0].mxu0
      %750 = vmatprep.mubr.f32.mxu0 %v247
      %751 = vmatmul.mubr.f32.gmra.mrb[0].mxu0 %v246
      %v752 = vpop.f32.mrb[0].mxu0
      %v753 = vadd.f32 %v528, %v752
      %v754 = vpop.f32.mrb[0].mxu0
      %755 = vmatprep.mubr.f32.mxu0 %v251
      %756 = vmatmul.mubr.f32.gmra.mrb[0].mxu0 %v250
      %v757 = vpop.f32.mrb[0].mxu0
      %v758 = vadd.f32 %v533, %v757
      %v759 = vpop.f32.mrb[0].mxu0
      %760 = vmatprep.mubr.f32.mxu0 %v255
      %761 = vmatmul.mubr.f32.gmra.mrb[0].mxu0 %v254
      %v762 = vpop.f32.mrb[0].mxu0
      %v763 = vadd.f32 %v538, %v762
      %v764 = vpop.f32.mrb[0].mxu0
      %765 = vmatprep.mubr.f32.mxu0 %v259
      %766 = vmatmul.mubr.f32.gmra.mrb[0].mxu0 %v258
      %v767 = vpop.f32.mrb[0].mxu0
      %v768 = vadd.f32 %v543, %v767
      %v769 = vpop.f32.mrb[0].mxu0
      %770 = vmatprep.mubr.f32.mxu0 %v263
      %771 = vmatmul.mubr.f32.gmra.mrb[0].mxu0 %v262
      %v772 = vpop.f32.mrb[0].mxu0
      %v773 = vadd.f32 %v548, %v772
      %v774 = vpop.f32.mrb[0].mxu0
      %775 = vmatprep.mubr.f32.mxu0 %v267
      %776 = vmatmul.mubr.f32.gmra.mrb[0].mxu0 %v266
      %v777 = vpop.f32.mrb[0].mxu0
      %v778 = vadd.f32 %v553, %v777
      %v779 = vpop.f32.mrb[0].mxu0
      %780 = vmatprep.mubr.f32.mxu0 %v271
      %781 = vmatmul.mubr.f32.gmra.mrb[0].mxu0 %v270
      %v782 = vpop.f32.mrb[0].mxu0
      %v783 = vadd.f32 %v558, %v782
      %v784 = vpop.f32.mrb[0].mxu0
      %785 = vdwg.mxu0
      %vm786 = vcmask 523264
      %v787 = vsel %vm786, %v628, 0.0
      %v788 = vsel %vm786, %v633, 0.0
      %v789 = vadd.f32 %v787, %v788
      %v790 = vsel %vm786, %v638, 0.0
      %v791 = vadd.f32 %v789, %v790
      %v792 = vsel %vm786, %v643, 0.0
      %v793 = vadd.f32 %v791, %v792
      %v794 = vsel %vm786, %v648, 0.0
      %v795 = vadd.f32 %v793, %v794
      %v796 = vsel %vm786, %v653, 0.0
      %v797 = vadd.f32 %v795, %v796
      %v798 = vsel %vm786, %v658, 0.0
      %v799 = vadd.f32 %v797, %v798
      %v800 = vsel %vm786, %v663, 0.0
      %v801 = vadd.f32 %v799, %v800
      %v802 = vsel %vm786, %v668, 0.0
      %v803 = vadd.f32 %v801, %v802
      %v804 = vsel %vm786, %v673, 0.0
      %v805 = vadd.f32 %v803, %v804
      %v806 = vsel %vm786, %v678, 0.0
      %v807 = vadd.f32 %v805, %v806
      %v808 = vsel %vm786, %v683, 0.0
      %v809 = vadd.f32 %v807, %v808
      %v810 = vsel %vm786, %v688, 0.0
      %v811 = vadd.f32 %v809, %v810
      %v812 = vsel %vm786, %v693, 0.0
      %v813 = vadd.f32 %v811, %v812
      %v814 = vsel %vm786, %v698, 0.0
      %v815 = vadd.f32 %v813, %v814
      %v816 = vsel %vm786, %v703, 0.0
      %v817 = vadd.f32 %v815, %v816
      %v818 = vsel %vm786, %v708, 0.0
      %v819 = vadd.f32 %v817, %v818
      %v820 = vsel %vm786, %v713, 0.0
      %v821 = vadd.f32 %v819, %v820
      %v822 = vsel %vm786, %v718, 0.0
      %v823 = vadd.f32 %v821, %v822
      %v824 = vsel %vm786, %v723, 0.0
      %v825 = vadd.f32 %v823, %v824
      %v826 = vsel %vm786, %v728, 0.0
      %v827 = vadd.f32 %v825, %v826
      %v828 = vsel %vm786, %v733, 0.0
      %v829 = vadd.f32 %v827, %v828
      %v830 = vsel %vm786, %v738, 0.0
      %v831 = vadd.f32 %v829, %v830
      %v832 = vsel %vm786, %v743, 0.0
      %v833 = vadd.f32 %v831, %v832
      %v834 = vsel %vm786, %v748, 0.0
      %v835 = vadd.f32 %v833, %v834
      %v836 = vsel %vm786, %v753, 0.0
      %v837 = vadd.f32 %v835, %v836
      %v838 = vsel %vm786, %v758, 0.0
      %v839 = vadd.f32 %v837, %v838
      %v840 = vsel %vm786, %v763, 0.0
      %v841 = vadd.f32 %v839, %v840
      %v842 = vsel %vm786, %v768, 0.0
      %v843 = vadd.f32 %v841, %v842
      %v844 = vsel %vm786, %v773, 0.0
      %v845 = vadd.f32 %v843, %v844
      %v846 = vsel %vm786, %v778, 0.0
      %v847 = vadd.f32 %v845, %v846
      %v848 = vsel %vm786, %v783, 0.0
      %v849 = vadd.f32 %v847, %v848
      %v850 = vrot.slane %v849, 4
      %v851 = vadd.f32 %v849, %v850
      %v852 = vrot.slane %v851, 2
      %v853 = vadd.f32 %v851, %v852
      %v854 = vrot.slane %v853, 1
      %v855 = vadd.f32 %v853, %v854
      %v856 = vrcp.pop 256.0
      %v857 = vmul.f32 %v855, %v856
      %v858 = vsub.f32 %v628, %v857
      %v859 = vsub.f32 %v633, %v857
      %v860 = vsub.f32 %v638, %v857
      %v861 = vsub.f32 %v643, %v857
      %v862 = vsub.f32 %v648, %v857
      %v863 = vsub.f32 %v653, %v857
      %v864 = vsub.f32 %v658, %v857
      %v865 = vsub.f32 %v663, %v857
      %v866 = vsub.f32 %v668, %v857
      %v867 = vsub.f32 %v673, %v857
      %v868 = vsub.f32 %v678, %v857
      %v869 = vsub.f32 %v683, %v857
      %v870 = vsub.f32 %v688, %v857
      %v871 = vsub.f32 %v693, %v857
      %v872 = vsub.f32 %v698, %v857
      %v873 = vsub.f32 %v703, %v857
      %v874 = vsub.f32 %v708, %v857
      %v875 = vsub.f32 %v713, %v857
      %v876 = vsub.f32 %v718, %v857
      %v877 = vsub.f32 %v723, %v857
      %v878 = vsub.f32 %v728, %v857
      %v879 = vsub.f32 %v733, %v857
      %v880 = vsub.f32 %v738, %v857
      %v881 = vsub.f32 %v743, %v857
      %v882 = vsub.f32 %v748, %v857
      %v883 = vsub.f32 %v753, %v857
      %v884 = vsub.f32 %v758, %v857
      %v885 = vsub.f32 %v763, %v857
      %v886 = vsub.f32 %v768, %v857
      %v887 = vsub.f32 %v773, %v857
      %v888 = vsub.f32 %v778, %v857
      %v889 = vsub.f32 %v783, %v857
      %v890 = vmul.f32 %v858, %v858
      %v891 = vmul.f32 %v859, %v859
      %v892 = vmul.f32 %v860, %v860
      %v893 = vmul.f32 %v861, %v861
      %v894 = vmul.f32 %v862, %v862
      %v895 = vmul.f32 %v863, %v863
      %v896 = vmul.f32 %v864, %v864
      %v897 = vmul.f32 %v865, %v865
      %v898 = vmul.f32 %v866, %v866
      %v899 = vmul.f32 %v867, %v867
      %v900 = vmul.f32 %v868, %v868
      %v901 = vmul.f32 %v869, %v869
      %v902 = vmul.f32 %v870, %v870
      %v903 = vmul.f32 %v871, %v871
      %v904 = vmul.f32 %v872, %v872
      %v905 = vmul.f32 %v873, %v873
      %v906 = vmul.f32 %v874, %v874
      %v907 = vmul.f32 %v875, %v875
      %v908 = vmul.f32 %v876, %v876
      %v909 = vmul.f32 %v877, %v877
      %v910 = vmul.f32 %v878, %v878
      %v911 = vmul.f32 %v879, %v879
      %v912 = vmul.f32 %v880, %v880
      %v913 = vmul.f32 %v881, %v881
      %v914 = vmul.f32 %v882, %v882
      %v915 = vmul.f32 %v883, %v883
      %v916 = vmul.f32 %v884, %v884
      %v917 = vmul.f32 %v885, %v885
      %v918 = vmul.f32 %v886, %v886
      %v919 = vmul.f32 %v887, %v887
      %v920 = vmul.f32 %v888, %v888
      %v921 = vmul.f32 %v889, %v889
      %v922 = vsel %vm786, %v890, 0.0
      %v923 = vsel %vm786, %v891, 0.0
      %v924 = vadd.f32 %v922, %v923
      %v925 = vsel %vm786, %v892, 0.0
      %v926 = vadd.f32 %v924, %v925
      %v927 = vsel %vm786, %v893, 0.0
      %v928 = vadd.f32 %v926, %v927
      %v929 = vsel %vm786, %v894, 0.0
      %v930 = vadd.f32 %v928, %v929
      %v931 = vsel %vm786, %v895, 0.0
      %v932 = vadd.f32 %v930, %v931
      %v933 = vsel %vm786, %v896, 0.0
      %v934 = vadd.f32 %v932, %v933
      %v935 = vsel %vm786, %v897, 0.0
      %v936 = vadd.f32 %v934, %v935
      %v937 = vsel %vm786, %v898, 0.0
      %v938 = vadd.f32 %v936, %v937
      %v939 = vsel %vm786, %v899, 0.0
      %v940 = vadd.f32 %v938, %v939
      %v941 = vsel %vm786, %v900, 0.0
      %v942 = vadd.f32 %v940, %v941
      %v943 = vsel %vm786, %v901, 0.0
      %v944 = vadd.f32 %v942, %v943
      %v945 = vsel %vm786, %v902, 0.0
      %v946 = vadd.f32 %v944, %v945
      %v947 = vsel %vm786, %v903, 0.0
      %v948 = vadd.f32 %v946, %v947
      %v949 = vsel %vm786, %v904, 0.0
      %v950 = vadd.f32 %v948, %v949
      %v951 = vsel %vm786, %v905, 0.0
      %v952 = vadd.f32 %v950, %v951
      %v953 = vsel %vm786, %v906, 0.0
      %v954 = vadd.f32 %v952, %v953
      %v955 = vsel %vm786, %v907, 0.0
      %v956 = vadd.f32 %v954, %v955
      %v957 = vsel %vm786, %v908, 0.0
      %v958 = vadd.f32 %v956, %v957
      %v959 = vsel %vm786, %v909, 0.0
      %v960 = vadd.f32 %v958, %v959
      %v961 = vsel %vm786, %v910, 0.0
      %v962 = vadd.f32 %v960, %v961
      %v963 = vsel %vm786, %v911, 0.0
      %v964 = vadd.f32 %v962, %v963
      %v965 = vsel %vm786, %v912, 0.0
      %v966 = vadd.f32 %v964, %v965
      %v967 = vsel %vm786, %v913, 0.0
      %v968 = vadd.f32 %v966, %v967
      %v969 = vsel %vm786, %v914, 0.0
      %v970 = vadd.f32 %v968, %v969
      %v971 = vsel %vm786, %v915, 0.0
      %v972 = vadd.f32 %v970, %v971
      %v973 = vsel %vm786, %v916, 0.0
      %v974 = vadd.f32 %v972, %v973
      %v975 = vsel %vm786, %v917, 0.0
      %v976 = vadd.f32 %v974, %v975
      %v977 = vsel %vm786, %v918, 0.0
      %v978 = vadd.f32 %v976, %v977
      %v979 = vsel %vm786, %v919, 0.0
      %v980 = vadd.f32 %v978, %v979
      %v981 = vsel %vm786, %v920, 0.0
      %v982 = vadd.f32 %v980, %v981
      %v983 = vsel %vm786, %v921, 0.0
      %v984 = vadd.f32 %v982, %v983
      %v985 = vrot.slane %v984, 4
      %v986 = vadd.f32 %v984, %v985
      %v987 = vrot.slane %v986, 2
      %v988 = vadd.f32 %v986, %v987
      %v989 = vrot.slane %v988, 1
      %v990 = vadd.f32 %v988, %v989
      %v991 = vmul.f32 %v990, %v856
      %v992 = vadd.f32 %v991, 1e-05
      %v993 = vrsqrt.pop %v992
      %v994 = vmul.f32 %v858, %v993
      %v995 = vmul.f32 %v859, %v993
      %v996 = vmul.f32 %v860, %v993
      %v997 = vmul.f32 %v861, %v993
      %v998 = vmul.f32 %v862, %v993
      %v999 = vmul.f32 %v863, %v993
      %v1000 = vmul.f32 %v864, %v993
      %v1001 = vmul.f32 %v865, %v993
      %v1002 = vmul.f32 %v866, %v993
      %v1003 = vmul.f32 %v867, %v993
      %v1004 = vmul.f32 %v868, %v993
      %v1005 = vmul.f32 %v869, %v993
      %v1006 = vmul.f32 %v870, %v993
      %v1007 = vmul.f32 %v871, %v993
      %v1008 = vmul.f32 %v872, %v993
      %v1009 = vmul.f32 %v873, %v993
      %v1010 = vmul.f32 %v874, %v993
      %v1011 = vmul.f32 %v875, %v993
      %v1012 = vmul.f32 %v876, %v993
      %v1013 = vmul.f32 %v877, %v993
      %v1014 = vmul.f32 %v878, %v993
      %v1015 = vmul.f32 %v879, %v993
      %v1016 = vmul.f32 %v880, %v993
      %v1017 = vmul.f32 %v881, %v993
      %v1018 = vmul.f32 %v882, %v993
      %v1019 = vmul.f32 %v883, %v993
      %v1020 = vmul.f32 %v884, %v993
      %v1021 = vmul.f32 %v885, %v993
      %v1022 = vmul.f32 %v886, %v993
      %v1023 = vmul.f32 %v887, %v993
      %v1024 = vmul.f32 %v888, %v993
      %v1025 = vmul.f32 %v889, %v993
      %vm1026 = vcmp.ge.f32.partialorder %v994, 0.0
      %vm1027 = vcmp.ge.f32.partialorder %v995, 0.0
      %vm1028 = vcmp.ge.f32.partialorder %v996, 0.0
      %vm1029 = vcmp.ge.f32.partialorder %v997, 0.0
      %vm1030 = vcmp.ge.f32.partialorder %v998, 0.0
      %vm1031 = vcmp.ge.f32.partialorder %v999, 0.0
      %vm1032 = vcmp.ge.f32.partialorder %v1000, 0.0
      %vm1033 = vcmp.ge.f32.partialorder %v1001, 0.0
      %vm1034 = vcmp.ge.f32.partialorder %v1002, 0.0
      %vm1035 = vcmp.ge.f32.partialorder %v1003, 0.0
      %vm1036 = vcmp.ge.f32.partialorder %v1004, 0.0
      %vm1037 = vcmp.ge.f32.partialorder %v1005, 0.0
      %vm1038 = vcmp.ge.f32.partialorder %v1006, 0.0
      %vm1039 = vcmp.ge.f32.partialorder %v1007, 0.0
      %vm1040 = vcmp.ge.f32.partialorder %v1008, 0.0
      %vm1041 = vcmp.ge.f32.partialorder %v1009, 0.0
      %vm1042 = vcmp.ge.f32.partialorder %v1010, 0.0
      %vm1043 = vcmp.ge.f32.partialorder %v1011, 0.0
      %vm1044 = vcmp.ge.f32.partialorder %v1012, 0.0
      %vm1045 = vcmp.ge.f32.partialorder %v1013, 0.0
      %vm1046 = vcmp.ge.f32.partialorder %v1014, 0.0
      %vm1047 = vcmp.ge.f32.partialorder %v1015, 0.0
      %vm1048 = vcmp.ge.f32.partialorder %v1016, 0.0
      %vm1049 = vcmp.ge.f32.partialorder %v1017, 0.0
      %vm1050 = vcmp.ge.f32.partialorder %v1018, 0.0
      %vm1051 = vcmp.ge.f32.partialorder %v1019, 0.0
      %vm1052 = vcmp.ge.f32.partialorder %v1020, 0.0
      %vm1053 = vcmp.ge.f32.partialorder %v1021, 0.0
      %vm1054 = vcmp.ge.f32.partialorder %v1022, 0.0
      %vm1055 = vcmp.ge.f32.partialorder %v1023, 0.0
      %vm1056 = vcmp.ge.f32.partialorder %v1024, 0.0
      %vm1057 = vcmp.ge.f32.partialorder %v1025, 0.0
      %v1058 = vmul.f32 %v994, 0.2
      %v1059 = vmul.f32 %v995, 0.2
      %v1060 = vmul.f32 %v996, 0.2
      %v1061 = vmul.f32 %v997, 0.2
      %v1062 = vmul.f32 %v998, 0.2
      %v1063 = vmul.f32 %v999, 0.2
      %v1064 = vmul.f32 %v1000, 0.2
      %v1065 = vmul.f32 %v1001, 0.2
      %v1066 = vmul.f32 %v1002, 0.2
      %v1067 = vmul.f32 %v1003, 0.2
      %v1068 = vmul.f32 %v1004, 0.2
      %v1069 = vmul.f32 %v1005, 0.2
      %v1070 = vmul.f32 %v1006, 0.2
      %v1071 = vmul.f32 %v1007, 0.2
      %v1072 = vmul.f32 %v1008, 0.2
      %v1073 = vmul.f32 %v1009, 0.2
      %v1074 = vmul.f32 %v1010, 0.2
      %v1075 = vmul.f32 %v1011, 0.2
      %v1076 = vmul.f32 %v1012, 0.2
      %v1077 = vmul.f32 %v1013, 0.2
      %v1078 = vmul.f32 %v1014, 0.2
      %v1079 = vmul.f32 %v1015, 0.2
      %v1080 = vmul.f32 %v1016, 0.2
      %v1081 = vmul.f32 %v1017, 0.2
      %v1082 = vmul.f32 %v1018, 0.2
      %v1083 = vmul.f32 %v1019, 0.2
      %v1084 = vmul.f32 %v1020, 0.2
      %v1085 = vmul.f32 %v1021, 0.2
      %v1086 = vmul.f32 %v1022, 0.2
      %v1087 = vmul.f32 %v1023, 0.2
      %v1088 = vmul.f32 %v1024, 0.2
      %v1089 = vmul.f32 %v1025, 0.2
      %v1090 = vsel %vm1026, %v994, %v1058
      %v1091 = vsel %vm1027, %v995, %v1059
      %v1092 = vsel %vm1028, %v996, %v1060
      %v1093 = vsel %vm1029, %v997, %v1061
      %v1094 = vsel %vm1030, %v998, %v1062
      %v1095 = vsel %vm1031, %v999, %v1063
      %v1096 = vsel %vm1032, %v1000, %v1064
      %v1097 = vsel %vm1033, %v1001, %v1065
      %v1098 = vsel %vm1034, %v1002, %v1066
      %v1099 = vsel %vm1035, %v1003, %v1067
      %v1100 = vsel %vm1036, %v1004, %v1068
      %v1101 = vsel %vm1037, %v1005, %v1069
      %v1102 = vsel %vm1038, %v1006, %v1070
      %v1103 = vsel %vm1039, %v1007, %v1071
      %v1104 = vsel %vm1040, %v1008, %v1072
      %v1105 = vsel %vm1041, %v1009, %v1073
      %v1106 = vsel %vm1042, %v1010, %v1074
      %v1107 = vsel %vm1043, %v1011, %v1075
      %v1108 = vsel %vm1044, %v1012, %v1076
      %v1109 = vsel %vm1045, %v1013, %v1077
      %v1110 = vsel %vm1046, %v1014, %v1078
      %v1111 = vsel %vm1047, %v1015, %v1079
      %v1112 = vsel %vm1048, %v1016, %v1080
      %v1113 = vsel %vm1049, %v1017, %v1081
      %v1114 = vsel %vm1050, %v1018, %v1082
      %v1115 = vsel %vm1051, %v1019, %v1083
      %v1116 = vsel %vm1052, %v1020, %v1084
      %v1117 = vsel %vm1053, %v1021, %v1085
      %v1118 = vsel %vm1054, %v1022, %v1086
      %v1119 = vsel %vm1055, %v1023, %v1087
      %v1120 = vsel %vm1056, %v1024, %v1088
      %v1121 = vsel %vm1057, %v1025, %v1089
      %1122 = vst.msk [vmem:[%s143] sm:$0xff] %vm786, %v1090
      %1123 = vst.msk [vmem:[%s143 + $0x8] sm:$0xff] %vm786, %v1091
      %1124 = vst.msk [vmem:[%s143 + $0x10] sm:$0xff] %vm786, %v1092
      %1125 = vst.msk [vmem:[%s143 + $0x18] sm:$0xff] %vm786, %v1093
      %1126 = vst.msk [vmem:[%s143 + $0x20] sm:$0xff] %vm786, %v1094
      %1127 = vst.msk [vmem:[%s143 + $0x28] sm:$0xff] %vm786, %v1095
      %1128 = vst.msk [vmem:[%s143 + $0x30] sm:$0xff] %vm786, %v1096
      %1129 = vst.msk [vmem:[%s143 + $0x38] sm:$0xff] %vm786, %v1097
      %1130 = vst.msk [vmem:[%s143 + $0x40] sm:$0xff] %vm786, %v1098
      %1131 = vst.msk [vmem:[%s143 + $0x48] sm:$0xff] %vm786, %v1099
      %1132 = vst.msk [vmem:[%s143 + $0x50] sm:$0xff] %vm786, %v1100
      %1133 = vst.msk [vmem:[%s143 + $0x58] sm:$0xff] %vm786, %v1101
      %1134 = vst.msk [vmem:[%s143 + $0x60] sm:$0xff] %vm786, %v1102
      %1135 = vst.msk [vmem:[%s143 + $0x68] sm:$0xff] %vm786, %v1103
      %1136 = vst.msk [vmem:[%s143 + $0x70] sm:$0xff] %vm786, %v1104
      %1137 = vst.msk [vmem:[%s143 + $0x78] sm:$0xff] %vm786, %v1105
      %1138 = vst.msk [vmem:[%s143 + $0x80] sm:$0xff] %vm786, %v1106
      %1139 = vst.msk [vmem:[%s143 + $0x88] sm:$0xff] %vm786, %v1107
      %1140 = vst.msk [vmem:[%s143 + $0x90] sm:$0xff] %vm786, %v1108
      %1141 = vst.msk [vmem:[%s143 + $0x98] sm:$0xff] %vm786, %v1109
      %1142 = vst.msk [vmem:[%s143 + $0xa0] sm:$0xff] %vm786, %v1110
      %1143 = vst.msk [vmem:[%s143 + $0xa8] sm:$0xff] %vm786, %v1111
      %1144 = vst.msk [vmem:[%s143 + $0xb0] sm:$0xff] %vm786, %v1112
      %1145 = vst.msk [vmem:[%s143 + $0xb8] sm:$0xff] %vm786, %v1113
      %1146 = vst.msk [vmem:[%s143 + $0xc0] sm:$0xff] %vm786, %v1114
      %1147 = vst.msk [vmem:[%s143 + $0xc8] sm:$0xff] %vm786, %v1115
      %1148 = vst.msk [vmem:[%s143 + $0xd0] sm:$0xff] %vm786, %v1116
      %1149 = vst.msk [vmem:[%s143 + $0xd8] sm:$0xff] %vm786, %v1117
      %1150 = vst.msk [vmem:[%s143 + $0xe0] sm:$0xff] %vm786, %v1118
      %1151 = vst.msk [vmem:[%s143 + $0xe8] sm:$0xff] %vm786, %v1119
      %1152 = vst.msk [vmem:[%s143 + $0xf0] sm:$0xff] %vm786, %v1120
      %1153 = vst.msk [vmem:[%s143 + $0xf8] sm:$0xff] %vm786, %v1121
      %p1154 = scmp.lt.s32.totalorder %s13, 1
      %s1155 = scalar_select %p1154, %s13, 1
      %s1156 = smul.addr %s1155, 32
      %s1157 = smul.addr %s1156, 8
      %s1158 = scalar_lea.vmem %s2, %s1157
      // Predicated region
      $region29: #{encoders_intrinsic_forward.9} parent=27 // pred_check
        %p1159 = pneg %p78
      $region30: #{encoders_intrinsic_forward.9} parent=27 // pred_check_branch
        %1161 = sbr.rel (%p1159) target = $region32
      $region31: #{encoders_intrinsic_forward.9} parent=27 // pred_region
        _
      $region32: #{encoders_intrinsic_forward.9} parent=27 // pred_fallthru
        _
    $region28: #{encoders_intrinsic_forward.9} parent=5 // pred_fallthru
      _
    %p1162 = scmp.le.s32.totalorder 2, %s8
    // Predicated region
    $region33: #{encoders_intrinsic_forward.9} parent=5 // pred_check
      %p1163 = pneg %p1162
    $region34: #{encoders_intrinsic_forward.9} parent=5 // pred_check_branch
      %1165 = sbr.rel (%p1163) target = $region36
    $region35: #{encoders_intrinsic_forward.9} parent=5 // pred_region
      %s1166 = ssub.s32 %s8, 2
      // Predicated region
      $region37: #{encoders_intrinsic_forward.9} parent=35 // pred_check
        %p1167 = pneg %p84
      $region38: #{encoders_intrinsic_forward.9} parent=35 // pred_check_branch
        %1169 = sbr.rel (%p1167) target = $region40
      $region39: #{encoders_intrinsic_forward.9} parent=35 // pred_region
        %p1170 = scmp.lt.s32.totalorder %s14, 1
        %s1171 = scalar_select %p1170, %s14, 1
        %s1172 = smul.addr %s1171, 32
        %s1173 = smul.addr %s1172, 8
        %s1174 = scalar_lea.vmem %s2, %s1173
      $region40: #{encoders_intrinsic_forward.9} parent=35 // pred_fallthru
        _
    $region36: #{encoders_intrinsic_forward.9} parent=5 // pred_fallthru
      _
  $region6: #{encoders_intrinsic_forward.9} parent=0 // loop_footer
    %s12 = sadd.s32 1, %s8
  $region7: #{encoders_intrinsic_forward.9} parent=0 // loop_footer_branch
    %7 = sbr.rel target = $region3
  $region8: #{encoders_intrinsic_forward.9} parent=0 // loop_exit
    _

// kernel: encoders_intrinsic_forward.10
$region0: #{encoders_intrinsic_forward.10}
  #allocation0 [shape = 'u32[]', space=smem, size = 0x4, offset = 0x4, fixed_abs, tag = 'smem constant byte address 0x4 - core index']
  #allocation1 [shape = 'u32[144,128]{1,0:T(1,128)}', space=vmem, size = 0x12000, scoped, tag = 'internal scratch']
  %s0 = inlined_call_operand.vmem [shape: f32[2,64,1024], index: 0, kind: input, shape index: {}]
  %s1 = inlined_call_operand.vmem [shape: f32[1024,128], index: 1, kind: input, shape index: {}]
  %s2 = inlined_call_operand.vmem [shape: f32[2,64,128], index: 2, kind: output, shape index: {}]
  %s3 = sld [smem:[#allocation0]]
  $region41: #{encoders_intrinsic_forward.10} parent=0
    _
  %s5 = ssub.s32 1, %s3
  %s6 = scalar_select 0, %s5, %s3
  loop: start=0, step=1, limit=4
  $region2: #{encoders_intrinsic_forward.10} parent=0 // loop_pre_header
    _
  $region3: #{encoders_intrinsic_forward.10} parent=0 // loop_header
    %s8 = sphi 0, %s12
    %p9 = scmp.ge.s32.totalorder %s8, 4
    %s18 = sphi 0, %s20
    %s21 = sphi 0, %s18
    %s22 = sphi 0, %s21
    %s38 = sphi 0, %s22
    %s42 = sphi 0, %s42
    %s44 = sphi 0, %s42
    %s45 = sphi 0, %s44
    %s59 = sphi 0, %s45
    %s65 = sphi 0, %s67
    %s68 = sphi 0, %s65
    %s69 = sphi 0, %s68
    %s85 = sphi 0, %s69
  $region4: #{encoders_intrinsic_forward.10} parent=0 // loop_header_branch
    %11 = sbr.rel (%p9) target = $region8
  $region5: #{encoders_intrinsic_forward.10} parent=0 // loop_body
    %s13 = ssub.s32 %s8, 1
    %s14 = ssub.s32 %s8, 2
    %s15 = sadd.s32 %s8, 1
    %s16 = ssub.s32 %s8, %s15
    %p17 = scmp.eq.s32.totalorder %s16, 0
    %s19 = sadd.s32 %s18, 1
    %s20 = scalar_select %p17, %s18, %s19
    %p23 = pneg %p17
    %p24 = scmp.eq.s32.totalorder %s8, 1
    %p25 = por %p23, %p24
    %p26 = scmp.ne.s32.totalorder %s18, %s21
    %p27 = scmp.eq.s32.totalorder %s8, 0
    %p28 = por %p26, %p27
    %p29 = scmp.ne.s32.totalorder %s18, %s21
    %p30 = scmp.eq.s32.totalorder %s13, 1
    %p31 = por %p29, %p30
    %p32 = scmp.ne.s32.totalorder %s21, %s22
    %p33 = scmp.eq.s32.totalorder %s13, 0
    %p34 = por %p32, %p33
    %p35 = scmp.ne.s32.totalorder %s21, %s22
    %p36 = scmp.eq.s32.totalorder %s14, 1
    %p37 = por %p35, %p36
    %p39 = scmp.ne.s32.totalorder %s22, %s38
    %p40 = scmp.eq.s32.totalorder %s14, 0
    %p41 = por %p39, %p40
    %s43 = sadd.s32 %s42, 1
    %p46 = scmp.eq.s32.totalorder %s8, 1
    %p47 = scmp.ne.s32.totalorder %s42, %s44
    %p48 = scmp.eq.s32.totalorder %s8, 0
    %p49 = por %p47, %p48
    %p50 = scmp.ne.s32.totalorder %s42, %s44
    %p51 = scmp.eq.s32.totalorder %s13, 1
    %p52 = por %p50, %p51
    %p53 = scmp.ne.s32.totalorder %s44, %s45
    %p54 = scmp.eq.s32.totalorder %s13, 0
    %p55 = por %p53, %p54
    %p56 = scmp.ne.s32.totalorder %s44, %s45
    %p57 = scmp.eq.s32.totalorder %s14, 1
    %p58 = por %p56, %p57
    %p60 = scmp.ne.s32.totalorder %s45, %s59
    %p61 = scmp.eq.s32.totalorder %s14, 0
    %p62 = por %p60, %p61
    %s63 = ssub.s32 %s8, %s15
    %p64 = scmp.eq.s32.totalorder %s63, 0
    %s66 = sadd.s32 %s65, 1
    %s67 = scalar_select %p64, %s65, %s66
    %p70 = pneg %p64
    %p71 = scmp.eq.s32.totalorder %s8, 1
    %p72 = por %p70, %p71
    %p73 = scmp.ne.s32.totalorder %s65, %s68
    %p74 = scmp.eq.s32.totalorder %s8, 0
    %p75 = por %p73, %p74
    %p76 = scmp.ne.s32.totalorder %s65, %s68
    %p77 = scmp.eq.s32.totalorder %s13, 1
    %p78 = por %p76, %p77
    %p79 = scmp.ne.s32.totalorder %s68, %s69
    %p80 = scmp.eq.s32.totalorder %s13, 0
    %p81 = por %p79, %p80
    %p82 = scmp.ne.s32.totalorder %s68, %s69
    %p83 = scmp.eq.s32.totalorder %s14, 1
    %p84 = por %p82, %p83
    %p86 = scmp.ne.s32.totalorder %s69, %s85
    %p87 = scmp.eq.s32.totalorder %s14, 0
    %p88 = por %p86, %p87
    %p89 = scmp.le.s32.totalorder 1, %s8
    %p90 = scmp.lt.s32.totalorder %s8, 3
    %p91 = pnand %p89, %p90
    %p92 = pneg %p91
    // Predicated region
    $region9: #{encoders_intrinsic_forward.10} parent=5 // pred_check
      _
    $region10: #{encoders_intrinsic_forward.10} parent=5 // pred_check_branch
      %94 = sbr.rel (%p91) target = $region12
    $region11: #{encoders_intrinsic_forward.10} parent=5 // pred_region
      %s95 = ssub.s32 %s8, 1
      // Predicated region
      $region13: #{encoders_intrinsic_forward.10} parent=11 // pred_check
        %p96 = pneg %p55
      $region14: #{encoders_intrinsic_forward.10} parent=11 // pred_check_branch
        %98 = sbr.rel (%p96) target = $region16
      $region15: #{encoders_intrinsic_forward.10} parent=11 // pred_region
        _
      $region16: #{encoders_intrinsic_forward.10} parent=11 // pred_fallthru
        _
    $region12: #{encoders_intrinsic_forward.10} parent=5 // pred_fallthru
      _
    %p99 = scmp.lt.s32.totalorder %s8, 2
    // Predicated region
    $region17: #{encoders_intrinsic_forward.10} parent=5 // pred_check
      %p100 = pneg %p99
    $region18: #{encoders_intrinsic_forward.10} parent=5 // pred_check_branch
      %102 = sbr.rel (%p100) target = $region20
    $region19: #{encoders_intrinsic_forward.10} parent=5 // pred_region
      // Predicated region
      $region21: #{encoders_intrinsic_forward.10} parent=19 // pred_check
        %p103 = pneg %p28
      $region22: #{encoders_intrinsic_forward.10} parent=19 // pred_check_branch
        %105 = sbr.rel (%p103) target = $region24
      $region23: #{encoders_intrinsic_forward.10} parent=19 // pred_region
        %p106 = scmp.lt.s32.totalorder %s8, 1
        %s107 = scalar_select %p106, %s8, 1
        %s108 = smul.addr %s107, 64
        %s109 = smul.addr %s108, 8
        %s110 = scalar_lea.vmem %s0, %s109
      $region24: #{encoders_intrinsic_forward.10} parent=19 // pred_fallthru
        _
    $region20: #{encoders_intrinsic_forward.10} parent=5 // pred_fallthru
      _
    %p111 = scmp.le.s32.totalorder 1, %s8
    %p112 = scmp.lt.s32.totalorder %s8, 3
    %p113 = pnand %p111, %p112
    %p114 = pneg %p113
    // Predicated region
    $region25: #{encoders_intrinsic_forward.10} parent=5 // pred_check
      _
    $region26: #{encoders_intrinsic_forward.10} parent=5 // pred_check_branch
      %116 = sbr.rel (%p113) target = $region28
    $region27: #{encoders_intrinsic_forward.10} parent=5 // pred_region
      %s117 = ssub.s32 %s8, 1
      %p118 = scmp.lt.s32.totalorder %s13, 1
      %s119 = scalar_select %p118, %s13, 1
      %s120 = smul.addr %s119, 64
      %s121 = smul.addr %s120, 8
      %s122 = scalar_lea.vmem %s0, %s121
      %p123 = pneg %p34
      %p124 = pneg %p31
      %p125 = pneg %p55
      %p126 = pneg %p52
      %p127 = pneg %p81
      %p128 = pneg %p78
      %p129 = scmp.lt.s32.totalorder %s13, 1
      %s130 = scalar_select %p129, %s13, 1
      %s131 = smul.addr %s130, 8
      %s132 = smul.addr %s131, 8
      %s133 = scalar_lea.vmem %s2, %s132
      %p134 = scmp.lt.s32.totalorder %s13, 1
      %s135 = scalar_select %p134, %s13, 1
      %s136 = smul.addr %s135, 64
      %s137 = smul.addr %s136, 8
      %s138 = scalar_lea.vmem %s0, %s137
      %p139 = scmp.lt.s32.totalorder %s13, 1
      %s140 = scalar_select %p139, %s13, 1
      %s141 = smul.addr %s140, 8
      %s142 = smul.addr %s141, 8
      %s143 = scalar_lea.vmem %s2, %s142
      %v144 = vld [vmem:[%s138] sm:$0xff]
      %v145 = vld [vmem:[%s138 + $0x8] sm:$0xff]
      %v146 = vld [vmem:[%s138 + $0x10] sm:$0xff]
      %v147 = vld [vmem:[%s138 + $0x18] sm:$0xff]
      %v148 = vld [vmem:[%s138 + $0x20] sm:$0xff]
      %v149 = vld [vmem:[%s138 + $0x28] sm:$0xff]
      %v150 = vld [vmem:[%s138 + $0x30] sm:$0xff]
      %v151 = vld [vmem:[%s138 + $0x38] sm:$0xff]
      %v152 = vld [vmem:[%s138 + $0x40] sm:$0xff]
      %v153 = vld [vmem:[%s138 + $0x48] sm:$0xff]
      %v154 = vld [vmem:[%s138 + $0x50] sm:$0xff]
      %v155 = vld [vmem:[%s138 + $0x58] sm:$0xff]
      %v156 = vld [vmem:[%s138 + $0x60] sm:$0xff]
      %v157 = vld [vmem:[%s138 + $0x68] sm:$0xff]
      %v158 = vld [vmem:[%s138 + $0x70] sm:$0xff]
      %v159 = vld [vmem:[%s138 + $0x78] sm:$0xff]
      %v160 = vld [vmem:[%s138 + $0x80] sm:$0xff]
      %v161 = vld [vmem:[%s138 + $0x88] sm:$0xff]
      %v162 = vld [vmem:[%s138 + $0x90] sm:$0xff]
      %v163 = vld [vmem:[%s138 + $0x98] sm:$0xff]
      %v164 = vld [vmem:[%s138 + $0xa0] sm:$0xff]
      %v165 = vld [vmem:[%s138 + $0xa8] sm:$0xff]
      %v166 = vld [vmem:[%s138 + $0xb0] sm:$0xff]
      %v167 = vld [vmem:[%s138 + $0xb8] sm:$0xff]
      %v168 = vld [vmem:[%s138 + $0xc0] sm:$0xff]
      %v169 = vld [vmem:[%s138 + $0xc8] sm:$0xff]
      %v170 = vld [vmem:[%s138 + $0xd0] sm:$0xff]
      %v171 = vld [vmem:[%s138 + $0xd8] sm:$0xff]
      %v172 = vld [vmem:[%s138 + $0xe0] sm:$0xff]
      %v173 = vld [vmem:[%s138 + $0xe8] sm:$0xff]
      %v174 = vld [vmem:[%s138 + $0xf0] sm:$0xff]
      %v175 = vld [vmem:[%s138 + $0xf8] sm:$0xff]
      %v176 = vld [vmem:[%s138 + $0x100] sm:$0xff]
      %v177 = vld [vmem:[%s138 + $0x108] sm:$0xff]
      %v178 = vld [vmem:[%s138 + $0x110] sm:$0xff]
      %v179 = vld [vmem:[%s138 + $0x118] sm:$0xff]
      %v180 = vld [vmem:[%s138 + $0x120] sm:$0xff]
      %v181 = vld [vmem:[%s138 + $0x128] sm:$0xff]
      %v182 = vld [vmem:[%s138 + $0x130] sm:$0xff]
      %v183 = vld [vmem:[%s138 + $0x138] sm:$0xff]
      %v184 = vld [vmem:[%s138 + $0x140] sm:$0xff]
      %v185 = vld [vmem:[%s138 + $0x148] sm:$0xff]
      %v186 = vld [vmem:[%s138 + $0x150] sm:$0xff]
      %v187 = vld [vmem:[%s138 + $0x158] sm:$0xff]
      %v188 = vld [vmem:[%s138 + $0x160] sm:$0xff]
      %v189 = vld [vmem:[%s138 + $0x168] sm:$0xff]
      %v190 = vld [vmem:[%s138 + $0x170] sm:$0xff]
      %v191 = vld [vmem:[%s138 + $0x178] sm:$0xff]
      %v192 = vld [vmem:[%s138 + $0x180] sm:$0xff]
      %v193 = vld [vmem:[%s138 + $0x188] sm:$0xff]
      %v194 = vld [vmem:[%s138 + $0x190] sm:$0xff]
      %v195 = vld [vmem:[%s138 + $0x198] sm:$0xff]
      %v196 = vld [vmem:[%s138 + $0x1a0] sm:$0xff]
      %v197 = vld [vmem:[%s138 + $0x1a8] sm:$0xff]
      %v198 = vld [vmem:[%s138 + $0x1b0] sm:$0xff]
      %v199 = vld [vmem:[%s138 + $0x1b8] sm:$0xff]
      %v200 = vld [vmem:[%s138 + $0x1c0] sm:$0xff]
      %v201 = vld [vmem:[%s138 + $0x1c8] sm:$0xff]
      %v202 = vld [vmem:[%s138 + $0x1d0] sm:$0xff]
      %v203 = vld [vmem:[%s138 + $0x1d8] sm:$0xff]
      %v204 = vld [vmem:[%s138 + $0x1e0] sm:$0xff]
      %v205 = vld [vmem:[%s138 + $0x1e8] sm:$0xff]
      %v206 = vld [vmem:[%s138 + $0x1f0] sm:$0xff]
      %v207 = vld [vmem:[%s138 + $0x1f8] sm:$0xff]
      %v208 = vld [vmem:[%s1] sm:$0xff]
      %v209 = vld [vmem:[%s1 + $0x8] sm:$0xff]
      %v210 = vld [vmem:[%s1 + $0x10] sm:$0xff]
      %v211 = vld [vmem:[%s1 + $0x18] sm:$0xff]
      %v212 = vld [vmem:[%s1 + $0x20] sm:$0xff]
      %v213 = vld [vmem:[%s1 + $0x28] sm:$0xff]
      %v214 = vld [vmem:[%s1 + $0x30] sm:$0xff]
      %v215 = vld [vmem:[%s1 + $0x38] sm:$0xff]
      %v216 = vld [vmem:[%s1 + $0x40] sm:$0xff]
      %v217 = vld [vmem:[%s1 + $0x48] sm:$0xff]
      %v218 = vld [vmem:[%s1 + $0x50] sm:$0xff]
      %v219 = vld [vmem:[%s1 + $0x58] sm:$0xff]
      %v220 = vld [vmem:[%s1 + $0x60] sm:$0xff]
      %v221 = vld [vmem:[%s1 + $0x68] sm:$0xff]
      %v222 = vld [vmem:[%s1 + $0x70] sm:$0xff]
      %v223 = vld [vmem:[%s1 + $0x78] sm:$0xff]
      %v224 = vld [vmem:[%s1 + $0x80] sm:$0xff]
      %v225 = vld [vmem:[%s1 + $0x88] sm:$0xff]
      %v226 = vld [vmem:[%s1 + $0x90] sm:$0xff]
      %v227 = vld [vmem:[%s1 + $0x98] sm:$0xff]
      %v228 = vld [vmem:[%s1 + $0xa0] sm:$0xff]
      %v229 = vld [vmem:[%s1 + $0xa8] sm:$0xff]
      %v230 = vld [vmem:[%s1 + $0xb0] sm:$0xff]
      %v231 = vld [vmem:[%s1 + $0xb8] sm:$0xff]
      %v232 = vld [vmem:[%s1 + $0xc0] sm:$0xff]
      %v233 = vld [vmem:[%s1 + $0xc8] sm:$0xff]
      %v234 = vld [vmem:[%s1 + $0xd0] sm:$0xff]
      %v235 = vld [vmem:[%s1 + $0xd8] sm:$0xff]
      %v236 = vld [vmem:[%s1 + $0xe0] sm:$0xff]
      %v237 = vld [vmem:[%s1 + $0xe8] sm:$0xff]
      %v238 = vld [vmem:[%s1 + $0xf0] sm:$0xff]
      %v239 = vld [vmem:[%s1 + $0xf8] sm:$0xff]
      %v240 = vld [vmem:[%s1 + $0x100] sm:$0xff]
      %v241 = vld [vmem:[%s1 + $0x108] sm:$0xff]
      %v242 = vld [vmem:[%s1 + $0x110] sm:$0xff]
      %v243 = vld [vmem:[%s1 + $0x118] sm:$0xff]
      %v244 = vld [vmem:[%s1 + $0x120] sm:$0xff]
      %v245 = vld [vmem:[%s1 + $0x128] sm:$0xff]
      %v246 = vld [vmem:[%s1 + $0x130] sm:$0xff]
      %v247 = vld [vmem:[%s1 + $0x138] sm:$0xff]
      %v248 = vld [vmem:[%s1 + $0x140] sm:$0xff]
      %v249 = vld [vmem:[%s1 + $0x148] sm:$0xff]
      %v250 = vld [vmem:[%s1 + $0x150] sm:$0xff]
      %v251 = vld [vmem:[%s1 + $0x158] sm:$0xff]
      %v252 = vld [vmem:[%s1 + $0x160] sm:$0xff]
      %v253 = vld [vmem:[%s1 + $0x168] sm:$0xff]
      %v254 = vld [vmem:[%s1 + $0x170] sm:$0xff]
      %v255 = vld [vmem:[%s1 + $0x178] sm:$0xff]
      %v256 = vld [vmem:[%s1 + $0x180] sm:$0xff]
      %v257 = vld [vmem:[%s1 + $0x188] sm:$0xff]
      %v258 = vld [vmem:[%s1 + $0x190] sm:$0xff]
      %v259 = vld [vmem:[%s1 + $0x198] sm:$0xff]
      %v260 = vld [vmem:[%s1 + $0x1a0] sm:$0xff]
      %v261 = vld [vmem:[%s1 + $0x1a8] sm:$0xff]
      %v262 = vld [vmem:[%s1 + $0x1b0] sm:$0xff]
      %v263 = vld [vmem:[%s1 + $0x1b8] sm:$0xff]
      %v264 = vld [vmem:[%s1 + $0x1c0] sm:$0xff]
      %v265 = vld [vmem:[%s1 + $0x1c8] sm:$0xff]
      %v266 = vld [vmem:[%s1 + $0x1d0] sm:$0xff]
      %v267 = vld [vmem:[%s1 + $0x1d8] sm:$0xff]
      %v268 = vld [vmem:[%s1 + $0x1e0] sm:$0xff]
      %v269 = vld [vmem:[%s1 + $0x1e8] sm:$0xff]
      %v270 = vld [vmem:[%s1 + $0x1f0] sm:$0xff]
      %v271 = vld [vmem:[%s1 + $0x1f8] sm:$0xff]
      %v272 = vld [vmem:[%s1 + $0x200] sm:$0xff]
      %v273 = vld [vmem:[%s1 + $0x208] sm:$0xff]
      %v274 = vld [vmem:[%s1 + $0x210] sm:$0xff]
      %v275 = vld [vmem:[%s1 + $0x218] sm:$0xff]
      %v276 = vld [vmem:[%s1 + $0x220] sm:$0xff]
      %v277 = vld [vmem:[%s1 + $0x228] sm:$0xff]
      %v278 = vld [vmem:[%s1 + $0x230] sm:$0xff]
      %v279 = vld [vmem:[%s1 + $0x238] sm:$0xff]
      %v280 = vld [vmem:[%s1 + $0x240] sm:$0xff]
      %v281 = vld [vmem:[%s1 + $0x248] sm:$0xff]
      %v282 = vld [vmem:[%s1 + $0x250] sm:$0xff]
      %v283 = vld [vmem:[%s1 + $0x258] sm:$0xff]
      %v284 = vld [vmem:[%s1 + $0x260] sm:$0xff]
      %v285 = vld [vmem:[%s1 + $0x268] sm:$0xff]
      %v286 = vld [vmem:[%s1 + $0x270] sm:$0xff]
      %v287 = vld [vmem:[%s1 + $0x278] sm:$0xff]
      %v288 = vld [vmem:[%s1 + $0x280] sm:$0xff]
      %v289 = vld [vmem:[%s1 + $0x288] sm:$0xff]
      %v290 = vld [vmem:[%s1 + $0x290] sm:$0xff]
      %v291 = vld [vmem:[%s1 + $0x298] sm:$0xff]
      %v292 = vld [vmem:[%s1 + $0x2a0] sm:$0xff]
      %v293 = vld [vmem:[%s1 + $0x2a8] sm:$0xff]
      %v294 = vld [vmem:[%s1 + $0x2b0] sm:$0xff]
      %v295 = vld [vmem:[%s1 + $0x2b8] sm:$0xff]
      %v296 = vld [vmem:[%s1 + $0x2c0] sm:$0xff]
      %v297 = vld [vmem:[%s1 + $0x2c8] sm:$0xff]
      %v298 = vld [vmem:[%s1 + $0x2d0] sm:$0xff]
      %v299 = vld [vmem:[%s1 + $0x2d8] sm:$0xff]
      %v300 = vld [vmem:[%s1 + $0x2e0] sm:$0xff]
      %v301 = vld [vmem:[%s1 + $0x2e8] sm:$0xff]
      %v302 = vld [vmem:[%s1 + $0x2f0] sm:$0xff]
      %v303 = vld [vmem:[%s1 + $0x2f8] sm:$0xff]
      %v304 = vld [vmem:[%s1 + $0x300] sm:$0xff]
      %v305 = vld [vmem:[%s1 + $0x308] sm:$0xff]
      %v306 = vld [vmem:[%s1 + $0x310] sm:$0xff]
      %v307 = vld [vmem:[%s1 + $0x318] sm:$0xff]
      %v308 = vld [vmem:[%s1 + $0x320] sm:$0xff]
      %v309 = vld [vmem:[%s1 + $0x328] sm:$0xff]
      %v310 = vld [vmem:[%s1 + $0x330] sm:$0xff]
      %v311 = vld [vmem:[%s1 + $0x338] sm:$0xff]
      %v312 = vld [vmem:[%s1 + $0x340] sm:$0xff]
      %v313 = vld [vmem:[%s1 + $0x348] sm:$0xff]
      %v314 = vld [vmem:[%s1 + $0x350] sm:$0xff]
      %v315 = vld [vmem:[%s1 + $0x358] sm:$0xff]
      %v316 = vld [vmem:[%s1 + $0x360] sm:$0xff]
      %v317 = vld [vmem:[%s1 + $0x368] sm:$0xff]
      %v318 = vld [vmem:[%s1 + $0x370] sm:$0xff]
      %v319 = vld [vmem:[%s1 + $0x378] sm:$0xff]
      %v320 = vld [vmem:[%s1 + $0x380] sm:$0xff]
      %v321 = vld [vmem:[%s1 + $0x388] sm:$0xff]
      %v322 = vld [vmem:[%s1 + $0x390] sm:$0xff]
      %v323 = vld [vmem:[%s1 + $0x398] sm:$0xff]
      %v324 = vld [vmem:[%s1 + $0x3a0] sm:$0xff]
      %v325 = vld [vmem:[%s1 + $0x3a8] sm:$0xff]
      %v326 = vld [vmem:[%s1 + $0x3b0] sm:$0xff]
      %v327 = vld [vmem:[%s1 + $0x3b8] sm:$0xff]
      %v328 = vld [vmem:[%s1 + $0x3c0] sm:$0xff]
      %v329 = vld [vmem:[%s1 + $0x3c8] sm:$0xff]
      %v330 = vld [vmem:[%s1 + $0x3d0] sm:$0xff]
      %v331 = vld [vmem:[%s1 + $0x3d8] sm:$0xff]
      %v332 = vld [vmem:[%s1 + $0x3e0] sm:$0xff]
      %v333 = vld [vmem:[%s1 + $0x3e8] sm:$0xff]
      %v334 = vld [vmem:[%s1 + $0x3f0] sm:$0xff]
      %v335 = vld [vmem:[%s1 + $0x3f8] sm:$0xff]
      %336 = vmatprep.subr.mxu0 0.0
      %337 = vmatpush1.msra.mxu0 %v208
      %338 = vmatprep.subr.mxu0 0.0
      %339 = vmatpush1.msra.mxu0 %v209
      %340 = vmatprep.subr.mxu0 0.0
      %341 = vmatpush1.msra.mxu0 %v210
      %342 = vmatprep.subr.mxu0 0.0
      %343 = vmatpush1.msra.mxu0 %v211
      %344 = vmatprep.subr.mxu0 0.0
      %345 = vmatpush1.msra.mxu0 %v212
      %346 = vmatprep.subr.mxu0 0.0
      %347 = vmatpush1.msra.mxu0 %v213
      %348 = vmatprep.subr.mxu0 0.0
      %349 = vmatpush1.msra.mxu0 %v214
      %350 = vmatprep.subr.mxu0 0.0
      %351 = vmatpush1.msra.mxu0 %v215
      %352 = vmatprep.subr.mxu0 0.0
      %353 = vmatpush1.msra.mxu0 %v216
      %354 = vmatprep.subr.mxu0 0.0
      %355 = vmatpush1.msra.mxu0 %v217
      %356 = vmatprep.subr.mxu0 0.0
      %357 = vmatpush1.msra.mxu0 %v218
      %358 = vmatprep.subr.mxu0 0.0
      %359 = vmatpush1.msra.mxu0 %v219
      %360 = vmatprep.subr.mxu0 0.0
      %361 = vmatpush1.msra.mxu0 %v220
      %362 = vmatprep.subr.mxu0 0.0
      %363 = vmatpush1.msra.mxu0 %v221
      %364 = vmatprep.subr.mxu0 0.0
      %365 = vmatpush1.msra.mxu0 %v222
      %366 = vmatprep.subr.mxu0 0.0
      %367 = vmatpush1.msra.mxu0 %v223
      %368 = vmatprep.subr.mxu0 0.0
      %369 = vmatpush1.msra.mxu0 %v224
      %370 = vmatprep.subr.mxu0 0.0
      %371 = vmatpush1.msra.mxu0 %v225
      %372 = vmatprep.subr.mxu0 0.0
      %373 = vmatpush1.msra.mxu0 %v226
      %374 = vmatprep.subr.mxu0 0.0
      %375 = vmatpush1.msra.mxu0 %v227
      %376 = vmatprep.subr.mxu0 0.0
      %377 = vmatpush1.msra.mxu0 %v228
      %378 = vmatprep.subr.mxu0 0.0
      %379 = vmatpush1.msra.mxu0 %v229
      %380 = vmatprep.subr.mxu0 0.0
      %381 = vmatpush1.msra.mxu0 %v230
      %382 = vmatprep.subr.mxu0 0.0
      %383 = vmatpush1.msra.mxu0 %v231
      %384 = vmatprep.subr.mxu0 0.0
      %385 = vmatpush1.msra.mxu0 %v232
      %386 = vmatprep.subr.mxu0 0.0
      %387 = vmatpush1.msra.mxu0 %v233
      %388 = vmatprep.subr.mxu0 0.0
      %389 = vmatpush1.msra.mxu0 %v234
      %390 = vmatprep.subr.mxu0 0.0
      %391 = vmatpush1.msra.mxu0 %v235
      %392 = vmatprep.subr.mxu0 0.0
      %393 = vmatpush1.msra.mxu0 %v236
      %394 = vmatprep.subr.mxu0 0.0
      %395 = vmatpush1.msra.mxu0 %v237
      %396 = vmatprep.subr.mxu0 0.0
      %397 = vmatpush1.msra.mxu0 %v238
      %398 = vmatprep.subr.mxu0 0.0
      %399 = vmatpush1.msra.mxu0 %v239
      %400 = vmatprep.mubr.f32.mxu0 %v145
      %401 = vmatmul.mubr.f32.gmra.mrb[0].mxu0 %v144
      %v402 = vpop.f32.mrb[0].mxu0
      %v403 = vadd.f32 0.0, %v402
      %v404 = vpop.f32.mrb[0].mxu0
      %405 = vmatprep.mubr.f32.mxu0 %v153
      %406 = vmatmul.mubr.f32.gmra.mrb[0].mxu0 %v152
      %v407 = vpop.f32.mrb[0].mxu0
      %v408 = vadd.f32 0.0, %v407
      %v409 = vpop.f32.mrb[0].mxu0
      %410 = vmatprep.mubr.f32.mxu0 %v161
      %411 = vmatmul.mubr.f32.gmra.mrb[0].mxu0 %v160
      %v412 = vpop.f32.mrb[0].mxu0
      %v413 = vadd.f32 0.0, %v412
      %v414 = vpop.f32.mrb[0].mxu0
      %415 = vmatprep.mubr.f32.mxu0 %v169
      %416 = vmatmul.mubr.f32.gmra.mrb[0].mxu0 %v168
      %v417 = vpop.f32.mrb[0].mxu0
      %v418 = vadd.f32 0.0, %v417
      %v419 = vpop.f32.mrb[0].mxu0
      %420 = vmatprep.mubr.f32.mxu0 %v177
      %421 = vmatmul.mubr.f32.gmra.mrb[0].mxu0 %v176
      %v422 = vpop.f32.mrb[0].mxu0
      %v423 = vadd.f32 0.0, %v422
      %v424 = vpop.f32.mrb[0].mxu0
      %425 = vmatprep.mubr.f32.mxu0 %v185
      %426 = vmatmul.mubr.f32.gmra.mrb[0].mxu0 %v184
      %v427 = vpop.f32.mrb[0].mxu0
      %v428 = vadd.f32 0.0, %v427
      %v429 = vpop.f32.mrb[0].mxu0
      %430 = vmatprep.mubr.f32.mxu0 %v193
      %431 = vmatmul.mubr.f32.gmra.mrb[0].mxu0 %v192
      %v432 = vpop.f32.mrb[0].mxu0
      %v433 = vadd.f32 0.0, %v432
      %v434 = vpop.f32.mrb[0].mxu0
      %435 = vmatprep.mubr.f32.mxu0 %v201
      %436 = vmatmul.mubr.f32.gmra.mrb[0].mxu0 %v200
      %v437 = vpop.f32.mrb[0].mxu0
      %v438 = vadd.f32 0.0, %v437
      %v439 = vpop.f32.mrb[0].mxu0
      %440 = vdwg.mxu0
      %441 = vmatprep.subr.mxu0 0.0
      %442 = vmatpush1.msra.mxu0 %v240
      %443 = vmatprep.subr.mxu0 0.0
      %444 = vmatpush1.msra.mxu0 %v241
      %445 = vmatprep.subr.mxu0 0.0
      %446 = vmatpush1.msra.mxu0 %v242
      %447 = vmatprep.subr.mxu0 0.0
      %448 = vmatpush1.msra.mxu0 %v243
      %449 = vmatprep.subr.mxu0 0.0
      %450 = vmatpush1.msra.mxu0 %v244
      %451 = vmatprep.subr.mxu0 0.0
      %452 = vmatpush1.msra.mxu0 %v245
      %453 = vmatprep.subr.mxu0 0.0
      %454 = vmatpush1.msra.mxu0 %v246
      %455 = vmatprep.subr.mxu0 0.0
      %456 = vmatpush1.msra.mxu0 %v247
      %457 = vmatprep.subr.mxu0 0.0
      %458 = vmatpush1.msra.mxu0 %v248
      %459 = vmatprep.subr.mxu0 0.0
      %460 = vmatpush1.msra.mxu0 %v249
      %461 = vmatprep.subr.mxu0 0.0
      %462 = vmatpush1.msra.mxu0 %v250
      %463 = vmatprep.subr.mxu0 0.0
      %464 = vmatpush1.msra.mxu0 %v251
      %465 = vmatprep.subr.mxu0 0.0
      %466 = vmatpush1.msra.mxu0 %v252
      %467 = vmatprep.subr.mxu0 0.0
      %468 = vmatpush1.msra.mxu0 %v253
      %469 = vmatprep.subr.mxu0 0.0
      %470 = vmatpush1.msra.mxu0 %v254
      %471 = vmatprep.subr.mxu0 0.0
      %472 = vmatpush1.msra.mxu0 %v255
      %473 = vmatprep.subr.mxu0 0.0
      %474 = vmatpush1.msra.mxu0 %v256
      %475 = vmatprep.subr.mxu0 0.0
      %476 = vmatpush1.msra.mxu0 %v257
      %477 = vmatprep.subr.mxu0 0.0
      %478 = vmatpush1.msra.mxu0 %v258
      %479 = vmatprep.subr.mxu0 0.0
      %480 = vmatpush1.msra.mxu0 %v259
      %481 = vmatprep.subr.mxu0 0.0
      %482 = vmatpush1.msra.mxu0 %v260
      %483 = vmatprep.subr.mxu0 0.0
      %484 = vmatpush1.msra.mxu0 %v261
      %485 = vmatprep.subr.mxu0 0.0
      %486 = vmatpush1.msra.mxu0 %v262
      %487 = vmatprep.subr.mxu0 0.0
      %488 = vmatpush1.msra.mxu0 %v263
      %489 = vmatprep.subr.mxu0 0.0
      %490 = vmatpush1.msra.mxu0 %v264
      %491 = vmatprep.subr.mxu0 0.0
      %492 = vmatpush1.msra.mxu0 %v265
      %493 = vmatprep.subr.mxu0 0.0
      %494 = vmatpush1.msra.mxu0 %v266
      %495 = vmatprep.subr.mxu0 0.0
      %496 = vmatpush1.msra.mxu0 %v267
      %497 = vmatprep.subr.mxu0 0.0
      %498 = vmatpush1.msra.mxu0 %v268
      %499 = vmatprep.subr.mxu0 0.0
      %500 = vmatpush1.msra.mxu0 %v269
      %501 = vmatprep.subr.mxu0 0.0
      %502 = vmatpush1.msra.mxu0 %v270
      %503 = vmatprep.subr.mxu0 0.0
      %504 = vmatpush1.msra.mxu0 %v271
      %505 = vmatprep.mubr.f32.mxu0 %v147
      %506 = vmatmul.mubr.f32.gmra.mrb[0].mxu0 %v146
      %v507 = vpop.f32.mrb[0].mxu0
      %v508 = vadd.f32 %v403, %v507
      %v509 = vpop.f32.mrb[0].mxu0
      %510 = vmatprep.mubr.f32.mxu0 %v155
      %511 = vmatmul.mubr.f32.gmra.mrb[0].mxu0 %v154
      %v512 = vpop.f32.mrb[0].mxu0
      %v513 = vadd.f32 %v408, %v512
      %v514 = vpop.f32.mrb[0].mxu0
      %515 = vmatprep.mubr.f32.mxu0 %v163
      %516 = vmatmul.mubr.f32.gmra.mrb[0].mxu0 %v162
      %v517 = vpop.f32.mrb[0].mxu0
      %v518 = vadd.f32 %v413, %v517
      %v519 = vpop.f32.mrb[0].mxu0
      %520 = vmatprep.mubr.f32.mxu0 %v171
      %521 = vmatmul.mubr.f32.gmra.mrb[0].mxu0 %v170
      %v522 = vpop.f32.mrb[0].mxu0
      %v523 = vadd.f32 %v418, %v522
      %v524 = vpop.f32.mrb[0].mxu0
      %525 = vmatprep.mubr.f32.mxu0 %v179
      %526 = vmatmul.mubr.f32.gmra.mrb[0].mxu0 %v178
      %v527 = vpop.f32.mrb[0].mxu0
      %v528 = vadd.f32 %v423, %v527
      %v529 = vpop.f32.mrb[0].mxu0
      %530 = vmatprep.mubr.f32.mxu0 %v187
      %531 = vmatmul.mubr.f32.gmra.mrb[0].mxu0 %v186
      %v532 = vpop.f32.mrb[0].mxu0
      %v533 = vadd.f32 %v428, %v532
      %v534 = vpop.f32.mrb[0].mxu0
      %535 = vmatprep.mubr.f32.mxu0 %v195
      %536 = vmatmul.mubr.f32.gmra.mrb[0].mxu0 %v194
      %v537 = vpop.f32.mrb[0].mxu0
      %v538 = vadd.f32 %v433, %v537
      %v539 = vpop.f32.mrb[0].mxu0
      %540 = vmatprep.mubr.f32.mxu0 %v203
      %541 = vmatmul.mubr.f32.gmra.mrb[0].mxu0 %v202
      %v542 = vpop.f32.mrb[0].mxu0
      %v543 = vadd.f32 %v438, %v542
      %v544 = vpop.f32.mrb[0].mxu0
      %545 = vdwg.mxu0
      %546 = vmatprep.subr.mxu0 0.0
      %547 = vmatpush1.msra.mxu0 %v272
      %548 = vmatprep.subr.mxu0 0.0
      %549 = vmatpush1.msra.mxu0 %v273
      %550 = vmatprep.subr.mxu0 0.0
      %551 = vmatpush1.msra.mxu0 %v274
      %552 = vmatprep.subr.mxu0 0.0
      %553 = vmatpush1.msra.mxu0 %v275
      %554 = vmatprep.subr.mxu0 0.0
      %555 = vmatpush1.msra.mxu0 %v276
      %556 = vmatprep.subr.mxu0 0.0
      %557 = vmatpush1.msra.mxu0 %v277
      %558 = vmatprep.subr.mxu0 0.0
      %559 = vmatpush1.msra.mxu0 %v278
      %560 = vmatprep.subr.mxu0 0.0
      %561 = vmatpush1.msra.mxu0 %v279
      %562 = vmatprep.subr.mxu0 0.0
      %563 = vmatpush1.msra.mxu0 %v280
      %564 = vmatprep.subr.mxu0 0.0
      %565 = vmatpush1.msra.mxu0 %v281
      %566 = vmatprep.subr.mxu0 0.0
      %567 = vmatpush1.msra.mxu0 %v282
      %568 = vmatprep.subr.mxu0 0.0
      %569 = vmatpush1.msra.mxu0 %v283
      %570 = vmatprep.subr.mxu0 0.0
      %571 = vmatpush1.msra.mxu0 %v284
      %572 = vmatprep.subr.mxu0 0.0
      %573 = vmatpush1.msra.mxu0 %v285
      %574 = vmatprep.subr.mxu0 0.0
      %575 = vmatpush1.msra.mxu0 %v286
      %576 = vmatprep.subr.mxu0 0.0
      %577 = vmatpush1.msra.mxu0 %v287
      %578 = vmatprep.subr.mxu0 0.0
      %579 = vmatpush1.msra.mxu0 %v288
      %580 = vmatprep.subr.mxu0 0.0
      %581 = vmatpush1.msra.mxu0 %v289
      %582 = vmatprep.subr.mxu0 0.0
      %583 = vmatpush1.msra.mxu0 %v290
      %584 = vmatprep.subr.mxu0 0.0
      %585 = vmatpush1.msra.mxu0 %v291
      %586 = vmatprep.subr.mxu0 0.0
      %587 = vmatpush1.msra.mxu0 %v292
      %588 = vmatprep.subr.mxu0 0.0
      %589 = vmatpush1.msra.mxu0 %v293
      %590 = vmatprep.subr.mxu0 0.0
      %591 = vmatpush1.msra.mxu0 %v294
      %592 = vmatprep.subr.mxu0 0.0
      %593 = vmatpush1.msra.mxu0 %v295
      %594 = vmatprep.subr.mxu0 0.0
      %595 = vmatpush1.msra.mxu0 %v296
      %596 = vmatprep.subr.mxu0 0.0
      %597 = vmatpush1.msra.mxu0 %v297
      %598 = vmatprep.subr.mxu0 0.0
      %599 = vmatpush1.msra.mxu0 %v298
      %600 = vmatprep.subr.mxu0 0.0
      %601 = vmatpush1.msra.mxu0 %v299
      %602 = vmatprep.subr.mxu0 0.0
      %603 = vmatpush1.msra.mxu0 %v300
      %604 = vmatprep.subr.mxu0 0.0
      %605 = vmatpush1.msra.mxu0 %v301
      %606 = vmatprep.subr.mxu0 0.0
      %607 = vmatpush1.msra.mxu0 %v302
      %608 = vmatprep.subr.mxu0 0.0
      %609 = vmatpush1.msra.mxu0 %v303
      %610 = vmatprep.mubr.f32.mxu0 %v149
      %611 = vmatmul.mubr.f32.gmra.mrb[0].mxu0 %v148
      %v612 = vpop.f32.mrb[0].mxu0
      %v613 = vadd.f32 %v508, %v612
      %v614 = vpop.f32.mrb[0].mxu0
      %615 = vmatprep.mubr.f32.mxu0 %v157
      %616 = vmatmul.mubr.f32.gmra.mrb[0].mxu0 %v156
      %v617 = vpop.f32.mrb[0].mxu0
      %v618 = vadd.f32 %v513, %v617
      %v619 = vpop.f32.mrb[0].mxu0
      %620 = vmatprep.mubr.f32.mxu0 %v165
      %621 = vmatmul.mubr.f32.gmra.mrb[0].mxu0 %v164
      %v622 = vpop.f32.mrb[0].mxu0
      %v623 = vadd.f32 %v518, %v622
      %v624 = vpop.f32.mrb[0].mxu0
      %625 = vmatprep.mubr.f32.mxu0 %v173
      %626 = vmatmul.mubr.f32.gmra.mrb[0].mxu0 %v172
      %v627 = vpop.f32.mrb[0].mxu0
      %v628 = vadd.f32 %v523, %v627
      %v629 = vpop.f32.mrb[0].mxu0
      %630 = vmatprep.mubr.f32.mxu0 %v181
      %631 = vmatmul.mubr.f32.gmra.mrb[0].mxu0 %v180
      %v632 = vpop.f32.mrb[0].mxu0
      %v633 = vadd.f32 %v528, %v632
      %v634 = vpop.f32.mrb[0].mxu0
      %635 = vmatprep.mubr.f32.mxu0 %v189
      %636 = vmatmul.mubr.f32.gmra.mrb[0].mxu0 %v188
      %v637 = vpop.f32.mrb[0].mxu0
      %v638 = vadd.f32 %v533, %v637
      %v639 = vpop.f32.mrb[0].mxu0
      %640 = vmatprep.mubr.f32.mxu0 %v197
      %641 = vmatmul.mubr.f32.gmra.mrb[0].mxu0 %v196
      %v642 = vpop.f32.mrb[0].mxu0
      %v643 = vadd.f32 %v538, %v642
      %v644 = vpop.f32.mrb[0].mxu0
      %645 = vmatprep.mubr.f32.mxu0 %v205
      %646 = vmatmul.mubr.f32.gmra.mrb[0].mxu0 %v204
      %v647 = vpop.f32.mrb[0].mxu0
      %v648 = vadd.f32 %v543, %v647
      %v649 = vpop.f32.mrb[0].mxu0
      %650 = vdwg.mxu0
      %651 = vmatprep.subr.mxu0 0.0
      %652 = vmatpush1.msra.mxu0 %v304
      %653 = vmatprep.subr.mxu0 0.0
      %654 = vmatpush1.msra.mxu0 %v305
      %655 = vmatprep.subr.mxu0 0.0
      %656 = vmatpush1.msra.mxu0 %v306
      %657 = vmatprep.subr.mxu0 0.0
      %658 = vmatpush1.msra.mxu0 %v307
      %659 = vmatprep.subr.mxu0 0.0
      %660 = vmatpush1.msra.mxu0 %v308
      %661 = vmatprep.subr.mxu0 0.0
      %662 = vmatpush1.msra.mxu0 %v309
      %663 = vmatprep.subr.mxu0 0.0
      %664 = vmatpush1.msra.mxu0 %v310
      %665 = vmatprep.subr.mxu0 0.0
      %666 = vmatpush1.msra.mxu0 %v311
      %667 = vmatprep.subr.mxu0 0.0
      %668 = vmatpush1.msra.mxu0 %v312
      %669 = vmatprep.subr.mxu0 0.0
      %670 = vmatpush1.msra.mxu0 %v313
      %671 = vmatprep.subr.mxu0 0.0
      %672 = vmatpush1.msra.mxu0 %v314
      %673 = vmatprep.subr.mxu0 0.0
      %674 = vmatpush1.msra.mxu0 %v315
      %675 = vmatprep.subr.mxu0 0.0
      %676 = vmatpush1.msra.mxu0 %v316
      %677 = vmatprep.subr.mxu0 0.0
      %678 = vmatpush1.msra.mxu0 %v317
      %679 = vmatprep.subr.mxu0 0.0
      %680 = vmatpush1.msra.mxu0 %v318
      %681 = vmatprep.subr.mxu0 0.0
      %682 = vmatpush1.msra.mxu0 %v319
      %683 = vmatprep.subr.mxu0 0.0
      %684 = vmatpush1.msra.mxu0 %v320
      %685 = vmatprep.subr.mxu0 0.0
      %686 = vmatpush1.msra.mxu0 %v321
      %687 = vmatprep.subr.mxu0 0.0
      %688 = vmatpush1.msra.mxu0 %v322
      %689 = vmatprep.subr.mxu0 0.0
      %690 = vmatpush1.msra.mxu0 %v323
      %691 = vmatprep.subr.mxu0 0.0
      %692 = vmatpush1.msra.mxu0 %v324
      %693 = vmatprep.subr.mxu0 0.0
      %694 = vmatpush1.msra.mxu0 %v325
      %695 = vmatprep.subr.mxu0 0.0
      %696 = vmatpush1.msra.mxu0 %v326
      %697 = vmatprep.subr.mxu0 0.0
      %698 = vmatpush1.msra.mxu0 %v327
      %699 = vmatprep.subr.mxu0 0.0
      %700 = vmatpush1.msra.mxu0 %v328
      %701 = vmatprep.subr.mxu0 0.0
      %702 = vmatpush1.msra.mxu0 %v329
      %703 = vmatprep.subr.mxu0 0.0
      %704 = vmatpush1.msra.mxu0 %v330
      %705 = vmatprep.subr.mxu0 0.0
      %706 = vmatpush1.msra.mxu0 %v331
      %707 = vmatprep.subr.mxu0 0.0
      %708 = vmatpush1.msra.mxu0 %v332
      %709 = vmatprep.subr.mxu0 0.0
      %710 = vmatpush1.msra.mxu0 %v333
      %711 = vmatprep.subr.mxu0 0.0
      %712 = vmatpush1.msra.mxu0 %v334
      %713 = vmatprep.subr.mxu0 0.0
      %714 = vmatpush1.msra.mxu0 %v335
      %715 = vmatprep.mubr.f32.mxu0 %v151
      %716 = vmatmul.mubr.f32.gmra.mrb[0].mxu0 %v150
      %v717 = vpop.f32.mrb[0].mxu0
      %v718 = vadd.f32 %v613, %v717
      %v719 = vpop.f32.mrb[0].mxu0
      %720 = vmatprep.mubr.f32.mxu0 %v159
      %721 = vmatmul.mubr.f32.gmra.mrb[0].mxu0 %v158
      %v722 = vpop.f32.mrb[0].mxu0
      %v723 = vadd.f32 %v618, %v722
      %v724 = vpop.f32.mrb[0].mxu0
      %725 = vmatprep.mubr.f32.mxu0 %v167
      %726 = vmatmul.mubr.f32.gmra.mrb[0].mxu0 %v166
      %v727 = vpop.f32.mrb[0].mxu0
      %v728 = vadd.f32 %v623, %v727
      %v729 = vpop.f32.mrb[0].mxu0
      %730 = vmatprep.mubr.f32.mxu0 %v175
      %731 = vmatmul.mubr.f32.gmra.mrb[0].mxu0 %v174
      %v732 = vpop.f32.mrb[0].mxu0
      %v733 = vadd.f32 %v628, %v732
      %v734 = vpop.f32.mrb[0].mxu0
      %735 = vmatprep.mubr.f32.mxu0 %v183
      %736 = vmatmul.mubr.f32.gmra.mrb[0].mxu0 %v182
      %v737 = vpop.f32.mrb[0].mxu0
      %v738 = vadd.f32 %v633, %v737
      %v739 = vpop.f32.mrb[0].mxu0
      %740 = vmatprep.mubr.f32.mxu0 %v191
      %741 = vmatmul.mubr.f32.gmra.mrb[0].mxu0 %v190
      %v742 = vpop.f32.mrb[0].mxu0
      %v743 = vadd.f32 %v638, %v742
      %v744 = vpop.f32.mrb[0].mxu0
      %745 = vmatprep.mubr.f32.mxu0 %v199
      %746 = vmatmul.mubr.f32.gmra.mrb[0].mxu0 %v198
      %v747 = vpop.f32.mrb[0].mxu0
      %v748 = vadd.f32 %v643, %v747
      %v749 = vpop.f32.mrb[0].mxu0
      %750 = vmatprep.mubr.f32.mxu0 %v207
      %751 = vmatmul.mubr.f32.gmra.mrb[0].mxu0 %v206
      %v752 = vpop.f32.mrb[0].mxu0
      %v753 = vadd.f32 %v648, %v752
      %v754 = vpop.f32.mrb[0].mxu0
      %755 = vdwg.mxu0
      %v756 = vadd.f32 %v718, %v723
      %v757 = vadd.f32 %v756, %v728
      %v758 = vadd.f32 %v757, %v733
      %v759 = vadd.f32 %v758, %v738
      %v760 = vadd.f32 %v759, %v743
      %v761 = vadd.f32 %v760, %v748
      %v762 = vadd.f32 %v761, %v753
      %v763 = vrot.slane %v762, 4
      %v764 = vadd.f32 %v762, %v763
      %v765 = vrot.slane %v764, 2
      %v766 = vadd.f32 %v764, %v765
      %v767 = vrot.slane %v766, 1
      %v768 = vadd.f32 %v766, %v767
      %v769 = vrcp.pop 64.0
      %v770 = vmul.f32 %v768, %v769
      %v771 = vsub.f32 %v718, %v770
      %v772 = vsub.f32 %v723, %v770
      %v773 = vsub.f32 %v728, %v770
      %v774 = vsub.f32 %v733, %v770
      %v775 = vsub.f32 %v738, %v770
      %v776 = vsub.f32 %v743, %v770
      %v777 = vsub.f32 %v748, %v770
      %v778 = vsub.f32 %v753, %v770
      %v779 = vmul.f32 %v771, %v771
      %v780 = vmul.f32 %v772, %v772
      %v781 = vmul.f32 %v773, %v773
      %v782 = vmul.f32 %v774, %v774
      %v783 = vmul.f32 %v775, %v775
      %v784 = vmul.f32 %v776, %v776
      %v785 = vmul.f32 %v777, %v777
      %v786 = vmul.f32 %v778, %v778
      %v787 = vadd.f32 %v779, %v780
      %v788 = vadd.f32 %v787, %v781
      %v789 = vadd.f32 %v788, %v782
      %v790 = vadd.f32 %v789, %v783
      %v791 = vadd.f32 %v790, %v784
      %v792 = vadd.f32 %v791, %v785
      %v793 = vadd.f32 %v792, %v786
      %v794 = vrot.slane %v793, 4
      %v795 = vadd.f32 %v793, %v794
      %v796 = vrot.slane %v795, 2
      %v797 = vadd.f32 %v795, %v796
      %v798 = vrot.slane %v797, 1
      %v799 = vadd.f32 %v797, %v798
      %v800 = vmul.f32 %v799, %v769
      %v801 = vadd.f32 %v800, 1e-05
      %v802 = vrsqrt.pop %v801
      %v803 = vmul.f32 %v771, %v802
      %v804 = vmul.f32 %v772, %v802
      %v805 = vmul.f32 %v773, %v802
      %v806 = vmul.f32 %v774, %v802
      %v807 = vmul.f32 %v775, %v802
      %v808 = vmul.f32 %v776, %v802
      %v809 = vmul.f32 %v777, %v802
      %v810 = vmul.f32 %v778, %v802
      %vm811 = vcmp.ge.f32.partialorder %v803, 0.0
      %vm812 = vcmp.ge.f32.partialorder %v804, 0.0
      %vm813 = vcmp.ge.f32.partialorder %v805, 0.0
      %vm814 = vcmp.ge.f32.partialorder %v806, 0.0
      %vm815 = vcmp.ge.f32.partialorder %v807, 0.0
      %vm816 = vcmp.ge.f32.partialorder %v808, 0.0
      %vm817 = vcmp.ge.f32.partialorder %v809, 0.0
      %vm818 = vcmp.ge.f32.partialorder %v810, 0.0
      %v819 = vmul.f32 %v803, 0.2
      %v820 = vmul.f32 %v804, 0.2
      %v821 = vmul.f32 %v805, 0.2
      %v822 = vmul.f32 %v806, 0.2
      %v823 = vmul.f32 %v807, 0.2
      %v824 = vmul.f32 %v808, 0.2
      %v825 = vmul.f32 %v809, 0.2
      %v826 = vmul.f32 %v810, 0.2
      %v827 = vsel %vm811, %v803, %v819
      %v828 = vsel %vm812, %v804, %v820
      %v829 = vsel %vm813, %v805, %v821
      %v830 = vsel %vm814, %v806, %v822
      %v831 = vsel %vm815, %v807, %v823
      %v832 = vsel %vm816, %v808, %v824
      %v833 = vsel %vm817, %v809, %v825
      %v834 = vsel %vm818, %v810, %v826
      %835 = vst [vmem:[%s143] sm:$0xff] %v827
      %836 = vst [vmem:[%s143 + $0x8] sm:$0xff] %v828
      %837 = vst [vmem:[%s143 + $0x10] sm:$0xff] %v829
      %838 = vst [vmem:[%s143 + $0x18] sm:$0xff] %v830
      %839 = vst [vmem:[%s143 + $0x20] sm:$0xff] %v831
      %840 = vst [vmem:[%s143 + $0x28] sm:$0xff] %v832
      %841 = vst [vmem:[%s143 + $0x30] sm:$0xff] %v833
      %842 = vst [vmem:[%s143 + $0x38] sm:$0xff] %v834
      %p843 = scmp.lt.s32.totalorder %s13, 1
      %s844 = scalar_select %p843, %s13, 1
      %s845 = smul.addr %s844, 8
      %s846 = smul.addr %s845, 8
      %s847 = scalar_lea.vmem %s2, %s846
      // Predicated region
      $region29: #{encoders_intrinsic_forward.10} parent=27 // pred_check
        %p848 = pneg %p78
      $region30: #{encoders_intrinsic_forward.10} parent=27 // pred_check_branch
        %850 = sbr.rel (%p848) target = $region32
      $region31: #{encoders_intrinsic_forward.10} parent=27 // pred_region
        _
      $region32: #{encoders_intrinsic_forward.10} parent=27 // pred_fallthru
        _
    $region28: #{encoders_intrinsic_forward.10} parent=5 // pred_fallthru
      _
    %p851 = scmp.le.s32.totalorder 2, %s8
    // Predicated region
    $region33: #{encoders_intrinsic_forward.10} parent=5 // pred_check
      %p852 = pneg %p851
    $region34: #{encoders_intrinsic_forward.10} parent=5 // pred_check_branch
      %854 = sbr.rel (%p852) target = $region36
    $region35: #{encoders_intrinsic_forward.10} parent=5 // pred_region
      %s855 = ssub.s32 %s8, 2
      // Predicated region
      $region37: #{encoders_intrinsic_forward.10} parent=35 // pred_check
        %p856 = pneg %p84
      $region38: #{encoders_intrinsic_forward.10} parent=35 // pred_check_branch
        %858 = sbr.rel (%p856) target = $region40
      $region39: #{encoders_intrinsic_forward.10} parent=35 // pred_region
        %p859 = scmp.lt.s32.totalorder %s14, 1
        %s860 = scalar_select %p859, %s14, 1
        %s861 = smul.addr %s860, 8
        %s862 = smul.addr %s861, 8
        %s863 = scalar_lea.vmem %s2, %s862
      $region40: #{encoders_intrinsic_forward.10} parent=35 // pred_fallthru
        _
    $region36: #{encoders_intrinsic_forward.10} parent=5 // pred_fallthru
      _
  $region6: #{encoders_intrinsic_forward.10} parent=0 // loop_footer
    %s12 = sadd.s32 1, %s8
  $region7: #{encoders_intrinsic_forward.10} parent=0 // loop_footer_branch
    %7 = sbr.rel target = $region3
  $region8: #{encoders_intrinsic_forward.10} parent=0 // loop_exit
    _

// kernel: encoders_intrinsic_forward.11
$region0: #{encoders_intrinsic_forward.11}
  #allocation0 [shape = 'u32[]', space=smem, size = 0x4, offset = 0x4, fixed_abs, tag = 'smem constant byte address 0x4 - core index']
  #allocation1 [shape = 'u32[144,128]{1,0:T(1,128)}', space=vmem, size = 0x12000, scoped, tag = 'internal scratch']
  %s0 = inlined_call_operand.vmem [shape: f32[2,16,2048], index: 0, kind: input, shape index: {}]
  %s1 = inlined_call_operand.vmem [shape: f32[2048,256], index: 1, kind: input, shape index: {}]
  %s2 = inlined_call_operand.vmem [shape: f32[2,16,256], index: 2, kind: output, shape index: {}]
  %s3 = sld [smem:[#allocation0]]
  $region41: #{encoders_intrinsic_forward.11} parent=0
    _
  %s5 = ssub.s32 1, %s3
  %s6 = scalar_select 0, %s5, %s3
  loop: start=0, step=1, limit=4
  $region2: #{encoders_intrinsic_forward.11} parent=0 // loop_pre_header
    _
  $region3: #{encoders_intrinsic_forward.11} parent=0 // loop_header
    %s8 = sphi 0, %s12
    %p9 = scmp.ge.s32.totalorder %s8, 4
    %s18 = sphi 0, %s20
    %s21 = sphi 0, %s18
    %s22 = sphi 0, %s21
    %s38 = sphi 0, %s22
    %s42 = sphi 0, %s42
    %s44 = sphi 0, %s42
    %s45 = sphi 0, %s44
    %s59 = sphi 0, %s45
    %s65 = sphi 0, %s67
    %s68 = sphi 0, %s65
    %s69 = sphi 0, %s68
    %s85 = sphi 0, %s69
  $region4: #{encoders_intrinsic_forward.11} parent=0 // loop_header_branch
    %11 = sbr.rel (%p9) target = $region8
  $region5: #{encoders_intrinsic_forward.11} parent=0 // loop_body
    %s13 = ssub.s32 %s8, 1
    %s14 = ssub.s32 %s8, 2
    %s15 = sadd.s32 %s8, 1
    %s16 = ssub.s32 %s8, %s15
    %p17 = scmp.eq.s32.totalorder %s16, 0
    %s19 = sadd.s32 %s18, 1
    %s20 = scalar_select %p17, %s18, %s19
    %p23 = pneg %p17
    %p24 = scmp.eq.s32.totalorder %s8, 1
    %p25 = por %p23, %p24
    %p26 = scmp.ne.s32.totalorder %s18, %s21
    %p27 = scmp.eq.s32.totalorder %s8, 0
    %p28 = por %p26, %p27
    %p29 = scmp.ne.s32.totalorder %s18, %s21
    %p30 = scmp.eq.s32.totalorder %s13, 1
    %p31 = por %p29, %p30
    %p32 = scmp.ne.s32.totalorder %s21, %s22
    %p33 = scmp.eq.s32.totalorder %s13, 0
    %p34 = por %p32, %p33
    %p35 = scmp.ne.s32.totalorder %s21, %s22
    %p36 = scmp.eq.s32.totalorder %s14, 1
    %p37 = por %p35, %p36
    %p39 = scmp.ne.s32.totalorder %s22, %s38
    %p40 = scmp.eq.s32.totalorder %s14, 0
    %p41 = por %p39, %p40
    %s43 = sadd.s32 %s42, 1
    %p46 = scmp.eq.s32.totalorder %s8, 1
    %p47 = scmp.ne.s32.totalorder %s42, %s44
    %p48 = scmp.eq.s32.totalorder %s8, 0
    %p49 = por %p47, %p48
    %p50 = scmp.ne.s32.totalorder %s42, %s44
    %p51 = scmp.eq.s32.totalorder %s13, 1
    %p52 = por %p50, %p51
    %p53 = scmp.ne.s32.totalorder %s44, %s45
    %p54 = scmp.eq.s32.totalorder %s13, 0
    %p55 = por %p53, %p54
    %p56 = scmp.ne.s32.totalorder %s44, %s45
    %p57 = scmp.eq.s32.totalorder %s14, 1
    %p58 = por %p56, %p57
    %p60 = scmp.ne.s32.totalorder %s45, %s59
    %p61 = scmp.eq.s32.totalorder %s14, 0
    %p62 = por %p60, %p61
    %s63 = ssub.s32 %s8, %s15
    %p64 = scmp.eq.s32.totalorder %s63, 0
    %s66 = sadd.s32 %s65, 1
    %s67 = scalar_select %p64, %s65, %s66
    %p70 = pneg %p64
    %p71 = scmp.eq.s32.totalorder %s8, 1
    %p72 = por %p70, %p71
    %p73 = scmp.ne.s32.totalorder %s65, %s68
    %p74 = scmp.eq.s32.totalorder %s8, 0
    %p75 = por %p73, %p74
    %p76 = scmp.ne.s32.totalorder %s65, %s68
    %p77 = scmp.eq.s32.totalorder %s13, 1
    %p78 = por %p76, %p77
    %p79 = scmp.ne.s32.totalorder %s68, %s69
    %p80 = scmp.eq.s32.totalorder %s13, 0
    %p81 = por %p79, %p80
    %p82 = scmp.ne.s32.totalorder %s68, %s69
    %p83 = scmp.eq.s32.totalorder %s14, 1
    %p84 = por %p82, %p83
    %p86 = scmp.ne.s32.totalorder %s69, %s85
    %p87 = scmp.eq.s32.totalorder %s14, 0
    %p88 = por %p86, %p87
    %p89 = scmp.le.s32.totalorder 1, %s8
    %p90 = scmp.lt.s32.totalorder %s8, 3
    %p91 = pnand %p89, %p90
    %p92 = pneg %p91
    // Predicated region
    $region9: #{encoders_intrinsic_forward.11} parent=5 // pred_check
      _
    $region10: #{encoders_intrinsic_forward.11} parent=5 // pred_check_branch
      %94 = sbr.rel (%p91) target = $region12
    $region11: #{encoders_intrinsic_forward.11} parent=5 // pred_region
      %s95 = ssub.s32 %s8, 1
      // Predicated region
      $region13: #{encoders_intrinsic_forward.11} parent=11 // pred_check
        %p96 = pneg %p55
      $region14: #{encoders_intrinsic_forward.11} parent=11 // pred_check_branch
        %98 = sbr.rel (%p96) target = $region16
      $region15: #{encoders_intrinsic_forward.11} parent=11 // pred_region
        _
      $region16: #{encoders_intrinsic_forward.11} parent=11 // pred_fallthru
        _
    $region12: #{encoders_intrinsic_forward.11} parent=5 // pred_fallthru
      _
    %p99 = scmp.lt.s32.totalorder %s8, 2
    // Predicated region
    $region17: #{encoders_intrinsic_forward.11} parent=5 // pred_check
      %p100 = pneg %p99
    $region18: #{encoders_intrinsic_forward.11} parent=5 // pred_check_branch
      %102 = sbr.rel (%p100) target = $region20
    $region19: #{encoders_intrinsic_forward.11} parent=5 // pred_region
      // Predicated region
      $region21: #{encoders_intrinsic_forward.11} parent=19 // pred_check
        %p103 = pneg %p28
      $region22: #{encoders_intrinsic_forward.11} parent=19 // pred_check_branch
        %105 = sbr.rel (%p103) target = $region24
      $region23: #{encoders_intrinsic_forward.11} parent=19 // pred_region
        %p106 = scmp.lt.s32.totalorder %s8, 1
        %s107 = scalar_select %p106, %s8, 1
        %s108 = smul.addr %s107, 32
        %s109 = smul.addr %s108, 8
        %s110 = scalar_lea.vmem %s0, %s109
      $region24: #{encoders_intrinsic_forward.11} parent=19 // pred_fallthru
        _
    $region20: #{encoders_intrinsic_forward.11} parent=5 // pred_fallthru
      _
    %p111 = scmp.le.s32.totalorder 1, %s8
    %p112 = scmp.lt.s32.totalorder %s8, 3
    %p113 = pnand %p111, %p112
    %p114 = pneg %p113
    // Predicated region
    $region25: #{encoders_intrinsic_forward.11} parent=5 // pred_check
      _
    $region26: #{encoders_intrinsic_forward.11} parent=5 // pred_check_branch
      %116 = sbr.rel (%p113) target = $region28
    $region27: #{encoders_intrinsic_forward.11} parent=5 // pred_region
      %s117 = ssub.s32 %s8, 1
      %p118 = scmp.lt.s32.totalorder %s13, 1
      %s119 = scalar_select %p118, %s13, 1
      %s120 = smul.addr %s119, 32
      %s121 = smul.addr %s120, 8
      %s122 = scalar_lea.vmem %s0, %s121
      %p123 = pneg %p34
      %p124 = pneg %p31
      %p125 = pneg %p55
      %p126 = pneg %p52
      %p127 = pneg %p81
      %p128 = pneg %p78
      %p129 = scmp.lt.s32.totalorder %s13, 1
      %s130 = scalar_select %p129, %s13, 1
      %s131 = smul.addr %s130, 4
      %s132 = smul.addr %s131, 8
      %s133 = scalar_lea.vmem %s2, %s132
      %p134 = scmp.lt.s32.totalorder %s13, 1
      %s135 = scalar_select %p134, %s13, 1
      %s136 = smul.addr %s135, 32
      %s137 = smul.addr %s136, 8
      %s138 = scalar_lea.vmem %s0, %s137
      %p139 = scmp.lt.s32.totalorder %s13, 1
      %s140 = scalar_select %p139, %s13, 1
      %s141 = smul.addr %s140, 4
      %s142 = smul.addr %s141, 8
      %s143 = scalar_lea.vmem %s2, %s142
      %v144 = vld [vmem:[%s138] sm:$0xff]
      %v145 = vld [vmem:[%s138 + $0x8] sm:$0xff]
      %v146 = vld [vmem:[%s138 + $0x10] sm:$0xff]
      %v147 = vld [vmem:[%s138 + $0x18] sm:$0xff]
      %v148 = vld [vmem:[%s138 + $0x20] sm:$0xff]
      %v149 = vld [vmem:[%s138 + $0x28] sm:$0xff]
      %v150 = vld [vmem:[%s138 + $0x30] sm:$0xff]
      %v151 = vld [vmem:[%s138 + $0x38] sm:$0xff]
      %v152 = vld [vmem:[%s138 + $0x40] sm:$0xff]
      %v153 = vld [vmem:[%s138 + $0x48] sm:$0xff]
      %v154 = vld [vmem:[%s138 + $0x50] sm:$0xff]
      %v155 = vld [vmem:[%s138 + $0x58] sm:$0xff]
      %v156 = vld [vmem:[%s138 + $0x60] sm:$0xff]
      %v157 = vld [vmem:[%s138 + $0x68] sm:$0xff]
      %v158 = vld [vmem:[%s138 + $0x70] sm:$0xff]
      %v159 = vld [vmem:[%s138 + $0x78] sm:$0xff]
      %v160 = vld [vmem:[%s138 + $0x80] sm:$0xff]
      %v161 = vld [vmem:[%s138 + $0x88] sm:$0xff]
      %v162 = vld [vmem:[%s138 + $0x90] sm:$0xff]
      %v163 = vld [vmem:[%s138 + $0x98] sm:$0xff]
      %v164 = vld [vmem:[%s138 + $0xa0] sm:$0xff]
      %v165 = vld [vmem:[%s138 + $0xa8] sm:$0xff]
      %v166 = vld [vmem:[%s138 + $0xb0] sm:$0xff]
      %v167 = vld [vmem:[%s138 + $0xb8] sm:$0xff]
      %v168 = vld [vmem:[%s138 + $0xc0] sm:$0xff]
      %v169 = vld [vmem:[%s138 + $0xc8] sm:$0xff]
      %v170 = vld [vmem:[%s138 + $0xd0] sm:$0xff]
      %v171 = vld [vmem:[%s138 + $0xd8] sm:$0xff]
      %v172 = vld [vmem:[%s138 + $0xe0] sm:$0xff]
      %v173 = vld [vmem:[%s138 + $0xe8] sm:$0xff]
      %v174 = vld [vmem:[%s138 + $0xf0] sm:$0xff]
      %v175 = vld [vmem:[%s138 + $0xf8] sm:$0xff]
      %v176 = vld [vmem:[%s1] sm:$0xff]
      %v177 = vld [vmem:[%s1 + $0x8] sm:$0xff]
      %v178 = vld [vmem:[%s1 + $0x10] sm:$0xff]
      %v179 = vld [vmem:[%s1 + $0x18] sm:$0xff]
      %v180 = vld [vmem:[%s1 + $0x20] sm:$0xff]
      %v181 = vld [vmem:[%s1 + $0x28] sm:$0xff]
      %v182 = vld [vmem:[%s1 + $0x30] sm:$0xff]
      %v183 = vld [vmem:[%s1 + $0x38] sm:$0xff]
      %v184 = vld [vmem:[%s1 + $0x40] sm:$0xff]
      %v185 = vld [vmem:[%s1 + $0x48] sm:$0xff]
      %v186 = vld [vmem:[%s1 + $0x50] sm:$0xff]
      %v187 = vld [vmem:[%s1 + $0x58] sm:$0xff]
      %v188 = vld [vmem:[%s1 + $0x60] sm:$0xff]
      %v189 = vld [vmem:[%s1 + $0x68] sm:$0xff]
      %v190 = vld [vmem:[%s1 + $0x70] sm:$0xff]
      %v191 = vld [vmem:[%s1 + $0x78] sm:$0xff]
      %v192 = vld [vmem:[%s1 + $0x80] sm:$0xff]
      %v193 = vld [vmem:[%s1 + $0x88] sm:$0xff]
      %v194 = vld [vmem:[%s1 + $0x90] sm:$0xff]
      %v195 = vld [vmem:[%s1 + $0x98] sm:$0xff]
      %v196 = vld [vmem:[%s1 + $0xa0] sm:$0xff]
      %v197 = vld [vmem:[%s1 + $0xa8] sm:$0xff]
      %v198 = vld [vmem:[%s1 + $0xb0] sm:$0xff]
      %v199 = vld [vmem:[%s1 + $0xb8] sm:$0xff]
      %v200 = vld [vmem:[%s1 + $0xc0] sm:$0xff]
      %v201 = vld [vmem:[%s1 + $0xc8] sm:$0xff]
      %v202 = vld [vmem:[%s1 + $0xd0] sm:$0xff]
      %v203 = vld [vmem:[%s1 + $0xd8] sm:$0xff]
      %v204 = vld [vmem:[%s1 + $0xe0] sm:$0xff]
      %v205 = vld [vmem:[%s1 + $0xe8] sm:$0xff]
      %v206 = vld [vmem:[%s1 + $0xf0] sm:$0xff]
      %v207 = vld [vmem:[%s1 + $0xf8] sm:$0xff]
      %v208 = vld [vmem:[%s1 + $0x100] sm:$0xff]
      %v209 = vld [vmem:[%s1 + $0x108] sm:$0xff]
      %v210 = vld [vmem:[%s1 + $0x110] sm:$0xff]
      %v211 = vld [vmem:[%s1 + $0x118] sm:$0xff]
      %v212 = vld [vmem:[%s1 + $0x120] sm:$0xff]
      %v213 = vld [vmem:[%s1 + $0x128] sm:$0xff]
      %v214 = vld [vmem:[%s1 + $0x130] sm:$0xff]
      %v215 = vld [vmem:[%s1 + $0x138] sm:$0xff]
      %v216 = vld [vmem:[%s1 + $0x140] sm:$0xff]
      %v217 = vld [vmem:[%s1 + $0x148] sm:$0xff]
      %v218 = vld [vmem:[%s1 + $0x150] sm:$0xff]
      %v219 = vld [vmem:[%s1 + $0x158] sm:$0xff]
      %v220 = vld [vmem:[%s1 + $0x160] sm:$0xff]
      %v221 = vld [vmem:[%s1 + $0x168] sm:$0xff]
      %v222 = vld [vmem:[%s1 + $0x170] sm:$0xff]
      %v223 = vld [vmem:[%s1 + $0x178] sm:$0xff]
      %v224 = vld [vmem:[%s1 + $0x180] sm:$0xff]
      %v225 = vld [vmem:[%s1 + $0x188] sm:$0xff]
      %v226 = vld [vmem:[%s1 + $0x190] sm:$0xff]
      %v227 = vld [vmem:[%s1 + $0x198] sm:$0xff]
      %v228 = vld [vmem:[%s1 + $0x1a0] sm:$0xff]
      %v229 = vld [vmem:[%s1 + $0x1a8] sm:$0xff]
      %v230 = vld [vmem:[%s1 + $0x1b0] sm:$0xff]
      %v231 = vld [vmem:[%s1 + $0x1b8] sm:$0xff]
      %v232 = vld [vmem:[%s1 + $0x1c0] sm:$0xff]
      %v233 = vld [vmem:[%s1 + $0x1c8] sm:$0xff]
      %v234 = vld [vmem:[%s1 + $0x1d0] sm:$0xff]
      %v235 = vld [vmem:[%s1 + $0x1d8] sm:$0xff]
      %v236 = vld [vmem:[%s1 + $0x1e0] sm:$0xff]
      %v237 = vld [vmem:[%s1 + $0x1e8] sm:$0xff]
      %v238 = vld [vmem:[%s1 + $0x1f0] sm:$0xff]
      %v239 = vld [vmem:[%s1 + $0x1f8] sm:$0xff]
      %v240 = vld [vmem:[%s1 + $0x200] sm:$0xff]
      %v241 = vld [vmem:[%s1 + $0x208] sm:$0xff]
      %v242 = vld [vmem:[%s1 + $0x210] sm:$0xff]
      %v243 = vld [vmem:[%s1 + $0x218] sm:$0xff]
      %v244 = vld [vmem:[%s1 + $0x220] sm:$0xff]
      %v245 = vld [vmem:[%s1 + $0x228] sm:$0xff]
      %v246 = vld [vmem:[%s1 + $0x230] sm:$0xff]
      %v247 = vld [vmem:[%s1 + $0x238] sm:$0xff]
      %v248 = vld [vmem:[%s1 + $0x240] sm:$0xff]
      %v249 = vld [vmem:[%s1 + $0x248] sm:$0xff]
      %v250 = vld [vmem:[%s1 + $0x250] sm:$0xff]
      %v251 = vld [vmem:[%s1 + $0x258] sm:$0xff]
      %v252 = vld [vmem:[%s1 + $0x260] sm:$0xff]
      %v253 = vld [vmem:[%s1 + $0x268] sm:$0xff]
      %v254 = vld [vmem:[%s1 + $0x270] sm:$0xff]
      %v255 = vld [vmem:[%s1 + $0x278] sm:$0xff]
      %v256 = vld [vmem:[%s1 + $0x280] sm:$0xff]
      %v257 = vld [vmem:[%s1 + $0x288] sm:$0xff]
      %v258 = vld [vmem:[%s1 + $0x290] sm:$0xff]
      %v259 = vld [vmem:[%s1 + $0x298] sm:$0xff]
      %v260 = vld [vmem:[%s1 + $0x2a0] sm:$0xff]
      %v261 = vld [vmem:[%s1 + $0x2a8] sm:$0xff]
      %v262 = vld [vmem:[%s1 + $0x2b0] sm:$0xff]
      %v263 = vld [vmem:[%s1 + $0x2b8] sm:$0xff]
      %v264 = vld [vmem:[%s1 + $0x2c0] sm:$0xff]
      %v265 = vld [vmem:[%s1 + $0x2c8] sm:$0xff]
      %v266 = vld [vmem:[%s1 + $0x2d0] sm:$0xff]
      %v267 = vld [vmem:[%s1 + $0x2d8] sm:$0xff]
      %v268 = vld [vmem:[%s1 + $0x2e0] sm:$0xff]
      %v269 = vld [vmem:[%s1 + $0x2e8] sm:$0xff]
      %v270 = vld [vmem:[%s1 + $0x2f0] sm:$0xff]
      %v271 = vld [vmem:[%s1 + $0x2f8] sm:$0xff]
      %v272 = vld [vmem:[%s1 + $0x300] sm:$0xff]
      %v273 = vld [vmem:[%s1 + $0x308] sm:$0xff]
      %v274 = vld [vmem:[%s1 + $0x310] sm:$0xff]
      %v275 = vld [vmem:[%s1 + $0x318] sm:$0xff]
      %v276 = vld [vmem:[%s1 + $0x320] sm:$0xff]
      %v277 = vld [vmem:[%s1 + $0x328] sm:$0xff]
      %v278 = vld [vmem:[%s1 + $0x330] sm:$0xff]
      %v279 = vld [vmem:[%s1 + $0x338] sm:$0xff]
      %v280 = vld [vmem:[%s1 + $0x340] sm:$0xff]
      %v281 = vld [vmem:[%s1 + $0x348] sm:$0xff]
      %v282 = vld [vmem:[%s1 + $0x350] sm:$0xff]
      %v283 = vld [vmem:[%s1 + $0x358] sm:$0xff]
      %v284 = vld [vmem:[%s1 + $0x360] sm:$0xff]
      %v285 = vld [vmem:[%s1 + $0x368] sm:$0xff]
      %v286 = vld [vmem:[%s1 + $0x370] sm:$0xff]
      %v287 = vld [vmem:[%s1 + $0x378] sm:$0xff]
      %v288 = vld [vmem:[%s1 + $0x380] sm:$0xff]
      %v289 = vld [vmem:[%s1 + $0x388] sm:$0xff]
      %v290 = vld [vmem:[%s1 + $0x390] sm:$0xff]
      %v291 = vld [vmem:[%s1 + $0x398] sm:$0xff]
      %v292 = vld [vmem:[%s1 + $0x3a0] sm:$0xff]
      %v293 = vld [vmem:[%s1 + $0x3a8] sm:$0xff]
      %v294 = vld [vmem:[%s1 + $0x3b0] sm:$0xff]
      %v295 = vld [vmem:[%s1 + $0x3b8] sm:$0xff]
      %v296 = vld [vmem:[%s1 + $0x3c0] sm:$0xff]
      %v297 = vld [vmem:[%s1 + $0x3c8] sm:$0xff]
      %v298 = vld [vmem:[%s1 + $0x3d0] sm:$0xff]
      %v299 = vld [vmem:[%s1 + $0x3d8] sm:$0xff]
      %v300 = vld [vmem:[%s1 + $0x3e0] sm:$0xff]
      %v301 = vld [vmem:[%s1 + $0x3e8] sm:$0xff]
      %v302 = vld [vmem:[%s1 + $0x3f0] sm:$0xff]
      %v303 = vld [vmem:[%s1 + $0x3f8] sm:$0xff]
      %v304 = vld [vmem:[%s1 + $0x400] sm:$0xff]
      %v305 = vld [vmem:[%s1 + $0x408] sm:$0xff]
      %v306 = vld [vmem:[%s1 + $0x410] sm:$0xff]
      %v307 = vld [vmem:[%s1 + $0x418] sm:$0xff]
      %v308 = vld [vmem:[%s1 + $0x420] sm:$0xff]
      %v309 = vld [vmem:[%s1 + $0x428] sm:$0xff]
      %v310 = vld [vmem:[%s1 + $0x430] sm:$0xff]
      %v311 = vld [vmem:[%s1 + $0x438] sm:$0xff]
      %v312 = vld [vmem:[%s1 + $0x440] sm:$0xff]
      %v313 = vld [vmem:[%s1 + $0x448] sm:$0xff]
      %v314 = vld [vmem:[%s1 + $0x450] sm:$0xff]
      %v315 = vld [vmem:[%s1 + $0x458] sm:$0xff]
      %v316 = vld [vmem:[%s1 + $0x460] sm:$0xff]
      %v317 = vld [vmem:[%s1 + $0x468] sm:$0xff]
      %v318 = vld [vmem:[%s1 + $0x470] sm:$0xff]
      %v319 = vld [vmem:[%s1 + $0x478] sm:$0xff]
      %v320 = vld [vmem:[%s1 + $0x480] sm:$0xff]
      %v321 = vld [vmem:[%s1 + $0x488] sm:$0xff]
      %v322 = vld [vmem:[%s1 + $0x490] sm:$0xff]
      %v323 = vld [vmem:[%s1 + $0x498] sm:$0xff]
      %v324 = vld [vmem:[%s1 + $0x4a0] sm:$0xff]
      %v325 = vld [vmem:[%s1 + $0x4a8] sm:$0xff]
      %v326 = vld [vmem:[%s1 + $0x4b0] sm:$0xff]
      %v327 = vld [vmem:[%s1 + $0x4b8] sm:$0xff]
      %v328 = vld [vmem:[%s1 + $0x4c0] sm:$0xff]
      %v329 = vld [vmem:[%s1 + $0x4c8] sm:$0xff]
      %v330 = vld [vmem:[%s1 + $0x4d0] sm:$0xff]
      %v331 = vld [vmem:[%s1 + $0x4d8] sm:$0xff]
      %v332 = vld [vmem:[%s1 + $0x4e0] sm:$0xff]
      %v333 = vld [vmem:[%s1 + $0x4e8] sm:$0xff]
      %v334 = vld [vmem:[%s1 + $0x4f0] sm:$0xff]
      %v335 = vld [vmem:[%s1 + $0x4f8] sm:$0xff]
      %v336 = vld [vmem:[%s1 + $0x500] sm:$0xff]
      %v337 = vld [vmem:[%s1 + $0x508] sm:$0xff]
      %v338 = vld [vmem:[%s1 + $0x510] sm:$0xff]
      %v339 = vld [vmem:[%s1 + $0x518] sm:$0xff]
      %v340 = vld [vmem:[%s1 + $0x520] sm:$0xff]
      %v341 = vld [vmem:[%s1 + $0x528] sm:$0xff]
      %v342 = vld [vmem:[%s1 + $0x530] sm:$0xff]
      %v343 = vld [vmem:[%s1 + $0x538] sm:$0xff]
      %v344 = vld [vmem:[%s1 + $0x540] sm:$0xff]
      %v345 = vld [vmem:[%s1 + $0x548] sm:$0xff]
      %v346 = vld [vmem:[%s1 + $0x550] sm:$0xff]
      %v347 = vld [vmem:[%s1 + $0x558] sm:$0xff]
      %v348 = vld [vmem:[%s1 + $0x560] sm:$0xff]
      %v349 = vld [vmem:[%s1 + $0x568] sm:$0xff]
      %v350 = vld [vmem:[%s1 + $0x570] sm:$0xff]
      %v351 = vld [vmem:[%s1 + $0x578] sm:$0xff]
      %v352 = vld [vmem:[%s1 + $0x580] sm:$0xff]
      %v353 = vld [vmem:[%s1 + $0x588] sm:$0xff]
      %v354 = vld [vmem:[%s1 + $0x590] sm:$0xff]
      %v355 = vld [vmem:[%s1 + $0x598] sm:$0xff]
      %v356 = vld [vmem:[%s1 + $0x5a0] sm:$0xff]
      %v357 = vld [vmem:[%s1 + $0x5a8] sm:$0xff]
      %v358 = vld [vmem:[%s1 + $0x5b0] sm:$0xff]
      %v359 = vld [vmem:[%s1 + $0x5b8] sm:$0xff]
      %v360 = vld [vmem:[%s1 + $0x5c0] sm:$0xff]
      %v361 = vld [vmem:[%s1 + $0x5c8] sm:$0xff]
      %v362 = vld [vmem:[%s1 + $0x5d0] sm:$0xff]
      %v363 = vld [vmem:[%s1 + $0x5d8] sm:$0xff]
      %v364 = vld [vmem:[%s1 + $0x5e0] sm:$0xff]
      %v365 = vld [vmem:[%s1 + $0x5e8] sm:$0xff]
      %v366 = vld [vmem:[%s1 + $0x5f0] sm:$0xff]
      %v367 = vld [vmem:[%s1 + $0x5f8] sm:$0xff]
      %v368 = vld [vmem:[%s1 + $0x600] sm:$0xff]
      %v369 = vld [vmem:[%s1 + $0x608] sm:$0xff]
      %v370 = vld [vmem:[%s1 + $0x610] sm:$0xff]
      %v371 = vld [vmem:[%s1 + $0x618] sm:$0xff]
      %v372 = vld [vmem:[%s1 + $0x620] sm:$0xff]
      %v373 = vld [vmem:[%s1 + $0x628] sm:$0xff]
      %v374 = vld [vmem:[%s1 + $0x630] sm:$0xff]
      %v375 = vld [vmem:[%s1 + $0x638] sm:$0xff]
      %v376 = vld [vmem:[%s1 + $0x640] sm:$0xff]
      %v377 = vld [vmem:[%s1 + $0x648] sm:$0xff]
      %v378 = vld [vmem:[%s1 + $0x650] sm:$0xff]
      %v379 = vld [vmem:[%s1 + $0x658] sm:$0xff]
      %v380 = vld [vmem:[%s1 + $0x660] sm:$0xff]
      %v381 = vld [vmem:[%s1 + $0x668] sm:$0xff]
      %v382 = vld [vmem:[%s1 + $0x670] sm:$0xff]
      %v383 = vld [vmem:[%s1 + $0x678] sm:$0xff]
      %v384 = vld [vmem:[%s1 + $0x680] sm:$0xff]
      %v385 = vld [vmem:[%s1 + $0x688] sm:$0xff]
      %v386 = vld [vmem:[%s1 + $0x690] sm:$0xff]
      %v387 = vld [vmem:[%s1 + $0x698] sm:$0xff]
      %v388 = vld [vmem:[%s1 + $0x6a0] sm:$0xff]
      %v389 = vld [vmem:[%s1 + $0x6a8] sm:$0xff]
      %v390 = vld [vmem:[%s1 + $0x6b0] sm:$0xff]
      %v391 = vld [vmem:[%s1 + $0x6b8] sm:$0xff]
      %v392 = vld [vmem:[%s1 + $0x6c0] sm:$0xff]
      %v393 = vld [vmem:[%s1 + $0x6c8] sm:$0xff]
      %v394 = vld [vmem:[%s1 + $0x6d0] sm:$0xff]
      %v395 = vld [vmem:[%s1 + $0x6d8] sm:$0xff]
      %v396 = vld [vmem:[%s1 + $0x6e0] sm:$0xff]
      %v397 = vld [vmem:[%s1 + $0x6e8] sm:$0xff]
      %v398 = vld [vmem:[%s1 + $0x6f0] sm:$0xff]
      %v399 = vld [vmem:[%s1 + $0x6f8] sm:$0xff]
      %v400 = vld [vmem:[%s1 + $0x700] sm:$0xff]
      %v401 = vld [vmem:[%s1 + $0x708] sm:$0xff]
      %v402 = vld [vmem:[%s1 + $0x710] sm:$0xff]
      %v403 = vld [vmem:[%s1 + $0x718] sm:$0xff]
      %v404 = vld [vmem:[%s1 + $0x720] sm:$0xff]
      %v405 = vld [vmem:[%s1 + $0x728] sm:$0xff]
      %v406 = vld [vmem:[%s1 + $0x730] sm:$0xff]
      %v407 = vld [vmem:[%s1 + $0x738] sm:$0xff]
      %v408 = vld [vmem:[%s1 + $0x740] sm:$0xff]
      %v409 = vld [vmem:[%s1 + $0x748] sm:$0xff]
      %v410 = vld [vmem:[%s1 + $0x750] sm:$0xff]
      %v411 = vld [vmem:[%s1 + $0x758] sm:$0xff]
      %v412 = vld [vmem:[%s1 + $0x760] sm:$0xff]
      %v413 = vld [vmem:[%s1 + $0x768] sm:$0xff]
      %v414 = vld [vmem:[%s1 + $0x770] sm:$0xff]
      %v415 = vld [vmem:[%s1 + $0x778] sm:$0xff]
      %v416 = vld [vmem:[%s1 + $0x780] sm:$0xff]
      %v417 = vld [vmem:[%s1 + $0x788] sm:$0xff]
      %v418 = vld [vmem:[%s1 + $0x790] sm:$0xff]
      %v419 = vld [vmem:[%s1 + $0x798] sm:$0xff]
      %v420 = vld [vmem:[%s1 + $0x7a0] sm:$0xff]
      %v421 = vld [vmem:[%s1 + $0x7a8] sm:$0xff]
      %v422 = vld [vmem:[%s1 + $0x7b0] sm:$0xff]
      %v423 = vld [vmem:[%s1 + $0x7b8] sm:$0xff]
      %v424 = vld [vmem:[%s1 + $0x7c0] sm:$0xff]
      %v425 = vld [vmem:[%s1 + $0x7c8] sm:$0xff]
      %v426 = vld [vmem:[%s1 + $0x7d0] sm:$0xff]
      %v427 = vld [vmem:[%s1 + $0x7d8] sm:$0xff]
      %v428 = vld [vmem:[%s1 + $0x7e0] sm:$0xff]
      %v429 = vld [vmem:[%s1 + $0x7e8] sm:$0xff]
      %v430 = vld [vmem:[%s1 + $0x7f0] sm:$0xff]
      %v431 = vld [vmem:[%s1 + $0x7f8] sm:$0xff]
      %v432 = vld [vmem:[%s1 + $0x800] sm:$0xff]
      %v433 = vld [vmem:[%s1 + $0x808] sm:$0xff]
      %v434 = vld [vmem:[%s1 + $0x810] sm:$0xff]
      %v435 = vld [vmem:[%s1 + $0x818] sm:$0xff]
      %v436 = vld [vmem:[%s1 + $0x820] sm:$0xff]
      %v437 = vld [vmem:[%s1 + $0x828] sm:$0xff]
      %v438 = vld [vmem:[%s1 + $0x830] sm:$0xff]
      %v439 = vld [vmem:[%s1 + $0x838] sm:$0xff]
      %v440 = vld [vmem:[%s1 + $0x840] sm:$0xff]
      %v441 = vld [vmem:[%s1 + $0x848] sm:$0xff]
      %v442 = vld [vmem:[%s1 + $0x850] sm:$0xff]
      %v443 = vld [vmem:[%s1 + $0x858] sm:$0xff]
      %v444 = vld [vmem:[%s1 + $0x860] sm:$0xff]
      %v445 = vld [vmem:[%s1 + $0x868] sm:$0xff]
      %v446 = vld [vmem:[%s1 + $0x870] sm:$0xff]
      %v447 = vld [vmem:[%s1 + $0x878] sm:$0xff]
      %v448 = vld [vmem:[%s1 + $0x880] sm:$0xff]
      %v449 = vld [vmem:[%s1 + $0x888] sm:$0xff]
      %v450 = vld [vmem:[%s1 + $0x890] sm:$0xff]
      %v451 = vld [vmem:[%s1 + $0x898] sm:$0xff]
      %v452 = vld [vmem:[%s1 + $0x8a0] sm:$0xff]
      %v453 = vld [vmem:[%s1 + $0x8a8] sm:$0xff]
      %v454 = vld [vmem:[%s1 + $0x8b0] sm:$0xff]
      %v455 = vld [vmem:[%s1 + $0x8b8] sm:$0xff]
      %v456 = vld [vmem:[%s1 + $0x8c0] sm:$0xff]
      %v457 = vld [vmem:[%s1 + $0x8c8] sm:$0xff]
      %v458 = vld [vmem:[%s1 + $0x8d0] sm:$0xff]
      %v459 = vld [vmem:[%s1 + $0x8d8] sm:$0xff]
      %v460 = vld [vmem:[%s1 + $0x8e0] sm:$0xff]
      %v461 = vld [vmem:[%s1 + $0x8e8] sm:$0xff]
      %v462 = vld [vmem:[%s1 + $0x8f0] sm:$0xff]
      %v463 = vld [vmem:[%s1 + $0x8f8] sm:$0xff]
      %v464 = vld [vmem:[%s1 + $0x900] sm:$0xff]
      %v465 = vld [vmem:[%s1 + $0x908] sm:$0xff]
      %v466 = vld [vmem:[%s1 + $0x910] sm:$0xff]
      %v467 = vld [vmem:[%s1 + $0x918] sm:$0xff]
      %v468 = vld [vmem:[%s1 + $0x920] sm:$0xff]
      %v469 = vld [vmem:[%s1 + $0x928] sm:$0xff]
      %v470 = vld [vmem:[%s1 + $0x930] sm:$0xff]
      %v471 = vld [vmem:[%s1 + $0x938] sm:$0xff]
      %v472 = vld [vmem:[%s1 + $0x940] sm:$0xff]
      %v473 = vld [vmem:[%s1 + $0x948] sm:$0xff]
      %v474 = vld [vmem:[%s1 + $0x950] sm:$0xff]
      %v475 = vld [vmem:[%s1 + $0x958] sm:$0xff]
      %v476 = vld [vmem:[%s1 + $0x960] sm:$0xff]
      %v477 = vld [vmem:[%s1 + $0x968] sm:$0xff]
      %v478 = vld [vmem:[%s1 + $0x970] sm:$0xff]
      %v479 = vld [vmem:[%s1 + $0x978] sm:$0xff]
      %v480 = vld [vmem:[%s1 + $0x980] sm:$0xff]
      %v481 = vld [vmem:[%s1 + $0x988] sm:$0xff]
      %v482 = vld [vmem:[%s1 + $0x990] sm:$0xff]
      %v483 = vld [vmem:[%s1 + $0x998] sm:$0xff]
      %v484 = vld [vmem:[%s1 + $0x9a0] sm:$0xff]
      %v485 = vld [vmem:[%s1 + $0x9a8] sm:$0xff]
      %v486 = vld [vmem:[%s1 + $0x9b0] sm:$0xff]
      %v487 = vld [vmem:[%s1 + $0x9b8] sm:$0xff]
      %v488 = vld [vmem:[%s1 + $0x9c0] sm:$0xff]
      %v489 = vld [vmem:[%s1 + $0x9c8] sm:$0xff]
      %v490 = vld [vmem:[%s1 + $0x9d0] sm:$0xff]
      %v491 = vld [vmem:[%s1 + $0x9d8] sm:$0xff]
      %v492 = vld [vmem:[%s1 + $0x9e0] sm:$0xff]
      %v493 = vld [vmem:[%s1 + $0x9e8] sm:$0xff]
      %v494 = vld [vmem:[%s1 + $0x9f0] sm:$0xff]
      %v495 = vld [vmem:[%s1 + $0x9f8] sm:$0xff]
      %v496 = vld [vmem:[%s1 + $0xa00] sm:$0xff]
      %v497 = vld [vmem:[%s1 + $0xa08] sm:$0xff]
      %v498 = vld [vmem:[%s1 + $0xa10] sm:$0xff]
      %v499 = vld [vmem:[%s1 + $0xa18] sm:$0xff]
      %v500 = vld [vmem:[%s1 + $0xa20] sm:$0xff]
      %v501 = vld [vmem:[%s1 + $0xa28] sm:$0xff]
      %v502 = vld [vmem:[%s1 + $0xa30] sm:$0xff]
      %v503 = vld [vmem:[%s1 + $0xa38] sm:$0xff]
      %v504 = vld [vmem:[%s1 + $0xa40] sm:$0xff]
      %v505 = vld [vmem:[%s1 + $0xa48] sm:$0xff]
      %v506 = vld [vmem:[%s1 + $0xa50] sm:$0xff]
      %v507 = vld [vmem:[%s1 + $0xa58] sm:$0xff]
      %v508 = vld [vmem:[%s1 + $0xa60] sm:$0xff]
      %v509 = vld [vmem:[%s1 + $0xa68] sm:$0xff]
      %v510 = vld [vmem:[%s1 + $0xa70] sm:$0xff]
      %v511 = vld [vmem:[%s1 + $0xa78] sm:$0xff]
      %v512 = vld [vmem:[%s1 + $0xa80] sm:$0xff]
      %v513 = vld [vmem:[%s1 + $0xa88] sm:$0xff]
      %v514 = vld [vmem:[%s1 + $0xa90] sm:$0xff]
      %v515 = vld [vmem:[%s1 + $0xa98] sm:$0xff]
      %v516 = vld [vmem:[%s1 + $0xaa0] sm:$0xff]
      %v517 = vld [vmem:[%s1 + $0xaa8] sm:$0xff]
      %v518 = vld [vmem:[%s1 + $0xab0] sm:$0xff]
      %v519 = vld [vmem:[%s1 + $0xab8] sm:$0xff]
      %v520 = vld [vmem:[%s1 + $0xac0] sm:$0xff]
      %v521 = vld [vmem:[%s1 + $0xac8] sm:$0xff]
      %v522 = vld [vmem:[%s1 + $0xad0] sm:$0xff]
      %v523 = vld [vmem:[%s1 + $0xad8] sm:$0xff]
      %v524 = vld [vmem:[%s1 + $0xae0] sm:$0xff]
      %v525 = vld [vmem:[%s1 + $0xae8] sm:$0xff]
      %v526 = vld [vmem:[%s1 + $0xaf0] sm:$0xff]
      %v527 = vld [vmem:[%s1 + $0xaf8] sm:$0xff]
      %v528 = vld [vmem:[%s1 + $0xb00] sm:$0xff]
      %v529 = vld [vmem:[%s1 + $0xb08] sm:$0xff]
      %v530 = vld [vmem:[%s1 + $0xb10] sm:$0xff]
      %v531 = vld [vmem:[%s1 + $0xb18] sm:$0xff]
      %v532 = vld [vmem:[%s1 + $0xb20] sm:$0xff]
      %v533 = vld [vmem:[%s1 + $0xb28] sm:$0xff]
      %v534 = vld [vmem:[%s1 + $0xb30] sm:$0xff]
      %v535 = vld [vmem:[%s1 + $0xb38] sm:$0xff]
      %v536 = vld [vmem:[%s1 + $0xb40] sm:$0xff]
      %v537 = vld [vmem:[%s1 + $0xb48] sm:$0xff]
      %v538 = vld [vmem:[%s1 + $0xb50] sm:$0xff]
      %v539 = vld [vmem:[%s1 + $0xb58] sm:$0xff]
      %v540 = vld [vmem:[%s1 + $0xb60] sm:$0xff]
      %v541 = vld [vmem:[%s1 + $0xb68] sm:$0xff]
      %v542 = vld [vmem:[%s1 + $0xb70] sm:$0xff]
      %v543 = vld [vmem:[%s1 + $0xb78] sm:$0xff]
      %v544 = vld [vmem:[%s1 + $0xb80] sm:$0xff]
      %v545 = vld [vmem:[%s1 + $0xb88] sm:$0xff]
      %v546 = vld [vmem:[%s1 + $0xb90] sm:$0xff]
      %v547 = vld [vmem:[%s1 + $0xb98] sm:$0xff]
      %v548 = vld [vmem:[%s1 + $0xba0] sm:$0xff]
      %v549 = vld [vmem:[%s1 + $0xba8] sm:$0xff]
      %v550 = vld [vmem:[%s1 + $0xbb0] sm:$0xff]
      %v551 = vld [vmem:[%s1 + $0xbb8] sm:$0xff]
      %v552 = vld [vmem:[%s1 + $0xbc0] sm:$0xff]
      %v553 = vld [vmem:[%s1 + $0xbc8] sm:$0xff]
      %v554 = vld [vmem:[%s1 + $0xbd0] sm:$0xff]
      %v555 = vld [vmem:[%s1 + $0xbd8] sm:$0xff]
      %v556 = vld [vmem:[%s1 + $0xbe0] sm:$0xff]
      %v557 = vld [vmem:[%s1 + $0xbe8] sm:$0xff]
      %v558 = vld [vmem:[%s1 + $0xbf0] sm:$0xff]
      %v559 = vld [vmem:[%s1 + $0xbf8] sm:$0xff]
      %v560 = vld [vmem:[%s1 + $0xc00] sm:$0xff]
      %v561 = vld [vmem:[%s1 + $0xc08] sm:$0xff]
      %v562 = vld [vmem:[%s1 + $0xc10] sm:$0xff]
      %v563 = vld [vmem:[%s1 + $0xc18] sm:$0xff]
      %v564 = vld [vmem:[%s1 + $0xc20] sm:$0xff]
      %v565 = vld [vmem:[%s1 + $0xc28] sm:$0xff]
      %v566 = vld [vmem:[%s1 + $0xc30] sm:$0xff]
      %v567 = vld [vmem:[%s1 + $0xc38] sm:$0xff]
      %v568 = vld [vmem:[%s1 + $0xc40] sm:$0xff]
      %v569 = vld [vmem:[%s1 + $0xc48] sm:$0xff]
      %v570 = vld [vmem:[%s1 + $0xc50] sm:$0xff]
      %v571 = vld [vmem:[%s1 + $0xc58] sm:$0xff]
      %v572 = vld [vmem:[%s1 + $0xc60] sm:$0xff]
      %v573 = vld [vmem:[%s1 + $0xc68] sm:$0xff]
      %v574 = vld [vmem:[%s1 + $0xc70] sm:$0xff]
      %v575 = vld [vmem:[%s1 + $0xc78] sm:$0xff]
      %v576 = vld [vmem:[%s1 + $0xc80] sm:$0xff]
      %v577 = vld [vmem:[%s1 + $0xc88] sm:$0xff]
      %v578 = vld [vmem:[%s1 + $0xc90] sm:$0xff]
      %v579 = vld [vmem:[%s1 + $0xc98] sm:$0xff]
      %v580 = vld [vmem:[%s1 + $0xca0] sm:$0xff]
      %v581 = vld [vmem:[%s1 + $0xca8] sm:$0xff]
      %v582 = vld [vmem:[%s1 + $0xcb0] sm:$0xff]
      %v583 = vld [vmem:[%s1 + $0xcb8] sm:$0xff]
      %v584 = vld [vmem:[%s1 + $0xcc0] sm:$0xff]
      %v585 = vld [vmem:[%s1 + $0xcc8] sm:$0xff]
      %v586 = vld [vmem:[%s1 + $0xcd0] sm:$0xff]
      %v587 = vld [vmem:[%s1 + $0xcd8] sm:$0xff]
      %v588 = vld [vmem:[%s1 + $0xce0] sm:$0xff]
      %v589 = vld [vmem:[%s1 + $0xce8] sm:$0xff]
      %v590 = vld [vmem:[%s1 + $0xcf0] sm:$0xff]
      %v591 = vld [vmem:[%s1 + $0xcf8] sm:$0xff]
      %v592 = vld [vmem:[%s1 + $0xd00] sm:$0xff]
      %v593 = vld [vmem:[%s1 + $0xd08] sm:$0xff]
      %v594 = vld [vmem:[%s1 + $0xd10] sm:$0xff]
      %v595 = vld [vmem:[%s1 + $0xd18] sm:$0xff]
      %v596 = vld [vmem:[%s1 + $0xd20] sm:$0xff]
      %v597 = vld [vmem:[%s1 + $0xd28] sm:$0xff]
      %v598 = vld [vmem:[%s1 + $0xd30] sm:$0xff]
      %v599 = vld [vmem:[%s1 + $0xd38] sm:$0xff]
      %v600 = vld [vmem:[%s1 + $0xd40] sm:$0xff]
      %v601 = vld [vmem:[%s1 + $0xd48] sm:$0xff]
      %v602 = vld [vmem:[%s1 + $0xd50] sm:$0xff]
      %v603 = vld [vmem:[%s1 + $0xd58] sm:$0xff]
      %v604 = vld [vmem:[%s1 + $0xd60] sm:$0xff]
      %v605 = vld [vmem:[%s1 + $0xd68] sm:$0xff]
      %v606 = vld [vmem:[%s1 + $0xd70] sm:$0xff]
      %v607 = vld [vmem:[%s1 + $0xd78] sm:$0xff]
      %v608 = vld [vmem:[%s1 + $0xd80] sm:$0xff]
      %v609 = vld [vmem:[%s1 + $0xd88] sm:$0xff]
      %v610 = vld [vmem:[%s1 + $0xd90] sm:$0xff]
      %v611 = vld [vmem:[%s1 + $0xd98] sm:$0xff]
      %v612 = vld [vmem:[%s1 + $0xda0] sm:$0xff]
      %v613 = vld [vmem:[%s1 + $0xda8] sm:$0xff]
      %v614 = vld [vmem:[%s1 + $0xdb0] sm:$0xff]
      %v615 = vld [vmem:[%s1 + $0xdb8] sm:$0xff]
      %v616 = vld [vmem:[%s1 + $0xdc0] sm:$0xff]
      %v617 = vld [vmem:[%s1 + $0xdc8] sm:$0xff]
      %v618 = vld [vmem:[%s1 + $0xdd0] sm:$0xff]
      %v619 = vld [vmem:[%s1 + $0xdd8] sm:$0xff]
      %v620 = vld [vmem:[%s1 + $0xde0] sm:$0xff]
      %v621 = vld [vmem:[%s1 + $0xde8] sm:$0xff]
      %v622 = vld [vmem:[%s1 + $0xdf0] sm:$0xff]
      %v623 = vld [vmem:[%s1 + $0xdf8] sm:$0xff]
      %v624 = vld [vmem:[%s1 + $0xe00] sm:$0xff]
      %v625 = vld [vmem:[%s1 + $0xe08] sm:$0xff]
      %v626 = vld [vmem:[%s1 + $0xe10] sm:$0xff]
      %v627 = vld [vmem:[%s1 + $0xe18] sm:$0xff]
      %v628 = vld [vmem:[%s1 + $0xe20] sm:$0xff]
      %v629 = vld [vmem:[%s1 + $0xe28] sm:$0xff]
      %v630 = vld [vmem:[%s1 + $0xe30] sm:$0xff]
      %v631 = vld [vmem:[%s1 + $0xe38] sm:$0xff]
      %v632 = vld [vmem:[%s1 + $0xe40] sm:$0xff]
      %v633 = vld [vmem:[%s1 + $0xe48] sm:$0xff]
      %v634 = vld [vmem:[%s1 + $0xe50] sm:$0xff]
      %v635 = vld [vmem:[%s1 + $0xe58] sm:$0xff]
      %v636 = vld [vmem:[%s1 + $0xe60] sm:$0xff]
      %v637 = vld [vmem:[%s1 + $0xe68] sm:$0xff]
      %v638 = vld [vmem:[%s1 + $0xe70] sm:$0xff]
      %v639 = vld [vmem:[%s1 + $0xe78] sm:$0xff]
      %v640 = vld [vmem:[%s1 + $0xe80] sm:$0xff]
      %v641 = vld [vmem:[%s1 + $0xe88] sm:$0xff]
      %v642 = vld [vmem:[%s1 + $0xe90] sm:$0xff]
      %v643 = vld [vmem:[%s1 + $0xe98] sm:$0xff]
      %v644 = vld [vmem:[%s1 + $0xea0] sm:$0xff]
      %v645 = vld [vmem:[%s1 + $0xea8] sm:$0xff]
      %v646 = vld [vmem:[%s1 + $0xeb0] sm:$0xff]
      %v647 = vld [vmem:[%s1 + $0xeb8] sm:$0xff]
      %v648 = vld [vmem:[%s1 + $0xec0] sm:$0xff]
      %v649 = vld [vmem:[%s1 + $0xec8] sm:$0xff]
      %v650 = vld [vmem:[%s1 + $0xed0] sm:$0xff]
      %v651 = vld [vmem:[%s1 + $0xed8] sm:$0xff]
      %v652 = vld [vmem:[%s1 + $0xee0] sm:$0xff]
      %v653 = vld [vmem:[%s1 + $0xee8] sm:$0xff]
      %v654 = vld [vmem:[%s1 + $0xef0] sm:$0xff]
      %v655 = vld [vmem:[%s1 + $0xef8] sm:$0xff]
      %v656 = vld [vmem:[%s1 + $0xf00] sm:$0xff]
      %v657 = vld [vmem:[%s1 + $0xf08] sm:$0xff]
      %v658 = vld [vmem:[%s1 + $0xf10] sm:$0xff]
      %v659 = vld [vmem:[%s1 + $0xf18] sm:$0xff]
      %v660 = vld [vmem:[%s1 + $0xf20] sm:$0xff]
      %v661 = vld [vmem:[%s1 + $0xf28] sm:$0xff]
      %v662 = vld [vmem:[%s1 + $0xf30] sm:$0xff]
      %v663 = vld [vmem:[%s1 + $0xf38] sm:$0xff]
      %v664 = vld [vmem:[%s1 + $0xf40] sm:$0xff]
      %v665 = vld [vmem:[%s1 + $0xf48] sm:$0xff]
      %v666 = vld [vmem:[%s1 + $0xf50] sm:$0xff]
      %v667 = vld [vmem:[%s1 + $0xf58] sm:$0xff]
      %v668 = vld [vmem:[%s1 + $0xf60] sm:$0xff]
      %v669 = vld [vmem:[%s1 + $0xf68] sm:$0xff]
      %v670 = vld [vmem:[%s1 + $0xf70] sm:$0xff]
      %v671 = vld [vmem:[%s1 + $0xf78] sm:$0xff]
      %v672 = vld [vmem:[%s1 + $0xf80] sm:$0xff]
      %v673 = vld [vmem:[%s1 + $0xf88] sm:$0xff]
      %v674 = vld [vmem:[%s1 + $0xf90] sm:$0xff]
      %v675 = vld [vmem:[%s1 + $0xf98] sm:$0xff]
      %v676 = vld [vmem:[%s1 + $0xfa0] sm:$0xff]
      %v677 = vld [vmem:[%s1 + $0xfa8] sm:$0xff]
      %v678 = vld [vmem:[%s1 + $0xfb0] sm:$0xff]
      %v679 = vld [vmem:[%s1 + $0xfb8] sm:$0xff]
      %v680 = vld [vmem:[%s1 + $0xfc0] sm:$0xff]
      %v681 = vld [vmem:[%s1 + $0xfc8] sm:$0xff]
      %v682 = vld [vmem:[%s1 + $0xfd0] sm:$0xff]
      %v683 = vld [vmem:[%s1 + $0xfd8] sm:$0xff]
      %v684 = vld [vmem:[%s1 + $0xfe0] sm:$0xff]
      %v685 = vld [vmem:[%s1 + $0xfe8] sm:$0xff]
      %v686 = vld [vmem:[%s1 + $0xff0] sm:$0xff]
      %v687 = vld [vmem:[%s1 + $0xff8] sm:$0xff]
      %688 = vmatprep.subr.mxu0 %v177
      %689 = vmatpush1.msra.mxu0 %v176
      %690 = vmatprep.subr.mxu0 %v179
      %691 = vmatpush1.msra.mxu0 %v178
      %692 = vmatprep.subr.mxu0 %v181
      %693 = vmatpush1.msra.mxu0 %v180
      %694 = vmatprep.subr.mxu0 %v183
      %695 = vmatpush1.msra.mxu0 %v182
      %696 = vmatprep.subr.mxu0 %v185
      %697 = vmatpush1.msra.mxu0 %v184
      %698 = vmatprep.subr.mxu0 %v187
      %699 = vmatpush1.msra.mxu0 %v186
      %700 = vmatprep.subr.mxu0 %v189
      %701 = vmatpush1.msra.mxu0 %v188
      %702 = vmatprep.subr.mxu0 %v191
      %703 = vmatpush1.msra.mxu0 %v190
      %704 = vmatprep.subr.mxu0 %v193
      %705 = vmatpush1.msra.mxu0 %v192
      %706 = vmatprep.subr.mxu0 %v195
      %707 = vmatpush1.msra.mxu0 %v194
      %708 = vmatprep.subr.mxu0 %v197
      %709 = vmatpush1.msra.mxu0 %v196
      %710 = vmatprep.subr.mxu0 %v199
      %711 = vmatpush1.msra.mxu0 %v198
      %712 = vmatprep.subr.mxu0 %v201
      %713 = vmatpush1.msra.mxu0 %v200
      %714 = vmatprep.subr.mxu0 %v203
      %715 = vmatpush1.msra.mxu0 %v202
      %716 = vmatprep.subr.mxu0 %v205
      %717 = vmatpush1.msra.mxu0 %v204
      %718 = vmatprep.subr.mxu0 %v207
      %719 = vmatpush1.msra.mxu0 %v206
      %720 = vmatprep.subr.mxu0 %v209
      %721 = vmatpush1.msra.mxu0 %v208
      %722 = vmatprep.subr.mxu0 %v211
      %723 = vmatpush1.msra.mxu0 %v210
      %724 = vmatprep.subr.mxu0 %v213
      %725 = vmatpush1.msra.mxu0 %v212
      %726 = vmatprep.subr.mxu0 %v215
      %727 = vmatpush1.msra.mxu0 %v214
      %728 = vmatprep.subr.mxu0 %v217
      %729 = vmatpush1.msra.mxu0 %v216
      %730 = vmatprep.subr.mxu0 %v219
      %731 = vmatpush1.msra.mxu0 %v218
      %732 = vmatprep.subr.mxu0 %v221
      %733 = vmatpush1.msra.mxu0 %v220
      %734 = vmatprep.subr.mxu0 %v223
      %735 = vmatpush1.msra.mxu0 %v222
      %736 = vmatprep.subr.mxu0 %v225
      %737 = vmatpush1.msra.mxu0 %v224
      %738 = vmatprep.subr.mxu0 %v227
      %739 = vmatpush1.msra.mxu0 %v226
      %740 = vmatprep.subr.mxu0 %v229
      %741 = vmatpush1.msra.mxu0 %v228
      %742 = vmatprep.subr.mxu0 %v231
      %743 = vmatpush1.msra.mxu0 %v230
      %744 = vmatprep.subr.mxu0 %v233
      %745 = vmatpush1.msra.mxu0 %v232
      %746 = vmatprep.subr.mxu0 %v235
      %747 = vmatpush1.msra.mxu0 %v234
      %748 = vmatprep.subr.mxu0 %v237
      %749 = vmatpush1.msra.mxu0 %v236
      %750 = vmatprep.subr.mxu0 %v239
      %751 = vmatpush1.msra.mxu0 %v238
      %752 = vmatprep.mubr.f32.mxu0 %v145
      %753 = vmatmul.mubr.f32.gmra.mrb[0].mxu0 %v144
      %v754 = vpop.f32.mrb[0].mxu0
      %v755 = vadd.f32 0.0, %v754
      %v756 = vpop.f32.mrb[0].mxu0
      %v757 = vadd.f32 0.0, %v756
      %758 = vmatprep.mubr.f32.mxu0 %v161
      %759 = vmatmul.mubr.f32.gmra.mrb[0].mxu0 %v160
      %v760 = vpop.f32.mrb[0].mxu0
      %v761 = vadd.f32 0.0, %v760
      %v762 = vpop.f32.mrb[0].mxu0
      %v763 = vadd.f32 0.0, %v762
      %764 = vdwg.mxu0
      %765 = vmatprep.subr.mxu0 %v241
      %766 = vmatpush1.msra.mxu0 %v240
      %767 = vmatprep.subr.mxu0 %v243
      %768 = vmatpush1.msra.mxu0 %v242
      %769 = vmatprep.subr.mxu0 %v245
      %770 = vmatpush1.msra.mxu0 %v244
      %771 = vmatprep.subr.mxu0 %v247
      %772 = vmatpush1.msra.mxu0 %v246
      %773 = vmatprep.subr.mxu0 %v249
      %774 = vmatpush1.msra.mxu0 %v248
      %775 = vmatprep.subr.mxu0 %v251
      %776 = vmatpush1.msra.mxu0 %v250
      %777 = vmatprep.subr.mxu0 %v253
      %778 = vmatpush1.msra.mxu0 %v252
      %779 = vmatprep.subr.mxu0 %v255
      %780 = vmatpush1.msra.mxu0 %v254
      %781 = vmatprep.subr.mxu0 %v257
      %782 = vmatpush1.msra.mxu0 %v256
      %783 = vmatprep.subr.mxu0 %v259
      %784 = vmatpush1.msra.mxu0 %v258
      %785 = vmatprep.subr.mxu0 %v261
      %786 = vmatpush1.msra.mxu0 %v260
      %787 = vmatprep.subr.mxu0 %v263
      %788 = vmatpush1.msra.mxu0 %v262
      %789 = vmatprep.subr.mxu0 %v265
      %790 = vmatpush1.msra.mxu0 %v264
      %791 = vmatprep.subr.mxu0 %v267
      %792 = vmatpush1.msra.mxu0 %v266
      %793 = vmatprep.subr.mxu0 %v269
      %794 = vmatpush1.msra.mxu0 %v268
      %795 = vmatprep.subr.mxu0 %v271
      %796 = vmatpush1.msra.mxu0 %v270
      %797 = vmatprep.subr.mxu0 %v273
      %798 = vmatpush1.msra.mxu0 %v272
      %799 = vmatprep.subr.mxu0 %v275
      %800 = vmatpush1.msra.mxu0 %v274
      %801 = vmatprep.subr.mxu0 %v277
      %802 = vmatpush1.msra.mxu0 %v276
      %803 = vmatprep.subr.mxu0 %v279
      %804 = vmatpush1.msra.mxu0 %v278
      %805 = vmatprep.subr.mxu0 %v281
      %806 = vmatpush1.msra.mxu0 %v280
      %807 = vmatprep.subr.mxu0 %v283
      %808 = vmatpush1.msra.mxu0 %v282
      %809 = vmatprep.subr.mxu0 %v285
      %810 = vmatpush1.msra.mxu0 %v284
      %811 = vmatprep.subr.mxu0 %v287
      %812 = vmatpush1.msra.mxu0 %v286
      %813 = vmatprep.subr.mxu0 %v289
      %814 = vmatpush1.msra.mxu0 %v288
      %815 = vmatprep.subr.mxu0 %v291
      %816 = vmatpush1.msra.mxu0 %v290
      %817 = vmatprep.subr.mxu0 %v293
      %818 = vmatpush1.msra.mxu0 %v292
      %819 = vmatprep.subr.mxu0 %v295
      %820 = vmatpush1.msra.mxu0 %v294
      %821 = vmatprep.subr.mxu0 %v297
      %822 = vmatpush1.msra.mxu0 %v296
      %823 = vmatprep.subr.mxu0 %v299
      %824 = vmatpush1.msra.mxu0 %v298
      %825 = vmatprep.subr.mxu0 %v301
      %826 = vmatpush1.msra.mxu0 %v300
      %827 = vmatprep.subr.mxu0 %v303
      %828 = vmatpush1.msra.mxu0 %v302
      %829 = vmatprep.mubr.f32.mxu0 %v147
      %830 = vmatmul.mubr.f32.gmra.mrb[0].mxu0 %v146
      %v831 = vpop.f32.mrb[0].mxu0
      %v832 = vadd.f32 %v755, %v831
      %v833 = vpop.f32.mrb[0].mxu0
      %v834 = vadd.f32 %v757, %v833
      %835 = vmatprep.mubr.f32.mxu0 %v163
      %836 = vmatmul.mubr.f32.gmra.mrb[0].mxu0 %v162
      %v837 = vpop.f32.mrb[0].mxu0
      %v838 = vadd.f32 %v761, %v837
      %v839 = vpop.f32.mrb[0].mxu0
      %v840 = vadd.f32 %v763, %v839
      %841 = vdwg.mxu0
      %842 = vmatprep.subr.mxu0 %v305
      %843 = vmatpush1.msra.mxu0 %v304
      %844 = vmatprep.subr.mxu0 %v307
      %845 = vmatpush1.msra.mxu0 %v306
      %846 = vmatprep.subr.mxu0 %v309
      %847 = vmatpush1.msra.mxu0 %v308
      %848 = vmatprep.subr.mxu0 %v311
      %849 = vmatpush1.msra.mxu0 %v310
      %850 = vmatprep.subr.mxu0 %v313
      %851 = vmatpush1.msra.mxu0 %v312
      %852 = vmatprep.subr.mxu0 %v315
      %853 = vmatpush1.msra.mxu0 %v314
      %854 = vmatprep.subr.mxu0 %v317
      %855 = vmatpush1.msra.mxu0 %v316
      %856 = vmatprep.subr.mxu0 %v319
      %857 = vmatpush1.msra.mxu0 %v318
      %858 = vmatprep.subr.mxu0 %v321
      %859 = vmatpush1.msra.mxu0 %v320
      %860 = vmatprep.subr.mxu0 %v323
      %861 = vmatpush1.msra.mxu0 %v322
      %862 = vmatprep.subr.mxu0 %v325
      %863 = vmatpush1.msra.mxu0 %v324
      %864 = vmatprep.subr.mxu0 %v327
      %865 = vmatpush1.msra.mxu0 %v326
      %866 = vmatprep.subr.mxu0 %v329
      %867 = vmatpush1.msra.mxu0 %v328
      %868 = vmatprep.subr.mxu0 %v331
      %869 = vmatpush1.msra.mxu0 %v330
      %870 = vmatprep.subr.mxu0 %v333
      %871 = vmatpush1.msra.mxu0 %v332
      %872 = vmatprep.subr.mxu0 %v335
      %873 = vmatpush1.msra.mxu0 %v334
      %874 = vmatprep.subr.mxu0 %v337
      %875 = vmatpush1.msra.mxu0 %v336
      %876 = vmatprep.subr.mxu0 %v339
      %877 = vmatpush1.msra.mxu0 %v338
      %878 = vmatprep.subr.mxu0 %v341
      %879 = vmatpush1.msra.mxu0 %v340
      %880 = vmatprep.subr.mxu0 %v343
      %881 = vmatpush1.msra.mxu0 %v342
      %882 = vmatprep.subr.mxu0 %v345
      %883 = vmatpush1.msra.mxu0 %v344
      %884 = vmatprep.subr.mxu0 %v347
      %885 = vmatpush1.msra.mxu0 %v346
      %886 = vmatprep.subr.mxu0 %v349
      %887 = vmatpush1.msra.mxu0 %v348
      %888 = vmatprep.subr.mxu0 %v351
      %889 = vmatpush1.msra.mxu0 %v350
      %890 = vmatprep.subr.mxu0 %v353
      %891 = vmatpush1.msra.mxu0 %v352
      %892 = vmatprep.subr.mxu0 %v355
      %893 = vmatpush1.msra.mxu0 %v354
      %894 = vmatprep.subr.mxu0 %v357
      %895 = vmatpush1.msra.mxu0 %v356
      %896 = vmatprep.subr.mxu0 %v359
      %897 = vmatpush1.msra.mxu0 %v358
      %898 = vmatprep.subr.mxu0 %v361
      %899 = vmatpush1.msra.mxu0 %v360
      %900 = vmatprep.subr.mxu0 %v363
      %901 = vmatpush1.msra.mxu0 %v362
      %902 = vmatprep.subr.mxu0 %v365
      %903 = vmatpush1.msra.mxu0 %v364
      %904 = vmatprep.subr.mxu0 %v367
      %905 = vmatpush1.msra.mxu0 %v366
      %906 = vmatprep.mubr.f32.mxu0 %v149
      %907 = vmatmul.mubr.f32.gmra.mrb[0].mxu0 %v148
      %v908 = vpop.f32.mrb[0].mxu0
      %v909 = vadd.f32 %v832, %v908
      %v910 = vpop.f32.mrb[0].mxu0
      %v911 = vadd.f32 %v834, %v910
      %912 = vmatprep.mubr.f32.mxu0 %v165
      %913 = vmatmul.mubr.f32.gmra.mrb[0].mxu0 %v164
      %v914 = vpop.f32.mrb[0].mxu0
      %v915 = vadd.f32 %v838, %v914
      %v916 = vpop.f32.mrb[0].mxu0
      %v917 = vadd.f32 %v840, %v916
      %918 = vdwg.mxu0
      %919 = vmatprep.subr.mxu0 %v369
      %920 = vmatpush1.msra.mxu0 %v368
      %921 = vmatprep.subr.mxu0 %v371
      %922 = vmatpush1.msra.mxu0 %v370
      %923 = vmatprep.subr.mxu0 %v373
      %924 = vmatpush1.msra.mxu0 %v372
      %925 = vmatprep.subr.mxu0 %v375
      %926 = vmatpush1.msra.mxu0 %v374
      %927 = vmatprep.subr.mxu0 %v377
      %928 = vmatpush1.msra.mxu0 %v376
      %929 = vmatprep.subr.mxu0 %v379
      %930 = vmatpush1.msra.mxu0 %v378
      %931 = vmatprep.subr.mxu0 %v381
      %932 = vmatpush1.msra.mxu0 %v380
      %933 = vmatprep.subr.mxu0 %v383
      %934 = vmatpush1.msra.mxu0 %v382
      %935 = vmatprep.subr.mxu0 %v385
      %936 = vmatpush1.msra.mxu0 %v384
      %937 = vmatprep.subr.mxu0 %v387
      %938 = vmatpush1.msra.mxu0 %v386
      %939 = vmatprep.subr.mxu0 %v389
      %940 = vmatpush1.msra.mxu0 %v388
      %941 = vmatprep.subr.mxu0 %v391
      %942 = vmatpush1.msra.mxu0 %v390
      %943 = vmatprep.subr.mxu0 %v393
      %944 = vmatpush1.msra.mxu0 %v392
      %945 = vmatprep.subr.mxu0 %v395
      %946 = vmatpush1.msra.mxu0 %v394
      %947 = vmatprep.subr.mxu0 %v397
      %948 = vmatpush1.msra.mxu0 %v396
      %949 = vmatprep.subr.mxu0 %v399
      %950 = vmatpush1.msra.mxu0 %v398
      %951 = vmatprep.subr.mxu0 %v401
      %952 = vmatpush1.msra.mxu0 %v400
      %953 = vmatprep.subr.mxu0 %v403
      %954 = vmatpush1.msra.mxu0 %v402
      %955 = vmatprep.subr.mxu0 %v405
      %956 = vmatpush1.msra.mxu0 %v404
      %957 = vmatprep.subr.mxu0 %v407
      %958 = vmatpush1.msra.mxu0 %v406
      %959 = vmatprep.subr.mxu0 %v409
      %960 = vmatpush1.msra.mxu0 %v408
      %961 = vmatprep.subr.mxu0 %v411
      %962 = vmatpush1.msra.mxu0 %v410
      %963 = vmatprep.subr.mxu0 %v413
      %964 = vmatpush1.msra.mxu0 %v412
      %965 = vmatprep.subr.mxu0 %v415
      %966 = vmatpush1.msra.mxu0 %v414
      %967 = vmatprep.subr.mxu0 %v417
      %968 = vmatpush1.msra.mxu0 %v416
      %969 = vmatprep.subr.mxu0 %v419
      %970 = vmatpush1.msra.mxu0 %v418
      %971 = vmatprep.subr.mxu0 %v421
      %972 = vmatpush1.msra.mxu0 %v420
      %973 = vmatprep.subr.mxu0 %v423
      %974 = vmatpush1.msra.mxu0 %v422
      %975 = vmatprep.subr.mxu0 %v425
      %976 = vmatpush1.msra.mxu0 %v424
      %977 = vmatprep.subr.mxu0 %v427
      %978 = vmatpush1.msra.mxu0 %v426
      %979 = vmatprep.subr.mxu0 %v429
      %980 = vmatpush1.msra.mxu0 %v428
      %981 = vmatprep.subr.mxu0 %v431
      %982 = vmatpush1.msra.mxu0 %v430
      %983 = vmatprep.mubr.f32.mxu0 %v151
      %984 = vmatmul.mubr.f32.gmra.mrb[0].mxu0 %v150
      %v985 = vpop.f32.mrb[0].mxu0
      %v986 = vadd.f32 %v909, %v985
      %v987 = vpop.f32.mrb[0].mxu0
      %v988 = vadd.f32 %v911, %v987
      %989 = vmatprep.mubr.f32.mxu0 %v167
      %990 = vmatmul.mubr.f32.gmra.mrb[0].mxu0 %v166
      %v991 = vpop.f32.mrb[0].mxu0
      %v992 = vadd.f32 %v915, %v991
      %v993 = vpop.f32.mrb[0].mxu0
      %v994 = vadd.f32 %v917, %v993
      %995 = vdwg.mxu0
      %996 = vmatprep.subr.mxu0 %v433
      %997 = vmatpush1.msra.mxu0 %v432
      %998 = vmatprep.subr.mxu0 %v435
      %999 = vmatpush1.msra.mxu0 %v434
      %1000 = vmatprep.subr.mxu0 %v437
      %1001 = vmatpush1.msra.mxu0 %v436
      %1002 = vmatprep.subr.mxu0 %v439
      %1003 = vmatpush1.msra.mxu0 %v438
      %1004 = vmatprep.subr.mxu0 %v441
      %1005 = vmatpush1.msra.mxu0 %v440
      %1006 = vmatprep.subr.mxu0 %v443
      %1007 = vmatpush1.msra.mxu0 %v442
      %1008 = vmatprep.subr.mxu0 %v445
      %1009 = vmatpush1.msra.mxu0 %v444
      %1010 = vmatprep.subr.mxu0 %v447
      %1011 = vmatpush1.msra.mxu0 %v446
      %1012 = vmatprep.subr.mxu0 %v449
      %1013 = vmatpush1.msra.mxu0 %v448
      %1014 = vmatprep.subr.mxu0 %v451
      %1015 = vmatpush1.msra.mxu0 %v450
      %1016 = vmatprep.subr.mxu0 %v453
      %1017 = vmatpush1.msra.mxu0 %v452
      %1018 = vmatprep.subr.mxu0 %v455
      %1019 = vmatpush1.msra.mxu0 %v454
      %1020 = vmatprep.subr.mxu0 %v457
      %1021 = vmatpush1.msra.mxu0 %v456
      %1022 = vmatprep.subr.mxu0 %v459
      %1023 = vmatpush1.msra.mxu0 %v458
      %1024 = vmatprep.subr.mxu0 %v461
      %1025 = vmatpush1.msra.mxu0 %v460
      %1026 = vmatprep.subr.mxu0 %v463
      %1027 = vmatpush1.msra.mxu0 %v462
      %1028 = vmatprep.subr.mxu0 %v465
      %1029 = vmatpush1.msra.mxu0 %v464
      %1030 = vmatprep.subr.mxu0 %v467
      %1031 = vmatpush1.msra.mxu0 %v466
      %1032 = vmatprep.subr.mxu0 %v469
      %1033 = vmatpush1.msra.mxu0 %v468
      %1034 = vmatprep.subr.mxu0 %v471
      %1035 = vmatpush1.msra.mxu0 %v470
      %1036 = vmatprep.subr.mxu0 %v473
      %1037 = vmatpush1.msra.mxu0 %v472
      %1038 = vmatprep.subr.mxu0 %v475
      %1039 = vmatpush1.msra.mxu0 %v474
      %1040 = vmatprep.subr.mxu0 %v477
      %1041 = vmatpush1.msra.mxu0 %v476
      %1042 = vmatprep.subr.mxu0 %v479
      %1043 = vmatpush1.msra.mxu0 %v478
      %1044 = vmatprep.subr.mxu0 %v481
      %1045 = vmatpush1.msra.mxu0 %v480
      %1046 = vmatprep.subr.mxu0 %v483
      %1047 = vmatpush1.msra.mxu0 %v482
      %1048 = vmatprep.subr.mxu0 %v485
      %1049 = vmatpush1.msra.mxu0 %v484
      %1050 = vmatprep.subr.mxu0 %v487
      %1051 = vmatpush1.msra.mxu0 %v486
      %1052 = vmatprep.subr.mxu0 %v489
      %1053 = vmatpush1.msra.mxu0 %v488
      %1054 = vmatprep.subr.mxu0 %v491
      %1055 = vmatpush1.msra.mxu0 %v490
      %1056 = vmatprep.subr.mxu0 %v493
      %1057 = vmatpush1.msra.mxu0 %v492
      %1058 = vmatprep.subr.mxu0 %v495
      %1059 = vmatpush1.msra.mxu0 %v494
      %1060 = vmatprep.mubr.f32.mxu0 %v153
      %1061 = vmatmul.mubr.f32.gmra.mrb[0].mxu0 %v152
      %v1062 = vpop.f32.mrb[0].mxu0
      %v1063 = vadd.f32 %v986, %v1062
      %v1064 = vpop.f32.mrb[0].mxu0
      %v1065 = vadd.f32 %v988, %v1064
      %1066 = vmatprep.mubr.f32.mxu0 %v169
      %1067 = vmatmul.mubr.f32.gmra.mrb[0].mxu0 %v168
      %v1068 = vpop.f32.mrb[0].mxu0
      %v1069 = vadd.f32 %v992, %v1068
      %v1070 = vpop.f32.mrb[0].mxu0
      %v1071 = vadd.f32 %v994, %v1070
      %1072 = vdwg.mxu0
      %1073 = vmatprep.subr.mxu0 %v497
      %1074 = vmatpush1.msra.mxu0 %v496
      %1075 = vmatprep.subr.mxu0 %v499
      %1076 = vmatpush1.msra.mxu0 %v498
      %1077 = vmatprep.subr.mxu0 %v501
      %1078 = vmatpush1.msra.mxu0 %v500
      %1079 = vmatprep.subr.mxu0 %v503
      %1080 = vmatpush1.msra.mxu0 %v502
      %1081 = vmatprep.subr.mxu0 %v505
      %1082 = vmatpush1.msra.mxu0 %v504
      %1083 = vmatprep.subr.mxu0 %v507
      %1084 = vmatpush1.msra.mxu0 %v506
      %1085 = vmatprep.subr.mxu0 %v509
      %1086 = vmatpush1.msra.mxu0 %v508
      %1087 = vmatprep.subr.mxu0 %v511
      %1088 = vmatpush1.msra.mxu0 %v510
      %1089 = vmatprep.subr.mxu0 %v513
      %1090 = vmatpush1.msra.mxu0 %v512
      %1091 = vmatprep.subr.mxu0 %v515
      %1092 = vmatpush1.msra.mxu0 %v514
      %1093 = vmatprep.subr.mxu0 %v517
      %1094 = vmatpush1.msra.mxu0 %v516
      %1095 = vmatprep.subr.mxu0 %v519
      %1096 = vmatpush1.msra.mxu0 %v518
      %1097 = vmatprep.subr.mxu0 %v521
      %1098 = vmatpush1.msra.mxu0 %v520
      %1099 = vmatprep.subr.mxu0 %v523
      %1100 = vmatpush1.msra.mxu0 %v522
      %1101 = vmatprep.subr.mxu0 %v525
      %1102 = vmatpush1.msra.mxu0 %v524
      %1103 = vmatprep.subr.mxu0 %v527
      %1104 = vmatpush1.msra.mxu0 %v526
      %1105 = vmatprep.subr.mxu0 %v529
      %1106 = vmatpush1.msra.mxu0 %v528
      %1107 = vmatprep.subr.mxu0 %v531
      %1108 = vmatpush1.msra.mxu0 %v530
      %1109 = vmatprep.subr.mxu0 %v533
      %1110 = vmatpush1.msra.mxu0 %v532
      %1111 = vmatprep.subr.mxu0 %v535
      %1112 = vmatpush1.msra.mxu0 %v534
      %1113 = vmatprep.subr.mxu0 %v537
      %1114 = vmatpush1.msra.mxu0 %v536
      %1115 = vmatprep.subr.mxu0 %v539
      %1116 = vmatpush1.msra.mxu0 %v538
      %1117 = vmatprep.subr.mxu0 %v541
      %1118 = vmatpush1.msra.mxu0 %v540
      %1119 = vmatprep.subr.mxu0 %v543
      %1120 = vmatpush1.msra.mxu0 %v542
      %1121 = vmatprep.subr.mxu0 %v545
      %1122 = vmatpush1.msra.mxu0 %v544
      %1123 = vmatprep.subr.mxu0 %v547
      %1124 = vmatpush1.msra.mxu0 %v546
      %1125 = vmatprep.subr.mxu0 %v549
      %1126 = vmatpush1.msra.mxu0 %v548
      %1127 = vmatprep.subr.mxu0 %v551
      %1128 = vmatpush1.msra.mxu0 %v550
      %1129 = vmatprep.subr.mxu0 %v553
      %1130 = vmatpush1.msra.mxu0 %v552
      %1131 = vmatprep.subr.mxu0 %v555
      %1132 = vmatpush1.msra.mxu0 %v554
      %1133 = vmatprep.subr.mxu0 %v557
      %1134 = vmatpush1.msra.mxu0 %v556
      %1135 = vmatprep.subr.mxu0 %v559
      %1136 = vmatpush1.msra.mxu0 %v558
      %1137 = vmatprep.mubr.f32.mxu0 %v155
      %1138 = vmatmul.mubr.f32.gmra.mrb[0].mxu0 %v154
      %v1139 = vpop.f32.mrb[0].mxu0
      %v1140 = vadd.f32 %v1063, %v1139
      %v1141 = vpop.f32.mrb[0].mxu0
      %v1142 = vadd.f32 %v1065, %v1141
      %1143 = vmatprep.mubr.f32.mxu0 %v171
      %1144 = vmatmul.mubr.f32.gmra.mrb[0].mxu0 %v170
      %v1145 = vpop.f32.mrb[0].mxu0
      %v1146 = vadd.f32 %v1069, %v1145
      %v1147 = vpop.f32.mrb[0].mxu0
      %v1148 = vadd.f32 %v1071, %v1147
      %1149 = vdwg.mxu0
      %1150 = vmatprep.subr.mxu0 %v561
      %1151 = vmatpush1.msra.mxu0 %v560
      %1152 = vmatprep.subr.mxu0 %v563
      %1153 = vmatpush1.msra.mxu0 %v562
      %1154 = vmatprep.subr.mxu0 %v565
      %1155 = vmatpush1.msra.mxu0 %v564
      %1156 = vmatprep.subr.mxu0 %v567
      %1157 = vmatpush1.msra.mxu0 %v566
      %1158 = vmatprep.subr.mxu0 %v569
      %1159 = vmatpush1.msra.mxu0 %v568
      %1160 = vmatprep.subr.mxu0 %v571
      %1161 = vmatpush1.msra.mxu0 %v570
      %1162 = vmatprep.subr.mxu0 %v573
      %1163 = vmatpush1.msra.mxu0 %v572
      %1164 = vmatprep.subr.mxu0 %v575
      %1165 = vmatpush1.msra.mxu0 %v574
      %1166 = vmatprep.subr.mxu0 %v577
      %1167 = vmatpush1.msra.mxu0 %v576
      %1168 = vmatprep.subr.mxu0 %v579
      %1169 = vmatpush1.msra.mxu0 %v578
      %1170 = vmatprep.subr.mxu0 %v581
      %1171 = vmatpush1.msra.mxu0 %v580
      %1172 = vmatprep.subr.mxu0 %v583
      %1173 = vmatpush1.msra.mxu0 %v582
      %1174 = vmatprep.subr.mxu0 %v585
      %1175 = vmatpush1.msra.mxu0 %v584
      %1176 = vmatprep.subr.mxu0 %v587
      %1177 = vmatpush1.msra.mxu0 %v586
      %1178 = vmatprep.subr.mxu0 %v589
      %1179 = vmatpush1.msra.mxu0 %v588
      %1180 = vmatprep.subr.mxu0 %v591
      %1181 = vmatpush1.msra.mxu0 %v590
      %1182 = vmatprep.subr.mxu0 %v593
      %1183 = vmatpush1.msra.mxu0 %v592
      %1184 = vmatprep.subr.mxu0 %v595
      %1185 = vmatpush1.msra.mxu0 %v594
      %1186 = vmatprep.subr.mxu0 %v597
      %1187 = vmatpush1.msra.mxu0 %v596
      %1188 = vmatprep.subr.mxu0 %v599
      %1189 = vmatpush1.msra.mxu0 %v598
      %1190 = vmatprep.subr.mxu0 %v601
      %1191 = vmatpush1.msra.mxu0 %v600
      %1192 = vmatprep.subr.mxu0 %v603
      %1193 = vmatpush1.msra.mxu0 %v602
      %1194 = vmatprep.subr.mxu0 %v605
      %1195 = vmatpush1.msra.mxu0 %v604
      %1196 = vmatprep.subr.mxu0 %v607
      %1197 = vmatpush1.msra.mxu0 %v606
      %1198 = vmatprep.subr.mxu0 %v609
      %1199 = vmatpush1.msra.mxu0 %v608
      %1200 = vmatprep.subr.mxu0 %v611
      %1201 = vmatpush1.msra.mxu0 %v610
      %1202 = vmatprep.subr.mxu0 %v613
      %1203 = vmatpush1.msra.mxu0 %v612
      %1204 = vmatprep.subr.mxu0 %v615
      %1205 = vmatpush1.msra.mxu0 %v614
      %1206 = vmatprep.subr.mxu0 %v617
      %1207 = vmatpush1.msra.mxu0 %v616
      %1208 = vmatprep.subr.mxu0 %v619
      %1209 = vmatpush1.msra.mxu0 %v618
      %1210 = vmatprep.subr.mxu0 %v621
      %1211 = vmatpush1.msra.mxu0 %v620
      %1212 = vmatprep.subr.mxu0 %v623
      %1213 = vmatpush1.msra.mxu0 %v622
      %1214 = vmatprep.mubr.f32.mxu0 %v157
      %1215 = vmatmul.mubr.f32.gmra.mrb[0].mxu0 %v156
      %v1216 = vpop.f32.mrb[0].mxu0
      %v1217 = vadd.f32 %v1140, %v1216
      %v1218 = vpop.f32.mrb[0].mxu0
      %v1219 = vadd.f32 %v1142, %v1218
      %1220 = vmatprep.mubr.f32.mxu0 %v173
      %1221 = vmatmul.mubr.f32.gmra.mrb[0].mxu0 %v172
      %v1222 = vpop.f32.mrb[0].mxu0
      %v1223 = vadd.f32 %v1146, %v1222
      %v1224 = vpop.f32.mrb[0].mxu0
      %v1225 = vadd.f32 %v1148, %v1224
      %1226 = vdwg.mxu0
      %1227 = vmatprep.subr.mxu0 %v625
      %1228 = vmatpush1.msra.mxu0 %v624
      %1229 = vmatprep.subr.mxu0 %v627
      %1230 = vmatpush1.msra.mxu0 %v626
      %1231 = vmatprep.subr.mxu0 %v629
      %1232 = vmatpush1.msra.mxu0 %v628
      %1233 = vmatprep.subr.mxu0 %v631
      %1234 = vmatpush1.msra.mxu0 %v630
      %1235 = vmatprep.subr.mxu0 %v633
      %1236 = vmatpush1.msra.mxu0 %v632
      %1237 = vmatprep.subr.mxu0 %v635
      %1238 = vmatpush1.msra.mxu0 %v634
      %1239 = vmatprep.subr.mxu0 %v637
      %1240 = vmatpush1.msra.mxu0 %v636
      %1241 = vmatprep.subr.mxu0 %v639
      %1242 = vmatpush1.msra.mxu0 %v638
      %1243 = vmatprep.subr.mxu0 %v641
      %1244 = vmatpush1.msra.mxu0 %v640
      %1245 = vmatprep.subr.mxu0 %v643
      %1246 = vmatpush1.msra.mxu0 %v642
      %1247 = vmatprep.subr.mxu0 %v645
      %1248 = vmatpush1.msra.mxu0 %v644
      %1249 = vmatprep.subr.mxu0 %v647
      %1250 = vmatpush1.msra.mxu0 %v646
      %1251 = vmatprep.subr.mxu0 %v649
      %1252 = vmatpush1.msra.mxu0 %v648
      %1253 = vmatprep.subr.mxu0 %v651
      %1254 = vmatpush1.msra.mxu0 %v650
      %1255 = vmatprep.subr.mxu0 %v653
      %1256 = vmatpush1.msra.mxu0 %v652
      %1257 = vmatprep.subr.mxu0 %v655
      %1258 = vmatpush1.msra.mxu0 %v654
      %1259 = vmatprep.subr.mxu0 %v657
      %1260 = vmatpush1.msra.mxu0 %v656
      %1261 = vmatprep.subr.mxu0 %v659
      %1262 = vmatpush1.msra.mxu0 %v658
      %1263 = vmatprep.subr.mxu0 %v661
      %1264 = vmatpush1.msra.mxu0 %v660
      %1265 = vmatprep.subr.mxu0 %v663
      %1266 = vmatpush1.msra.mxu0 %v662
      %1267 = vmatprep.subr.mxu0 %v665
      %1268 = vmatpush1.msra.mxu0 %v664
      %1269 = vmatprep.subr.mxu0 %v667
      %1270 = vmatpush1.msra.mxu0 %v666
      %1271 = vmatprep.subr.mxu0 %v669
      %1272 = vmatpush1.msra.mxu0 %v668
      %1273 = vmatprep.subr.mxu0 %v671
      %1274 = vmatpush1.msra.mxu0 %v670
      %1275 = vmatprep.subr.mxu0 %v673
      %1276 = vmatpush1.msra.mxu0 %v672
      %1277 = vmatprep.subr.mxu0 %v675
      %1278 = vmatpush1.msra.mxu0 %v674
      %1279 = vmatprep.subr.mxu0 %v677
      %1280 = vmatpush1.msra.mxu0 %v676
      %1281 = vmatprep.subr.mxu0 %v679
      %1282 = vmatpush1.msra.mxu0 %v678
      %1283 = vmatprep.subr.mxu0 %v681
      %1284 = vmatpush1.msra.mxu0 %v680
      %1285 = vmatprep.subr.mxu0 %v683
      %1286 = vmatpush1.msra.mxu0 %v682
      %1287 = vmatprep.subr.mxu0 %v685
      %1288 = vmatpush1.msra.mxu0 %v684
      %1289 = vmatprep.subr.mxu0 %v687
      %1290 = vmatpush1.msra.mxu0 %v686
      %1291 = vmatprep.mubr.f32.mxu0 %v159
      %1292 = vmatmul.mubr.f32.gmra.mrb[0].mxu0 %v158
      %v1293 = vpop.f32.mrb[0].mxu0
      %v1294 = vadd.f32 %v1217, %v1293
      %v1295 = vpop.f32.mrb[0].mxu0
      %v1296 = vadd.f32 %v1219, %v1295
      %1297 = vmatprep.mubr.f32.mxu0 %v175
      %1298 = vmatmul.mubr.f32.gmra.mrb[0].mxu0 %v174
      %v1299 = vpop.f32.mrb[0].mxu0
      %v1300 = vadd.f32 %v1223, %v1299
      %v1301 = vpop.f32.mrb[0].mxu0
      %v1302 = vadd.f32 %v1225, %v1301
      %1303 = vdwg.mxu0
      %v1304 = vadd.f32 %v1294, %v1300
      %v1305 = vrot.slane %v1304, 4
      %v1306 = vadd.f32 %v1304, %v1305
      %v1307 = vrot.slane %v1306, 2
      %v1308 = vadd.f32 %v1306, %v1307
      %v1309 = vrot.slane %v1308, 1
      %v1310 = vadd.f32 %v1308, %v1309
      %v1311 = vadd.f32 %v1296, %v1302
      %v1312 = vrot.slane %v1311, 4
      %v1313 = vadd.f32 %v1311, %v1312
      %v1314 = vrot.slane %v1313, 2
      %v1315 = vadd.f32 %v1313, %v1314
      %v1316 = vrot.slane %v1315, 1
      %v1317 = vadd.f32 %v1315, %v1316
      %v1318 = vrcp.pop 16.0
      %v1319 = vmul.f32 %v1310, %v1318
      %v1320 = vmul.f32 %v1317, %v1318
      %v1321 = vsub.f32 %v1294, %v1319
      %v1322 = vsub.f32 %v1296, %v1320
      %v1323 = vsub.f32 %v1300, %v1319
      %v1324 = vsub.f32 %v1302, %v1320
      %v1325 = vmul.f32 %v1321, %v1321
      %v1326 = vmul.f32 %v1322, %v1322
      %v1327 = vmul.f32 %v1323, %v1323
      %v1328 = vmul.f32 %v1324, %v1324
      %v1329 = vadd.f32 %v1325, %v1327
      %v1330 = vrot.slane %v1329, 4
      %v1331 = vadd.f32 %v1329, %v1330
      %v1332 = vrot.slane %v1331, 2
      %v1333 = vadd.f32 %v1331, %v1332
      %v1334 = vrot.slane %v1333, 1
      %v1335 = vadd.f32 %v1333, %v1334
      %v1336 = vadd.f32 %v1326, %v1328
      %v1337 = vrot.slane %v1336, 4
      %v1338 = vadd.f32 %v1336, %v1337
      %v1339 = vrot.slane %v1338, 2
      %v1340 = vadd.f32 %v1338, %v1339
      %v1341 = vrot.slane %v1340, 1
      %v1342 = vadd.f32 %v1340, %v1341
      %v1343 = vmul.f32 %v1335, %v1318
      %v1344 = vmul.f32 %v1342, %v1318
      %v1345 = vadd.f32 %v1343, 1e-05
      %v1346 = vadd.f32 %v1344, 1e-05
      %v1347 = vrsqrt.pop %v1345
      %v1348 = vrsqrt.pop %v1346
      %v1349 = vmul.f32 %v1321, %v1347
      %v1350 = vmul.f32 %v1322, %v1348
      %v1351 = vmul.f32 %v1323, %v1347
      %v1352 = vmul.f32 %v1324, %v1348
      %vm1353 = vcmp.ge.f32.partialorder %v1349, 0.0
      %vm1354 = vcmp.ge.f32.partialorder %v1350, 0.0
      %vm1355 = vcmp.ge.f32.partialorder %v1351, 0.0
      %vm1356 = vcmp.ge.f32.partialorder %v1352, 0.0
      %v1357 = vmul.f32 %v1349, 0.2
      %v1358 = vmul.f32 %v1350, 0.2
      %v1359 = vmul.f32 %v1351, 0.2
      %v1360 = vmul.f32 %v1352, 0.2
      %v1361 = vsel %vm1353, %v1349, %v1357
      %v1362 = vsel %vm1354, %v1350, %v1358
      %v1363 = vsel %vm1355, %v1351, %v1359
      %v1364 = vsel %vm1356, %v1352, %v1360
      %1365 = vst [vmem:[%s143] sm:$0xff] %v1361
      %1366 = vst [vmem:[%s143 + $0x8] sm:$0xff] %v1362
      %1367 = vst [vmem:[%s143 + $0x10] sm:$0xff] %v1363
      %1368 = vst [vmem:[%s143 + $0x18] sm:$0xff] %v1364
      %p1369 = scmp.lt.s32.totalorder %s13, 1
      %s1370 = scalar_select %p1369, %s13, 1
      %s1371 = smul.addr %s1370, 4
      %s1372 = smul.addr %s1371, 8
      %s1373 = scalar_lea.vmem %s2, %s1372
      // Predicated region
      $region29: #{encoders_intrinsic_forward.11} parent=27 // pred_check
        %p1374 = pneg %p78
      $region30: #{encoders_intrinsic_forward.11} parent=27 // pred_check_branch
        %1376 = sbr.rel (%p1374) target = $region32
      $region31: #{encoders_intrinsic_forward.11} parent=27 // pred_region
        _
      $region32: #{encoders_intrinsic_forward.11} parent=27 // pred_fallthru
        _
    $region28: #{encoders_intrinsic_forward.11} parent=5 // pred_fallthru
      _
    %p1377 = scmp.le.s32.totalorder 2, %s8
    // Predicated region
    $region33: #{encoders_intrinsic_forward.11} parent=5 // pred_check
      %p1378 = pneg %p1377
    $region34: #{encoders_intrinsic_forward.11} parent=5 // pred_check_branch
      %1380 = sbr.rel (%p1378) target = $region36
    $region35: #{encoders_intrinsic_forward.11} parent=5 // pred_region
      %s1381 = ssub.s32 %s8, 2
      // Predicated region
      $region37: #{encoders_intrinsic_forward.11} parent=35 // pred_check
        %p1382 = pneg %p84
      $region38: #{encoders_intrinsic_forward.11} parent=35 // pred_check_branch
        %1384 = sbr.rel (%p1382) target = $region40
      $region39: #{encoders_intrinsic_forward.11} parent=35 // pred_region
        %p1385 = scmp.lt.s32.totalorder %s14, 1
        %s1386 = scalar_select %p1385, %s14, 1
        %s1387 = smul.addr %s1386, 4
        %s1388 = smul.addr %s1387, 8
        %s1389 = scalar_lea.vmem %s2, %s1388
      $region40: #{encoders_intrinsic_forward.11} parent=35 // pred_fallthru
        _
    $region36: #{encoders_intrinsic_forward.11} parent=5 // pred_fallthru
      _
  $region6: #{encoders_intrinsic_forward.11} parent=0 // loop_footer
    %s12 = sadd.s32 1, %s8
  $region7: #{encoders_intrinsic_forward.11} parent=0 // loop_footer_branch
    %7 = sbr.rel target = $region3
  $region8: #{encoders_intrinsic_forward.11} parent=0 // loop_exit
    _

// kernel: encoders_intrinsic_forward.13
$region0: #{encoders_intrinsic_forward.13}
  #allocation0 [shape = 'u32[]', space=smem, size = 0x4, offset = 0x4, fixed_abs, tag = 'smem constant byte address 0x4 - core index']
  #allocation1 [shape = 'u32[144,128]{1,0:T(1,128)}', space=vmem, size = 0x12000, scoped, tag = 'internal scratch']
  %s0 = inlined_call_operand.vmem [shape: f32[2,128], index: 0, kind: input, shape index: {}]
  %s1 = inlined_call_operand.vmem [shape: f32[128,16], index: 1, kind: input, shape index: {}]
  %s2 = inlined_call_operand.vmem [shape: f32[1,16], index: 2, kind: input, shape index: {}]
  %s3 = inlined_call_operand.hbm [shape: f32[2,16], index: 3, kind: output, shape index: {}]
  %s4 = sld [smem:[#allocation0]]
  $region22: #{encoders_intrinsic_forward.13} parent=0
    _
  %s6 = ssub.s32 1, %s4
  %s7 = scalar_select 0, %s6, %s4
  $region1: #{encoders_intrinsic_forward.13} parent=0
    #allocation2 [shape = 'u8[1024]{0}', space=vmem, size = 0x400, scoped, tag = 'output window, operand 0, single buffered']
    #allocation3 [shape = 's32[1]{0}', space=sflag, size = 0x4, scoped, tag = 'scoped memory for encoders_intrinsic_forward.13']
    %8 = vsyncpa [#allocation3], 0
    // Predicated region
    $region2: #{encoders_intrinsic_forward.13} parent=1 // pred_check
      _
    $region3: #{encoders_intrinsic_forward.13} parent=1 // pred_check_branch
      %10 = sbr.rel (0) target = $region5
    $region4: #{encoders_intrinsic_forward.13} parent=1 // pred_region
      _
    $region5: #{encoders_intrinsic_forward.13} parent=1 // pred_fallthru
      _
    // Predicated region
    $region6: #{encoders_intrinsic_forward.13} parent=1 // pred_check
      _
    $region7: #{encoders_intrinsic_forward.13} parent=1 // pred_check_branch
      %12 = sbr.rel (0) target = $region9
    $region8: #{encoders_intrinsic_forward.13} parent=1 // pred_region
      _
    $region9: #{encoders_intrinsic_forward.13} parent=1 // pred_fallthru
      _
    // Predicated region
    $region10: #{encoders_intrinsic_forward.13} parent=1 // pred_check
      _
    $region11: #{encoders_intrinsic_forward.13} parent=1 // pred_check_branch
      %14 = sbr.rel (0) target = $region13
    $region12: #{encoders_intrinsic_forward.13} parent=1 // pred_region
      _
    $region13: #{encoders_intrinsic_forward.13} parent=1 // pred_fallthru
      _
    %v15 = vld [vmem:[%s0] sm:$0x3]
    %v16 = vld [vmem:[%s1] sm:$0xff]
    %v17 = vld [vmem:[%s1 + $0x8] sm:$0xff]
    %v18 = vld [vmem:[%s1 + $0x10] sm:$0xff]
    %v19 = vld [vmem:[%s1 + $0x18] sm:$0xff]
    %v20 = vld [vmem:[%s1 + $0x20] sm:$0xff]
    %v21 = vld [vmem:[%s1 + $0x28] sm:$0xff]
    %v22 = vld [vmem:[%s1 + $0x30] sm:$0xff]
    %v23 = vld [vmem:[%s1 + $0x38] sm:$0xff]
    %v24 = vld [vmem:[%s1 + $0x40] sm:$0xff]
    %v25 = vld [vmem:[%s1 + $0x48] sm:$0xff]
    %v26 = vld [vmem:[%s1 + $0x50] sm:$0xff]
    %v27 = vld [vmem:[%s1 + $0x58] sm:$0xff]
    %v28 = vld [vmem:[%s1 + $0x60] sm:$0xff]
    %v29 = vld [vmem:[%s1 + $0x68] sm:$0xff]
    %v30 = vld [vmem:[%s1 + $0x70] sm:$0xff]
    %v31 = vld [vmem:[%s1 + $0x78] sm:$0xff]
    %v32 = vld [vmem:[%s2] sm:$0x1]
    %v34 = vlaneseq
    %v35 = vshrl.u32 %v34, 7
    %v36 = vsub.s32 0, %v35
    %v37 = vrot.slane %v32, %v36
    %39 = vmatprep.subr.mxu0 0.0
    %40 = vmatpush1.msra.mxu0 %v16
    %41 = vmatprep.subr.mxu0 0.0
    %42 = vmatpush1.msra.mxu0 %v17
    %43 = vmatprep.subr.mxu0 0.0
    %44 = vmatpush1.msra.mxu0 %v18
    %45 = vmatprep.subr.mxu0 0.0
    %46 = vmatpush1.msra.mxu0 %v19
    %47 = vmatprep.subr.mxu0 0.0
    %48 = vmatpush1.msra.mxu0 %v20
    %49 = vmatprep.subr.mxu0 0.0
    %50 = vmatpush1.msra.mxu0 %v21
    %51 = vmatprep.subr.mxu0 0.0
    %52 = vmatpush1.msra.mxu0 %v22
    %53 = vmatprep.subr.mxu0 0.0
    %54 = vmatpush1.msra.mxu0 %v23
    %55 = vmatprep.subr.mxu0 0.0
    %56 = vmatpush1.msra.mxu0 %v24
    %57 = vmatprep.subr.mxu0 0.0
    %58 = vmatpush1.msra.mxu0 %v25
    %59 = vmatprep.subr.mxu0 0.0
    %60 = vmatpush1.msra.mxu0 %v26
    %61 = vmatprep.subr.mxu0 0.0
    %62 = vmatpush1.msra.mxu0 %v27
    %63 = vmatprep.subr.mxu0 0.0
    %64 = vmatpush1.msra.mxu0 %v28
    %65 = vmatprep.subr.mxu0 0.0
    %66 = vmatpush1.msra.mxu0 %v29
    %67 = vmatprep.subr.mxu0 0.0
    %68 = vmatpush1.msra.mxu0 %v30
    %69 = vmatprep.subr.mxu0 0.0
    %70 = vmatpush1.msra.mxu0 %v31
    %71 = vmatprep.subr.mxu0 0.0
    %72 = vmatpush1.msra.mxu0 0.0
    %73 = vmatprep.subr.mxu0 0.0
    %74 = vmatpush1.msra.mxu0 0.0
    %75 = vmatprep.subr.mxu0 0.0
    %76 = vmatpush1.msra.mxu0 0.0
    %77 = vmatprep.subr.mxu0 0.0
    %78 = vmatpush1.msra.mxu0 0.0
    %79 = vmatprep.subr.mxu0 0.0
    %80 = vmatpush1.msra.mxu0 0.0
    %81 = vmatprep.subr.mxu0 0.0
    %82 = vmatpush1.msra.mxu0 0.0
    %83 = vmatprep.subr.mxu0 0.0
    %84 = vmatpush1.msra.mxu0 0.0
    %85 = vmatprep.subr.mxu0 0.0
    %86 = vmatpush1.msra.mxu0 0.0
    %87 = vmatprep.subr.mxu0 0.0
    %88 = vmatpush1.msra.mxu0 0.0
    %89 = vmatprep.subr.mxu0 0.0
    %90 = vmatpush1.msra.mxu0 0.0
    %91 = vmatprep.subr.mxu0 0.0
    %92 = vmatpush1.msra.mxu0 0.0
    %93 = vmatprep.subr.mxu0 0.0
    %94 = vmatpush1.msra.mxu0 0.0
    %95 = vmatprep.subr.mxu0 0.0
    %96 = vmatpush1.msra.mxu0 0.0
    %97 = vmatprep.subr.mxu0 0.0
    %98 = vmatpush1.msra.mxu0 0.0
    %99 = vmatprep.subr.mxu0 0.0
    %100 = vmatpush1.msra.mxu0 0.0
    %101 = vmatprep.subr.mxu0 0.0
    %102 = vmatpush1.msra.mxu0 0.0
    %103 = vmatprep.mubr.f32.mxu0 0.0
    %104 = vmatmul.mubr.f32.gmra.mrb[0].mxu0 %v15
    %v105 = vpop.f32.mrb[0].mxu0
    %v106 = vadd.f32 %v37, %v105
    %v107 = vpop.f32.mrb[0].mxu0
    %108 = vdwg.mxu0
    %v109 = vsub.f32 0.0, %v106
    %v110 = vmul.f32 %v109, 1.442695
    %v111 = vpow.pop %v110
    %v112 = vadd.f32 %v111, 1.0
    %v113 = vrcp.pop %v112
    %v114 = vmul.f32 1.0, %v113
    %vm115 = vcmask 123904
    %116 = vst.msk [vmem:[#allocation2] sm:$0x3] %vm115, %v114
    // Predicated region
    $region14: #{encoders_intrinsic_forward.13} parent=1 // pred_check
      _
    $region15: #{encoders_intrinsic_forward.13} parent=1 // pred_check_branch
      %118 = sbr.rel (0) target = $region17
    $region16: #{encoders_intrinsic_forward.13} parent=1 // pred_region
      %s120 = ssub.s32 32, 32
      %121 = vsyncadd [#allocation3], %s120
      %s123 = sshll.u32 [#allocation2], 4
      %s124 = int_to_ptr.vmem [resolvable:$true] %s123
      %126 = dma.vmem_to_hbm [thread:$0]  %s124, 32, %s3, [#allocation3]
    $region17: #{encoders_intrinsic_forward.13} parent=1 // pred_fallthru
      _
    // Predicated region
    $region18: #{encoders_intrinsic_forward.13} parent=1 // pred_check
      _
    $region19: #{encoders_intrinsic_forward.13} parent=1 // pred_check_branch
      %128 = sbr.rel (0) target = $region21
    $region20: #{encoders_intrinsic_forward.13} parent=1 // pred_region
      %129 = dma.done [#allocation3], 32
    $region21: #{encoders_intrinsic_forward.13} parent=1 // pred_fallthru
      _
    %130 = vsyncpa [#allocation3], 1

// kernel: encoders_intrinsic_forward.12
$region0: #{encoders_intrinsic_forward.12}
  #allocation0 [shape = 'u32[]', space=smem, size = 0x4, offset = 0x4, fixed_abs, tag = 'smem constant byte address 0x4 - core index']
  #allocation1 [shape = 'u32[144,128]{1,0:T(1,128)}', space=vmem, size = 0x12000, scoped, tag = 'internal scratch']
  %s0 = inlined_call_operand.vmem [shape: f32[2,4096], index: 0, kind: input, shape index: {}]
  %s1 = inlined_call_operand.vmem [shape: f32[4096,128], index: 1, kind: input, shape index: {}]
  %s2 = inlined_call_operand.vmem [shape: f32[1,128], index: 2, kind: input, shape index: {}]
  %s3 = inlined_call_operand.vmem [shape: f32[2,128], index: 3, kind: output, shape index: {}]
  %s4 = sld [smem:[#allocation0]]
  $region22: #{encoders_intrinsic_forward.12} parent=0
    _
  %s6 = ssub.s32 1, %s4
  %s7 = scalar_select 0, %s6, %s4
  // Predicated region
  $region2: #{encoders_intrinsic_forward.12} parent=0 // pred_check
    _
  $region3: #{encoders_intrinsic_forward.12} parent=0 // pred_check_branch
    %9 = sbr.rel (0) target = $region5
  $region4: #{encoders_intrinsic_forward.12} parent=0 // pred_region
    _
  $region5: #{encoders_intrinsic_forward.12} parent=0 // pred_fallthru
    _
  // Predicated region
  $region6: #{encoders_intrinsic_forward.12} parent=0 // pred_check
    _
  $region7: #{encoders_intrinsic_forward.12} parent=0 // pred_check_branch
    %11 = sbr.rel (0) target = $region9
  $region8: #{encoders_intrinsic_forward.12} parent=0 // pred_region
    _
  $region9: #{encoders_intrinsic_forward.12} parent=0 // pred_fallthru
    _
  // Predicated region
  $region10: #{encoders_intrinsic_forward.12} parent=0 // pred_check
    _
  $region11: #{encoders_intrinsic_forward.12} parent=0 // pred_check_branch
    %13 = sbr.rel (0) target = $region13
  $region12: #{encoders_intrinsic_forward.12} parent=0 // pred_region
    _
  $region13: #{encoders_intrinsic_forward.12} parent=0 // pred_fallthru
    _
  %v14 = vld [vmem:[%s0] sm:$0xff]
  %v15 = vld [vmem:[%s0 + $0x8] sm:$0xff]
  %v16 = vld [vmem:[%s0 + $0x10] sm:$0xff]
  %v17 = vld [vmem:[%s0 + $0x18] sm:$0xff]
  %v18 = vld [vmem:[%s0 + $0x20] sm:$0xff]
  %v19 = vld [vmem:[%s0 + $0x28] sm:$0xff]
  %v20 = vld [vmem:[%s0 + $0x30] sm:$0xff]
  %v21 = vld [vmem:[%s0 + $0x38] sm:$0xff]
  %v22 = vld [vmem:[%s1] sm:$0xff]
  %v23 = vld [vmem:[%s1 + $0x8] sm:$0xff]
  %v24 = vld [vmem:[%s1 + $0x10] sm:$0xff]
  %v25 = vld [vmem:[%s1 + $0x18] sm:$0xff]
  %v26 = vld [vmem:[%s1 + $0x20] sm:$0xff]
  %v27 = vld [vmem:[%s1 + $0x28] sm:$0xff]
  %v28 = vld [vmem:[%s1 + $0x30] sm:$0xff]
  %v29 = vld [vmem:[%s1 + $0x38] sm:$0xff]
  %v30 = vld [vmem:[%s1 + $0x40] sm:$0xff]
  %v31 = vld [vmem:[%s1 + $0x48] sm:$0xff]
  %v32 = vld [vmem:[%s1 + $0x50] sm:$0xff]
  %v33 = vld [vmem:[%s1 + $0x58] sm:$0xff]
  %v34 = vld [vmem:[%s1 + $0x60] sm:$0xff]
  %v35 = vld [vmem:[%s1 + $0x68] sm:$0xff]
  %v36 = vld [vmem:[%s1 + $0x70] sm:$0xff]
  %v37 = vld [vmem:[%s1 + $0x78] sm:$0xff]
  %v38 = vld [vmem:[%s1 + $0x80] sm:$0xff]
  %v39 = vld [vmem:[%s1 + $0x88] sm:$0xff]
  %v40 = vld [vmem:[%s1 + $0x90] sm:$0xff]
  %v41 = vld [vmem:[%s1 + $0x98] sm:$0xff]
  %v42 = vld [vmem:[%s1 + $0xa0] sm:$0xff]
  %v43 = vld [vmem:[%s1 + $0xa8] sm:$0xff]
  %v44 = vld [vmem:[%s1 + $0xb0] sm:$0xff]
  %v45 = vld [vmem:[%s1 + $0xb8] sm:$0xff]
  %v46 = vld [vmem:[%s1 + $0xc0] sm:$0xff]
  %v47 = vld [vmem:[%s1 + $0xc8] sm:$0xff]
  %v48 = vld [vmem:[%s1 + $0xd0] sm:$0xff]
  %v49 = vld [vmem:[%s1 + $0xd8] sm:$0xff]
  %v50 = vld [vmem:[%s1 + $0xe0] sm:$0xff]
  %v51 = vld [vmem:[%s1 + $0xe8] sm:$0xff]
  %v52 = vld [vmem:[%s1 + $0xf0] sm:$0xff]
  %v53 = vld [vmem:[%s1 + $0xf8] sm:$0xff]
  %v54 = vld [vmem:[%s1 + $0x100] sm:$0xff]
  %v55 = vld [vmem:[%s1 + $0x108] sm:$0xff]
  %v56 = vld [vmem:[%s1 + $0x110] sm:$0xff]
  %v57 = vld [vmem:[%s1 + $0x118] sm:$0xff]
  %v58 = vld [vmem:[%s1 + $0x120] sm:$0xff]
  %v59 = vld [vmem:[%s1 + $0x128] sm:$0xff]
  %v60 = vld [vmem:[%s1 + $0x130] sm:$0xff]
  %v61 = vld [vmem:[%s1 + $0x138] sm:$0xff]
  %v62 = vld [vmem:[%s1 + $0x140] sm:$0xff]
  %v63 = vld [vmem:[%s1 + $0x148] sm:$0xff]
  %v64 = vld [vmem:[%s1 + $0x150] sm:$0xff]
  %v65 = vld [vmem:[%s1 + $0x158] sm:$0xff]
  %v66 = vld [vmem:[%s1 + $0x160] sm:$0xff]
  %v67 = vld [vmem:[%s1 + $0x168] sm:$0xff]
  %v68 = vld [vmem:[%s1 + $0x170] sm:$0xff]
  %v69 = vld [vmem:[%s1 + $0x178] sm:$0xff]
  %v70 = vld [vmem:[%s1 + $0x180] sm:$0xff]
  %v71 = vld [vmem:[%s1 + $0x188] sm:$0xff]
  %v72 = vld [vmem:[%s1 + $0x190] sm:$0xff]
  %v73 = vld [vmem:[%s1 + $0x198] sm:$0xff]
  %v74 = vld [vmem:[%s1 + $0x1a0] sm:$0xff]
  %v75 = vld [vmem:[%s1 + $0x1a8] sm:$0xff]
  %v76 = vld [vmem:[%s1 + $0x1b0] sm:$0xff]
  %v77 = vld [vmem:[%s1 + $0x1b8] sm:$0xff]
  %v78 = vld [vmem:[%s1 + $0x1c0] sm:$0xff]
  %v79 = vld [vmem:[%s1 + $0x1c8] sm:$0xff]
  %v80 = vld [vmem:[%s1 + $0x1d0] sm:$0xff]
  %v81 = vld [vmem:[%s1 + $0x1d8] sm:$0xff]
  %v82 = vld [vmem:[%s1 + $0x1e0] sm:$0xff]
  %v83 = vld [vmem:[%s1 + $0x1e8] sm:$0xff]
  %v84 = vld [vmem:[%s1 + $0x1f0] sm:$0xff]
  %v85 = vld [vmem:[%s1 + $0x1f8] sm:$0xff]
  %v86 = vld [vmem:[%s1 + $0x200] sm:$0xff]
  %v87 = vld [vmem:[%s1 + $0x208] sm:$0xff]
  %v88 = vld [vmem:[%s1 + $0x210] sm:$0xff]
  %v89 = vld [vmem:[%s1 + $0x218] sm:$0xff]
  %v90 = vld [vmem:[%s1 + $0x220] sm:$0xff]
  %v91 = vld [vmem:[%s1 + $0x228] sm:$0xff]
  %v92 = vld [vmem:[%s1 + $0x230] sm:$0xff]
  %v93 = vld [vmem:[%s1 + $0x238] sm:$0xff]
  %v94 = vld [vmem:[%s1 + $0x240] sm:$0xff]
  %v95 = vld [vmem:[%s1 + $0x248] sm:$0xff]
  %v96 = vld [vmem:[%s1 + $0x250] sm:$0xff]
  %v97 = vld [vmem:[%s1 + $0x258] sm:$0xff]
  %v98 = vld [vmem:[%s1 + $0x260] sm:$0xff]
  %v99 = vld [vmem:[%s1 + $0x268] sm:$0xff]
  %v100 = vld [vmem:[%s1 + $0x270] sm:$0xff]
  %v101 = vld [vmem:[%s1 + $0x278] sm:$0xff]
  %v102 = vld [vmem:[%s1 + $0x280] sm:$0xff]
  %v103 = vld [vmem:[%s1 + $0x288] sm:$0xff]
  %v104 = vld [vmem:[%s1 + $0x290] sm:$0xff]
  %v105 = vld [vmem:[%s1 + $0x298] sm:$0xff]
  %v106 = vld [vmem:[%s1 + $0x2a0] sm:$0xff]
  %v107 = vld [vmem:[%s1 + $0x2a8] sm:$0xff]
  %v108 = vld [vmem:[%s1 + $0x2b0] sm:$0xff]
  %v109 = vld [vmem:[%s1 + $0x2b8] sm:$0xff]
  %v110 = vld [vmem:[%s1 + $0x2c0] sm:$0xff]
  %v111 = vld [vmem:[%s1 + $0x2c8] sm:$0xff]
  %v112 = vld [vmem:[%s1 + $0x2d0] sm:$0xff]
  %v113 = vld [vmem:[%s1 + $0x2d8] sm:$0xff]
  %v114 = vld [vmem:[%s1 + $0x2e0] sm:$0xff]
  %v115 = vld [vmem:[%s1 + $0x2e8] sm:$0xff]
  %v116 = vld [vmem:[%s1 + $0x2f0] sm:$0xff]
  %v117 = vld [vmem:[%s1 + $0x2f8] sm:$0xff]
  %v118 = vld [vmem:[%s1 + $0x300] sm:$0xff]
  %v119 = vld [vmem:[%s1 + $0x308] sm:$0xff]
  %v120 = vld [vmem:[%s1 + $0x310] sm:$0xff]
  %v121 = vld [vmem:[%s1 + $0x318] sm:$0xff]
  %v122 = vld [vmem:[%s1 + $0x320] sm:$0xff]
  %v123 = vld [vmem:[%s1 + $0x328] sm:$0xff]
  %v124 = vld [vmem:[%s1 + $0x330] sm:$0xff]
  %v125 = vld [vmem:[%s1 + $0x338] sm:$0xff]
  %v126 = vld [vmem:[%s1 + $0x340] sm:$0xff]
  %v127 = vld [vmem:[%s1 + $0x348] sm:$0xff]
  %v128 = vld [vmem:[%s1 + $0x350] sm:$0xff]
  %v129 = vld [vmem:[%s1 + $0x358] sm:$0xff]
  %v130 = vld [vmem:[%s1 + $0x360] sm:$0xff]
  %v131 = vld [vmem:[%s1 + $0x368] sm:$0xff]
  %v132 = vld [vmem:[%s1 + $0x370] sm:$0xff]
  %v133 = vld [vmem:[%s1 + $0x378] sm:$0xff]
  %v134 = vld [vmem:[%s1 + $0x380] sm:$0xff]
  %v135 = vld [vmem:[%s1 + $0x388] sm:$0xff]
  %v136 = vld [vmem:[%s1 + $0x390] sm:$0xff]
  %v137 = vld [vmem:[%s1 + $0x398] sm:$0xff]
  %v138 = vld [vmem:[%s1 + $0x3a0] sm:$0xff]
  %v139 = vld [vmem:[%s1 + $0x3a8] sm:$0xff]
  %v140 = vld [vmem:[%s1 + $0x3b0] sm:$0xff]
  %v141 = vld [vmem:[%s1 + $0x3b8] sm:$0xff]
  %v142 = vld [vmem:[%s1 + $0x3c0] sm:$0xff]
  %v143 = vld [vmem:[%s1 + $0x3c8] sm:$0xff]
  %v144 = vld [vmem:[%s1 + $0x3d0] sm:$0xff]
  %v145 = vld [vmem:[%s1 + $0x3d8] sm:$0xff]
  %v146 = vld [vmem:[%s1 + $0x3e0] sm:$0xff]
  %v147 = vld [vmem:[%s1 + $0x3e8] sm:$0xff]
  %v148 = vld [vmem:[%s1 + $0x3f0] sm:$0xff]
  %v149 = vld [vmem:[%s1 + $0x3f8] sm:$0xff]
  %v150 = vld [vmem:[%s1 + $0x400] sm:$0xff]
  %v151 = vld [vmem:[%s1 + $0x408] sm:$0xff]
  %v152 = vld [vmem:[%s1 + $0x410] sm:$0xff]
  %v153 = vld [vmem:[%s1 + $0x418] sm:$0xff]
  %v154 = vld [vmem:[%s1 + $0x420] sm:$0xff]
  %v155 = vld [vmem:[%s1 + $0x428] sm:$0xff]
  %v156 = vld [vmem:[%s1 + $0x430] sm:$0xff]
  %v157 = vld [vmem:[%s1 + $0x438] sm:$0xff]
  %v158 = vld [vmem:[%s1 + $0x440] sm:$0xff]
  %v159 = vld [vmem:[%s1 + $0x448] sm:$0xff]
  %v160 = vld [vmem:[%s1 + $0x450] sm:$0xff]
  %v161 = vld [vmem:[%s1 + $0x458] sm:$0xff]
  %v162 = vld [vmem:[%s1 + $0x460] sm:$0xff]
  %v163 = vld [vmem:[%s1 + $0x468] sm:$0xff]
  %v164 = vld [vmem:[%s1 + $0x470] sm:$0xff]
  %v165 = vld [vmem:[%s1 + $0x478] sm:$0xff]
  %v166 = vld [vmem:[%s1 + $0x480] sm:$0xff]
  %v167 = vld [vmem:[%s1 + $0x488] sm:$0xff]
  %v168 = vld [vmem:[%s1 + $0x490] sm:$0xff]
  %v169 = vld [vmem:[%s1 + $0x498] sm:$0xff]
  %v170 = vld [vmem:[%s1 + $0x4a0] sm:$0xff]
  %v171 = vld [vmem:[%s1 + $0x4a8] sm:$0xff]
  %v172 = vld [vmem:[%s1 + $0x4b0] sm:$0xff]
  %v173 = vld [vmem:[%s1 + $0x4b8] sm:$0xff]
  %v174 = vld [vmem:[%s1 + $0x4c0] sm:$0xff]
  %v175 = vld [vmem:[%s1 + $0x4c8] sm:$0xff]
  %v176 = vld [vmem:[%s1 + $0x4d0] sm:$0xff]
  %v177 = vld [vmem:[%s1 + $0x4d8] sm:$0xff]
  %v178 = vld [vmem:[%s1 + $0x4e0] sm:$0xff]
  %v179 = vld [vmem:[%s1 + $0x4e8] sm:$0xff]
  %v180 = vld [vmem:[%s1 + $0x4f0] sm:$0xff]
  %v181 = vld [vmem:[%s1 + $0x4f8] sm:$0xff]
  %v182 = vld [vmem:[%s1 + $0x500] sm:$0xff]
  %v183 = vld [vmem:[%s1 + $0x508] sm:$0xff]
  %v184 = vld [vmem:[%s1 + $0x510] sm:$0xff]
  %v185 = vld [vmem:[%s1 + $0x518] sm:$0xff]
  %v186 = vld [vmem:[%s1 + $0x520] sm:$0xff]
  %v187 = vld [vmem:[%s1 + $0x528] sm:$0xff]
  %v188 = vld [vmem:[%s1 + $0x530] sm:$0xff]
  %v189 = vld [vmem:[%s1 + $0x538] sm:$0xff]
  %v190 = vld [vmem:[%s1 + $0x540] sm:$0xff]
  %v191 = vld [vmem:[%s1 + $0x548] sm:$0xff]
  %v192 = vld [vmem:[%s1 + $0x550] sm:$0xff]
  %v193 = vld [vmem:[%s1 + $0x558] sm:$0xff]
  %v194 = vld [vmem:[%s1 + $0x560] sm:$0xff]
  %v195 = vld [vmem:[%s1 + $0x568] sm:$0xff]
  %v196 = vld [vmem:[%s1 + $0x570] sm:$0xff]
  %v197 = vld [vmem:[%s1 + $0x578] sm:$0xff]
  %v198 = vld [vmem:[%s1 + $0x580] sm:$0xff]
  %v199 = vld [vmem:[%s1 + $0x588] sm:$0xff]
  %v200 = vld [vmem:[%s1 + $0x590] sm:$0xff]
  %v201 = vld [vmem:[%s1 + $0x598] sm:$0xff]
  %v202 = vld [vmem:[%s1 + $0x5a0] sm:$0xff]
  %v203 = vld [vmem:[%s1 + $0x5a8] sm:$0xff]
  %v204 = vld [vmem:[%s1 + $0x5b0] sm:$0xff]
  %v205 = vld [vmem:[%s1 + $0x5b8] sm:$0xff]
  %v206 = vld [vmem:[%s1 + $0x5c0] sm:$0xff]
  %v207 = vld [vmem:[%s1 + $0x5c8] sm:$0xff]
  %v208 = vld [vmem:[%s1 + $0x5d0] sm:$0xff]
  %v209 = vld [vmem:[%s1 + $0x5d8] sm:$0xff]
  %v210 = vld [vmem:[%s1 + $0x5e0] sm:$0xff]
  %v211 = vld [vmem:[%s1 + $0x5e8] sm:$0xff]
  %v212 = vld [vmem:[%s1 + $0x5f0] sm:$0xff]
  %v213 = vld [vmem:[%s1 + $0x5f8] sm:$0xff]
  %v214 = vld [vmem:[%s1 + $0x600] sm:$0xff]
  %v215 = vld [vmem:[%s1 + $0x608] sm:$0xff]
  %v216 = vld [vmem:[%s1 + $0x610] sm:$0xff]
  %v217 = vld [vmem:[%s1 + $0x618] sm:$0xff]
  %v218 = vld [vmem:[%s1 + $0x620] sm:$0xff]
  %v219 = vld [vmem:[%s1 + $0x628] sm:$0xff]
  %v220 = vld [vmem:[%s1 + $0x630] sm:$0xff]
  %v221 = vld [vmem:[%s1 + $0x638] sm:$0xff]
  %v222 = vld [vmem:[%s1 + $0x640] sm:$0xff]
  %v223 = vld [vmem:[%s1 + $0x648] sm:$0xff]
  %v224 = vld [vmem:[%s1 + $0x650] sm:$0xff]
  %v225 = vld [vmem:[%s1 + $0x658] sm:$0xff]
  %v226 = vld [vmem:[%s1 + $0x660] sm:$0xff]
  %v227 = vld [vmem:[%s1 + $0x668] sm:$0xff]
  %v228 = vld [vmem:[%s1 + $0x670] sm:$0xff]
  %v229 = vld [vmem:[%s1 + $0x678] sm:$0xff]
  %v230 = vld [vmem:[%s1 + $0x680] sm:$0xff]
  %v231 = vld [vmem:[%s1 + $0x688] sm:$0xff]
  %v232 = vld [vmem:[%s1 + $0x690] sm:$0xff]
  %v233 = vld [vmem:[%s1 + $0x698] sm:$0xff]
  %v234 = vld [vmem:[%s1 + $0x6a0] sm:$0xff]
  %v235 = vld [vmem:[%s1 + $0x6a8] sm:$0xff]
  %v236 = vld [vmem:[%s1 + $0x6b0] sm:$0xff]
  %v237 = vld [vmem:[%s1 + $0x6b8] sm:$0xff]
  %v238 = vld [vmem:[%s1 + $0x6c0] sm:$0xff]
  %v239 = vld [vmem:[%s1 + $0x6c8] sm:$0xff]
  %v240 = vld [vmem:[%s1 + $0x6d0] sm:$0xff]
  %v241 = vld [vmem:[%s1 + $0x6d8] sm:$0xff]
  %v242 = vld [vmem:[%s1 + $0x6e0] sm:$0xff]
  %v243 = vld [vmem:[%s1 + $0x6e8] sm:$0xff]
  %v244 = vld [vmem:[%s1 + $0x6f0] sm:$0xff]
  %v245 = vld [vmem:[%s1 + $0x6f8] sm:$0xff]
  %v246 = vld [vmem:[%s1 + $0x700] sm:$0xff]
  %v247 = vld [vmem:[%s1 + $0x708] sm:$0xff]
  %v248 = vld [vmem:[%s1 + $0x710] sm:$0xff]
  %v249 = vld [vmem:[%s1 + $0x718] sm:$0xff]
  %v250 = vld [vmem:[%s1 + $0x720] sm:$0xff]
  %v251 = vld [vmem:[%s1 + $0x728] sm:$0xff]
  %v252 = vld [vmem:[%s1 + $0x730] sm:$0xff]
  %v253 = vld [vmem:[%s1 + $0x738] sm:$0xff]
  %v254 = vld [vmem:[%s1 + $0x740] sm:$0xff]
  %v255 = vld [vmem:[%s1 + $0x748] sm:$0xff]
  %v256 = vld [vmem:[%s1 + $0x750] sm:$0xff]
  %v257 = vld [vmem:[%s1 + $0x758] sm:$0xff]
  %v258 = vld [vmem:[%s1 + $0x760] sm:$0xff]
  %v259 = vld [vmem:[%s1 + $0x768] sm:$0xff]
  %v260 = vld [vmem:[%s1 + $0x770] sm:$0xff]
  %v261 = vld [vmem:[%s1 + $0x778] sm:$0xff]
  %v262 = vld [vmem:[%s1 + $0x780] sm:$0xff]
  %v263 = vld [vmem:[%s1 + $0x788] sm:$0xff]
  %v264 = vld [vmem:[%s1 + $0x790] sm:$0xff]
  %v265 = vld [vmem:[%s1 + $0x798] sm:$0xff]
  %v266 = vld [vmem:[%s1 + $0x7a0] sm:$0xff]
  %v267 = vld [vmem:[%s1 + $0x7a8] sm:$0xff]
  %v268 = vld [vmem:[%s1 + $0x7b0] sm:$0xff]
  %v269 = vld [vmem:[%s1 + $0x7b8] sm:$0xff]
  %v270 = vld [vmem:[%s1 + $0x7c0] sm:$0xff]
  %v271 = vld [vmem:[%s1 + $0x7c8] sm:$0xff]
  %v272 = vld [vmem:[%s1 + $0x7d0] sm:$0xff]
  %v273 = vld [vmem:[%s1 + $0x7d8] sm:$0xff]
  %v274 = vld [vmem:[%s1 + $0x7e0] sm:$0xff]
  %v275 = vld [vmem:[%s1 + $0x7e8] sm:$0xff]
  %v276 = vld [vmem:[%s1 + $0x7f0] sm:$0xff]
  %v277 = vld [vmem:[%s1 + $0x7f8] sm:$0xff]
  %v278 = vld [vmem:[%s1 + $0x800] sm:$0xff]
  %v279 = vld [vmem:[%s1 + $0x808] sm:$0xff]
  %v280 = vld [vmem:[%s1 + $0x810] sm:$0xff]
  %v281 = vld [vmem:[%s1 + $0x818] sm:$0xff]
  %v282 = vld [vmem:[%s1 + $0x820] sm:$0xff]
  %v283 = vld [vmem:[%s1 + $0x828] sm:$0xff]
  %v284 = vld [vmem:[%s1 + $0x830] sm:$0xff]
  %v285 = vld [vmem:[%s1 + $0x838] sm:$0xff]
  %v286 = vld [vmem:[%s1 + $0x840] sm:$0xff]
  %v287 = vld [vmem:[%s1 + $0x848] sm:$0xff]
  %v288 = vld [vmem:[%s1 + $0x850] sm:$0xff]
  %v289 = vld [vmem:[%s1 + $0x858] sm:$0xff]
  %v290 = vld [vmem:[%s1 + $0x860] sm:$0xff]
  %v291 = vld [vmem:[%s1 + $0x868] sm:$0xff]
  %v292 = vld [vmem:[%s1 + $0x870] sm:$0xff]
  %v293 = vld [vmem:[%s1 + $0x878] sm:$0xff]
  %v294 = vld [vmem:[%s1 + $0x880] sm:$0xff]
  %v295 = vld [vmem:[%s1 + $0x888] sm:$0xff]
  %v296 = vld [vmem:[%s1 + $0x890] sm:$0xff]
  %v297 = vld [vmem:[%s1 + $0x898] sm:$0xff]
  %v298 = vld [vmem:[%s1 + $0x8a0] sm:$0xff]
  %v299 = vld [vmem:[%s1 + $0x8a8] sm:$0xff]
  %v300 = vld [vmem:[%s1 + $0x8b0] sm:$0xff]
  %v301 = vld [vmem:[%s1 + $0x8b8] sm:$0xff]
  %v302 = vld [vmem:[%s1 + $0x8c0] sm:$0xff]
  %v303 = vld [vmem:[%s1 + $0x8c8] sm:$0xff]
  %v304 = vld [vmem:[%s1 + $0x8d0] sm:$0xff]
  %v305 = vld [vmem:[%s1 + $0x8d8] sm:$0xff]
  %v306 = vld [vmem:[%s1 + $0x8e0] sm:$0xff]
  %v307 = vld [vmem:[%s1 + $0x8e8] sm:$0xff]
  %v308 = vld [vmem:[%s1 + $0x8f0] sm:$0xff]
  %v309 = vld [vmem:[%s1 + $0x8f8] sm:$0xff]
  %v310 = vld [vmem:[%s1 + $0x900] sm:$0xff]
  %v311 = vld [vmem:[%s1 + $0x908] sm:$0xff]
  %v312 = vld [vmem:[%s1 + $0x910] sm:$0xff]
  %v313 = vld [vmem:[%s1 + $0x918] sm:$0xff]
  %v314 = vld [vmem:[%s1 + $0x920] sm:$0xff]
  %v315 = vld [vmem:[%s1 + $0x928] sm:$0xff]
  %v316 = vld [vmem:[%s1 + $0x930] sm:$0xff]
  %v317 = vld [vmem:[%s1 + $0x938] sm:$0xff]
  %v318 = vld [vmem:[%s1 + $0x940] sm:$0xff]
  %v319 = vld [vmem:[%s1 + $0x948] sm:$0xff]
  %v320 = vld [vmem:[%s1 + $0x950] sm:$0xff]
  %v321 = vld [vmem:[%s1 + $0x958] sm:$0xff]
  %v322 = vld [vmem:[%s1 + $0x960] sm:$0xff]
  %v323 = vld [vmem:[%s1 + $0x968] sm:$0xff]
  %v324 = vld [vmem:[%s1 + $0x970] sm:$0xff]
  %v325 = vld [vmem:[%s1 + $0x978] sm:$0xff]
  %v326 = vld [vmem:[%s1 + $0x980] sm:$0xff]
  %v327 = vld [vmem:[%s1 + $0x988] sm:$0xff]
  %v328 = vld [vmem:[%s1 + $0x990] sm:$0xff]
  %v329 = vld [vmem:[%s1 + $0x998] sm:$0xff]
  %v330 = vld [vmem:[%s1 + $0x9a0] sm:$0xff]
  %v331 = vld [vmem:[%s1 + $0x9a8] sm:$0xff]
  %v332 = vld [vmem:[%s1 + $0x9b0] sm:$0xff]
  %v333 = vld [vmem:[%s1 + $0x9b8] sm:$0xff]
  %v334 = vld [vmem:[%s1 + $0x9c0] sm:$0xff]
  %v335 = vld [vmem:[%s1 + $0x9c8] sm:$0xff]
  %v336 = vld [vmem:[%s1 + $0x9d0] sm:$0xff]
  %v337 = vld [vmem:[%s1 + $0x9d8] sm:$0xff]
  %v338 = vld [vmem:[%s1 + $0x9e0] sm:$0xff]
  %v339 = vld [vmem:[%s1 + $0x9e8] sm:$0xff]
  %v340 = vld [vmem:[%s1 + $0x9f0] sm:$0xff]
  %v341 = vld [vmem:[%s1 + $0x9f8] sm:$0xff]
  %v342 = vld [vmem:[%s1 + $0xa00] sm:$0xff]
  %v343 = vld [vmem:[%s1 + $0xa08] sm:$0xff]
  %v344 = vld [vmem:[%s1 + $0xa10] sm:$0xff]
  %v345 = vld [vmem:[%s1 + $0xa18] sm:$0xff]
  %v346 = vld [vmem:[%s1 + $0xa20] sm:$0xff]
  %v347 = vld [vmem:[%s1 + $0xa28] sm:$0xff]
  %v348 = vld [vmem:[%s1 + $0xa30] sm:$0xff]
  %v349 = vld [vmem:[%s1 + $0xa38] sm:$0xff]
  %v350 = vld [vmem:[%s1 + $0xa40] sm:$0xff]
  %v351 = vld [vmem:[%s1 + $0xa48] sm:$0xff]
  %v352 = vld [vmem:[%s1 + $0xa50] sm:$0xff]
  %v353 = vld [vmem:[%s1 + $0xa58] sm:$0xff]
  %v354 = vld [vmem:[%s1 + $0xa60] sm:$0xff]
  %v355 = vld [vmem:[%s1 + $0xa68] sm:$0xff]
  %v356 = vld [vmem:[%s1 + $0xa70] sm:$0xff]
  %v357 = vld [vmem:[%s1 + $0xa78] sm:$0xff]
  %v358 = vld [vmem:[%s1 + $0xa80] sm:$0xff]
  %v359 = vld [vmem:[%s1 + $0xa88] sm:$0xff]
  %v360 = vld [vmem:[%s1 + $0xa90] sm:$0xff]
  %v361 = vld [vmem:[%s1 + $0xa98] sm:$0xff]
  %v362 = vld [vmem:[%s1 + $0xaa0] sm:$0xff]
  %v363 = vld [vmem:[%s1 + $0xaa8] sm:$0xff]
  %v364 = vld [vmem:[%s1 + $0xab0] sm:$0xff]
  %v365 = vld [vmem:[%s1 + $0xab8] sm:$0xff]
  %v366 = vld [vmem:[%s1 + $0xac0] sm:$0xff]
  %v367 = vld [vmem:[%s1 + $0xac8] sm:$0xff]
  %v368 = vld [vmem:[%s1 + $0xad0] sm:$0xff]
  %v369 = vld [vmem:[%s1 + $0xad8] sm:$0xff]
  %v370 = vld [vmem:[%s1 + $0xae0] sm:$0xff]
  %v371 = vld [vmem:[%s1 + $0xae8] sm:$0xff]
  %v372 = vld [vmem:[%s1 + $0xaf0] sm:$0xff]
  %v373 = vld [vmem:[%s1 + $0xaf8] sm:$0xff]
  %v374 = vld [vmem:[%s1 + $0xb00] sm:$0xff]
  %v375 = vld [vmem:[%s1 + $0xb08] sm:$0xff]
  %v376 = vld [vmem:[%s1 + $0xb10] sm:$0xff]
  %v377 = vld [vmem:[%s1 + $0xb18] sm:$0xff]
  %v378 = vld [vmem:[%s1 + $0xb20] sm:$0xff]
  %v379 = vld [vmem:[%s1 + $0xb28] sm:$0xff]
  %v380 = vld [vmem:[%s1 + $0xb30] sm:$0xff]
  %v381 = vld [vmem:[%s1 + $0xb38] sm:$0xff]
  %v382 = vld [vmem:[%s1 + $0xb40] sm:$0xff]
  %v383 = vld [vmem:[%s1 + $0xb48] sm:$0xff]
  %v384 = vld [vmem:[%s1 + $0xb50] sm:$0xff]
  %v385 = vld [vmem:[%s1 + $0xb58] sm:$0xff]
  %v386 = vld [vmem:[%s1 + $0xb60] sm:$0xff]
  %v387 = vld [vmem:[%s1 + $0xb68] sm:$0xff]
  %v388 = vld [vmem:[%s1 + $0xb70] sm:$0xff]
  %v389 = vld [vmem:[%s1 + $0xb78] sm:$0xff]
  %v390 = vld [vmem:[%s1 + $0xb80] sm:$0xff]
  %v391 = vld [vmem:[%s1 + $0xb88] sm:$0xff]
  %v392 = vld [vmem:[%s1 + $0xb90] sm:$0xff]
  %v393 = vld [vmem:[%s1 + $0xb98] sm:$0xff]
  %v394 = vld [vmem:[%s1 + $0xba0] sm:$0xff]
  %v395 = vld [vmem:[%s1 + $0xba8] sm:$0xff]
  %v396 = vld [vmem:[%s1 + $0xbb0] sm:$0xff]
  %v397 = vld [vmem:[%s1 + $0xbb8] sm:$0xff]
  %v398 = vld [vmem:[%s1 + $0xbc0] sm:$0xff]
  %v399 = vld [vmem:[%s1 + $0xbc8] sm:$0xff]
  %v400 = vld [vmem:[%s1 + $0xbd0] sm:$0xff]
  %v401 = vld [vmem:[%s1 + $0xbd8] sm:$0xff]
  %v402 = vld [vmem:[%s1 + $0xbe0] sm:$0xff]
  %v403 = vld [vmem:[%s1 + $0xbe8] sm:$0xff]
  %v404 = vld [vmem:[%s1 + $0xbf0] sm:$0xff]
  %v405 = vld [vmem:[%s1 + $0xbf8] sm:$0xff]
  %v406 = vld [vmem:[%s1 + $0xc00] sm:$0xff]
  %v407 = vld [vmem:[%s1 + $0xc08] sm:$0xff]
  %v408 = vld [vmem:[%s1 + $0xc10] sm:$0xff]
  %v409 = vld [vmem:[%s1 + $0xc18] sm:$0xff]
  %v410 = vld [vmem:[%s1 + $0xc20] sm:$0xff]
  %v411 = vld [vmem:[%s1 + $0xc28] sm:$0xff]
  %v412 = vld [vmem:[%s1 + $0xc30] sm:$0xff]
  %v413 = vld [vmem:[%s1 + $0xc38] sm:$0xff]
  %v414 = vld [vmem:[%s1 + $0xc40] sm:$0xff]
  %v415 = vld [vmem:[%s1 + $0xc48] sm:$0xff]
  %v416 = vld [vmem:[%s1 + $0xc50] sm:$0xff]
  %v417 = vld [vmem:[%s1 + $0xc58] sm:$0xff]
  %v418 = vld [vmem:[%s1 + $0xc60] sm:$0xff]
  %v419 = vld [vmem:[%s1 + $0xc68] sm:$0xff]
  %v420 = vld [vmem:[%s1 + $0xc70] sm:$0xff]
  %v421 = vld [vmem:[%s1 + $0xc78] sm:$0xff]
  %v422 = vld [vmem:[%s1 + $0xc80] sm:$0xff]
  %v423 = vld [vmem:[%s1 + $0xc88] sm:$0xff]
  %v424 = vld [vmem:[%s1 + $0xc90] sm:$0xff]
  %v425 = vld [vmem:[%s1 + $0xc98] sm:$0xff]
  %v426 = vld [vmem:[%s1 + $0xca0] sm:$0xff]
  %v427 = vld [vmem:[%s1 + $0xca8] sm:$0xff]
  %v428 = vld [vmem:[%s1 + $0xcb0] sm:$0xff]
  %v429 = vld [vmem:[%s1 + $0xcb8] sm:$0xff]
  %v430 = vld [vmem:[%s1 + $0xcc0] sm:$0xff]
  %v431 = vld [vmem:[%s1 + $0xcc8] sm:$0xff]
  %v432 = vld [vmem:[%s1 + $0xcd0] sm:$0xff]
  %v433 = vld [vmem:[%s1 + $0xcd8] sm:$0xff]
  %v434 = vld [vmem:[%s1 + $0xce0] sm:$0xff]
  %v435 = vld [vmem:[%s1 + $0xce8] sm:$0xff]
  %v436 = vld [vmem:[%s1 + $0xcf0] sm:$0xff]
  %v437 = vld [vmem:[%s1 + $0xcf8] sm:$0xff]
  %v438 = vld [vmem:[%s1 + $0xd00] sm:$0xff]
  %v439 = vld [vmem:[%s1 + $0xd08] sm:$0xff]
  %v440 = vld [vmem:[%s1 + $0xd10] sm:$0xff]
  %v441 = vld [vmem:[%s1 + $0xd18] sm:$0xff]
  %v442 = vld [vmem:[%s1 + $0xd20] sm:$0xff]
  %v443 = vld [vmem:[%s1 + $0xd28] sm:$0xff]
  %v444 = vld [vmem:[%s1 + $0xd30] sm:$0xff]
  %v445 = vld [vmem:[%s1 + $0xd38] sm:$0xff]
  %v446 = vld [vmem:[%s1 + $0xd40] sm:$0xff]
  %v447 = vld [vmem:[%s1 + $0xd48] sm:$0xff]
  %v448 = vld [vmem:[%s1 + $0xd50] sm:$0xff]
  %v449 = vld [vmem:[%s1 + $0xd58] sm:$0xff]
  %v450 = vld [vmem:[%s1 + $0xd60] sm:$0xff]
  %v451 = vld [vmem:[%s1 + $0xd68] sm:$0xff]
  %v452 = vld [vmem:[%s1 + $0xd70] sm:$0xff]
  %v453 = vld [vmem:[%s1 + $0xd78] sm:$0xff]
  %v454 = vld [vmem:[%s1 + $0xd80] sm:$0xff]
  %v455 = vld [vmem:[%s1 + $0xd88] sm:$0xff]
  %v456 = vld [vmem:[%s1 + $0xd90] sm:$0xff]
  %v457 = vld [vmem:[%s1 + $0xd98] sm:$0xff]
  %v458 = vld [vmem:[%s1 + $0xda0] sm:$0xff]
  %v459 = vld [vmem:[%s1 + $0xda8] sm:$0xff]
  %v460 = vld [vmem:[%s1 + $0xdb0] sm:$0xff]
  %v461 = vld [vmem:[%s1 + $0xdb8] sm:$0xff]
  %v462 = vld [vmem:[%s1 + $0xdc0] sm:$0xff]
  %v463 = vld [vmem:[%s1 + $0xdc8] sm:$0xff]
  %v464 = vld [vmem:[%s1 + $0xdd0] sm:$0xff]
  %v465 = vld [vmem:[%s1 + $0xdd8] sm:$0xff]
  %v466 = vld [vmem:[%s1 + $0xde0] sm:$0xff]
  %v467 = vld [vmem:[%s1 + $0xde8] sm:$0xff]
  %v468 = vld [vmem:[%s1 + $0xdf0] sm:$0xff]
  %v469 = vld [vmem:[%s1 + $0xdf8] sm:$0xff]
  %v470 = vld [vmem:[%s1 + $0xe00] sm:$0xff]
  %v471 = vld [vmem:[%s1 + $0xe08] sm:$0xff]
  %v472 = vld [vmem:[%s1 + $0xe10] sm:$0xff]
  %v473 = vld [vmem:[%s1 + $0xe18] sm:$0xff]
  %v474 = vld [vmem:[%s1 + $0xe20] sm:$0xff]
  %v475 = vld [vmem:[%s1 + $0xe28] sm:$0xff]
  %v476 = vld [vmem:[%s1 + $0xe30] sm:$0xff]
  %v477 = vld [vmem:[%s1 + $0xe38] sm:$0xff]
  %v478 = vld [vmem:[%s1 + $0xe40] sm:$0xff]
  %v479 = vld [vmem:[%s1 + $0xe48] sm:$0xff]
  %v480 = vld [vmem:[%s1 + $0xe50] sm:$0xff]
  %v481 = vld [vmem:[%s1 + $0xe58] sm:$0xff]
  %v482 = vld [vmem:[%s1 + $0xe60] sm:$0xff]
  %v483 = vld [vmem:[%s1 + $0xe68] sm:$0xff]
  %v484 = vld [vmem:[%s1 + $0xe70] sm:$0xff]
  %v485 = vld [vmem:[%s1 + $0xe78] sm:$0xff]
  %v486 = vld [vmem:[%s1 + $0xe80] sm:$0xff]
  %v487 = vld [vmem:[%s1 + $0xe88] sm:$0xff]
  %v488 = vld [vmem:[%s1 + $0xe90] sm:$0xff]
  %v489 = vld [vmem:[%s1 + $0xe98] sm:$0xff]
  %v490 = vld [vmem:[%s1 + $0xea0] sm:$0xff]
  %v491 = vld [vmem:[%s1 + $0xea8] sm:$0xff]
  %v492 = vld [vmem:[%s1 + $0xeb0] sm:$0xff]
  %v493 = vld [vmem:[%s1 + $0xeb8] sm:$0xff]
  %v494 = vld [vmem:[%s1 + $0xec0] sm:$0xff]
  %v495 = vld [vmem:[%s1 + $0xec8] sm:$0xff]
  %v496 = vld [vmem:[%s1 + $0xed0] sm:$0xff]
  %v497 = vld [vmem:[%s1 + $0xed8] sm:$0xff]
  %v498 = vld [vmem:[%s1 + $0xee0] sm:$0xff]
  %v499 = vld [vmem:[%s1 + $0xee8] sm:$0xff]
  %v500 = vld [vmem:[%s1 + $0xef0] sm:$0xff]
  %v501 = vld [vmem:[%s1 + $0xef8] sm:$0xff]
  %v502 = vld [vmem:[%s1 + $0xf00] sm:$0xff]
  %v503 = vld [vmem:[%s1 + $0xf08] sm:$0xff]
  %v504 = vld [vmem:[%s1 + $0xf10] sm:$0xff]
  %v505 = vld [vmem:[%s1 + $0xf18] sm:$0xff]
  %v506 = vld [vmem:[%s1 + $0xf20] sm:$0xff]
  %v507 = vld [vmem:[%s1 + $0xf28] sm:$0xff]
  %v508 = vld [vmem:[%s1 + $0xf30] sm:$0xff]
  %v509 = vld [vmem:[%s1 + $0xf38] sm:$0xff]
  %v510 = vld [vmem:[%s1 + $0xf40] sm:$0xff]
  %v511 = vld [vmem:[%s1 + $0xf48] sm:$0xff]
  %v512 = vld [vmem:[%s1 + $0xf50] sm:$0xff]
  %v513 = vld [vmem:[%s1 + $0xf58] sm:$0xff]
  %v514 = vld [vmem:[%s1 + $0xf60] sm:$0xff]
  %v515 = vld [vmem:[%s1 + $0xf68] sm:$0xff]
  %v516 = vld [vmem:[%s1 + $0xf70] sm:$0xff]
  %v517 = vld [vmem:[%s1 + $0xf78] sm:$0xff]
  %v518 = vld [vmem:[%s1 + $0xf80] sm:$0xff]
  %v519 = vld [vmem:[%s1 + $0xf88] sm:$0xff]
  %v520 = vld [vmem:[%s1 + $0xf90] sm:$0xff]
  %v521 = vld [vmem:[%s1 + $0xf98] sm:$0xff]
  %v522 = vld [vmem:[%s1 + $0xfa0] sm:$0xff]
  %v523 = vld [vmem:[%s1 + $0xfa8] sm:$0xff]
  %v524 = vld [vmem:[%s1 + $0xfb0] sm:$0xff]
  %v525 = vld [vmem:[%s1 + $0xfb8] sm:$0xff]
  %v526 = vld [vmem:[%s1 + $0xfc0] sm:$0xff]
  %v527 = vld [vmem:[%s1 + $0xfc8] sm:$0xff]
  %v528 = vld [vmem:[%s1 + $0xfd0] sm:$0xff]
  %v529 = vld [vmem:[%s1 + $0xfd8] sm:$0xff]
  %v530 = vld [vmem:[%s1 + $0xfe0] sm:$0xff]
  %v531 = vld [vmem:[%s1 + $0xfe8] sm:$0xff]
  %v532 = vld [vmem:[%s1 + $0xff0] sm:$0xff]
  %v533 = vld [vmem:[%s1 + $0xff8] sm:$0xff]
  %v534 = vld [vmem:[%s2] sm:$0x1]
  %v536 = vlaneseq
  %v537 = vshrl.u32 %v536, 7
  %v538 = vsub.s32 0, %v537
  %v539 = vrot.slane %v534, %v538
  %v549 = vcombine.high %v14, %v14
  %v551 = vunpack.c.l.s4 1983009808
  %v552 = vunpack.c.0.s8 %v551
  %v553 = vlaneseq
  %v554 = vshrl.u32 %v553, 7
  %v555 = vsub.s32 %v552, %v554
  %v556 = vrot.slane %v14, %v555
  %v558 = vunpack.c.l.s4 1983009808
  %v559 = vunpack.c.0.s8 %v558
  %v560 = vlaneseq
  %v561 = vshrl.u32 %v560, 7
  %v562 = vsub.s32 %v559, %v561
  %v563 = vrot.slane %v549, %v562
  %v564 = vcombine.high %v556, %v556
  %v565 = vcombine.high %v563, %v563
  %v566 = vcombine.high %v15, %v15
  %v568 = vunpack.c.l.s4 1983009808
  %v569 = vunpack.c.0.s8 %v568
  %v570 = vlaneseq
  %v571 = vshrl.u32 %v570, 7
  %v572 = vsub.s32 %v569, %v571
  %v573 = vrot.slane %v15, %v572
  %v575 = vunpack.c.l.s4 1983009808
  %v576 = vunpack.c.0.s8 %v575
  %v577 = vlaneseq
  %v578 = vshrl.u32 %v577, 7
  %v579 = vsub.s32 %v576, %v578
  %v580 = vrot.slane %v566, %v579
  %v581 = vcombine.high %v573, %v573
  %v582 = vcombine.high %v580, %v580
  %v583 = vcombine.high %v16, %v16
  %v585 = vunpack.c.l.s4 1983009808
  %v586 = vunpack.c.0.s8 %v585
  %v587 = vlaneseq
  %v588 = vshrl.u32 %v587, 7
  %v589 = vsub.s32 %v586, %v588
  %v590 = vrot.slane %v16, %v589
  %v592 = vunpack.c.l.s4 1983009808
  %v593 = vunpack.c.0.s8 %v592
  %v594 = vlaneseq
  %v595 = vshrl.u32 %v594, 7
  %v596 = vsub.s32 %v593, %v595
  %v597 = vrot.slane %v583, %v596
  %v598 = vcombine.high %v590, %v590
  %v599 = vcombine.high %v597, %v597
  %v600 = vcombine.high %v17, %v17
  %v602 = vunpack.c.l.s4 1983009808
  %v603 = vunpack.c.0.s8 %v602
  %v604 = vlaneseq
  %v605 = vshrl.u32 %v604, 7
  %v606 = vsub.s32 %v603, %v605
  %v607 = vrot.slane %v17, %v606
  %v609 = vunpack.c.l.s4 1983009808
  %v610 = vunpack.c.0.s8 %v609
  %v611 = vlaneseq
  %v612 = vshrl.u32 %v611, 7
  %v613 = vsub.s32 %v610, %v612
  %v614 = vrot.slane %v600, %v613
  %v615 = vcombine.high %v607, %v607
  %v616 = vcombine.high %v614, %v614
  %v617 = vcombine.high %v18, %v18
  %v619 = vunpack.c.l.s4 1983009808
  %v620 = vunpack.c.0.s8 %v619
  %v621 = vlaneseq
  %v622 = vshrl.u32 %v621, 7
  %v623 = vsub.s32 %v620, %v622
  %v624 = vrot.slane %v18, %v623
  %v626 = vunpack.c.l.s4 1983009808
  %v627 = vunpack.c.0.s8 %v626
  %v628 = vlaneseq
  %v629 = vshrl.u32 %v628, 7
  %v630 = vsub.s32 %v627, %v629
  %v631 = vrot.slane %v617, %v630
  %v632 = vcombine.high %v624, %v624
  %v633 = vcombine.high %v631, %v631
  %v634 = vcombine.high %v19, %v19
  %v636 = vunpack.c.l.s4 1983009808
  %v637 = vunpack.c.0.s8 %v636
  %v638 = vlaneseq
  %v639 = vshrl.u32 %v638, 7
  %v640 = vsub.s32 %v637, %v639
  %v641 = vrot.slane %v19, %v640
  %v643 = vunpack.c.l.s4 1983009808
  %v644 = vunpack.c.0.s8 %v643
  %v645 = vlaneseq
  %v646 = vshrl.u32 %v645, 7
  %v647 = vsub.s32 %v644, %v646
  %v648 = vrot.slane %v634, %v647
  %v649 = vcombine.high %v641, %v641
  %v650 = vcombine.high %v648, %v648
  %v651 = vcombine.high %v20, %v20
  %v653 = vunpack.c.l.s4 1983009808
  %v654 = vunpack.c.0.s8 %v653
  %v655 = vlaneseq
  %v656 = vshrl.u32 %v655, 7
  %v657 = vsub.s32 %v654, %v656
  %v658 = vrot.slane %v20, %v657
  %v660 = vunpack.c.l.s4 1983009808
  %v661 = vunpack.c.0.s8 %v660
  %v662 = vlaneseq
  %v663 = vshrl.u32 %v662, 7
  %v664 = vsub.s32 %v661, %v663
  %v665 = vrot.slane %v651, %v664
  %v666 = vcombine.high %v658, %v658
  %v667 = vcombine.high %v665, %v665
  %v668 = vcombine.high %v21, %v21
  %v670 = vunpack.c.l.s4 1983009808
  %v671 = vunpack.c.0.s8 %v670
  %v672 = vlaneseq
  %v673 = vshrl.u32 %v672, 7
  %v674 = vsub.s32 %v671, %v673
  %v675 = vrot.slane %v21, %v674
  %v677 = vunpack.c.l.s4 1983009808
  %v678 = vunpack.c.0.s8 %v677
  %v679 = vlaneseq
  %v680 = vshrl.u32 %v679, 7
  %v681 = vsub.s32 %v678, %v680
  %v682 = vrot.slane %v668, %v681
  %v683 = vcombine.high %v675, %v675
  %v684 = vcombine.high %v682, %v682
  %717 = vmatprep.subr.mxu0 0.0
  %718 = vmatpush1.msra.mxu0 %v22
  %719 = vmatprep.subr.mxu0 0.0
  %720 = vmatpush1.msra.mxu0 %v23
  %721 = vmatprep.subr.mxu0 0.0
  %722 = vmatpush1.msra.mxu0 %v24
  %723 = vmatprep.subr.mxu0 0.0
  %724 = vmatpush1.msra.mxu0 %v25
  %725 = vmatprep.subr.mxu0 0.0
  %726 = vmatpush1.msra.mxu0 %v26
  %727 = vmatprep.subr.mxu0 0.0
  %728 = vmatpush1.msra.mxu0 %v27
  %729 = vmatprep.subr.mxu0 0.0
  %730 = vmatpush1.msra.mxu0 %v28
  %731 = vmatprep.subr.mxu0 0.0
  %732 = vmatpush1.msra.mxu0 %v29
  %733 = vmatprep.subr.mxu0 0.0
  %734 = vmatpush1.msra.mxu0 %v30
  %735 = vmatprep.subr.mxu0 0.0
  %736 = vmatpush1.msra.mxu0 %v31
  %737 = vmatprep.subr.mxu0 0.0
  %738 = vmatpush1.msra.mxu0 %v32
  %739 = vmatprep.subr.mxu0 0.0
  %740 = vmatpush1.msra.mxu0 %v33
  %741 = vmatprep.subr.mxu0 0.0
  %742 = vmatpush1.msra.mxu0 %v34
  %743 = vmatprep.subr.mxu0 0.0
  %744 = vmatpush1.msra.mxu0 %v35
  %745 = vmatprep.subr.mxu0 0.0
  %746 = vmatpush1.msra.mxu0 %v36
  %747 = vmatprep.subr.mxu0 0.0
  %748 = vmatpush1.msra.mxu0 %v37
  %749 = vmatprep.subr.mxu0 0.0
  %750 = vmatpush1.msra.mxu0 %v38
  %751 = vmatprep.subr.mxu0 0.0
  %752 = vmatpush1.msra.mxu0 %v39
  %753 = vmatprep.subr.mxu0 0.0
  %754 = vmatpush1.msra.mxu0 %v40
  %755 = vmatprep.subr.mxu0 0.0
  %756 = vmatpush1.msra.mxu0 %v41
  %757 = vmatprep.subr.mxu0 0.0
  %758 = vmatpush1.msra.mxu0 %v42
  %759 = vmatprep.subr.mxu0 0.0
  %760 = vmatpush1.msra.mxu0 %v43
  %761 = vmatprep.subr.mxu0 0.0
  %762 = vmatpush1.msra.mxu0 %v44
  %763 = vmatprep.subr.mxu0 0.0
  %764 = vmatpush1.msra.mxu0 %v45
  %765 = vmatprep.subr.mxu0 0.0
  %766 = vmatpush1.msra.mxu0 %v46
  %767 = vmatprep.subr.mxu0 0.0
  %768 = vmatpush1.msra.mxu0 %v47
  %769 = vmatprep.subr.mxu0 0.0
  %770 = vmatpush1.msra.mxu0 %v48
  %771 = vmatprep.subr.mxu0 0.0
  %772 = vmatpush1.msra.mxu0 %v49
  %773 = vmatprep.subr.mxu0 0.0
  %774 = vmatpush1.msra.mxu0 %v50
  %775 = vmatprep.subr.mxu0 0.0
  %776 = vmatpush1.msra.mxu0 %v51
  %777 = vmatprep.subr.mxu0 0.0
  %778 = vmatpush1.msra.mxu0 %v52
  %779 = vmatprep.subr.mxu0 0.0
  %780 = vmatpush1.msra.mxu0 %v53
  %781 = vmatprep.mubr.f32.mxu0 %v564
  %782 = vmatmul.mubr.f32.gmra.mrb[0].mxu0 %v556
  %v783 = vpop.f32.mrb[0].mxu0
  %v784 = vadd.f32 %v539, %v783
  %v785 = vpop.f32.mrb[0].mxu0
  %786 = vdwg.mxu0
  %787 = vmatprep.subr.mxu0 0.0
  %788 = vmatpush1.msra.mxu0 %v54
  %789 = vmatprep.subr.mxu0 0.0
  %790 = vmatpush1.msra.mxu0 %v55
  %791 = vmatprep.subr.mxu0 0.0
  %792 = vmatpush1.msra.mxu0 %v56
  %793 = vmatprep.subr.mxu0 0.0
  %794 = vmatpush1.msra.mxu0 %v57
  %795 = vmatprep.subr.mxu0 0.0
  %796 = vmatpush1.msra.mxu0 %v58
  %797 = vmatprep.subr.mxu0 0.0
  %798 = vmatpush1.msra.mxu0 %v59
  %799 = vmatprep.subr.mxu0 0.0
  %800 = vmatpush1.msra.mxu0 %v60
  %801 = vmatprep.subr.mxu0 0.0
  %802 = vmatpush1.msra.mxu0 %v61
  %803 = vmatprep.subr.mxu0 0.0
  %804 = vmatpush1.msra.mxu0 %v62
  %805 = vmatprep.subr.mxu0 0.0
  %806 = vmatpush1.msra.mxu0 %v63
  %807 = vmatprep.subr.mxu0 0.0
  %808 = vmatpush1.msra.mxu0 %v64
  %809 = vmatprep.subr.mxu0 0.0
  %810 = vmatpush1.msra.mxu0 %v65
  %811 = vmatprep.subr.mxu0 0.0
  %812 = vmatpush1.msra.mxu0 %v66
  %813 = vmatprep.subr.mxu0 0.0
  %814 = vmatpush1.msra.mxu0 %v67
  %815 = vmatprep.subr.mxu0 0.0
  %816 = vmatpush1.msra.mxu0 %v68
  %817 = vmatprep.subr.mxu0 0.0
  %818 = vmatpush1.msra.mxu0 %v69
  %819 = vmatprep.subr.mxu0 0.0
  %820 = vmatpush1.msra.mxu0 %v70
  %821 = vmatprep.subr.mxu0 0.0
  %822 = vmatpush1.msra.mxu0 %v71
  %823 = vmatprep.subr.mxu0 0.0
  %824 = vmatpush1.msra.mxu0 %v72
  %825 = vmatprep.subr.mxu0 0.0
  %826 = vmatpush1.msra.mxu0 %v73
  %827 = vmatprep.subr.mxu0 0.0
  %828 = vmatpush1.msra.mxu0 %v74
  %829 = vmatprep.subr.mxu0 0.0
  %830 = vmatpush1.msra.mxu0 %v75
  %831 = vmatprep.subr.mxu0 0.0
  %832 = vmatpush1.msra.mxu0 %v76
  %833 = vmatprep.subr.mxu0 0.0
  %834 = vmatpush1.msra.mxu0 %v77
  %835 = vmatprep.subr.mxu0 0.0
  %836 = vmatpush1.msra.mxu0 %v78
  %837 = vmatprep.subr.mxu0 0.0
  %838 = vmatpush1.msra.mxu0 %v79
  %839 = vmatprep.subr.mxu0 0.0
  %840 = vmatpush1.msra.mxu0 %v80
  %841 = vmatprep.subr.mxu0 0.0
  %842 = vmatpush1.msra.mxu0 %v81
  %843 = vmatprep.subr.mxu0 0.0
  %844 = vmatpush1.msra.mxu0 %v82
  %845 = vmatprep.subr.mxu0 0.0
  %846 = vmatpush1.msra.mxu0 %v83
  %847 = vmatprep.subr.mxu0 0.0
  %848 = vmatpush1.msra.mxu0 %v84
  %849 = vmatprep.subr.mxu0 0.0
  %850 = vmatpush1.msra.mxu0 %v85
  %851 = vmatprep.mubr.f32.mxu0 %v565
  %852 = vmatmul.mubr.f32.gmra.mrb[0].mxu0 %v563
  %v853 = vpop.f32.mrb[0].mxu0
  %v854 = vadd.f32 %v784, %v853
  %v855 = vpop.f32.mrb[0].mxu0
  %856 = vdwg.mxu0
  %857 = vmatprep.subr.mxu0 0.0
  %858 = vmatpush1.msra.mxu0 %v86
  %859 = vmatprep.subr.mxu0 0.0
  %860 = vmatpush1.msra.mxu0 %v87
  %861 = vmatprep.subr.mxu0 0.0
  %862 = vmatpush1.msra.mxu0 %v88
  %863 = vmatprep.subr.mxu0 0.0
  %864 = vmatpush1.msra.mxu0 %v89
  %865 = vmatprep.subr.mxu0 0.0
  %866 = vmatpush1.msra.mxu0 %v90
  %867 = vmatprep.subr.mxu0 0.0
  %868 = vmatpush1.msra.mxu0 %v91
  %869 = vmatprep.subr.mxu0 0.0
  %870 = vmatpush1.msra.mxu0 %v92
  %871 = vmatprep.subr.mxu0 0.0
  %872 = vmatpush1.msra.mxu0 %v93
  %873 = vmatprep.subr.mxu0 0.0
  %874 = vmatpush1.msra.mxu0 %v94
  %875 = vmatprep.subr.mxu0 0.0
  %876 = vmatpush1.msra.mxu0 %v95
  %877 = vmatprep.subr.mxu0 0.0
  %878 = vmatpush1.msra.mxu0 %v96
  %879 = vmatprep.subr.mxu0 0.0
  %880 = vmatpush1.msra.mxu0 %v97
  %881 = vmatprep.subr.mxu0 0.0
  %882 = vmatpush1.msra.mxu0 %v98
  %883 = vmatprep.subr.mxu0 0.0
  %884 = vmatpush1.msra.mxu0 %v99
  %885 = vmatprep.subr.mxu0 0.0
  %886 = vmatpush1.msra.mxu0 %v100
  %887 = vmatprep.subr.mxu0 0.0
  %888 = vmatpush1.msra.mxu0 %v101
  %889 = vmatprep.subr.mxu0 0.0
  %890 = vmatpush1.msra.mxu0 %v102
  %891 = vmatprep.subr.mxu0 0.0
  %892 = vmatpush1.msra.mxu0 %v103
  %893 = vmatprep.subr.mxu0 0.0
  %894 = vmatpush1.msra.mxu0 %v104
  %895 = vmatprep.subr.mxu0 0.0
  %896 = vmatpush1.msra.mxu0 %v105
  %897 = vmatprep.subr.mxu0 0.0
  %898 = vmatpush1.msra.mxu0 %v106
  %899 = vmatprep.subr.mxu0 0.0
  %900 = vmatpush1.msra.mxu0 %v107
  %901 = vmatprep.subr.mxu0 0.0
  %902 = vmatpush1.msra.mxu0 %v108
  %903 = vmatprep.subr.mxu0 0.0
  %904 = vmatpush1.msra.mxu0 %v109
  %905 = vmatprep.subr.mxu0 0.0
  %906 = vmatpush1.msra.mxu0 %v110
  %907 = vmatprep.subr.mxu0 0.0
  %908 = vmatpush1.msra.mxu0 %v111
  %909 = vmatprep.subr.mxu0 0.0
  %910 = vmatpush1.msra.mxu0 %v112
  %911 = vmatprep.subr.mxu0 0.0
  %912 = vmatpush1.msra.mxu0 %v113
  %913 = vmatprep.subr.mxu0 0.0
  %914 = vmatpush1.msra.mxu0 %v114
  %915 = vmatprep.subr.mxu0 0.0
  %916 = vmatpush1.msra.mxu0 %v115
  %917 = vmatprep.subr.mxu0 0.0
  %918 = vmatpush1.msra.mxu0 %v116
  %919 = vmatprep.subr.mxu0 0.0
  %920 = vmatpush1.msra.mxu0 %v117
  %921 = vmatprep.mubr.f32.mxu0 %v581
  %922 = vmatmul.mubr.f32.gmra.mrb[0].mxu0 %v573
  %v923 = vpop.f32.mrb[0].mxu0
  %v924 = vadd.f32 %v854, %v923
  %v925 = vpop.f32.mrb[0].mxu0
  %926 = vdwg.mxu0
  %927 = vmatprep.subr.mxu0 0.0
  %928 = vmatpush1.msra.mxu0 %v118
  %929 = vmatprep.subr.mxu0 0.0
  %930 = vmatpush1.msra.mxu0 %v119
  %931 = vmatprep.subr.mxu0 0.0
  %932 = vmatpush1.msra.mxu0 %v120
  %933 = vmatprep.subr.mxu0 0.0
  %934 = vmatpush1.msra.mxu0 %v121
  %935 = vmatprep.subr.mxu0 0.0
  %936 = vmatpush1.msra.mxu0 %v122
  %937 = vmatprep.subr.mxu0 0.0
  %938 = vmatpush1.msra.mxu0 %v123
  %939 = vmatprep.subr.mxu0 0.0
  %940 = vmatpush1.msra.mxu0 %v124
  %941 = vmatprep.subr.mxu0 0.0
  %942 = vmatpush1.msra.mxu0 %v125
  %943 = vmatprep.subr.mxu0 0.0
  %944 = vmatpush1.msra.mxu0 %v126
  %945 = vmatprep.subr.mxu0 0.0
  %946 = vmatpush1.msra.mxu0 %v127
  %947 = vmatprep.subr.mxu0 0.0
  %948 = vmatpush1.msra.mxu0 %v128
  %949 = vmatprep.subr.mxu0 0.0
  %950 = vmatpush1.msra.mxu0 %v129
  %951 = vmatprep.subr.mxu0 0.0
  %952 = vmatpush1.msra.mxu0 %v130
  %953 = vmatprep.subr.mxu0 0.0
  %954 = vmatpush1.msra.mxu0 %v131
  %955 = vmatprep.subr.mxu0 0.0
  %956 = vmatpush1.msra.mxu0 %v132
  %957 = vmatprep.subr.mxu0 0.0
  %958 = vmatpush1.msra.mxu0 %v133
  %959 = vmatprep.subr.mxu0 0.0
  %960 = vmatpush1.msra.mxu0 %v134
  %961 = vmatprep.subr.mxu0 0.0
  %962 = vmatpush1.msra.mxu0 %v135
  %963 = vmatprep.subr.mxu0 0.0
  %964 = vmatpush1.msra.mxu0 %v136
  %965 = vmatprep.subr.mxu0 0.0
  %966 = vmatpush1.msra.mxu0 %v137
  %967 = vmatprep.subr.mxu0 0.0
  %968 = vmatpush1.msra.mxu0 %v138
  %969 = vmatprep.subr.mxu0 0.0
  %970 = vmatpush1.msra.mxu0 %v139
  %971 = vmatprep.subr.mxu0 0.0
  %972 = vmatpush1.msra.mxu0 %v140
  %973 = vmatprep.subr.mxu0 0.0
  %974 = vmatpush1.msra.mxu0 %v141
  %975 = vmatprep.subr.mxu0 0.0
  %976 = vmatpush1.msra.mxu0 %v142
  %977 = vmatprep.subr.mxu0 0.0
  %978 = vmatpush1.msra.mxu0 %v143
  %979 = vmatprep.subr.mxu0 0.0
  %980 = vmatpush1.msra.mxu0 %v144
  %981 = vmatprep.subr.mxu0 0.0
  %982 = vmatpush1.msra.mxu0 %v145
  %983 = vmatprep.subr.mxu0 0.0
  %984 = vmatpush1.msra.mxu0 %v146
  %985 = vmatprep.subr.mxu0 0.0
  %986 = vmatpush1.msra.mxu0 %v147
  %987 = vmatprep.subr.mxu0 0.0
  %988 = vmatpush1.msra.mxu0 %v148
  %989 = vmatprep.subr.mxu0 0.0
  %990 = vmatpush1.msra.mxu0 %v149
  %991 = vmatprep.mubr.f32.mxu0 %v582
  %992 = vmatmul.mubr.f32.gmra.mrb[0].mxu0 %v580
  %v993 = vpop.f32.mrb[0].mxu0
  %v994 = vadd.f32 %v924, %v993
  %v995 = vpop.f32.mrb[0].mxu0
  %996 = vdwg.mxu0
  %997 = vmatprep.subr.mxu0 0.0
  %998 = vmatpush1.msra.mxu0 %v150
  %999 = vmatprep.subr.mxu0 0.0
  %1000 = vmatpush1.msra.mxu0 %v151
  %1001 = vmatprep.subr.mxu0 0.0
  %1002 = vmatpush1.msra.mxu0 %v152
  %1003 = vmatprep.subr.mxu0 0.0
  %1004 = vmatpush1.msra.mxu0 %v153
  %1005 = vmatprep.subr.mxu0 0.0
  %1006 = vmatpush1.msra.mxu0 %v154
  %1007 = vmatprep.subr.mxu0 0.0
  %1008 = vmatpush1.msra.mxu0 %v155
  %1009 = vmatprep.subr.mxu0 0.0
  %1010 = vmatpush1.msra.mxu0 %v156
  %1011 = vmatprep.subr.mxu0 0.0
  %1012 = vmatpush1.msra.mxu0 %v157
  %1013 = vmatprep.subr.mxu0 0.0
  %1014 = vmatpush1.msra.mxu0 %v158
  %1015 = vmatprep.subr.mxu0 0.0
  %1016 = vmatpush1.msra.mxu0 %v159
  %1017 = vmatprep.subr.mxu0 0.0
  %1018 = vmatpush1.msra.mxu0 %v160
  %1019 = vmatprep.subr.mxu0 0.0
  %1020 = vmatpush1.msra.mxu0 %v161
  %1021 = vmatprep.subr.mxu0 0.0
  %1022 = vmatpush1.msra.mxu0 %v162
  %1023 = vmatprep.subr.mxu0 0.0
  %1024 = vmatpush1.msra.mxu0 %v163
  %1025 = vmatprep.subr.mxu0 0.0
  %1026 = vmatpush1.msra.mxu0 %v164
  %1027 = vmatprep.subr.mxu0 0.0
  %1028 = vmatpush1.msra.mxu0 %v165
  %1029 = vmatprep.subr.mxu0 0.0
  %1030 = vmatpush1.msra.mxu0 %v166
  %1031 = vmatprep.subr.mxu0 0.0
  %1032 = vmatpush1.msra.mxu0 %v167
  %1033 = vmatprep.subr.mxu0 0.0
  %1034 = vmatpush1.msra.mxu0 %v168
  %1035 = vmatprep.subr.mxu0 0.0
  %1036 = vmatpush1.msra.mxu0 %v169
  %1037 = vmatprep.subr.mxu0 0.0
  %1038 = vmatpush1.msra.mxu0 %v170
  %1039 = vmatprep.subr.mxu0 0.0
  %1040 = vmatpush1.msra.mxu0 %v171
  %1041 = vmatprep.subr.mxu0 0.0
  %1042 = vmatpush1.msra.mxu0 %v172
  %1043 = vmatprep.subr.mxu0 0.0
  %1044 = vmatpush1.msra.mxu0 %v173
  %1045 = vmatprep.subr.mxu0 0.0
  %1046 = vmatpush1.msra.mxu0 %v174
  %1047 = vmatprep.subr.mxu0 0.0
  %1048 = vmatpush1.msra.mxu0 %v175
  %1049 = vmatprep.subr.mxu0 0.0
  %1050 = vmatpush1.msra.mxu0 %v176
  %1051 = vmatprep.subr.mxu0 0.0
  %1052 = vmatpush1.msra.mxu0 %v177
  %1053 = vmatprep.subr.mxu0 0.0
  %1054 = vmatpush1.msra.mxu0 %v178
  %1055 = vmatprep.subr.mxu0 0.0
  %1056 = vmatpush1.msra.mxu0 %v179
  %1057 = vmatprep.subr.mxu0 0.0
  %1058 = vmatpush1.msra.mxu0 %v180
  %1059 = vmatprep.subr.mxu0 0.0
  %1060 = vmatpush1.msra.mxu0 %v181
  %1061 = vmatprep.mubr.f32.mxu0 %v598
  %1062 = vmatmul.mubr.f32.gmra.mrb[0].mxu0 %v590
  %v1063 = vpop.f32.mrb[0].mxu0
  %v1064 = vadd.f32 %v994, %v1063
  %v1065 = vpop.f32.mrb[0].mxu0
  %1066 = vdwg.mxu0
  %1067 = vmatprep.subr.mxu0 0.0
  %1068 = vmatpush1.msra.mxu0 %v182
  %1069 = vmatprep.subr.mxu0 0.0
  %1070 = vmatpush1.msra.mxu0 %v183
  %1071 = vmatprep.subr.mxu0 0.0
  %1072 = vmatpush1.msra.mxu0 %v184
  %1073 = vmatprep.subr.mxu0 0.0
  %1074 = vmatpush1.msra.mxu0 %v185
  %1075 = vmatprep.subr.mxu0 0.0
  %1076 = vmatpush1.msra.mxu0 %v186
  %1077 = vmatprep.subr.mxu0 0.0
  %1078 = vmatpush1.msra.mxu0 %v187
  %1079 = vmatprep.subr.mxu0 0.0
  %1080 = vmatpush1.msra.mxu0 %v188
  %1081 = vmatprep.subr.mxu0 0.0
  %1082 = vmatpush1.msra.mxu0 %v189
  %1083 = vmatprep.subr.mxu0 0.0
  %1084 = vmatpush1.msra.mxu0 %v190
  %1085 = vmatprep.subr.mxu0 0.0
  %1086 = vmatpush1.msra.mxu0 %v191
  %1087 = vmatprep.subr.mxu0 0.0
  %1088 = vmatpush1.msra.mxu0 %v192
  %1089 = vmatprep.subr.mxu0 0.0
  %1090 = vmatpush1.msra.mxu0 %v193
  %1091 = vmatprep.subr.mxu0 0.0
  %1092 = vmatpush1.msra.mxu0 %v194
  %1093 = vmatprep.subr.mxu0 0.0
  %1094 = vmatpush1.msra.mxu0 %v195
  %1095 = vmatprep.subr.mxu0 0.0
  %1096 = vmatpush1.msra.mxu0 %v196
  %1097 = vmatprep.subr.mxu0 0.0
  %1098 = vmatpush1.msra.mxu0 %v197
  %1099 = vmatprep.subr.mxu0 0.0
  %1100 = vmatpush1.msra.mxu0 %v198
  %1101 = vmatprep.subr.mxu0 0.0
  %1102 = vmatpush1.msra.mxu0 %v199
  %1103 = vmatprep.subr.mxu0 0.0
  %1104 = vmatpush1.msra.mxu0 %v200
  %1105 = vmatprep.subr.mxu0 0.0
  %1106 = vmatpush1.msra.mxu0 %v201
  %1107 = vmatprep.subr.mxu0 0.0
  %1108 = vmatpush1.msra.mxu0 %v202
  %1109 = vmatprep.subr.mxu0 0.0
  %1110 = vmatpush1.msra.mxu0 %v203
  %1111 = vmatprep.subr.mxu0 0.0
  %1112 = vmatpush1.msra.mxu0 %v204
  %1113 = vmatprep.subr.mxu0 0.0
  %1114 = vmatpush1.msra.mxu0 %v205
  %1115 = vmatprep.subr.mxu0 0.0
  %1116 = vmatpush1.msra.mxu0 %v206
  %1117 = vmatprep.subr.mxu0 0.0
  %1118 = vmatpush1.msra.mxu0 %v207
  %1119 = vmatprep.subr.mxu0 0.0
  %1120 = vmatpush1.msra.mxu0 %v208
  %1121 = vmatprep.subr.mxu0 0.0
  %1122 = vmatpush1.msra.mxu0 %v209
  %1123 = vmatprep.subr.mxu0 0.0
  %1124 = vmatpush1.msra.mxu0 %v210
  %1125 = vmatprep.subr.mxu0 0.0
  %1126 = vmatpush1.msra.mxu0 %v211
  %1127 = vmatprep.subr.mxu0 0.0
  %1128 = vmatpush1.msra.mxu0 %v212
  %1129 = vmatprep.subr.mxu0 0.0
  %1130 = vmatpush1.msra.mxu0 %v213
  %1131 = vmatprep.mubr.f32.mxu0 %v599
  %1132 = vmatmul.mubr.f32.gmra.mrb[0].mxu0 %v597
  %v1133 = vpop.f32.mrb[0].mxu0
  %v1134 = vadd.f32 %v1064, %v1133
  %v1135 = vpop.f32.mrb[0].mxu0
  %1136 = vdwg.mxu0
  %1137 = vmatprep.subr.mxu0 0.0
  %1138 = vmatpush1.msra.mxu0 %v214
  %1139 = vmatprep.subr.mxu0 0.0
  %1140 = vmatpush1.msra.mxu0 %v215
  %1141 = vmatprep.subr.mxu0 0.0
  %1142 = vmatpush1.msra.mxu0 %v216
  %1143 = vmatprep.subr.mxu0 0.0
  %1144 = vmatpush1.msra.mxu0 %v217
  %1145 = vmatprep.subr.mxu0 0.0
  %1146 = vmatpush1.msra.mxu0 %v218
  %1147 = vmatprep.subr.mxu0 0.0
  %1148 = vmatpush1.msra.mxu0 %v219
  %1149 = vmatprep.subr.mxu0 0.0
  %1150 = vmatpush1.msra.mxu0 %v220
  %1151 = vmatprep.subr.mxu0 0.0
  %1152 = vmatpush1.msra.mxu0 %v221
  %1153 = vmatprep.subr.mxu0 0.0
  %1154 = vmatpush1.msra.mxu0 %v222
  %1155 = vmatprep.subr.mxu0 0.0
  %1156 = vmatpush1.msra.mxu0 %v223
  %1157 = vmatprep.subr.mxu0 0.0
  %1158 = vmatpush1.msra.mxu0 %v224
  %1159 = vmatprep.subr.mxu0 0.0
  %1160 = vmatpush1.msra.mxu0 %v225
  %1161 = vmatprep.subr.mxu0 0.0
  %1162 = vmatpush1.msra.mxu0 %v226
  %1163 = vmatprep.subr.mxu0 0.0
  %1164 = vmatpush1.msra.mxu0 %v227
  %1165 = vmatprep.subr.mxu0 0.0
  %1166 = vmatpush1.msra.mxu0 %v228
  %1167 = vmatprep.subr.mxu0 0.0
  %1168 = vmatpush1.msra.mxu0 %v229
  %1169 = vmatprep.subr.mxu0 0.0
  %1170 = vmatpush1.msra.mxu0 %v230
  %1171 = vmatprep.subr.mxu0 0.0
  %1172 = vmatpush1.msra.mxu0 %v231
  %1173 = vmatprep.subr.mxu0 0.0
  %1174 = vmatpush1.msra.mxu0 %v232
  %1175 = vmatprep.subr.mxu0 0.0
  %1176 = vmatpush1.msra.mxu0 %v233
  %1177 = vmatprep.subr.mxu0 0.0
  %1178 = vmatpush1.msra.mxu0 %v234
  %1179 = vmatprep.subr.mxu0 0.0
  %1180 = vmatpush1.msra.mxu0 %v235
  %1181 = vmatprep.subr.mxu0 0.0
  %1182 = vmatpush1.msra.mxu0 %v236
  %1183 = vmatprep.subr.mxu0 0.0
  %1184 = vmatpush1.msra.mxu0 %v237
  %1185 = vmatprep.subr.mxu0 0.0
  %1186 = vmatpush1.msra.mxu0 %v238
  %1187 = vmatprep.subr.mxu0 0.0
  %1188 = vmatpush1.msra.mxu0 %v239
  %1189 = vmatprep.subr.mxu0 0.0
  %1190 = vmatpush1.msra.mxu0 %v240
  %1191 = vmatprep.subr.mxu0 0.0
  %1192 = vmatpush1.msra.mxu0 %v241
  %1193 = vmatprep.subr.mxu0 0.0
  %1194 = vmatpush1.msra.mxu0 %v242
  %1195 = vmatprep.subr.mxu0 0.0
  %1196 = vmatpush1.msra.mxu0 %v243
  %1197 = vmatprep.subr.mxu0 0.0
  %1198 = vmatpush1.msra.mxu0 %v244
  %1199 = vmatprep.subr.mxu0 0.0
  %1200 = vmatpush1.msra.mxu0 %v245
  %1201 = vmatprep.mubr.f32.mxu0 %v615
  %1202 = vmatmul.mubr.f32.gmra.mrb[0].mxu0 %v607
  %v1203 = vpop.f32.mrb[0].mxu0
  %v1204 = vadd.f32 %v1134, %v1203
  %v1205 = vpop.f32.mrb[0].mxu0
  %1206 = vdwg.mxu0
  %1207 = vmatprep.subr.mxu0 0.0
  %1208 = vmatpush1.msra.mxu0 %v246
  %1209 = vmatprep.subr.mxu0 0.0
  %1210 = vmatpush1.msra.mxu0 %v247
  %1211 = vmatprep.subr.mxu0 0.0
  %1212 = vmatpush1.msra.mxu0 %v248
  %1213 = vmatprep.subr.mxu0 0.0
  %1214 = vmatpush1.msra.mxu0 %v249
  %1215 = vmatprep.subr.mxu0 0.0
  %1216 = vmatpush1.msra.mxu0 %v250
  %1217 = vmatprep.subr.mxu0 0.0
  %1218 = vmatpush1.msra.mxu0 %v251
  %1219 = vmatprep.subr.mxu0 0.0
  %1220 = vmatpush1.msra.mxu0 %v252
  %1221 = vmatprep.subr.mxu0 0.0
  %1222 = vmatpush1.msra.mxu0 %v253
  %1223 = vmatprep.subr.mxu0 0.0
  %1224 = vmatpush1.msra.mxu0 %v254
  %1225 = vmatprep.subr.mxu0 0.0
  %1226 = vmatpush1.msra.mxu0 %v255
  %1227 = vmatprep.subr.mxu0 0.0
  %1228 = vmatpush1.msra.mxu0 %v256
  %1229 = vmatprep.subr.mxu0 0.0
  %1230 = vmatpush1.msra.mxu0 %v257
  %1231 = vmatprep.subr.mxu0 0.0
  %1232 = vmatpush1.msra.mxu0 %v258
  %1233 = vmatprep.subr.mxu0 0.0
  %1234 = vmatpush1.msra.mxu0 %v259
  %1235 = vmatprep.subr.mxu0 0.0
  %1236 = vmatpush1.msra.mxu0 %v260
  %1237 = vmatprep.subr.mxu0 0.0
  %1238 = vmatpush1.msra.mxu0 %v261
  %1239 = vmatprep.subr.mxu0 0.0
  %1240 = vmatpush1.msra.mxu0 %v262
  %1241 = vmatprep.subr.mxu0 0.0
  %1242 = vmatpush1.msra.mxu0 %v263
  %1243 = vmatprep.subr.mxu0 0.0
  %1244 = vmatpush1.msra.mxu0 %v264
  %1245 = vmatprep.subr.mxu0 0.0
  %1246 = vmatpush1.msra.mxu0 %v265
  %1247 = vmatprep.subr.mxu0 0.0
  %1248 = vmatpush1.msra.mxu0 %v266
  %1249 = vmatprep.subr.mxu0 0.0
  %1250 = vmatpush1.msra.mxu0 %v267
  %1251 = vmatprep.subr.mxu0 0.0
  %1252 = vmatpush1.msra.mxu0 %v268
  %1253 = vmatprep.subr.mxu0 0.0
  %1254 = vmatpush1.msra.mxu0 %v269
  %1255 = vmatprep.subr.mxu0 0.0
  %1256 = vmatpush1.msra.mxu0 %v270
  %1257 = vmatprep.subr.mxu0 0.0
  %1258 = vmatpush1.msra.mxu0 %v271
  %1259 = vmatprep.subr.mxu0 0.0
  %1260 = vmatpush1.msra.mxu0 %v272
  %1261 = vmatprep.subr.mxu0 0.0
  %1262 = vmatpush1.msra.mxu0 %v273
  %1263 = vmatprep.subr.mxu0 0.0
  %1264 = vmatpush1.msra.mxu0 %v274
  %1265 = vmatprep.subr.mxu0 0.0
  %1266 = vmatpush1.msra.mxu0 %v275
  %1267 = vmatprep.subr.mxu0 0.0
  %1268 = vmatpush1.msra.mxu0 %v276
  %1269 = vmatprep.subr.mxu0 0.0
  %1270 = vmatpush1.msra.mxu0 %v277
  %1271 = vmatprep.mubr.f32.mxu0 %v616
  %1272 = vmatmul.mubr.f32.gmra.mrb[0].mxu0 %v614
  %v1273 = vpop.f32.mrb[0].mxu0
  %v1274 = vadd.f32 %v1204, %v1273
  %v1275 = vpop.f32.mrb[0].mxu0
  %1276 = vdwg.mxu0
  %1277 = vmatprep.subr.mxu0 0.0
  %1278 = vmatpush1.msra.mxu0 %v278
  %1279 = vmatprep.subr.mxu0 0.0
  %1280 = vmatpush1.msra.mxu0 %v279
  %1281 = vmatprep.subr.mxu0 0.0
  %1282 = vmatpush1.msra.mxu0 %v280
  %1283 = vmatprep.subr.mxu0 0.0
  %1284 = vmatpush1.msra.mxu0 %v281
  %1285 = vmatprep.subr.mxu0 0.0
  %1286 = vmatpush1.msra.mxu0 %v282
  %1287 = vmatprep.subr.mxu0 0.0
  %1288 = vmatpush1.msra.mxu0 %v283
  %1289 = vmatprep.subr.mxu0 0.0
  %1290 = vmatpush1.msra.mxu0 %v284
  %1291 = vmatprep.subr.mxu0 0.0
  %1292 = vmatpush1.msra.mxu0 %v285
  %1293 = vmatprep.subr.mxu0 0.0
  %1294 = vmatpush1.msra.mxu0 %v286
  %1295 = vmatprep.subr.mxu0 0.0
  %1296 = vmatpush1.msra.mxu0 %v287
  %1297 = vmatprep.subr.mxu0 0.0
  %1298 = vmatpush1.msra.mxu0 %v288
  %1299 = vmatprep.subr.mxu0 0.0
  %1300 = vmatpush1.msra.mxu0 %v289
  %1301 = vmatprep.subr.mxu0 0.0
  %1302 = vmatpush1.msra.mxu0 %v290
  %1303 = vmatprep.subr.mxu0 0.0
  %1304 = vmatpush1.msra.mxu0 %v291
  %1305 = vmatprep.subr.mxu0 0.0
  %1306 = vmatpush1.msra.mxu0 %v292
  %1307 = vmatprep.subr.mxu0 0.0
  %1308 = vmatpush1.msra.mxu0 %v293
  %1309 = vmatprep.subr.mxu0 0.0
  %1310 = vmatpush1.msra.mxu0 %v294
  %1311 = vmatprep.subr.mxu0 0.0
  %1312 = vmatpush1.msra.mxu0 %v295
  %1313 = vmatprep.subr.mxu0 0.0
  %1314 = vmatpush1.msra.mxu0 %v296
  %1315 = vmatprep.subr.mxu0 0.0
  %1316 = vmatpush1.msra.mxu0 %v297
  %1317 = vmatprep.subr.mxu0 0.0
  %1318 = vmatpush1.msra.mxu0 %v298
  %1319 = vmatprep.subr.mxu0 0.0
  %1320 = vmatpush1.msra.mxu0 %v299
  %1321 = vmatprep.subr.mxu0 0.0
  %1322 = vmatpush1.msra.mxu0 %v300
  %1323 = vmatprep.subr.mxu0 0.0
  %1324 = vmatpush1.msra.mxu0 %v301
  %1325 = vmatprep.subr.mxu0 0.0
  %1326 = vmatpush1.msra.mxu0 %v302
  %1327 = vmatprep.subr.mxu0 0.0
  %1328 = vmatpush1.msra.mxu0 %v303
  %1329 = vmatprep.subr.mxu0 0.0
  %1330 = vmatpush1.msra.mxu0 %v304
  %1331 = vmatprep.subr.mxu0 0.0
  %1332 = vmatpush1.msra.mxu0 %v305
  %1333 = vmatprep.subr.mxu0 0.0
  %1334 = vmatpush1.msra.mxu0 %v306
  %1335 = vmatprep.subr.mxu0 0.0
  %1336 = vmatpush1.msra.mxu0 %v307
  %1337 = vmatprep.subr.mxu0 0.0
  %1338 = vmatpush1.msra.mxu0 %v308
  %1339 = vmatprep.subr.mxu0 0.0
  %1340 = vmatpush1.msra.mxu0 %v309
  %1341 = vmatprep.mubr.f32.mxu0 %v632
  %1342 = vmatmul.mubr.f32.gmra.mrb[0].mxu0 %v624
  %v1343 = vpop.f32.mrb[0].mxu0
  %v1344 = vadd.f32 %v1274, %v1343
  %v1345 = vpop.f32.mrb[0].mxu0
  %1346 = vdwg.mxu0
  %1347 = vmatprep.subr.mxu0 0.0
  %1348 = vmatpush1.msra.mxu0 %v310
  %1349 = vmatprep.subr.mxu0 0.0
  %1350 = vmatpush1.msra.mxu0 %v311
  %1351 = vmatprep.subr.mxu0 0.0
  %1352 = vmatpush1.msra.mxu0 %v312
  %1353 = vmatprep.subr.mxu0 0.0
  %1354 = vmatpush1.msra.mxu0 %v313
  %1355 = vmatprep.subr.mxu0 0.0
  %1356 = vmatpush1.msra.mxu0 %v314
  %1357 = vmatprep.subr.mxu0 0.0
  %1358 = vmatpush1.msra.mxu0 %v315
  %1359 = vmatprep.subr.mxu0 0.0
  %1360 = vmatpush1.msra.mxu0 %v316
  %1361 = vmatprep.subr.mxu0 0.0
  %1362 = vmatpush1.msra.mxu0 %v317
  %1363 = vmatprep.subr.mxu0 0.0
  %1364 = vmatpush1.msra.mxu0 %v318
  %1365 = vmatprep.subr.mxu0 0.0
  %1366 = vmatpush1.msra.mxu0 %v319
  %1367 = vmatprep.subr.mxu0 0.0
  %1368 = vmatpush1.msra.mxu0 %v320
  %1369 = vmatprep.subr.mxu0 0.0
  %1370 = vmatpush1.msra.mxu0 %v321
  %1371 = vmatprep.subr.mxu0 0.0
  %1372 = vmatpush1.msra.mxu0 %v322
  %1373 = vmatprep.subr.mxu0 0.0
  %1374 = vmatpush1.msra.mxu0 %v323
  %1375 = vmatprep.subr.mxu0 0.0
  %1376 = vmatpush1.msra.mxu0 %v324
  %1377 = vmatprep.subr.mxu0 0.0
  %1378 = vmatpush1.msra.mxu0 %v325
  %1379 = vmatprep.subr.mxu0 0.0
  %1380 = vmatpush1.msra.mxu0 %v326
  %1381 = vmatprep.subr.mxu0 0.0
  %1382 = vmatpush1.msra.mxu0 %v327
  %1383 = vmatprep.subr.mxu0 0.0
  %1384 = vmatpush1.msra.mxu0 %v328
  %1385 = vmatprep.subr.mxu0 0.0
  %1386 = vmatpush1.msra.mxu0 %v329
  %1387 = vmatprep.subr.mxu0 0.0
  %1388 = vmatpush1.msra.mxu0 %v330
  %1389 = vmatprep.subr.mxu0 0.0
  %1390 = vmatpush1.msra.mxu0 %v331
  %1391 = vmatprep.subr.mxu0 0.0
  %1392 = vmatpush1.msra.mxu0 %v332
  %1393 = vmatprep.subr.mxu0 0.0
  %1394 = vmatpush1.msra.mxu0 %v333
  %1395 = vmatprep.subr.mxu0 0.0
  %1396 = vmatpush1.msra.mxu0 %v334
  %1397 = vmatprep.subr.mxu0 0.0
  %1398 = vmatpush1.msra.mxu0 %v335
  %1399 = vmatprep.subr.mxu0 0.0
  %1400 = vmatpush1.msra.mxu0 %v336
  %1401 = vmatprep.subr.mxu0 0.0
  %1402 = vmatpush1.msra.mxu0 %v337
  %1403 = vmatprep.subr.mxu0 0.0
  %1404 = vmatpush1.msra.mxu0 %v338
  %1405 = vmatprep.subr.mxu0 0.0
  %1406 = vmatpush1.msra.mxu0 %v339
  %1407 = vmatprep.subr.mxu0 0.0
  %1408 = vmatpush1.msra.mxu0 %v340
  %1409 = vmatprep.subr.mxu0 0.0
  %1410 = vmatpush1.msra.mxu0 %v341
  %1411 = vmatprep.mubr.f32.mxu0 %v633
  %1412 = vmatmul.mubr.f32.gmra.mrb[0].mxu0 %v631
  %v1413 = vpop.f32.mrb[0].mxu0
  %v1414 = vadd.f32 %v1344, %v1413
  %v1415 = vpop.f32.mrb[0].mxu0
  %1416 = vdwg.mxu0
  %1417 = vmatprep.subr.mxu0 0.0
  %1418 = vmatpush1.msra.mxu0 %v342
  %1419 = vmatprep.subr.mxu0 0.0
  %1420 = vmatpush1.msra.mxu0 %v343
  %1421 = vmatprep.subr.mxu0 0.0
  %1422 = vmatpush1.msra.mxu0 %v344
  %1423 = vmatprep.subr.mxu0 0.0
  %1424 = vmatpush1.msra.mxu0 %v345
  %1425 = vmatprep.subr.mxu0 0.0
  %1426 = vmatpush1.msra.mxu0 %v346
  %1427 = vmatprep.subr.mxu0 0.0
  %1428 = vmatpush1.msra.mxu0 %v347
  %1429 = vmatprep.subr.mxu0 0.0
  %1430 = vmatpush1.msra.mxu0 %v348
  %1431 = vmatprep.subr.mxu0 0.0
  %1432 = vmatpush1.msra.mxu0 %v349
  %1433 = vmatprep.subr.mxu0 0.0
  %1434 = vmatpush1.msra.mxu0 %v350
  %1435 = vmatprep.subr.mxu0 0.0
  %1436 = vmatpush1.msra.mxu0 %v351
  %1437 = vmatprep.subr.mxu0 0.0
  %1438 = vmatpush1.msra.mxu0 %v352
  %1439 = vmatprep.subr.mxu0 0.0
  %1440 = vmatpush1.msra.mxu0 %v353
  %1441 = vmatprep.subr.mxu0 0.0
  %1442 = vmatpush1.msra.mxu0 %v354
  %1443 = vmatprep.subr.mxu0 0.0
  %1444 = vmatpush1.msra.mxu0 %v355
  %1445 = vmatprep.subr.mxu0 0.0
  %1446 = vmatpush1.msra.mxu0 %v356
  %1447 = vmatprep.subr.mxu0 0.0
  %1448 = vmatpush1.msra.mxu0 %v357
  %1449 = vmatprep.subr.mxu0 0.0
  %1450 = vmatpush1.msra.mxu0 %v358
  %1451 = vmatprep.subr.mxu0 0.0
  %1452 = vmatpush1.msra.mxu0 %v359
  %1453 = vmatprep.subr.mxu0 0.0
  %1454 = vmatpush1.msra.mxu0 %v360
  %1455 = vmatprep.subr.mxu0 0.0
  %1456 = vmatpush1.msra.mxu0 %v361
  %1457 = vmatprep.subr.mxu0 0.0
  %1458 = vmatpush1.msra.mxu0 %v362
  %1459 = vmatprep.subr.mxu0 0.0
  %1460 = vmatpush1.msra.mxu0 %v363
  %1461 = vmatprep.subr.mxu0 0.0
  %1462 = vmatpush1.msra.mxu0 %v364
  %1463 = vmatprep.subr.mxu0 0.0
  %1464 = vmatpush1.msra.mxu0 %v365
  %1465 = vmatprep.subr.mxu0 0.0
  %1466 = vmatpush1.msra.mxu0 %v366
  %1467 = vmatprep.subr.mxu0 0.0
  %1468 = vmatpush1.msra.mxu0 %v367
  %1469 = vmatprep.subr.mxu0 0.0
  %1470 = vmatpush1.msra.mxu0 %v368
  %1471 = vmatprep.subr.mxu0 0.0
  %1472 = vmatpush1.msra.mxu0 %v369
  %1473 = vmatprep.subr.mxu0 0.0
  %1474 = vmatpush1.msra.mxu0 %v370
  %1475 = vmatprep.subr.mxu0 0.0
  %1476 = vmatpush1.msra.mxu0 %v371
  %1477 = vmatprep.subr.mxu0 0.0
  %1478 = vmatpush1.msra.mxu0 %v372
  %1479 = vmatprep.subr.mxu0 0.0
  %1480 = vmatpush1.msra.mxu0 %v373
  %1481 = vmatprep.mubr.f32.mxu0 %v649
  %1482 = vmatmul.mubr.f32.gmra.mrb[0].mxu0 %v641
  %v1483 = vpop.f32.mrb[0].mxu0
  %v1484 = vadd.f32 %v1414, %v1483
  %v1485 = vpop.f32.mrb[0].mxu0
  %1486 = vdwg.mxu0
  %1487 = vmatprep.subr.mxu0 0.0
  %1488 = vmatpush1.msra.mxu0 %v374
  %1489 = vmatprep.subr.mxu0 0.0
  %1490 = vmatpush1.msra.mxu0 %v375
  %1491 = vmatprep.subr.mxu0 0.0
  %1492 = vmatpush1.msra.mxu0 %v376
  %1493 = vmatprep.subr.mxu0 0.0
  %1494 = vmatpush1.msra.mxu0 %v377
  %1495 = vmatprep.subr.mxu0 0.0
  %1496 = vmatpush1.msra.mxu0 %v378
  %1497 = vmatprep.subr.mxu0 0.0
  %1498 = vmatpush1.msra.mxu0 %v379
  %1499 = vmatprep.subr.mxu0 0.0
  %1500 = vmatpush1.msra.mxu0 %v380
  %1501 = vmatprep.subr.mxu0 0.0
  %1502 = vmatpush1.msra.mxu0 %v381
  %1503 = vmatprep.subr.mxu0 0.0
  %1504 = vmatpush1.msra.mxu0 %v382
  %1505 = vmatprep.subr.mxu0 0.0
  %1506 = vmatpush1.msra.mxu0 %v383
  %1507 = vmatprep.subr.mxu0 0.0
  %1508 = vmatpush1.msra.mxu0 %v384
  %1509 = vmatprep.subr.mxu0 0.0
  %1510 = vmatpush1.msra.mxu0 %v385
  %1511 = vmatprep.subr.mxu0 0.0
  %1512 = vmatpush1.msra.mxu0 %v386
  %1513 = vmatprep.subr.mxu0 0.0
  %1514 = vmatpush1.msra.mxu0 %v387
  %1515 = vmatprep.subr.mxu0 0.0
  %1516 = vmatpush1.msra.mxu0 %v388
  %1517 = vmatprep.subr.mxu0 0.0
  %1518 = vmatpush1.msra.mxu0 %v389
  %1519 = vmatprep.subr.mxu0 0.0
  %1520 = vmatpush1.msra.mxu0 %v390
  %1521 = vmatprep.subr.mxu0 0.0
  %1522 = vmatpush1.msra.mxu0 %v391
  %1523 = vmatprep.subr.mxu0 0.0
  %1524 = vmatpush1.msra.mxu0 %v392
  %1525 = vmatprep.subr.mxu0 0.0
  %1526 = vmatpush1.msra.mxu0 %v393
  %1527 = vmatprep.subr.mxu0 0.0
  %1528 = vmatpush1.msra.mxu0 %v394
  %1529 = vmatprep.subr.mxu0 0.0
  %1530 = vmatpush1.msra.mxu0 %v395
  %1531 = vmatprep.subr.mxu0 0.0
  %1532 = vmatpush1.msra.mxu0 %v396
  %1533 = vmatprep.subr.mxu0 0.0
  %1534 = vmatpush1.msra.mxu0 %v397
  %1535 = vmatprep.subr.mxu0 0.0
  %1536 = vmatpush1.msra.mxu0 %v398
  %1537 = vmatprep.subr.mxu0 0.0
  %1538 = vmatpush1.msra.mxu0 %v399
  %1539 = vmatprep.subr.mxu0 0.0
  %1540 = vmatpush1.msra.mxu0 %v400
  %1541 = vmatprep.subr.mxu0 0.0
  %1542 = vmatpush1.msra.mxu0 %v401
  %1543 = vmatprep.subr.mxu0 0.0
  %1544 = vmatpush1.msra.mxu0 %v402
  %1545 = vmatprep.subr.mxu0 0.0
  %1546 = vmatpush1.msra.mxu0 %v403
  %1547 = vmatprep.subr.mxu0 0.0
  %1548 = vmatpush1.msra.mxu0 %v404
  %1549 = vmatprep.subr.mxu0 0.0
  %1550 = vmatpush1.msra.mxu0 %v405
  %1551 = vmatprep.mubr.f32.mxu0 %v650
  %1552 = vmatmul.mubr.f32.gmra.mrb[0].mxu0 %v648
  %v1553 = vpop.f32.mrb[0].mxu0
  %v1554 = vadd.f32 %v1484, %v1553
  %v1555 = vpop.f32.mrb[0].mxu0
  %1556 = vdwg.mxu0
  %1557 = vmatprep.subr.mxu0 0.0
  %1558 = vmatpush1.msra.mxu0 %v406
  %1559 = vmatprep.subr.mxu0 0.0
  %1560 = vmatpush1.msra.mxu0 %v407
  %1561 = vmatprep.subr.mxu0 0.0
  %1562 = vmatpush1.msra.mxu0 %v408
  %1563 = vmatprep.subr.mxu0 0.0
  %1564 = vmatpush1.msra.mxu0 %v409
  %1565 = vmatprep.subr.mxu0 0.0
  %1566 = vmatpush1.msra.mxu0 %v410
  %1567 = vmatprep.subr.mxu0 0.0
  %1568 = vmatpush1.msra.mxu0 %v411
  %1569 = vmatprep.subr.mxu0 0.0
  %1570 = vmatpush1.msra.mxu0 %v412
  %1571 = vmatprep.subr.mxu0 0.0
  %1572 = vmatpush1.msra.mxu0 %v413
  %1573 = vmatprep.subr.mxu0 0.0
  %1574 = vmatpush1.msra.mxu0 %v414
  %1575 = vmatprep.subr.mxu0 0.0
  %1576 = vmatpush1.msra.mxu0 %v415
  %1577 = vmatprep.subr.mxu0 0.0
  %1578 = vmatpush1.msra.mxu0 %v416
  %1579 = vmatprep.subr.mxu0 0.0
  %1580 = vmatpush1.msra.mxu0 %v417
  %1581 = vmatprep.subr.mxu0 0.0
  %1582 = vmatpush1.msra.mxu0 %v418
  %1583 = vmatprep.subr.mxu0 0.0
  %1584 = vmatpush1.msra.mxu0 %v419
  %1585 = vmatprep.subr.mxu0 0.0
  %1586 = vmatpush1.msra.mxu0 %v420
  %1587 = vmatprep.subr.mxu0 0.0
  %1588 = vmatpush1.msra.mxu0 %v421
  %1589 = vmatprep.subr.mxu0 0.0
  %1590 = vmatpush1.msra.mxu0 %v422
  %1591 = vmatprep.subr.mxu0 0.0
  %1592 = vmatpush1.msra.mxu0 %v423
  %1593 = vmatprep.subr.mxu0 0.0
  %1594 = vmatpush1.msra.mxu0 %v424
  %1595 = vmatprep.subr.mxu0 0.0
  %1596 = vmatpush1.msra.mxu0 %v425
  %1597 = vmatprep.subr.mxu0 0.0
  %1598 = vmatpush1.msra.mxu0 %v426
  %1599 = vmatprep.subr.mxu0 0.0
  %1600 = vmatpush1.msra.mxu0 %v427
  %1601 = vmatprep.subr.mxu0 0.0
  %1602 = vmatpush1.msra.mxu0 %v428
  %1603 = vmatprep.subr.mxu0 0.0
  %1604 = vmatpush1.msra.mxu0 %v429
  %1605 = vmatprep.subr.mxu0 0.0
  %1606 = vmatpush1.msra.mxu0 %v430
  %1607 = vmatprep.subr.mxu0 0.0
  %1608 = vmatpush1.msra.mxu0 %v431
  %1609 = vmatprep.subr.mxu0 0.0
  %1610 = vmatpush1.msra.mxu0 %v432
  %1611 = vmatprep.subr.mxu0 0.0
  %1612 = vmatpush1.msra.mxu0 %v433
  %1613 = vmatprep.subr.mxu0 0.0
  %1614 = vmatpush1.msra.mxu0 %v434
  %1615 = vmatprep.subr.mxu0 0.0
  %1616 = vmatpush1.msra.mxu0 %v435
  %1617 = vmatprep.subr.mxu0 0.0
  %1618 = vmatpush1.msra.mxu0 %v436
  %1619 = vmatprep.subr.mxu0 0.0
  %1620 = vmatpush1.msra.mxu0 %v437
  %1621 = vmatprep.mubr.f32.mxu0 %v666
  %1622 = vmatmul.mubr.f32.gmra.mrb[0].mxu0 %v658
  %v1623 = vpop.f32.mrb[0].mxu0
  %v1624 = vadd.f32 %v1554, %v1623
  %v1625 = vpop.f32.mrb[0].mxu0
  %1626 = vdwg.mxu0
  %1627 = vmatprep.subr.mxu0 0.0
  %1628 = vmatpush1.msra.mxu0 %v438
  %1629 = vmatprep.subr.mxu0 0.0
  %1630 = vmatpush1.msra.mxu0 %v439
  %1631 = vmatprep.subr.mxu0 0.0
  %1632 = vmatpush1.msra.mxu0 %v440
  %1633 = vmatprep.subr.mxu0 0.0
  %1634 = vmatpush1.msra.mxu0 %v441
  %1635 = vmatprep.subr.mxu0 0.0
  %1636 = vmatpush1.msra.mxu0 %v442
  %1637 = vmatprep.subr.mxu0 0.0
  %1638 = vmatpush1.msra.mxu0 %v443
  %1639 = vmatprep.subr.mxu0 0.0
  %1640 = vmatpush1.msra.mxu0 %v444
  %1641 = vmatprep.subr.mxu0 0.0
  %1642 = vmatpush1.msra.mxu0 %v445
  %1643 = vmatprep.subr.mxu0 0.0
  %1644 = vmatpush1.msra.mxu0 %v446
  %1645 = vmatprep.subr.mxu0 0.0
  %1646 = vmatpush1.msra.mxu0 %v447
  %1647 = vmatprep.subr.mxu0 0.0
  %1648 = vmatpush1.msra.mxu0 %v448
  %1649 = vmatprep.subr.mxu0 0.0
  %1650 = vmatpush1.msra.mxu0 %v449
  %1651 = vmatprep.subr.mxu0 0.0
  %1652 = vmatpush1.msra.mxu0 %v450
  %1653 = vmatprep.subr.mxu0 0.0
  %1654 = vmatpush1.msra.mxu0 %v451
  %1655 = vmatprep.subr.mxu0 0.0
  %1656 = vmatpush1.msra.mxu0 %v452
  %1657 = vmatprep.subr.mxu0 0.0
  %1658 = vmatpush1.msra.mxu0 %v453
  %1659 = vmatprep.subr.mxu0 0.0
  %1660 = vmatpush1.msra.mxu0 %v454
  %1661 = vmatprep.subr.mxu0 0.0
  %1662 = vmatpush1.msra.mxu0 %v455
  %1663 = vmatprep.subr.mxu0 0.0
  %1664 = vmatpush1.msra.mxu0 %v456
  %1665 = vmatprep.subr.mxu0 0.0
  %1666 = vmatpush1.msra.mxu0 %v457
  %1667 = vmatprep.subr.mxu0 0.0
  %1668 = vmatpush1.msra.mxu0 %v458
  %1669 = vmatprep.subr.mxu0 0.0
  %1670 = vmatpush1.msra.mxu0 %v459
  %1671 = vmatprep.subr.mxu0 0.0
  %1672 = vmatpush1.msra.mxu0 %v460
  %1673 = vmatprep.subr.mxu0 0.0
  %1674 = vmatpush1.msra.mxu0 %v461
  %1675 = vmatprep.subr.mxu0 0.0
  %1676 = vmatpush1.msra.mxu0 %v462
  %1677 = vmatprep.subr.mxu0 0.0
  %1678 = vmatpush1.msra.mxu0 %v463
  %1679 = vmatprep.subr.mxu0 0.0
  %1680 = vmatpush1.msra.mxu0 %v464
  %1681 = vmatprep.subr.mxu0 0.0
  %1682 = vmatpush1.msra.mxu0 %v465
  %1683 = vmatprep.subr.mxu0 0.0
  %1684 = vmatpush1.msra.mxu0 %v466
  %1685 = vmatprep.subr.mxu0 0.0
  %1686 = vmatpush1.msra.mxu0 %v467
  %1687 = vmatprep.subr.mxu0 0.0
  %1688 = vmatpush1.msra.mxu0 %v468
  %1689 = vmatprep.subr.mxu0 0.0
  %1690 = vmatpush1.msra.mxu0 %v469
  %1691 = vmatprep.mubr.f32.mxu0 %v667
  %1692 = vmatmul.mubr.f32.gmra.mrb[0].mxu0 %v665
  %v1693 = vpop.f32.mrb[0].mxu0
  %v1694 = vadd.f32 %v1624, %v1693
  %v1695 = vpop.f32.mrb[0].mxu0
  %1696 = vdwg.mxu0
  %1697 = vmatprep.subr.mxu0 0.0
  %1698 = vmatpush1.msra.mxu0 %v470
  %1699 = vmatprep.subr.mxu0 0.0
  %1700 = vmatpush1.msra.mxu0 %v471
  %1701 = vmatprep.subr.mxu0 0.0
  %1702 = vmatpush1.msra.mxu0 %v472
  %1703 = vmatprep.subr.mxu0 0.0
  %1704 = vmatpush1.msra.mxu0 %v473
  %1705 = vmatprep.subr.mxu0 0.0
  %1706 = vmatpush1.msra.mxu0 %v474
  %1707 = vmatprep.subr.mxu0 0.0
  %1708 = vmatpush1.msra.mxu0 %v475
  %1709 = vmatprep.subr.mxu0 0.0
  %1710 = vmatpush1.msra.mxu0 %v476
  %1711 = vmatprep.subr.mxu0 0.0
  %1712 = vmatpush1.msra.mxu0 %v477
  %1713 = vmatprep.subr.mxu0 0.0
  %1714 = vmatpush1.msra.mxu0 %v478
  %1715 = vmatprep.subr.mxu0 0.0
  %1716 = vmatpush1.msra.mxu0 %v479
  %1717 = vmatprep.subr.mxu0 0.0
  %1718 = vmatpush1.msra.mxu0 %v480
  %1719 = vmatprep.subr.mxu0 0.0
  %1720 = vmatpush1.msra.mxu0 %v481
  %1721 = vmatprep.subr.mxu0 0.0
  %1722 = vmatpush1.msra.mxu0 %v482
  %1723 = vmatprep.subr.mxu0 0.0
  %1724 = vmatpush1.msra.mxu0 %v483
  %1725 = vmatprep.subr.mxu0 0.0
  %1726 = vmatpush1.msra.mxu0 %v484
  %1727 = vmatprep.subr.mxu0 0.0
  %1728 = vmatpush1.msra.mxu0 %v485
  %1729 = vmatprep.subr.mxu0 0.0
  %1730 = vmatpush1.msra.mxu0 %v486
  %1731 = vmatprep.subr.mxu0 0.0
  %1732 = vmatpush1.msra.mxu0 %v487
  %1733 = vmatprep.subr.mxu0 0.0
  %1734 = vmatpush1.msra.mxu0 %v488
  %1735 = vmatprep.subr.mxu0 0.0
  %1736 = vmatpush1.msra.mxu0 %v489
  %1737 = vmatprep.subr.mxu0 0.0
  %1738 = vmatpush1.msra.mxu0 %v490
  %1739 = vmatprep.subr.mxu0 0.0
  %1740 = vmatpush1.msra.mxu0 %v491
  %1741 = vmatprep.subr.mxu0 0.0
  %1742 = vmatpush1.msra.mxu0 %v492
  %1743 = vmatprep.subr.mxu0 0.0
  %1744 = vmatpush1.msra.mxu0 %v493
  %1745 = vmatprep.subr.mxu0 0.0
  %1746 = vmatpush1.msra.mxu0 %v494
  %1747 = vmatprep.subr.mxu0 0.0
  %1748 = vmatpush1.msra.mxu0 %v495
  %1749 = vmatprep.subr.mxu0 0.0
  %1750 = vmatpush1.msra.mxu0 %v496
  %1751 = vmatprep.subr.mxu0 0.0
  %1752 = vmatpush1.msra.mxu0 %v497
  %1753 = vmatprep.subr.mxu0 0.0
  %1754 = vmatpush1.msra.mxu0 %v498
  %1755 = vmatprep.subr.mxu0 0.0
  %1756 = vmatpush1.msra.mxu0 %v499
  %1757 = vmatprep.subr.mxu0 0.0
  %1758 = vmatpush1.msra.mxu0 %v500
  %1759 = vmatprep.subr.mxu0 0.0
  %1760 = vmatpush1.msra.mxu0 %v501
  %1761 = vmatprep.mubr.f32.mxu0 %v683
  %1762 = vmatmul.mubr.f32.gmra.mrb[0].mxu0 %v675
  %v1763 = vpop.f32.mrb[0].mxu0
  %v1764 = vadd.f32 %v1694, %v1763
  %v1765 = vpop.f32.mrb[0].mxu0
  %1766 = vdwg.mxu0
  %1767 = vmatprep.subr.mxu0 0.0
  %1768 = vmatpush1.msra.mxu0 %v502
  %1769 = vmatprep.subr.mxu0 0.0
  %1770 = vmatpush1.msra.mxu0 %v503
  %1771 = vmatprep.subr.mxu0 0.0
  %1772 = vmatpush1.msra.mxu0 %v504
  %1773 = vmatprep.subr.mxu0 0.0
  %1774 = vmatpush1.msra.mxu0 %v505
  %1775 = vmatprep.subr.mxu0 0.0
  %1776 = vmatpush1.msra.mxu0 %v506
  %1777 = vmatprep.subr.mxu0 0.0
  %1778 = vmatpush1.msra.mxu0 %v507
  %1779 = vmatprep.subr.mxu0 0.0
  %1780 = vmatpush1.msra.mxu0 %v508
  %1781 = vmatprep.subr.mxu0 0.0
  %1782 = vmatpush1.msra.mxu0 %v509
  %1783 = vmatprep.subr.mxu0 0.0
  %1784 = vmatpush1.msra.mxu0 %v510
  %1785 = vmatprep.subr.mxu0 0.0
  %1786 = vmatpush1.msra.mxu0 %v511
  %1787 = vmatprep.subr.mxu0 0.0
  %1788 = vmatpush1.msra.mxu0 %v512
  %1789 = vmatprep.subr.mxu0 0.0
  %1790 = vmatpush1.msra.mxu0 %v513
  %1791 = vmatprep.subr.mxu0 0.0
  %1792 = vmatpush1.msra.mxu0 %v514
  %1793 = vmatprep.subr.mxu0 0.0
  %1794 = vmatpush1.msra.mxu0 %v515
  %1795 = vmatprep.subr.mxu0 0.0
  %1796 = vmatpush1.msra.mxu0 %v516
  %1797 = vmatprep.subr.mxu0 0.0
  %1798 = vmatpush1.msra.mxu0 %v517
  %1799 = vmatprep.subr.mxu0 0.0
  %1800 = vmatpush1.msra.mxu0 %v518
  %1801 = vmatprep.subr.mxu0 0.0
  %1802 = vmatpush1.msra.mxu0 %v519
  %1803 = vmatprep.subr.mxu0 0.0
  %1804 = vmatpush1.msra.mxu0 %v520
  %1805 = vmatprep.subr.mxu0 0.0
  %1806 = vmatpush1.msra.mxu0 %v521
  %1807 = vmatprep.subr.mxu0 0.0
  %1808 = vmatpush1.msra.mxu0 %v522
  %1809 = vmatprep.subr.mxu0 0.0
  %1810 = vmatpush1.msra.mxu0 %v523
  %1811 = vmatprep.subr.mxu0 0.0
  %1812 = vmatpush1.msra.mxu0 %v524
  %1813 = vmatprep.subr.mxu0 0.0
  %1814 = vmatpush1.msra.mxu0 %v525
  %1815 = vmatprep.subr.mxu0 0.0
  %1816 = vmatpush1.msra.mxu0 %v526
  %1817 = vmatprep.subr.mxu0 0.0
  %1818 = vmatpush1.msra.mxu0 %v527
  %1819 = vmatprep.subr.mxu0 0.0
  %1820 = vmatpush1.msra.mxu0 %v528
  %1821 = vmatprep.subr.mxu0 0.0
  %1822 = vmatpush1.msra.mxu0 %v529
  %1823 = vmatprep.subr.mxu0 0.0
  %1824 = vmatpush1.msra.mxu0 %v530
  %1825 = vmatprep.subr.mxu0 0.0
  %1826 = vmatpush1.msra.mxu0 %v531
  %1827 = vmatprep.subr.mxu0 0.0
  %1828 = vmatpush1.msra.mxu0 %v532
  %1829 = vmatprep.subr.mxu0 0.0
  %1830 = vmatpush1.msra.mxu0 %v533
  %1831 = vmatprep.mubr.f32.mxu0 %v684
  %1832 = vmatmul.mubr.f32.gmra.mrb[0].mxu0 %v682
  %v1833 = vpop.f32.mrb[0].mxu0
  %v1834 = vadd.f32 %v1764, %v1833
  %v1835 = vpop.f32.mrb[0].mxu0
  %1836 = vdwg.mxu0
  %v1837 = vsub.f32 0.0, %v1834
  %v1838 = vmul.f32 %v1837, 1.442695
  %v1839 = vpow.pop %v1838
  %v1840 = vadd.f32 %v1839, 1.0
  %v1841 = vrcp.pop %v1840
  %v1842 = vmul.f32 1.0, %v1841
  %1843 = vst [vmem:[%s3] sm:$0x3] %v1842
  // Predicated region
  $region14: #{encoders_intrinsic_forward.12} parent=0 // pred_check
    _
  $region15: #{encoders_intrinsic_forward.12} parent=0 // pred_check_branch
    %1845 = sbr.rel (0) target = $region17
  $region16: #{encoders_intrinsic_forward.12} parent=0 // pred_region
    _
  $region17: #{encoders_intrinsic_forward.12} parent=0 // pred_fallthru
    _
  // Predicated region
  $region18: #{encoders_intrinsic_forward.12} parent=0 // pred_check
    _
  $region19: #{encoders_intrinsic_forward.12} parent=0 // pred_check_branch
    %1847 = sbr.rel (0) target = $region21
  $region20: #{encoders_intrinsic_forward.12} parent=0 // pred_region
    _
  $region21: #{encoders_intrinsic_forward.12} parent=0 // pred_fallthru
    _

// kernel: encoders_intrinsic_forward.15
$region0: #{encoders_intrinsic_forward.15}
  #allocation0 [shape = 'u32[]', space=smem, size = 0x4, offset = 0x4, fixed_abs, tag = 'smem constant byte address 0x4 - core index']
  #allocation1 [shape = 'u32[144,128]{1,0:T(1,128)}', space=vmem, size = 0x12000, scoped, tag = 'internal scratch']
  %s0 = inlined_call_operand.vmem [shape: f32[2,128], index: 0, kind: input, shape index: {}]
  %s1 = inlined_call_operand.vmem [shape: f32[128,64], index: 1, kind: input, shape index: {}]
  %s2 = inlined_call_operand.vmem [shape: f32[1,64], index: 2, kind: input, shape index: {}]
  %s3 = inlined_call_operand.hbm [shape: f32[2,64], index: 3, kind: output, shape index: {}]
  %s4 = sld [smem:[#allocation0]]
  $region22: #{encoders_intrinsic_forward.15} parent=0
    _
  %s6 = ssub.s32 1, %s4
  %s7 = scalar_select 0, %s6, %s4
  $region1: #{encoders_intrinsic_forward.15} parent=0
    #allocation2 [shape = 'u8[1024]{0}', space=vmem, size = 0x400, scoped, tag = 'output window, operand 0, single buffered']
    #allocation3 [shape = 's32[1]{0}', space=sflag, size = 0x4, scoped, tag = 'scoped memory for encoders_intrinsic_forward.15']
    %8 = vsyncpa [#allocation3], 0
    // Predicated region
    $region2: #{encoders_intrinsic_forward.15} parent=1 // pred_check
      _
    $region3: #{encoders_intrinsic_forward.15} parent=1 // pred_check_branch
      %10 = sbr.rel (0) target = $region5
    $region4: #{encoders_intrinsic_forward.15} parent=1 // pred_region
      _
    $region5: #{encoders_intrinsic_forward.15} parent=1 // pred_fallthru
      _
    // Predicated region
    $region6: #{encoders_intrinsic_forward.15} parent=1 // pred_check
      _
    $region7: #{encoders_intrinsic_forward.15} parent=1 // pred_check_branch
      %12 = sbr.rel (0) target = $region9
    $region8: #{encoders_intrinsic_forward.15} parent=1 // pred_region
      _
    $region9: #{encoders_intrinsic_forward.15} parent=1 // pred_fallthru
      _
    // Predicated region
    $region10: #{encoders_intrinsic_forward.15} parent=1 // pred_check
      _
    $region11: #{encoders_intrinsic_forward.15} parent=1 // pred_check_branch
      %14 = sbr.rel (0) target = $region13
    $region12: #{encoders_intrinsic_forward.15} parent=1 // pred_region
      _
    $region13: #{encoders_intrinsic_forward.15} parent=1 // pred_fallthru
      _
    %v15 = vld [vmem:[%s0] sm:$0x3]
    %v16 = vld [vmem:[%s1] sm:$0xff]
    %v17 = vld [vmem:[%s1 + $0x8] sm:$0xff]
    %v18 = vld [vmem:[%s1 + $0x10] sm:$0xff]
    %v19 = vld [vmem:[%s1 + $0x18] sm:$0xff]
    %v20 = vld [vmem:[%s1 + $0x20] sm:$0xff]
    %v21 = vld [vmem:[%s1 + $0x28] sm:$0xff]
    %v22 = vld [vmem:[%s1 + $0x30] sm:$0xff]
    %v23 = vld [vmem:[%s1 + $0x38] sm:$0xff]
    %v24 = vld [vmem:[%s1 + $0x40] sm:$0xff]
    %v25 = vld [vmem:[%s1 + $0x48] sm:$0xff]
    %v26 = vld [vmem:[%s1 + $0x50] sm:$0xff]
    %v27 = vld [vmem:[%s1 + $0x58] sm:$0xff]
    %v28 = vld [vmem:[%s1 + $0x60] sm:$0xff]
    %v29 = vld [vmem:[%s1 + $0x68] sm:$0xff]
    %v30 = vld [vmem:[%s1 + $0x70] sm:$0xff]
    %v31 = vld [vmem:[%s1 + $0x78] sm:$0xff]
    %v32 = vld [vmem:[%s2] sm:$0x1]
    %v34 = vlaneseq
    %v35 = vshrl.u32 %v34, 7
    %v36 = vsub.s32 0, %v35
    %v37 = vrot.slane %v32, %v36
    %39 = vmatprep.subr.mxu0 0.0
    %40 = vmatpush1.msra.mxu0 %v16
    %41 = vmatprep.subr.mxu0 0.0
    %42 = vmatpush1.msra.mxu0 %v17
    %43 = vmatprep.subr.mxu0 0.0
    %44 = vmatpush1.msra.mxu0 %v18
    %45 = vmatprep.subr.mxu0 0.0
    %46 = vmatpush1.msra.mxu0 %v19
    %47 = vmatprep.subr.mxu0 0.0
    %48 = vmatpush1.msra.mxu0 %v20
    %49 = vmatprep.subr.mxu0 0.0
    %50 = vmatpush1.msra.mxu0 %v21
    %51 = vmatprep.subr.mxu0 0.0
    %52 = vmatpush1.msra.mxu0 %v22
    %53 = vmatprep.subr.mxu0 0.0
    %54 = vmatpush1.msra.mxu0 %v23
    %55 = vmatprep.subr.mxu0 0.0
    %56 = vmatpush1.msra.mxu0 %v24
    %57 = vmatprep.subr.mxu0 0.0
    %58 = vmatpush1.msra.mxu0 %v25
    %59 = vmatprep.subr.mxu0 0.0
    %60 = vmatpush1.msra.mxu0 %v26
    %61 = vmatprep.subr.mxu0 0.0
    %62 = vmatpush1.msra.mxu0 %v27
    %63 = vmatprep.subr.mxu0 0.0
    %64 = vmatpush1.msra.mxu0 %v28
    %65 = vmatprep.subr.mxu0 0.0
    %66 = vmatpush1.msra.mxu0 %v29
    %67 = vmatprep.subr.mxu0 0.0
    %68 = vmatpush1.msra.mxu0 %v30
    %69 = vmatprep.subr.mxu0 0.0
    %70 = vmatpush1.msra.mxu0 %v31
    %71 = vmatprep.subr.mxu0 0.0
    %72 = vmatpush1.msra.mxu0 0.0
    %73 = vmatprep.subr.mxu0 0.0
    %74 = vmatpush1.msra.mxu0 0.0
    %75 = vmatprep.subr.mxu0 0.0
    %76 = vmatpush1.msra.mxu0 0.0
    %77 = vmatprep.subr.mxu0 0.0
    %78 = vmatpush1.msra.mxu0 0.0
    %79 = vmatprep.subr.mxu0 0.0
    %80 = vmatpush1.msra.mxu0 0.0
    %81 = vmatprep.subr.mxu0 0.0
    %82 = vmatpush1.msra.mxu0 0.0
    %83 = vmatprep.subr.mxu0 0.0
    %84 = vmatpush1.msra.mxu0 0.0
    %85 = vmatprep.subr.mxu0 0.0
    %86 = vmatpush1.msra.mxu0 0.0
    %87 = vmatprep.subr.mxu0 0.0
    %88 = vmatpush1.msra.mxu0 0.0
    %89 = vmatprep.subr.mxu0 0.0
    %90 = vmatpush1.msra.mxu0 0.0
    %91 = vmatprep.subr.mxu0 0.0
    %92 = vmatpush1.msra.mxu0 0.0
    %93 = vmatprep.subr.mxu0 0.0
    %94 = vmatpush1.msra.mxu0 0.0
    %95 = vmatprep.subr.mxu0 0.0
    %96 = vmatpush1.msra.mxu0 0.0
    %97 = vmatprep.subr.mxu0 0.0
    %98 = vmatpush1.msra.mxu0 0.0
    %99 = vmatprep.subr.mxu0 0.0
    %100 = vmatpush1.msra.mxu0 0.0
    %101 = vmatprep.subr.mxu0 0.0
    %102 = vmatpush1.msra.mxu0 0.0
    %103 = vmatprep.mubr.f32.mxu0 0.0
    %104 = vmatmul.mubr.f32.gmra.mrb[0].mxu0 %v15
    %v105 = vpop.f32.mrb[0].mxu0
    %v106 = vadd.f32 %v37, %v105
    %v107 = vpop.f32.mrb[0].mxu0
    %108 = vdwg.mxu0
    %v109 = vsub.f32 0.0, %v106
    %v110 = vmul.f32 %v109, 1.442695
    %v111 = vpow.pop %v110
    %v112 = vadd.f32 %v111, 1.0
    %v113 = vrcp.pop %v112
    %v114 = vmul.f32 1.0, %v113
    %vm115 = vcmask 517120
    %116 = vst.msk [vmem:[#allocation2] sm:$0x3] %vm115, %v114
    // Predicated region
    $region14: #{encoders_intrinsic_forward.15} parent=1 // pred_check
      _
    $region15: #{encoders_intrinsic_forward.15} parent=1 // pred_check_branch
      %118 = sbr.rel (0) target = $region17
    $region16: #{encoders_intrinsic_forward.15} parent=1 // pred_region
      %s120 = ssub.s32 32, 32
      %121 = vsyncadd [#allocation3], %s120
      %s123 = sshll.u32 [#allocation2], 4
      %s124 = int_to_ptr.vmem [resolvable:$true] %s123
      %126 = dma.vmem_to_hbm [thread:$0]  %s124, 32, %s3, [#allocation3]
    $region17: #{encoders_intrinsic_forward.15} parent=1 // pred_fallthru
      _
    // Predicated region
    $region18: #{encoders_intrinsic_forward.15} parent=1 // pred_check
      _
    $region19: #{encoders_intrinsic_forward.15} parent=1 // pred_check_branch
      %128 = sbr.rel (0) target = $region21
    $region20: #{encoders_intrinsic_forward.15} parent=1 // pred_region
      %129 = dma.done [#allocation3], 32
    $region21: #{encoders_intrinsic_forward.15} parent=1 // pred_fallthru
      _
    %130 = vsyncpa [#allocation3], 1

</llo_original>
